<compile_context>
chip_gen: v6e
topology: v6e:2x2x1
jax: 0.10.0
libtpu: 0.0.40
codegen_flags: <defaults>
</compile_context>

<pallas_src>
import functools
import math

import jax
import jax.numpy as jnp
from jax.experimental import pallas as pl
from jax.experimental.pallas import tpu as pltpu


# ------------------------------ helpers --------------------------------------

def _pick_tile(dim, candidates):
    """Largest candidate tile dividing `dim`, else the full dim (legal block)."""
    for c in candidates:
        if dim % c == 0:
            return c
    return dim


# -------------------- fused matmul (+bias, +act, +res+LN) --------------------

def _fused_matmul_kernel(*refs, activation, fuse_res_ln, eps):
    if fuse_res_ln:
        x_ref, w_ref, b_ref, res_ref, g_ref, beta_ref, o_ref, acc_ref = refs
    else:
        x_ref, w_ref, b_ref, o_ref, acc_ref = refs

    k = pl.program_id(2)

    @pl.when(k == 0)
    def _():
        acc_ref[...] = jnp.zeros_like(acc_ref)

    # bf16 x bf16 -> f32 accumulation on the MXU.
    acc_ref[...] += jnp.dot(x_ref[...], w_ref[...],
                            preferred_element_type=jnp.float32)

    @pl.when(k == pl.num_programs(2) - 1)
    def _():
        y = acc_ref[...] + b_ref[...].astype(jnp.float32)
        if activation == "gelu":
            # tanh-approximate GELU; epilogue math kept in f32 (v5e has no bf16 VPU/EUP)
            y = 0.5 * y * (1.0 + jnp.tanh(
                0.7978845608028654 * (y + 0.044715 * y * y * y)))
        elif activation == "tanh":
            y = jnp.tanh(y)
        if fuse_res_ln:
            y = y + res_ref[...].astype(jnp.float32)
            mean = jnp.mean(y, axis=-1, keepdims=True)
            var = jnp.mean(jnp.square(y - mean), axis=-1, keepdims=True)
            y = (y - mean) * jax.lax.rsqrt(var + eps)
            y = (y * g_ref[...].astype(jnp.float32)
                 + beta_ref[...].astype(jnp.float32))
        o_ref[...] = y.astype(o_ref.dtype)


def fused_linear(x, w, b, *, activation="none", residual=None, ln_params=None,
                 out_dtype=jnp.bfloat16, eps=1e-12):
    """y = act(x @ w + b); optionally y = LayerNorm(y + residual).

    x: [M, K] bf16, w: [K, N] bf16, b: [N] f32.  Tiled/pipelined over
    (M/tm, N/tn, K/tk) with an f32 VMEM accumulator.  When residual+LN is fused
    the N axis is kept un-tiled (tn = N) so the LN row reduction sees the full
    feature dimension.
    """
    M, K = x.shape
    Kw, N = w.shape
    assert K == Kw
    fuse_res_ln = residual is not None
    if fuse_res_ln:
        assert ln_params is not None and residual.shape == (M, N)

    tm = _pick_tile(M, (128, 256))
    tk = _pick_tile(K, (512, 256, 128))
    tn = N if fuse_res_ln else _pick_tile(N, (512, 256, 128))
    grid = (M // tm, N // tn, K // tk)

    x_spec = pl.BlockSpec((tm, tk), lambda i, j, k: (i, k))
    w_spec = pl.BlockSpec((tk, tn), lambda i, j, k: (k, j))
    b_spec = pl.BlockSpec((1, tn), lambda i, j, k: (0, j))
    o_spec = pl.BlockSpec((tm, tn), lambda i, j, k: (i, j))

    in_specs = [x_spec, w_spec, b_spec]
    operands = [x, w, b.reshape(1, N)]
    if fuse_res_ln:
        gamma, beta = ln_params
        in_specs += [pl.BlockSpec((tm, tn), lambda i, j, k: (i, j)),
                     pl.BlockSpec((1, tn), lambda i, j, k: (0, j)),
                     pl.BlockSpec((1, tn), lambda i, j, k: (0, j))]
        operands += [residual, gamma.reshape(1, N), beta.reshape(1, N)]

    flops = 2 * M * N * K
    transcendentals = M * N if activation != "none" else 0
    bytes_accessed = int(
        x.size * x.dtype.itemsize + w.size * w.dtype.itemsize
        + M * N * jnp.dtype(out_dtype).itemsize
        + (residual.size * residual.dtype.itemsize if fuse_res_ln else 0))

    return pl.pallas_call(
        functools.partial(_fused_matmul_kernel, activation=activation,
                          fuse_res_ln=fuse_res_ln, eps=eps),
        out_shape=jax.ShapeDtypeStruct((M, N), out_dtype),
        grid=grid,
        in_specs=in_specs,
        out_specs=o_spec,
        scratch_shapes=[pltpu.VMEM((tm, tn), jnp.float32)],
        compiler_params=pltpu.CompilerParams(
            dimension_semantics=("parallel", "parallel", "arbitrary")),
        cost_estimate=pl.CostEstimate(flops=flops,
                                      transcendentals=transcendentals,
                                      bytes_accessed=bytes_accessed),
    )(*operands)


# --------------------------- pure LayerNorm (embeddings) ----------------------

def _layernorm_kernel(x_ref, g_ref, b_ref, o_ref, *, eps):
    x = x_ref[...].astype(jnp.float32)
    mean = jnp.mean(x, axis=-1, keepdims=True)
    var = jnp.mean(jnp.square(x - mean), axis=-1, keepdims=True)
    y = (x - mean) * jax.lax.rsqrt(var + eps)
    o_ref[...] = (y * g_ref[...].astype(jnp.float32)
                  + b_ref[...].astype(jnp.float32)).astype(o_ref.dtype)


def layernorm(x, gamma, beta, *, eps=1e-12, out_dtype=jnp.bfloat16):
    M, H = x.shape
    tm = _pick_tile(M, (512, 256, 128))
    return pl.pallas_call(
        functools.partial(_layernorm_kernel, eps=eps),
        out_shape=jax.ShapeDtypeStruct((M, H), out_dtype),
        grid=(M // tm,),
        in_specs=[pl.BlockSpec((tm, H), lambda i: (i, 0)),
                  pl.BlockSpec((1, H), lambda i: (0, 0)),
                  pl.BlockSpec((1, H), lambda i: (0, 0))],
        out_specs=pl.BlockSpec((tm, H), lambda i: (i, 0)),
        compiler_params=pltpu.CompilerParams(dimension_semantics=("parallel",)),
    )(x, gamma.reshape(1, H), beta.reshape(1, H))


# ------------------------------ attention ------------------------------------

def _attention_kernel(q_ref, k_ref, v_ref, o_ref, *, scale):
    q = q_ref[...]                      # [S, Dh] bf16
    k = k_ref[...]                      # [S, Dh] bf16
    v = v_ref[...]                      # [S, Dh] bf16
    # scores = q @ k^T on the MXU (bf16 in, f32 accumulate); contract head_dim.
    s = jax.lax.dot_general(q, k, (((1,), (1,)), ((), ())),
                            preferred_element_type=jnp.float32) * scale
    m = jnp.max(s, axis=-1, keepdims=True)            # softmax stats in f32
    p = jnp.exp(s - m)
    denom = jnp.sum(p, axis=-1, keepdims=True)
    p = p * pl.reciprocal(denom, approx=True)          # EUP reciprocal + vmul
    o = jnp.dot(p.astype(v.dtype), v, preferred_element_type=jnp.float32)
    o_ref[...] = o.astype(o_ref.dtype)


def attention_from_qkv(qkv, *, batch, seq, n_heads):
    """qkv: [B*S, 3H] (columns = q|k|v, heads contiguous) -> context [B*S, H].

    Grid iterates (batch, head); Q/K/V tiles are sliced directly out of the QKV
    slab by the index_maps and the context tile is written lane-dense into the
    [B*S, H] output, so no plain-JAX split_heads / transpose passes are needed.
    """
    M, three_h = qkv.shape
    H = three_h // 3
    Dh = H // n_heads
    scale = 1.0 / math.sqrt(Dh)

    q_spec = pl.BlockSpec((seq, Dh), lambda b, h: (b, h))
    k_spec = pl.BlockSpec((seq, Dh), lambda b, h: (b, n_heads + h))
    v_spec = pl.BlockSpec((seq, Dh), lambda b, h: (b, 2 * n_heads + h))
    o_spec = pl.BlockSpec((seq, Dh), lambda b, h: (b, h))

    flops = 4 * batch * n_heads * seq * seq * Dh
    bytes_accessed = int(qkv.size * qkv.dtype.itemsize
                         + M * H * qkv.dtype.itemsize)

    return pl.pallas_call(
        functools.partial(_attention_kernel, scale=scale),
        out_shape=jax.ShapeDtypeStruct((M, H), qkv.dtype),
        grid=(batch, n_heads),
        in_specs=[q_spec, k_spec, v_spec],
        out_specs=o_spec,
        compiler_params=pltpu.CompilerParams(
            dimension_semantics=("parallel", "parallel")),
        cost_estimate=pl.CostEstimate(flops=flops,
                                      transcendentals=batch * n_heads * seq * seq,
                                      bytes_accessed=bytes_accessed),
    )(qkv, qkv, qkv)


# --------------------- fused BertPooler + linear_transform --------------------

def _pooler_head_kernel(cls_ref, wp_ref, bp_ref, wl_ref, bl_ref, o_ref):
    pooled = jnp.tanh(
        jnp.dot(cls_ref[...], wp_ref[...], preferred_element_type=jnp.float32)
        + bp_ref[...].astype(jnp.float32))
    out = (jnp.dot(pooled.astype(wl_ref.dtype), wl_ref[...],
                   preferred_element_type=jnp.float32)
           + bl_ref[...].astype(jnp.float32))
    o_ref[...] = out.astype(o_ref.dtype)


def pooler_head(cls, wp, bp, wl, bl, *, out_dtype=jnp.float32):
    """out = (tanh(cls @ wp + bp)) @ wl + bl, one tiny single-tile kernel."""
    B, H = cls.shape
    OUT = wl.shape[1]
    vmem = pl.BlockSpec(memory_space=pltpu.MemorySpace.VMEM)
    return pl.pallas_call(
        _pooler_head_kernel,
        out_shape=jax.ShapeDtypeStruct((B, OUT), out_dtype),
        in_specs=[vmem] * 5,
        out_specs=vmem,
    )(cls, wp, bp.reshape(1, H), wl, bl.reshape(1, OUT))


# --------------------------- parameter construction ---------------------------

def init_params(key, *, vocab_size, max_pos, hidden, n_layers, n_heads,
                intermediate, output_size):
    del n_heads  # layout is head-contiguous inside H; nothing head-specific here
    std = 0.02
    keys = iter(jax.random.split(key, 5 + 4 * n_layers))

    def w(shape):  # bf16 weights, f32 accumulation happens inside the kernels
        return (std * jax.random.normal(next(keys), shape, jnp.float32)
                ).astype(jnp.bfloat16)

    def zeros(n):
        return jnp.zeros((n,), jnp.float32)

    def ones(n):
        return jnp.ones((n,), jnp.float32)

    params = {
        "word_emb": w((vocab_size, hidden)),
        "pos_emb": w((max_pos, hidden)),
        "type_emb": w((2, hidden)),
        "emb_ln_g": ones(hidden), "emb_ln_b": zeros(hidden),
        "layers": [],
        "pooler_w": w((hidden, hidden)), "pooler_b": zeros(hidden),
        # linear_transform: Linear(hidden_size, encoder_output_size, bias=True)
        "lin_w": w((hidden, output_size)), "lin_b": zeros(output_size),
    }
    for _ in range(n_layers):
        params["layers"].append({
            # fused Q|K|V projection: one [H, 3H] matmul instead of three [H, H]
            "w_qkv": w((hidden, 3 * hidden)), "b_qkv": zeros(3 * hidden),
            "wo": w((hidden, hidden)), "bo": zeros(hidden),
            "ln1_g": ones(hidden), "ln1_b": zeros(hidden),
            "w1": w((hidden, intermediate)), "b1": zeros(intermediate),
            "w2": w((intermediate, hidden)), "b2": zeros(hidden),
            "ln2_g": ones(hidden), "ln2_b": zeros(hidden),
        })
    return params


# ------------------------------- forward pass ---------------------------------

def bert_encoder_forward(params, input_ids, *, n_heads):
    B, S = input_ids.shape
    H = params["word_emb"].shape[1]

    # Embedding gathers stay in plain JAX (glue); token_type_ids are implicitly
    # zero, matching the reference forward(input_ids) call.
    emb = (params["word_emb"][input_ids].astype(jnp.float32)
           + params["pos_emb"][:S][None, :, :].astype(jnp.float32)
           + params["type_emb"][0][None, None, :].astype(jnp.float32))
    x = layernorm(emb.reshape(B * S, H).astype(jnp.bfloat16),
                  params["emb_ln_g"], params["emb_ln_b"])            # [B*S, H] bf16

    for layer in params["layers"]:
        # Fused QKV projection: [B*S, H] @ [H, 3H] + b, single pallas_call.
        qkv = fused_linear(x, layer["w_qkv"], layer["b_qkv"])
        # Per-(batch, head) attention, lane-dense [B*S, H] context output.
        ctx = attention_from_qkv(qkv, batch=B, seq=S, n_heads=n_heads)
        # Attention output projection with residual-add + LayerNorm epilogue.
        x = fused_linear(ctx, layer["wo"], layer["bo"],
                         residual=x, ln_params=(layer["ln1_g"], layer["ln1_b"]))
        # FFN: dense + GELU fused, then dense + residual + LayerNorm fused.
        h = fused_linear(x, layer["w1"], layer["b1"], activation="gelu")
        x = fused_linear(h, layer["w2"], layer["b2"],
                         residual=x, ln_params=(layer["ln2_g"], layer["ln2_b"]))

    # BertPooler ([CLS] -> dense -> tanh) fused with linear_transform.
    cls = x.reshape(B, S, H)[:, 0, :]                               # [B, H]
    out = pooler_head(cls, params["pooler_w"], params["pooler_b"],
                      params["lin_w"], params["lin_b"])             # [B, OUT] f32
    # self.layer_normalization exists in __init__ but is NOT applied in forward().
    return out


# ----------------------------------- main --------------------------------------

if __name__ == "__main__":
    # Small config, but 128-aligned so the tiled kernels exercise real (8,128)
    # friendly blocks (head_dim = 128 -> lane-dense attention tiles).
    B, S = 2, 128
    HIDDEN = 256
    N_HEADS = 2
    INTERMEDIATE = 512
    OUT = 128                # args.encoder_output_size
    N_LAYERS = 2
    VOCAB = 128
    MAX_POS = 512

    key = jax.random.PRNGKey(0)
    k_params, k_ids = jax.random.split(key)
    params = init_params(k_params, vocab_size=VOCAB, max_pos=MAX_POS,
                         hidden=HIDDEN, n_layers=N_LAYERS, n_heads=N_HEADS,
                         intermediate=INTERMEDIATE, output_size=OUT)
    input_ids = jax.random.randint(k_ids, (B, S), 0, VOCAB, dtype=jnp.int32)

    forward = jax.jit(functools.partial(bert_encoder_forward, n_heads=N_HEADS))
    out = jax.block_until_ready(forward(params, input_ids))

    assert out.shape == (B, OUT), out.shape
    assert bool(jnp.all(jnp.isfinite(out)))
    print("KERNEL_OK")
</pallas_src>

<mosaic_0001>
module attributes {stable_mosaic.version = 11 : i64} {
  func.func @_fused_matmul_kernel(%arg0: i32, %arg1: i32, %arg2: i32, %arg3: memref<128x256xbf16, #tpu.memory_space<vmem>>, %arg4: memref<256x256xbf16, #tpu.memory_space<vmem>>, %arg5: memref<1x256xf32, #tpu.memory_space<vmem>>, %arg6: memref<128x256xbf16, #tpu.memory_space<vmem>>, %arg7: memref<128x256xf32, #tpu.memory_space<vmem>>) attributes {dimension_semantics = [#tpu.dimension_semantics<parallel>, #tpu.dimension_semantics<parallel>, #tpu.dimension_semantics<arbitrary>], iteration_bounds = array<i64: 2, 3, 1>, scalar_prefetch = 0 : i64, scratch_operands = 1 : i64, tpu.core_type = #tpu.core_type<tc>, window_params = [{transform_indices = @transform_0, window_bounds = array<i64: 128, 256>}, {transform_indices = @transform_1, window_bounds = array<i64: 256, 256>}, {transform_indices = @transform_2, window_bounds = array<i64: 1, 256>}, {transform_indices = @transform_3, window_bounds = array<i64: 128, 256>}]} {
    %c0_i32 = arith.constant 0 : i32
    %0 = arith.cmpi eq, %arg2, %c0_i32 : i32
    %1 = arith.extui %0 : i1 to i32
    %c0_i32_0 = arith.constant 0 : i32
    %2 = arith.cmpi ne, %1, %c0_i32_0 : i32
    scf.if %2 {
      %cst_10 = arith.constant 0.000000e+00 : f32
      %12 = vector.broadcast %cst_10 : f32 to vector<128x256xf32>
      %c0_11 = arith.constant 0 : index
      %c0_12 = arith.constant 0 : index
      %13 = vector.load %arg7[%c0_11, %c0_12] : memref<128x256xf32, #tpu.memory_space<vmem>>, vector<128x256xf32>
      tpu.vector_store %arg7[%c0_11, %c0_12], %12 {strides = array<i32>} : memref<128x256xf32, #tpu.memory_space<vmem>>, vector<128x256xf32>,
    } else {
    }
    %c0 = arith.constant 0 : index
    %c0_1 = arith.constant 0 : index
    %3 = vector.load %arg7[%c0, %c0_1] : memref<128x256xf32, #tpu.memory_space<vmem>>, vector<128x256xf32>
    %c0_2 = arith.constant 0 : index
    %c0_3 = arith.constant 0 : index
    %4 = vector.load %arg3[%c0_2, %c0_3] : memref<128x256xbf16, #tpu.memory_space<vmem>>, vector<128x256xbf16>
    %c0_4 = arith.constant 0 : index
    %c0_5 = arith.constant 0 : index
    %5 = vector.load %arg4[%c0_4, %c0_5] : memref<256x256xbf16, #tpu.memory_space<vmem>>, vector<256x256xbf16>
    %cst = arith.constant dense<0.000000e+00> : vector<128x256xf32>
    %6 = tpu.matmul %4, %5, %cst {dimension_numbers = #tpu.dot_dimension_numbers<[1], [0], [0], [1], [0, 0, 1, 1], [], []>} : vector<128x256xbf16>, vector<256x256xbf16>, vector<128x256xf32> -> vector<128x256xf32>
    %7 = arith.addf %3, %6 : vector<128x256xf32>
    %c0_6 = arith.constant 0 : index
    %c0_7 = arith.constant 0 : index
    %8 = vector.load %arg7[%c0_6, %c0_7] : memref<128x256xf32, #tpu.memory_space<vmem>>, vector<128x256xf32>
    tpu.vector_store %arg7[%c0_6, %c0_7], %7 {strides = array<i32>} : memref<128x256xf32, #tpu.memory_space<vmem>>, vector<128x256xf32>,
    %c0_i32_8 = arith.constant 0 : i32
    %9 = arith.cmpi eq, %arg2, %c0_i32_8 : i32
    %10 = arith.extui %9 : i1 to i32
    %c0_i32_9 = arith.constant 0 : i32
    %11 = arith.cmpi ne, %10, %c0_i32_9 : i32
    scf.if %11 {
      %c0_10 = arith.constant 0 : index
      %c0_11 = arith.constant 0 : index
      %12 = vector.load %arg7[%c0_10, %c0_11] : memref<128x256xf32, #tpu.memory_space<vmem>>, vector<128x256xf32>
      %c0_12 = arith.constant 0 : index
      %c0_13 = arith.constant 0 : index
      %13 = vector.load %arg5[%c0_12, %c0_13] : memref<1x256xf32, #tpu.memory_space<vmem>>, vector<1x256xf32>
      %14 = vector.broadcast %13 : vector<1x256xf32> to vector<128x256xf32>
      %15 = arith.addf %12, %14 : vector<128x256xf32>
      %16 = arith.truncf %15 : vector<128x256xf32> to vector<128x256xbf16>
      %c0_14 = arith.constant 0 : index
      %c0_15 = arith.constant 0 : index
      %17 = vector.load %arg6[%c0_14, %c0_15] : memref<128x256xbf16, #tpu.memory_space<vmem>>, vector<128x256xbf16>
      tpu.vector_store %arg6[%c0_14, %c0_15], %16 {strides = array<i32>} : memref<128x256xbf16, #tpu.memory_space<vmem>>, vector<128x256xbf16>,
    } else {
    }
    return
  }
  func.func @transform_0(%arg0: i32, %arg1: i32, %arg2: i32) -> (i32, i32) {
    %c0_i32 = arith.constant 0 : i32
    return %arg0, %arg2 : i32, i32
  }
  func.func @transform_1(%arg0: i32, %arg1: i32, %arg2: i32) -> (i32, i32) {
    %c0_i32 = arith.constant 0 : i32
    return %arg2, %arg1 : i32, i32
  }
  func.func @transform_2(%arg0: i32, %arg1: i32, %arg2: i32) -> (i32, i32) {
    %c0_i32 = arith.constant 0 : i32
    %c0_i32_0 = arith.constant 0 : i32
    return %c0_i32, %arg1 : i32, i32
  }
  func.func @transform_3(%arg0: i32, %arg1: i32, %arg2: i32) -> (i32, i32) {
    %c0_i32 = arith.constant 0 : i32
    return %arg0, %arg1 : i32, i32
  }
}

module attributes {stable_mosaic.version = 11 : i64} {
  func.func @_layernorm_kernel(%arg0: i32, %arg1: memref<256x256xbf16, #tpu.memory_space<vmem>>, %arg2: memref<1x256xf32, #tpu.memory_space<vmem>>, %arg3: memref<1x256xf32, #tpu.memory_space<vmem>>, %arg4: memref<256x256xbf16, #tpu.memory_space<vmem>>) attributes {dimension_semantics = [#tpu.dimension_semantics<parallel>], iteration_bounds = array<i64: 1>, scalar_prefetch = 0 : i64, scratch_operands = 0 : i64, tpu.core_type = #tpu.core_type<tc>, window_params = [{transform_indices = @transform_0, window_bounds = array<i64: 256, 256>}, {pipeline_mode = #tpu.pipeline_mode<synchronous>, transform_indices = @transform_1, window_bounds = array<i64: 1, 256>}, {pipeline_mode = #tpu.pipeline_mode<synchronous>, transform_indices = @transform_2, window_bounds = array<i64: 1, 256>}, {transform_indices = @transform_3, window_bounds = array<i64: 256, 256>}]} {
    %c0 = arith.constant 0 : index
    %c0_0 = arith.constant 0 : index
    %0 = vector.load %arg1[%c0, %c0_0] : memref<256x256xbf16, #tpu.memory_space<vmem>>, vector<256x256xbf16>
    %1 = arith.extf %0 : vector<256x256xbf16> to vector<256x256xf32>
    %cst = arith.constant dense<0.000000e+00> : vector<256xf32>
    %2 = vector.multi_reduction <add>, %1, %cst [1] : vector<256x256xf32> to vector<256xf32>
    %3 = vector.shape_cast %2 : vector<256xf32> to vector<256x1xf32>
    %cst_1 = arith.constant 2.560000e+02 : f32
    %4 = vector.broadcast %cst_1 : f32 to vector<256x1xf32>
    %5 = arith.divf %3, %4 : vector<256x1xf32>
    %6 = vector.broadcast %5 : vector<256x1xf32> to vector<256x256xf32>
    %7 = arith.subf %1, %6 : vector<256x256xf32>
    %8 = arith.mulf %7, %7 : vector<256x256xf32>
    %cst_2 = arith.constant dense<0.000000e+00> : vector<256xf32>
    %9 = vector.multi_reduction <add>, %8, %cst_2 [1] : vector<256x256xf32> to vector<256xf32>
    %10 = vector.shape_cast %9 : vector<256xf32> to vector<256x1xf32>
    %cst_3 = arith.constant 2.560000e+02 : f32
    %11 = vector.broadcast %cst_3 : f32 to vector<256x1xf32>
    %12 = arith.divf %10, %11 : vector<256x1xf32>
    %13 = vector.broadcast %5 : vector<256x1xf32> to vector<256x256xf32>
    %14 = arith.subf %1, %13 : vector<256x256xf32>
    %cst_4 = arith.constant 9.99999996E-13 : f32
    %15 = vector.broadcast %cst_4 : f32 to vector<256x1xf32>
    %16 = arith.addf %12, %15 : vector<256x1xf32>
    %17 = math.rsqrt %16 : vector<256x1xf32>
    %18 = vector.broadcast %17 : vector<256x1xf32> to vector<256x256xf32>
    %19 = arith.mulf %14, %18 : vector<256x256xf32>
    %c0_5 = arith.constant 0 : index
    %c0_6 = arith.constant 0 : index
    %20 = vector.load %arg2[%c0_5, %c0_6] : memref<1x256xf32, #tpu.memory_space<vmem>>, vector<1x256xf32>
    %21 = vector.broadcast %20 : vector<1x256xf32> to vector<256x256xf32>
    %22 = arith.mulf %19, %21 : vector<256x256xf32>
    %c0_7 = arith.constant 0 : index
    %c0_8 = arith.constant 0 : index
    %23 = vector.load %arg3[%c0_7, %c0_8] : memref<1x256xf32, #tpu.memory_space<vmem>>, vector<1x256xf32>
    %24 = vector.broadcast %23 : vector<1x256xf32> to vector<256x256xf32>
    %25 = arith.addf %22, %24 : vector<256x256xf32>
    %26 = arith.truncf %25 : vector<256x256xf32> to vector<256x256xbf16>
    %c0_9 = arith.constant 0 : index
    %c0_10 = arith.constant 0 : index
    %27 = vector.load %arg4[%c0_9, %c0_10] : memref<256x256xbf16, #tpu.memory_space<vmem>>, vector<256x256xbf16>
    tpu.vector_store %arg4[%c0_9, %c0_10], %26 {strides = array<i32>} : memref<256x256xbf16, #tpu.memory_space<vmem>>, vector<256x256xbf16>,
    return
  }
  func.func @transform_0(%arg0: i32) -> (i32, i32) {
    %c0_i32 = arith.constant 0 : i32
    %c0_i32_0 = arith.constant 0 : i32
    return %arg0, %c0_i32 : i32, i32
  }
  func.func @transform_1(%arg0: i32) -> (i32, i32) {
    %c0_i32 = arith.constant 0 : i32
    %c0_i32_0 = arith.constant 0 : i32
    %c0_i32_1 = arith.constant 0 : i32
    return %c0_i32, %c0_i32_0 : i32, i32
  }
  func.func @transform_2(%arg0: i32) -> (i32, i32) {
    %c0_i32 = arith.constant 0 : i32
    %c0_i32_0 = arith.constant 0 : i32
    %c0_i32_1 = arith.constant 0 : i32
    return %c0_i32, %c0_i32_0 : i32, i32
  }
  func.func @transform_3(%arg0: i32) -> (i32, i32) {
    %c0_i32 = arith.constant 0 : i32
    %c0_i32_0 = arith.constant 0 : i32
    return %arg0, %c0_i32 : i32, i32
  }
}

module attributes {stable_mosaic.version = 11 : i64} {
  func.func @_attention_kernel(%arg0: i32, %arg1: i32, %arg2: memref<128x128xbf16, #tpu.memory_space<vmem>>, %arg3: memref<128x128xbf16, #tpu.memory_space<vmem>>, %arg4: memref<128x128xbf16, #tpu.memory_space<vmem>>, %arg5: memref<128x128xbf16, #tpu.memory_space<vmem>>) attributes {dimension_semantics = [#tpu.dimension_semantics<parallel>, #tpu.dimension_semantics<parallel>], iteration_bounds = array<i64: 2, 2>, scalar_prefetch = 0 : i64, scratch_operands = 0 : i64, tpu.core_type = #tpu.core_type<tc>, window_params = [{transform_indices = @transform_0, window_bounds = array<i64: 128, 128>}, {transform_indices = @transform_1, window_bounds = array<i64: 128, 128>}, {transform_indices = @transform_2, window_bounds = array<i64: 128, 128>}, {transform_indices = @transform_3, window_bounds = array<i64: 128, 128>}]} {
    %c0 = arith.constant 0 : index
    %c0_0 = arith.constant 0 : index
    %0 = vector.load %arg2[%c0, %c0_0] : memref<128x128xbf16, #tpu.memory_space<vmem>>, vector<128x128xbf16>
    %c0_1 = arith.constant 0 : index
    %c0_2 = arith.constant 0 : index
    %1 = vector.load %arg3[%c0_1, %c0_2] : memref<128x128xbf16, #tpu.memory_space<vmem>>, vector<128x128xbf16>
    %c0_3 = arith.constant 0 : index
    %c0_4 = arith.constant 0 : index
    %2 = vector.load %arg4[%c0_3, %c0_4] : memref<128x128xbf16, #tpu.memory_space<vmem>>, vector<128x128xbf16>
    %cst = arith.constant dense<0.000000e+00> : vector<128x128xf32>
    %3 = tpu.matmul %0, %1, %cst {dimension_numbers = #tpu.dot_dimension_numbers<[1], [1], [0], [0], [0, 0, 1, 0], [], []>} : vector<128x128xbf16>, vector<128x128xbf16>, vector<128x128xf32> -> vector<128x128xf32>
    %cst_5 = arith.constant 0.0883883461 : f32
    %4 = vector.broadcast %cst_5 : f32 to vector<128x128xf32>
    %5 = arith.mulf %3, %4 : vector<128x128xf32>
    %cst_6 = arith.constant dense<0xFF800000> : vector<128xf32>
    %6 = vector.multi_reduction <maximumf>, %5, %cst_6 [1] : vector<128x128xf32> to vector<128xf32>
    %7 = vector.shape_cast %6 : vector<128xf32> to vector<128x1xf32>
    %8 = vector.broadcast %7 : vector<128x1xf32> to vector<128x128xf32>
    %9 = arith.subf %5, %8 : vector<128x128xf32>
    %10 = math.exp %9 : vector<128x128xf32>
    %cst_7 = arith.constant dense<0.000000e+00> : vector<128xf32>
    %11 = vector.multi_reduction <add>, %10, %cst_7 [1] : vector<128x128xf32> to vector<128xf32>
    %12 = vector.shape_cast %11 : vector<128xf32> to vector<128x1xf32>
    %13 = tpu.reciprocal %12 {approx = true} : vector<128x1xf32> -> vector<128x1xf32>
    %14 = vector.broadcast %13 : vector<128x1xf32> to vector<128x128xf32>
    %15 = arith.mulf %10, %14 : vector<128x128xf32>
    %16 = arith.truncf %15 : vector<128x128xf32> to vector<128x128xbf16>
    %cst_8 = arith.constant dense<0.000000e+00> : vector<128x128xf32>
    %17 = tpu.matmul %16, %2, %cst_8 {dimension_numbers = #tpu.dot_dimension_numbers<[1], [0], [0], [1], [0, 0, 1, 1], [], []>} : vector<128x128xbf16>, vector<128x128xbf16>, vector<128x128xf32> -> vector<128x128xf32>
    %18 = arith.truncf %17 : vector<128x128xf32> to vector<128x128xbf16>
    %c0_9 = arith.constant 0 : index
    %c0_10 = arith.constant 0 : index
    %19 = vector.load %arg5[%c0_9, %c0_10] : memref<128x128xbf16, #tpu.memory_space<vmem>>, vector<128x128xbf16>
    tpu.vector_store %arg5[%c0_9, %c0_10], %18 {strides = array<i32>} : memref<128x128xbf16, #tpu.memory_space<vmem>>, vector<128x128xbf16>,
    return
  }
  func.func @transform_0(%arg0: i32, %arg1: i32) -> (i32, i32) {
    %c0_i32 = arith.constant 0 : i32
    return %arg0, %arg1 : i32, i32
  }
  func.func @transform_1(%arg0: i32, %arg1: i32) -> (i32, i32) {
    %c2_i32 = arith.constant 2 : i32
    %0 = arith.addi %c2_i32, %arg1 : i32
    %c0_i32 = arith.constant 0 : i32
    return %arg0, %0 : i32, i32
  }
  func.func @transform_2(%arg0: i32, %arg1: i32) -> (i32, i32) {
    %c4_i32 = arith.constant 4 : i32
    %0 = arith.addi %c4_i32, %arg1 : i32
    %c0_i32 = arith.constant 0 : i32
    return %arg0, %0 : i32, i32
  }
  func.func @transform_3(%arg0: i32, %arg1: i32) -> (i32, i32) {
    %c0_i32 = arith.constant 0 : i32
    return %arg0, %arg1 : i32, i32
  }
}

module attributes {stable_mosaic.version = 11 : i64} {
  func.func @_fused_matmul_kernel(%arg0: i32, %arg1: i32, %arg2: i32, %arg3: memref<128x256xbf16, #tpu.memory_space<vmem>>, %arg4: memref<256x256xbf16, #tpu.memory_space<vmem>>, %arg5: memref<1x256xf32, #tpu.memory_space<vmem>>, %arg6: memref<128x256xbf16, #tpu.memory_space<vmem>>, %arg7: memref<1x256xf32, #tpu.memory_space<vmem>>, %arg8: memref<1x256xf32, #tpu.memory_space<vmem>>, %arg9: memref<128x256xbf16, #tpu.memory_space<vmem>>, %arg10: memref<128x256xf32, #tpu.memory_space<vmem>>) attributes {dimension_semantics = [#tpu.dimension_semantics<parallel>, #tpu.dimension_semantics<parallel>, #tpu.dimension_semantics<arbitrary>], iteration_bounds = array<i64: 2, 1, 1>, scalar_prefetch = 0 : i64, scratch_operands = 1 : i64, tpu.core_type = #tpu.core_type<tc>, window_params = [{transform_indices = @transform_0, window_bounds = array<i64: 128, 256>}, {transform_indices = @transform_1, window_bounds = array<i64: 256, 256>}, {transform_indices = @transform_2, window_bounds = array<i64: 1, 256>}, {transform_indices = @transform_3, window_bounds = array<i64: 128, 256>}, {transform_indices = @transform_4, window_bounds = array<i64: 1, 256>}, {transform_indices = @transform_5, window_bounds = array<i64: 1, 256>}, {transform_indices = @transform_6, window_bounds = array<i64: 128, 256>}]} {
    %c0_i32 = arith.constant 0 : i32
    %0 = arith.cmpi eq, %arg2, %c0_i32 : i32
    %1 = arith.extui %0 : i1 to i32
    %c0_i32_0 = arith.constant 0 : i32
    %2 = arith.cmpi ne, %1, %c0_i32_0 : i32
    scf.if %2 {
      %cst_10 = arith.constant 0.000000e+00 : f32
      %12 = vector.broadcast %cst_10 : f32 to vector<128x256xf32>
      %c0_11 = arith.constant 0 : index
      %c0_12 = arith.constant 0 : index
      %13 = vector.load %arg10[%c0_11, %c0_12] : memref<128x256xf32, #tpu.memory_space<vmem>>, vector<128x256xf32>
      tpu.vector_store %arg10[%c0_11, %c0_12], %12 {strides = array<i32>} : memref<128x256xf32, #tpu.memory_space<vmem>>, vector<128x256xf32>,
    } else {
    }
    %c0 = arith.constant 0 : index
    %c0_1 = arith.constant 0 : index
    %3 = vector.load %arg10[%c0, %c0_1] : memref<128x256xf32, #tpu.memory_space<vmem>>, vector<128x256xf32>
    %c0_2 = arith.constant 0 : index
    %c0_3 = arith.constant 0 : index
    %4 = vector.load %arg3[%c0_2, %c0_3] : memref<128x256xbf16, #tpu.memory_space<vmem>>, vector<128x256xbf16>
    %c0_4 = arith.constant 0 : index
    %c0_5 = arith.constant 0 : index
    %5 = vector.load %arg4[%c0_4, %c0_5] : memref<256x256xbf16, #tpu.memory_space<vmem>>, vector<256x256xbf16>
    %cst = arith.constant dense<0.000000e+00> : vector<128x256xf32>
    %6 = tpu.matmul %4, %5, %cst {dimension_numbers = #tpu.dot_dimension_numbers<[1], [0], [0], [1], [0, 0, 1, 1], [], []>} : vector<128x256xbf16>, vector<256x256xbf16>, vector<128x256xf32> -> vector<128x256xf32>
    %7 = arith.addf %3, %6 : vector<128x256xf32>
    %c0_6 = arith.constant 0 : index
    %c0_7 = arith.constant 0 : index
    %8 = vector.load %arg10[%c0_6, %c0_7] : memref<128x256xf32, #tpu.memory_space<vmem>>, vector<128x256xf32>
    tpu.vector_store %arg10[%c0_6, %c0_7], %7 {strides = array<i32>} : memref<128x256xf32, #tpu.memory_space<vmem>>, vector<128x256xf32>,
    %c0_i32_8 = arith.constant 0 : i32
    %9 = arith.cmpi eq, %arg2, %c0_i32_8 : i32
    %10 = arith.extui %9 : i1 to i32
    %c0_i32_9 = arith.constant 0 : i32
    %11 = arith.cmpi ne, %10, %c0_i32_9 : i32
    scf.if %11 {
      %c0_10 = arith.constant 0 : index
      %c0_11 = arith.constant 0 : index
      %12 = vector.load %arg10[%c0_10, %c0_11] : memref<128x256xf32, #tpu.memory_space<vmem>>, vector<128x256xf32>
      %c0_12 = arith.constant 0 : index
      %c0_13 = arith.constant 0 : index
      %13 = vector.load %arg5[%c0_12, %c0_13] : memref<1x256xf32, #tpu.memory_space<vmem>>, vector<1x256xf32>
      %14 = vector.broadcast %13 : vector<1x256xf32> to vector<128x256xf32>
      %15 = arith.addf %12, %14 : vector<128x256xf32>
      %c0_14 = arith.constant 0 : index
      %c0_15 = arith.constant 0 : index
      %16 = vector.load %arg6[%c0_14, %c0_15] : memref<128x256xbf16, #tpu.memory_space<vmem>>, vector<128x256xbf16>
      %17 = arith.extf %16 : vector<128x256xbf16> to vector<128x256xf32>
      %18 = arith.addf %15, %17 : vector<128x256xf32>
      %cst_16 = arith.constant dense<0.000000e+00> : vector<128xf32>
      %19 = vector.multi_reduction <add>, %18, %cst_16 [1] : vector<128x256xf32> to vector<128xf32>
      %20 = vector.shape_cast %19 : vector<128xf32> to vector<128x1xf32>
      %cst_17 = arith.constant 2.560000e+02 : f32
      %21 = vector.broadcast %cst_17 : f32 to vector<128x1xf32>
      %22 = arith.divf %20, %21 : vector<128x1xf32>
      %23 = vector.broadcast %22 : vector<128x1xf32> to vector<128x256xf32>
      %24 = arith.subf %18, %23 : vector<128x256xf32>
      %25 = arith.mulf %24, %24 : vector<128x256xf32>
      %cst_18 = arith.constant dense<0.000000e+00> : vector<128xf32>
      %26 = vector.multi_reduction <add>, %25, %cst_18 [1] : vector<128x256xf32> to vector<128xf32>
      %27 = vector.shape_cast %26 : vector<128xf32> to vector<128x1xf32>
      %cst_19 = arith.constant 2.560000e+02 : f32
      %28 = vector.broadcast %cst_19 : f32 to vector<128x1xf32>
      %29 = arith.divf %27, %28 : vector<128x1xf32>
      %30 = vector.broadcast %22 : vector<128x1xf32> to vector<128x256xf32>
      %31 = arith.subf %18, %30 : vector<128x256xf32>
      %cst_20 = arith.constant 9.99999996E-13 : f32
      %32 = vector.broadcast %cst_20 : f32 to vector<128x1xf32>
      %33 = arith.addf %29, %32 : vector<128x1xf32>
      %34 = math.rsqrt %33 : vector<128x1xf32>
      %35 = vector.broadcast %34 : vector<128x1xf32> to vector<128x256xf32>
      %36 = arith.mulf %31, %35 : vector<128x256xf32>
      %c0_21 = arith.constant 0 : index
      %c0_22 = arith.constant 0 : index
      %37 = vector.load %arg7[%c0_21, %c0_22] : memref<1x256xf32, #tpu.memory_space<vmem>>, vector<1x256xf32>
      %38 = vector.broadcast %37 : vector<1x256xf32> to vector<128x256xf32>
      %39 = arith.mulf %36, %38 : vector<128x256xf32>
      %c0_23 = arith.constant 0 : index
      %c0_24 = arith.constant 0 : index
      %40 = vector.load %arg8[%c0_23, %c0_24] : memref<1x256xf32, #tpu.memory_space<vmem>>, vector<1x256xf32>
      %41 = vector.broadcast %40 : vector<1x256xf32> to vector<128x256xf32>
      %42 = arith.addf %39, %41 : vector<128x256xf32>
      %43 = arith.truncf %42 : vector<128x256xf32> to vector<128x256xbf16>
      %c0_25 = arith.constant 0 : index
      %c0_26 = arith.constant 0 : index
      %44 = vector.load %arg9[%c0_25, %c0_26] : memref<128x256xbf16, #tpu.memory_space<vmem>>, vector<128x256xbf16>
      tpu.vector_store %arg9[%c0_25, %c0_26], %43 {strides = array<i32>} : memref<128x256xbf16, #tpu.memory_space<vmem>>, vector<128x256xbf16>,
    } else {
    }
    return
  }
  func.func @transform_0(%arg0: i32, %arg1: i32, %arg2: i32) -> (i32, i32) {
    %c0_i32 = arith.constant 0 : i32
    return %arg0, %arg2 : i32, i32
  }
  func.func @transform_1(%arg0: i32, %arg1: i32, %arg2: i32) -> (i32, i32) {
    %c0_i32 = arith.constant 0 : i32
    return %arg2, %arg1 : i32, i32
  }
  func.func @transform_2(%arg0: i32, %arg1: i32, %arg2: i32) -> (i32, i32) {
    %c0_i32 = arith.constant 0 : i32
    %c0_i32_0 = arith.constant 0 : i32
    return %c0_i32, %arg1 : i32, i32
  }
  func.func @transform_3(%arg0: i32, %arg1: i32, %arg2: i32) -> (i32, i32) {
    %c0_i32 = arith.constant 0 : i32
    return %arg0, %arg1 : i32, i32
  }
  func.func @transform_4(%arg0: i32, %arg1: i32, %arg2: i32) -> (i32, i32) {
    %c0_i32 = arith.constant 0 : i32
    %c0_i32_0 = arith.constant 0 : i32
    return %c0_i32, %arg1 : i32, i32
  }
  func.func @transform_5(%arg0: i32, %arg1: i32, %arg2: i32) -> (i32, i32) {
    %c0_i32 = arith.constant 0 : i32
    %c0_i32_0 = arith.constant 0 : i32
    return %c0_i32, %arg1 : i32, i32
  }
  func.func @transform_6(%arg0: i32, %arg1: i32, %arg2: i32) -> (i32, i32) {
    %c0_i32 = arith.constant 0 : i32
    return %arg0, %arg1 : i32, i32
  }
}

module attributes {stable_mosaic.version = 11 : i64} {
  func.func @_fused_matmul_kernel(%arg0: i32, %arg1: i32, %arg2: i32, %arg3: memref<128x256xbf16, #tpu.memory_space<vmem>>, %arg4: memref<256x512xbf16, #tpu.memory_space<vmem>>, %arg5: memref<1x512xf32, #tpu.memory_space<vmem>>, %arg6: memref<128x512xbf16, #tpu.memory_space<vmem>>, %arg7: memref<128x512xf32, #tpu.memory_space<vmem>>) attributes {dimension_semantics = [#tpu.dimension_semantics<parallel>, #tpu.dimension_semantics<parallel>, #tpu.dimension_semantics<arbitrary>], iteration_bounds = array<i64: 2, 1, 1>, scalar_prefetch = 0 : i64, scratch_operands = 1 : i64, tpu.core_type = #tpu.core_type<tc>, window_params = [{transform_indices = @transform_0, window_bounds = array<i64: 128, 256>}, {transform_indices = @transform_1, window_bounds = array<i64: 256, 512>}, {transform_indices = @transform_2, window_bounds = array<i64: 1, 512>}, {transform_indices = @transform_3, window_bounds = array<i64: 128, 512>}]} {
    %c0_i32 = arith.constant 0 : i32
    %0 = arith.cmpi eq, %arg2, %c0_i32 : i32
    %1 = arith.extui %0 : i1 to i32
    %c0_i32_0 = arith.constant 0 : i32
    %2 = arith.cmpi ne, %1, %c0_i32_0 : i32
    scf.if %2 {
      %cst_10 = arith.constant 0.000000e+00 : f32
      %12 = vector.broadcast %cst_10 : f32 to vector<128x512xf32>
      %c0_11 = arith.constant 0 : index
      %c0_12 = arith.constant 0 : index
      %13 = vector.load %arg7[%c0_11, %c0_12] : memref<128x512xf32, #tpu.memory_space<vmem>>, vector<128x512xf32>
      tpu.vector_store %arg7[%c0_11, %c0_12], %12 {strides = array<i32>} : memref<128x512xf32, #tpu.memory_space<vmem>>, vector<128x512xf32>,
    } else {
    }
    %c0 = arith.constant 0 : index
    %c0_1 = arith.constant 0 : index
    %3 = vector.load %arg7[%c0, %c0_1] : memref<128x512xf32, #tpu.memory_space<vmem>>, vector<128x512xf32>
    %c0_2 = arith.constant 0 : index
    %c0_3 = arith.constant 0 : index
    %4 = vector.load %arg3[%c0_2, %c0_3] : memref<128x256xbf16, #tpu.memory_space<vmem>>, vector<128x256xbf16>
    %c0_4 = arith.constant 0 : index
    %c0_5 = arith.constant 0 : index
    %5 = vector.load %arg4[%c0_4, %c0_5] : memref<256x512xbf16, #tpu.memory_space<vmem>>, vector<256x512xbf16>
    %cst = arith.constant dense<0.000000e+00> : vector<128x512xf32>
    %6 = tpu.matmul %4, %5, %cst {dimension_numbers = #tpu.dot_dimension_numbers<[1], [0], [0], [1], [0, 0, 1, 1], [], []>} : vector<128x256xbf16>, vector<256x512xbf16>, vector<128x512xf32> -> vector<128x512xf32>
    %7 = arith.addf %3, %6 : vector<128x512xf32>
    %c0_6 = arith.constant 0 : index
    %c0_7 = arith.constant 0 : index
    %8 = vector.load %arg7[%c0_6, %c0_7] : memref<128x512xf32, #tpu.memory_space<vmem>>, vector<128x512xf32>
    tpu.vector_store %arg7[%c0_6, %c0_7], %7 {strides = array<i32>} : memref<128x512xf32, #tpu.memory_space<vmem>>, vector<128x512xf32>,
    %c0_i32_8 = arith.constant 0 : i32
    %9 = arith.cmpi eq, %arg2, %c0_i32_8 : i32
    %10 = arith.extui %9 : i1 to i32
    %c0_i32_9 = arith.constant 0 : i32
    %11 = arith.cmpi ne, %10, %c0_i32_9 : i32
    scf.if %11 {
      %c0_10 = arith.constant 0 : index
      %c0_11 = arith.constant 0 : index
      %12 = vector.load %arg7[%c0_10, %c0_11] : memref<128x512xf32, #tpu.memory_space<vmem>>, vector<128x512xf32>
      %c0_12 = arith.constant 0 : index
      %c0_13 = arith.constant 0 : index
      %13 = vector.load %arg5[%c0_12, %c0_13] : memref<1x512xf32, #tpu.memory_space<vmem>>, vector<1x512xf32>
      %14 = vector.broadcast %13 : vector<1x512xf32> to vector<128x512xf32>
      %15 = arith.addf %12, %14 : vector<128x512xf32>
      %cst_14 = arith.constant 5.000000e-01 : f32
      %16 = vector.broadcast %cst_14 : f32 to vector<128x512xf32>
      %17 = arith.mulf %16, %15 : vector<128x512xf32>
      %cst_15 = arith.constant 4.471500e-02 : f32
      %18 = vector.broadcast %cst_15 : f32 to vector<128x512xf32>
      %19 = arith.mulf %18, %15 : vector<128x512xf32>
      %20 = arith.mulf %19, %15 : vector<128x512xf32>
      %21 = arith.mulf %20, %15 : vector<128x512xf32>
      %22 = arith.addf %15, %21 : vector<128x512xf32>
      %cst_16 = arith.constant 0.797884583 : f32
      %23 = vector.broadcast %cst_16 : f32 to vector<128x512xf32>
      %24 = arith.mulf %23, %22 : vector<128x512xf32>
      %25 = math.tanh %24 : vector<128x512xf32>
      %cst_17 = arith.constant 1.000000e+00 : f32
      %26 = vector.broadcast %cst_17 : f32 to vector<128x512xf32>
      %27 = arith.addf %26, %25 : vector<128x512xf32>
      %28 = arith.mulf %17, %27 : vector<128x512xf32>
      %29 = arith.truncf %28 : vector<128x512xf32> to vector<128x512xbf16>
      %c0_18 = arith.constant 0 : index
      %c0_19 = arith.constant 0 : index
      %30 = vector.load %arg6[%c0_18, %c0_19] : memref<128x512xbf16, #tpu.memory_space<vmem>>, vector<128x512xbf16>
      tpu.vector_store %arg6[%c0_18, %c0_19], %29 {strides = array<i32>} : memref<128x512xbf16, #tpu.memory_space<vmem>>, vector<128x512xbf16>,
    } else {
    }
    return
  }
  func.func @transform_0(%arg0: i32, %arg1: i32, %arg2: i32) -> (i32, i32) {
    %c0_i32 = arith.constant 0 : i32
    return %arg0, %arg2 : i32, i32
  }
  func.func @transform_1(%arg0: i32, %arg1: i32, %arg2: i32) -> (i32, i32) {
    %c0_i32 = arith.constant 0 : i32
    return %arg2, %arg1 : i32, i32
  }
  func.func @transform_2(%arg0: i32, %arg1: i32, %arg2: i32) -> (i32, i32) {
    %c0_i32 = arith.constant 0 : i32
    %c0_i32_0 = arith.constant 0 : i32
    return %c0_i32, %arg1 : i32, i32
  }
  func.func @transform_3(%arg0: i32, %arg1: i32, %arg2: i32) -> (i32, i32) {
    %c0_i32 = arith.constant 0 : i32
    return %arg0, %arg1 : i32, i32
  }
}

module attributes {stable_mosaic.version = 11 : i64} {
  func.func @_fused_matmul_kernel(%arg0: i32, %arg1: i32, %arg2: i32, %arg3: memref<128x512xbf16, #tpu.memory_space<vmem>>, %arg4: memref<512x256xbf16, #tpu.memory_space<vmem>>, %arg5: memref<1x256xf32, #tpu.memory_space<vmem>>, %arg6: memref<128x256xbf16, #tpu.memory_space<vmem>>, %arg7: memref<1x256xf32, #tpu.memory_space<vmem>>, %arg8: memref<1x256xf32, #tpu.memory_space<vmem>>, %arg9: memref<128x256xbf16, #tpu.memory_space<vmem>>, %arg10: memref<128x256xf32, #tpu.memory_space<vmem>>) attributes {dimension_semantics = [#tpu.dimension_semantics<parallel>, #tpu.dimension_semantics<parallel>, #tpu.dimension_semantics<arbitrary>], iteration_bounds = array<i64: 2, 1, 1>, scalar_prefetch = 0 : i64, scratch_operands = 1 : i64, tpu.core_type = #tpu.core_type<tc>, window_params = [{transform_indices = @transform_0, window_bounds = array<i64: 128, 512>}, {transform_indices = @transform_1, window_bounds = array<i64: 512, 256>}, {transform_indices = @transform_2, window_bounds = array<i64: 1, 256>}, {transform_indices = @transform_3, window_bounds = array<i64: 128, 256>}, {transform_indices = @transform_4, window_bounds = array<i64: 1, 256>}, {transform_indices = @transform_5, window_bounds = array<i64: 1, 256>}, {transform_indices = @transform_6, window_bounds = array<i64: 128, 256>}]} {
    %c0_i32 = arith.constant 0 : i32
    %0 = arith.cmpi eq, %arg2, %c0_i32 : i32
    %1 = arith.extui %0 : i1 to i32
    %c0_i32_0 = arith.constant 0 : i32
    %2 = arith.cmpi ne, %1, %c0_i32_0 : i32
    scf.if %2 {
      %cst_10 = arith.constant 0.000000e+00 : f32
      %12 = vector.broadcast %cst_10 : f32 to vector<128x256xf32>
      %c0_11 = arith.constant 0 : index
      %c0_12 = arith.constant 0 : index
      %13 = vector.load %arg10[%c0_11, %c0_12] : memref<128x256xf32, #tpu.memory_space<vmem>>, vector<128x256xf32>
      tpu.vector_store %arg10[%c0_11, %c0_12], %12 {strides = array<i32>} : memref<128x256xf32, #tpu.memory_space<vmem>>, vector<128x256xf32>,
    } else {
    }
    %c0 = arith.constant 0 : index
    %c0_1 = arith.constant 0 : index
    %3 = vector.load %arg10[%c0, %c0_1] : memref<128x256xf32, #tpu.memory_space<vmem>>, vector<128x256xf32>
    %c0_2 = arith.constant 0 : index
    %c0_3 = arith.constant 0 : index
    %4 = vector.load %arg3[%c0_2, %c0_3] : memref<128x512xbf16, #tpu.memory_space<vmem>>, vector<128x512xbf16>
    %c0_4 = arith.constant 0 : index
    %c0_5 = arith.constant 0 : index
    %5 = vector.load %arg4[%c0_4, %c0_5] : memref<512x256xbf16, #tpu.memory_space<vmem>>, vector<512x256xbf16>
    %cst = arith.constant dense<0.000000e+00> : vector<128x256xf32>
    %6 = tpu.matmul %4, %5, %cst {dimension_numbers = #tpu.dot_dimension_numbers<[1], [0], [0], [1], [0, 0, 1, 1], [], []>} : vector<128x512xbf16>, vector<512x256xbf16>, vector<128x256xf32> -> vector<128x256xf32>
    %7 = arith.addf %3, %6 : vector<128x256xf32>
    %c0_6 = arith.constant 0 : index
    %c0_7 = arith.constant 0 : index
    %8 = vector.load %arg10[%c0_6, %c0_7] : memref<128x256xf32, #tpu.memory_space<vmem>>, vector<128x256xf32>
    tpu.vector_store %arg10[%c0_6, %c0_7], %7 {strides = array<i32>} : memref<128x256xf32, #tpu.memory_space<vmem>>, vector<128x256xf32>,
    %c0_i32_8 = arith.constant 0 : i32
    %9 = arith.cmpi eq, %arg2, %c0_i32_8 : i32
    %10 = arith.extui %9 : i1 to i32
    %c0_i32_9 = arith.constant 0 : i32
    %11 = arith.cmpi ne, %10, %c0_i32_9 : i32
    scf.if %11 {
      %c0_10 = arith.constant 0 : index
      %c0_11 = arith.constant 0 : index
      %12 = vector.load %arg10[%c0_10, %c0_11] : memref<128x256xf32, #tpu.memory_space<vmem>>, vector<128x256xf32>
      %c0_12 = arith.constant 0 : index
      %c0_13 = arith.constant 0 : index
      %13 = vector.load %arg5[%c0_12, %c0_13] : memref<1x256xf32, #tpu.memory_space<vmem>>, vector<1x256xf32>
      %14 = vector.broadcast %13 : vector<1x256xf32> to vector<128x256xf32>
      %15 = arith.addf %12, %14 : vector<128x256xf32>
      %c0_14 = arith.constant 0 : index
      %c0_15 = arith.constant 0 : index
      %16 = vector.load %arg6[%c0_14, %c0_15] : memref<128x256xbf16, #tpu.memory_space<vmem>>, vector<128x256xbf16>
      %17 = arith.extf %16 : vector<128x256xbf16> to vector<128x256xf32>
      %18 = arith.addf %15, %17 : vector<128x256xf32>
      %cst_16 = arith.constant dense<0.000000e+00> : vector<128xf32>
      %19 = vector.multi_reduction <add>, %18, %cst_16 [1] : vector<128x256xf32> to vector<128xf32>
      %20 = vector.shape_cast %19 : vector<128xf32> to vector<128x1xf32>
      %cst_17 = arith.constant 2.560000e+02 : f32
      %21 = vector.broadcast %cst_17 : f32 to vector<128x1xf32>
      %22 = arith.divf %20, %21 : vector<128x1xf32>
      %23 = vector.broadcast %22 : vector<128x1xf32> to vector<128x256xf32>
      %24 = arith.subf %18, %23 : vector<128x256xf32>
      %25 = arith.mulf %24, %24 : vector<128x256xf32>
      %cst_18 = arith.constant dense<0.000000e+00> : vector<128xf32>
      %26 = vector.multi_reduction <add>, %25, %cst_18 [1] : vector<128x256xf32> to vector<128xf32>
      %27 = vector.shape_cast %26 : vector<128xf32> to vector<128x1xf32>
      %cst_19 = arith.constant 2.560000e+02 : f32
      %28 = vector.broadcast %cst_19 : f32 to vector<128x1xf32>
      %29 = arith.divf %27, %28 : vector<128x1xf32>
      %30 = vector.broadcast %22 : vector<128x1xf32> to vector<128x256xf32>
      %31 = arith.subf %18, %30 : vector<128x256xf32>
      %cst_20 = arith.constant 9.99999996E-13 : f32
      %32 = vector.broadcast %cst_20 : f32 to vector<128x1xf32>
      %33 = arith.addf %29, %32 : vector<128x1xf32>
      %34 = math.rsqrt %33 : vector<128x1xf32>
      %35 = vector.broadcast %34 : vector<128x1xf32> to vector<128x256xf32>
      %36 = arith.mulf %31, %35 : vector<128x256xf32>
      %c0_21 = arith.constant 0 : index
      %c0_22 = arith.constant 0 : index
      %37 = vector.load %arg7[%c0_21, %c0_22] : memref<1x256xf32, #tpu.memory_space<vmem>>, vector<1x256xf32>
      %38 = vector.broadcast %37 : vector<1x256xf32> to vector<128x256xf32>
      %39 = arith.mulf %36, %38 : vector<128x256xf32>
      %c0_23 = arith.constant 0 : index
      %c0_24 = arith.constant 0 : index
      %40 = vector.load %arg8[%c0_23, %c0_24] : memref<1x256xf32, #tpu.memory_space<vmem>>, vector<1x256xf32>
      %41 = vector.broadcast %40 : vector<1x256xf32> to vector<128x256xf32>
      %42 = arith.addf %39, %41 : vector<128x256xf32>
      %43 = arith.truncf %42 : vector<128x256xf32> to vector<128x256xbf16>
      %c0_25 = arith.constant 0 : index
      %c0_26 = arith.constant 0 : index
      %44 = vector.load %arg9[%c0_25, %c0_26] : memref<128x256xbf16, #tpu.memory_space<vmem>>, vector<128x256xbf16>
      tpu.vector_store %arg9[%c0_25, %c0_26], %43 {strides = array<i32>} : memref<128x256xbf16, #tpu.memory_space<vmem>>, vector<128x256xbf16>,
    } else {
    }
    return
  }
  func.func @transform_0(%arg0: i32, %arg1: i32, %arg2: i32) -> (i32, i32) {
    %c0_i32 = arith.constant 0 : i32
    return %arg0, %arg2 : i32, i32
  }
  func.func @transform_1(%arg0: i32, %arg1: i32, %arg2: i32) -> (i32, i32) {
    %c0_i32 = arith.constant 0 : i32
    return %arg2, %arg1 : i32, i32
  }
  func.func @transform_2(%arg0: i32, %arg1: i32, %arg2: i32) -> (i32, i32) {
    %c0_i32 = arith.constant 0 : i32
    %c0_i32_0 = arith.constant 0 : i32
    return %c0_i32, %arg1 : i32, i32
  }
  func.func @transform_3(%arg0: i32, %arg1: i32, %arg2: i32) -> (i32, i32) {
    %c0_i32 = arith.constant 0 : i32
    return %arg0, %arg1 : i32, i32
  }
  func.func @transform_4(%arg0: i32, %arg1: i32, %arg2: i32) -> (i32, i32) {
    %c0_i32 = arith.constant 0 : i32
    %c0_i32_0 = arith.constant 0 : i32
    return %c0_i32, %arg1 : i32, i32
  }
  func.func @transform_5(%arg0: i32, %arg1: i32, %arg2: i32) -> (i32, i32) {
    %c0_i32 = arith.constant 0 : i32
    %c0_i32_0 = arith.constant 0 : i32
    return %c0_i32, %arg1 : i32, i32
  }
  func.func @transform_6(%arg0: i32, %arg1: i32, %arg2: i32) -> (i32, i32) {
    %c0_i32 = arith.constant 0 : i32
    return %arg0, %arg1 : i32, i32
  }
}

module attributes {stable_mosaic.version = 11 : i64} {
  func.func @_pooler_head_kernel(%arg0: memref<2x256xbf16, #tpu.memory_space<vmem>>, %arg1: memref<256x256xbf16, #tpu.memory_space<vmem>>, %arg2: memref<1x256xf32, #tpu.memory_space<vmem>>, %arg3: memref<256x128xbf16, #tpu.memory_space<vmem>>, %arg4: memref<1x128xf32, #tpu.memory_space<vmem>>, %arg5: memref<2x128xf32, #tpu.memory_space<vmem>>) attributes {dimension_semantics = [], scalar_prefetch = 0 : i64, scratch_operands = 0 : i64, tpu.core_type = #tpu.core_type<tc>} {
    %c0 = arith.constant 0 : index
    %c0_0 = arith.constant 0 : index
    %0 = vector.load %arg0[%c0, %c0_0] : memref<2x256xbf16, #tpu.memory_space<vmem>>, vector<2x256xbf16>
    %c0_1 = arith.constant 0 : index
    %c0_2 = arith.constant 0 : index
    %1 = vector.load %arg1[%c0_1, %c0_2] : memref<256x256xbf16, #tpu.memory_space<vmem>>, vector<256x256xbf16>
    %cst = arith.constant dense<0.000000e+00> : vector<2x256xf32>
    %2 = tpu.matmul %0, %1, %cst {dimension_numbers = #tpu.dot_dimension_numbers<[1], [0], [0], [1], [0, 0, 1, 1], [], []>} : vector<2x256xbf16>, vector<256x256xbf16>, vector<2x256xf32> -> vector<2x256xf32>
    %c0_3 = arith.constant 0 : index
    %c0_4 = arith.constant 0 : index
    %3 = vector.load %arg2[%c0_3, %c0_4] : memref<1x256xf32, #tpu.memory_space<vmem>>, vector<1x256xf32>
    %4 = vector.broadcast %3 : vector<1x256xf32> to vector<2x256xf32>
    %5 = arith.addf %2, %4 : vector<2x256xf32>
    %6 = math.tanh %5 : vector<2x256xf32>
    %7 = arith.truncf %6 : vector<2x256xf32> to vector<2x256xbf16>
    %c0_5 = arith.constant 0 : index
    %c0_6 = arith.constant 0 : index
    %8 = vector.load %arg3[%c0_5, %c0_6] : memref<256x128xbf16, #tpu.memory_space<vmem>>, vector<256x128xbf16>
    %cst_7 = arith.constant dense<0.000000e+00> : vector<2x128xf32>
    %9 = tpu.matmul %7, %8, %cst_7 {dimension_numbers = #tpu.dot_dimension_numbers<[1], [0], [0], [1], [0, 0, 1, 1], [], []>} : vector<2x256xbf16>, vector<256x128xbf16>, vector<2x128xf32> -> vector<2x128xf32>
    %c0_8 = arith.constant 0 : index
    %c0_9 = arith.constant 0 : index
    %10 = vector.load %arg4[%c0_8, %c0_9] : memref<1x128xf32, #tpu.memory_space<vmem>>, vector<1x128xf32>
    %11 = vector.broadcast %10 : vector<1x128xf32> to vector<2x128xf32>
    %12 = arith.addf %9, %11 : vector<2x128xf32>
    %c0_10 = arith.constant 0 : index
    %c0_11 = arith.constant 0 : index
    %13 = vector.load %arg5[%c0_10, %c0_11] : memref<2x128xf32, #tpu.memory_space<vmem>>, vector<2x128xf32>
    tpu.vector_store %arg5[%c0_10, %c0_11], %12 {strides = array<i32>} : memref<2x128xf32, #tpu.memory_space<vmem>>, vector<2x128xf32>,
    return
  }
}

</mosaic_0001>

<llo_original>
// kernel: bert_encoder_forward.12
$region0: #{bert_encoder_forward.12}
  #allocation0 [shape = 'u32[]', space=smem, size = 0x4, offset = 0x4, fixed_abs, tag = 'smem constant byte address 0x4 - core index']
  #allocation1 [shape = 'u32[144,128]{1,0:T(1,128)}', space=vmem, size = 0x12000, scoped, tag = 'internal scratch']
  %s0 = inlined_call_operand.vmem [shape: bf16[256,256], index: 0, kind: input, shape index: {}]
  %s1 = inlined_call_operand.vmem [shape: f32[1,256], index: 1, kind: input, shape index: {}]
  %s2 = inlined_call_operand.vmem [shape: f32[1,256], index: 2, kind: input, shape index: {}]
  %s3 = inlined_call_operand.vmem [shape: bf16[256,256], index: 3, kind: output, shape index: {}]
  %s4 = sld [smem:[#allocation0]]
  $region22: #{bert_encoder_forward.12} parent=0
    _
  %s6 = ssub.s32 1, %s4
  %s7 = scalar_select 0, %s6, %s4
  // Predicated region
  $region2: #{bert_encoder_forward.12} parent=0 // pred_check
    _
  $region3: #{bert_encoder_forward.12} parent=0 // pred_check_branch
    %9 = sbr.rel (0) target = $region5
  $region4: #{bert_encoder_forward.12} parent=0 // pred_region
    _
  $region5: #{bert_encoder_forward.12} parent=0 // pred_fallthru
    _
  // Predicated region
  $region6: #{bert_encoder_forward.12} parent=0 // pred_check
    _
  $region7: #{bert_encoder_forward.12} parent=0 // pred_check_branch
    %11 = sbr.rel (0) target = $region9
  $region8: #{bert_encoder_forward.12} parent=0 // pred_region
    _
  $region9: #{bert_encoder_forward.12} parent=0 // pred_fallthru
    _
  // Predicated region
  $region10: #{bert_encoder_forward.12} parent=0 // pred_check
    _
  $region11: #{bert_encoder_forward.12} parent=0 // pred_check_branch
    %13 = sbr.rel (0) target = $region13
  $region12: #{bert_encoder_forward.12} parent=0 // pred_region
    _
  $region13: #{bert_encoder_forward.12} parent=0 // pred_fallthru
    _
  %v14 = vld [vmem:[%s0] sm:$0xff]
  %v15 = vld [vmem:[%s0 + $0x8] sm:$0xff]
  %v16 = vld [vmem:[%s0 + $0x10] sm:$0xff]
  %v17 = vld [vmem:[%s0 + $0x18] sm:$0xff]
  %v18 = vld [vmem:[%s0 + $0x20] sm:$0xff]
  %v19 = vld [vmem:[%s0 + $0x28] sm:$0xff]
  %v20 = vld [vmem:[%s0 + $0x30] sm:$0xff]
  %v21 = vld [vmem:[%s0 + $0x38] sm:$0xff]
  %v22 = vld [vmem:[%s0 + $0x40] sm:$0xff]
  %v23 = vld [vmem:[%s0 + $0x48] sm:$0xff]
  %v24 = vld [vmem:[%s0 + $0x50] sm:$0xff]
  %v25 = vld [vmem:[%s0 + $0x58] sm:$0xff]
  %v26 = vld [vmem:[%s0 + $0x60] sm:$0xff]
  %v27 = vld [vmem:[%s0 + $0x68] sm:$0xff]
  %v28 = vld [vmem:[%s0 + $0x70] sm:$0xff]
  %v29 = vld [vmem:[%s0 + $0x78] sm:$0xff]
  %v30 = vld [vmem:[%s0 + $0x80] sm:$0xff]
  %v31 = vld [vmem:[%s0 + $0x88] sm:$0xff]
  %v32 = vld [vmem:[%s0 + $0x90] sm:$0xff]
  %v33 = vld [vmem:[%s0 + $0x98] sm:$0xff]
  %v34 = vld [vmem:[%s0 + $0xa0] sm:$0xff]
  %v35 = vld [vmem:[%s0 + $0xa8] sm:$0xff]
  %v36 = vld [vmem:[%s0 + $0xb0] sm:$0xff]
  %v37 = vld [vmem:[%s0 + $0xb8] sm:$0xff]
  %v38 = vld [vmem:[%s0 + $0xc0] sm:$0xff]
  %v39 = vld [vmem:[%s0 + $0xc8] sm:$0xff]
  %v40 = vld [vmem:[%s0 + $0xd0] sm:$0xff]
  %v41 = vld [vmem:[%s0 + $0xd8] sm:$0xff]
  %v42 = vld [vmem:[%s0 + $0xe0] sm:$0xff]
  %v43 = vld [vmem:[%s0 + $0xe8] sm:$0xff]
  %v44 = vld [vmem:[%s0 + $0xf0] sm:$0xff]
  %v45 = vld [vmem:[%s0 + $0xf8] sm:$0xff]
  %v46 = vunpack.c.l.bf16 %v14
  %v47 = vunpack.c.h.bf16 %v14
  %v48 = vunpack.c.l.bf16 %v15
  %v49 = vunpack.c.h.bf16 %v15
  %v50 = vunpack.c.l.bf16 %v16
  %v51 = vunpack.c.h.bf16 %v16
  %v52 = vunpack.c.l.bf16 %v17
  %v53 = vunpack.c.h.bf16 %v17
  %v54 = vunpack.c.l.bf16 %v18
  %v55 = vunpack.c.h.bf16 %v18
  %v56 = vunpack.c.l.bf16 %v19
  %v57 = vunpack.c.h.bf16 %v19
  %v58 = vunpack.c.l.bf16 %v20
  %v59 = vunpack.c.h.bf16 %v20
  %v60 = vunpack.c.l.bf16 %v21
  %v61 = vunpack.c.h.bf16 %v21
  %v62 = vunpack.c.l.bf16 %v22
  %v63 = vunpack.c.h.bf16 %v22
  %v64 = vunpack.c.l.bf16 %v23
  %v65 = vunpack.c.h.bf16 %v23
  %v66 = vunpack.c.l.bf16 %v24
  %v67 = vunpack.c.h.bf16 %v24
  %v68 = vunpack.c.l.bf16 %v25
  %v69 = vunpack.c.h.bf16 %v25
  %v70 = vunpack.c.l.bf16 %v26
  %v71 = vunpack.c.h.bf16 %v26
  %v72 = vunpack.c.l.bf16 %v27
  %v73 = vunpack.c.h.bf16 %v27
  %v74 = vunpack.c.l.bf16 %v28
  %v75 = vunpack.c.h.bf16 %v28
  %v76 = vunpack.c.l.bf16 %v29
  %v77 = vunpack.c.h.bf16 %v29
  %v78 = vunpack.c.l.bf16 %v30
  %v79 = vunpack.c.h.bf16 %v30
  %v80 = vunpack.c.l.bf16 %v31
  %v81 = vunpack.c.h.bf16 %v31
  %v82 = vunpack.c.l.bf16 %v32
  %v83 = vunpack.c.h.bf16 %v32
  %v84 = vunpack.c.l.bf16 %v33
  %v85 = vunpack.c.h.bf16 %v33
  %v86 = vunpack.c.l.bf16 %v34
  %v87 = vunpack.c.h.bf16 %v34
  %v88 = vunpack.c.l.bf16 %v35
  %v89 = vunpack.c.h.bf16 %v35
  %v90 = vunpack.c.l.bf16 %v36
  %v91 = vunpack.c.h.bf16 %v36
  %v92 = vunpack.c.l.bf16 %v37
  %v93 = vunpack.c.h.bf16 %v37
  %v94 = vunpack.c.l.bf16 %v38
  %v95 = vunpack.c.h.bf16 %v38
  %v96 = vunpack.c.l.bf16 %v39
  %v97 = vunpack.c.h.bf16 %v39
  %v98 = vunpack.c.l.bf16 %v40
  %v99 = vunpack.c.h.bf16 %v40
  %v100 = vunpack.c.l.bf16 %v41
  %v101 = vunpack.c.h.bf16 %v41
  %v102 = vunpack.c.l.bf16 %v42
  %v103 = vunpack.c.h.bf16 %v42
  %v104 = vunpack.c.l.bf16 %v43
  %v105 = vunpack.c.h.bf16 %v43
  %v106 = vunpack.c.l.bf16 %v44
  %v107 = vunpack.c.h.bf16 %v44
  %v108 = vunpack.c.l.bf16 %v45
  %v109 = vunpack.c.h.bf16 %v45
  %v110 = vadd.f32 %v46, %v47
  %111 = vadd.xlane.f32.xlu0 %v110
  %v112 = vpop.xlane.xlu0 %111
  %v113 = vadd.f32 %v48, %v49
  %114 = vadd.xlane.f32.xlu0 %v113
  %v115 = vpop.xlane.xlu0 %114
  %v116 = vadd.f32 %v50, %v51
  %117 = vadd.xlane.f32.xlu0 %v116
  %v118 = vpop.xlane.xlu0 %117
  %v119 = vadd.f32 %v52, %v53
  %120 = vadd.xlane.f32.xlu0 %v119
  %v121 = vpop.xlane.xlu0 %120
  %v122 = vadd.f32 %v54, %v55
  %123 = vadd.xlane.f32.xlu0 %v122
  %v124 = vpop.xlane.xlu0 %123
  %v125 = vadd.f32 %v56, %v57
  %126 = vadd.xlane.f32.xlu0 %v125
  %v127 = vpop.xlane.xlu0 %126
  %v128 = vadd.f32 %v58, %v59
  %129 = vadd.xlane.f32.xlu0 %v128
  %v130 = vpop.xlane.xlu0 %129
  %v131 = vadd.f32 %v60, %v61
  %132 = vadd.xlane.f32.xlu0 %v131
  %v133 = vpop.xlane.xlu0 %132
  %v134 = vadd.f32 %v62, %v63
  %135 = vadd.xlane.f32.xlu0 %v134
  %v136 = vpop.xlane.xlu0 %135
  %v137 = vadd.f32 %v64, %v65
  %138 = vadd.xlane.f32.xlu0 %v137
  %v139 = vpop.xlane.xlu0 %138
  %v140 = vadd.f32 %v66, %v67
  %141 = vadd.xlane.f32.xlu0 %v140
  %v142 = vpop.xlane.xlu0 %141
  %v143 = vadd.f32 %v68, %v69
  %144 = vadd.xlane.f32.xlu0 %v143
  %v145 = vpop.xlane.xlu0 %144
  %v146 = vadd.f32 %v70, %v71
  %147 = vadd.xlane.f32.xlu0 %v146
  %v148 = vpop.xlane.xlu0 %147
  %v149 = vadd.f32 %v72, %v73
  %150 = vadd.xlane.f32.xlu0 %v149
  %v151 = vpop.xlane.xlu0 %150
  %v152 = vadd.f32 %v74, %v75
  %153 = vadd.xlane.f32.xlu0 %v152
  %v154 = vpop.xlane.xlu0 %153
  %v155 = vadd.f32 %v76, %v77
  %156 = vadd.xlane.f32.xlu0 %v155
  %v157 = vpop.xlane.xlu0 %156
  %v158 = vadd.f32 %v78, %v79
  %159 = vadd.xlane.f32.xlu0 %v158
  %v160 = vpop.xlane.xlu0 %159
  %v161 = vadd.f32 %v80, %v81
  %162 = vadd.xlane.f32.xlu0 %v161
  %v163 = vpop.xlane.xlu0 %162
  %v164 = vadd.f32 %v82, %v83
  %165 = vadd.xlane.f32.xlu0 %v164
  %v166 = vpop.xlane.xlu0 %165
  %v167 = vadd.f32 %v84, %v85
  %168 = vadd.xlane.f32.xlu0 %v167
  %v169 = vpop.xlane.xlu0 %168
  %v170 = vadd.f32 %v86, %v87
  %171 = vadd.xlane.f32.xlu0 %v170
  %v172 = vpop.xlane.xlu0 %171
  %v173 = vadd.f32 %v88, %v89
  %174 = vadd.xlane.f32.xlu0 %v173
  %v175 = vpop.xlane.xlu0 %174
  %v176 = vadd.f32 %v90, %v91
  %177 = vadd.xlane.f32.xlu0 %v176
  %v178 = vpop.xlane.xlu0 %177
  %v179 = vadd.f32 %v92, %v93
  %180 = vadd.xlane.f32.xlu0 %v179
  %v181 = vpop.xlane.xlu0 %180
  %v182 = vadd.f32 %v94, %v95
  %183 = vadd.xlane.f32.xlu0 %v182
  %v184 = vpop.xlane.xlu0 %183
  %v185 = vadd.f32 %v96, %v97
  %186 = vadd.xlane.f32.xlu0 %v185
  %v187 = vpop.xlane.xlu0 %186
  %v188 = vadd.f32 %v98, %v99
  %189 = vadd.xlane.f32.xlu0 %v188
  %v190 = vpop.xlane.xlu0 %189
  %v191 = vadd.f32 %v100, %v101
  %192 = vadd.xlane.f32.xlu0 %v191
  %v193 = vpop.xlane.xlu0 %192
  %v194 = vadd.f32 %v102, %v103
  %195 = vadd.xlane.f32.xlu0 %v194
  %v196 = vpop.xlane.xlu0 %195
  %v197 = vadd.f32 %v104, %v105
  %198 = vadd.xlane.f32.xlu0 %v197
  %v199 = vpop.xlane.xlu0 %198
  %v200 = vadd.f32 %v106, %v107
  %201 = vadd.xlane.f32.xlu0 %v200
  %v202 = vpop.xlane.xlu0 %201
  %v203 = vadd.f32 %v108, %v109
  %204 = vadd.xlane.f32.xlu0 %v203
  %v205 = vpop.xlane.xlu0 %204
  %v206 = vrcp.pop 256.0
  %v207 = vmul.f32 %v112, %v206
  %v208 = vmul.f32 %v115, %v206
  %v209 = vmul.f32 %v118, %v206
  %v210 = vmul.f32 %v121, %v206
  %v211 = vmul.f32 %v124, %v206
  %v212 = vmul.f32 %v127, %v206
  %v213 = vmul.f32 %v130, %v206
  %v214 = vmul.f32 %v133, %v206
  %v215 = vmul.f32 %v136, %v206
  %v216 = vmul.f32 %v139, %v206
  %v217 = vmul.f32 %v142, %v206
  %v218 = vmul.f32 %v145, %v206
  %v219 = vmul.f32 %v148, %v206
  %v220 = vmul.f32 %v151, %v206
  %v221 = vmul.f32 %v154, %v206
  %v222 = vmul.f32 %v157, %v206
  %v223 = vmul.f32 %v160, %v206
  %v224 = vmul.f32 %v163, %v206
  %v225 = vmul.f32 %v166, %v206
  %v226 = vmul.f32 %v169, %v206
  %v227 = vmul.f32 %v172, %v206
  %v228 = vmul.f32 %v175, %v206
  %v229 = vmul.f32 %v178, %v206
  %v230 = vmul.f32 %v181, %v206
  %v231 = vmul.f32 %v184, %v206
  %v232 = vmul.f32 %v187, %v206
  %v233 = vmul.f32 %v190, %v206
  %v234 = vmul.f32 %v193, %v206
  %v235 = vmul.f32 %v196, %v206
  %v236 = vmul.f32 %v199, %v206
  %v237 = vmul.f32 %v202, %v206
  %v238 = vmul.f32 %v205, %v206
  %v239 = vsub.f32 %v46, %v207
  %v240 = vsub.f32 %v47, %v207
  %v241 = vsub.f32 %v48, %v208
  %v242 = vsub.f32 %v49, %v208
  %v243 = vsub.f32 %v50, %v209
  %v244 = vsub.f32 %v51, %v209
  %v245 = vsub.f32 %v52, %v210
  %v246 = vsub.f32 %v53, %v210
  %v247 = vsub.f32 %v54, %v211
  %v248 = vsub.f32 %v55, %v211
  %v249 = vsub.f32 %v56, %v212
  %v250 = vsub.f32 %v57, %v212
  %v251 = vsub.f32 %v58, %v213
  %v252 = vsub.f32 %v59, %v213
  %v253 = vsub.f32 %v60, %v214
  %v254 = vsub.f32 %v61, %v214
  %v255 = vsub.f32 %v62, %v215
  %v256 = vsub.f32 %v63, %v215
  %v257 = vsub.f32 %v64, %v216
  %v258 = vsub.f32 %v65, %v216
  %v259 = vsub.f32 %v66, %v217
  %v260 = vsub.f32 %v67, %v217
  %v261 = vsub.f32 %v68, %v218
  %v262 = vsub.f32 %v69, %v218
  %v263 = vsub.f32 %v70, %v219
  %v264 = vsub.f32 %v71, %v219
  %v265 = vsub.f32 %v72, %v220
  %v266 = vsub.f32 %v73, %v220
  %v267 = vsub.f32 %v74, %v221
  %v268 = vsub.f32 %v75, %v221
  %v269 = vsub.f32 %v76, %v222
  %v270 = vsub.f32 %v77, %v222
  %v271 = vsub.f32 %v78, %v223
  %v272 = vsub.f32 %v79, %v223
  %v273 = vsub.f32 %v80, %v224
  %v274 = vsub.f32 %v81, %v224
  %v275 = vsub.f32 %v82, %v225
  %v276 = vsub.f32 %v83, %v225
  %v277 = vsub.f32 %v84, %v226
  %v278 = vsub.f32 %v85, %v226
  %v279 = vsub.f32 %v86, %v227
  %v280 = vsub.f32 %v87, %v227
  %v281 = vsub.f32 %v88, %v228
  %v282 = vsub.f32 %v89, %v228
  %v283 = vsub.f32 %v90, %v229
  %v284 = vsub.f32 %v91, %v229
  %v285 = vsub.f32 %v92, %v230
  %v286 = vsub.f32 %v93, %v230
  %v287 = vsub.f32 %v94, %v231
  %v288 = vsub.f32 %v95, %v231
  %v289 = vsub.f32 %v96, %v232
  %v290 = vsub.f32 %v97, %v232
  %v291 = vsub.f32 %v98, %v233
  %v292 = vsub.f32 %v99, %v233
  %v293 = vsub.f32 %v100, %v234
  %v294 = vsub.f32 %v101, %v234
  %v295 = vsub.f32 %v102, %v235
  %v296 = vsub.f32 %v103, %v235
  %v297 = vsub.f32 %v104, %v236
  %v298 = vsub.f32 %v105, %v236
  %v299 = vsub.f32 %v106, %v237
  %v300 = vsub.f32 %v107, %v237
  %v301 = vsub.f32 %v108, %v238
  %v302 = vsub.f32 %v109, %v238
  %v303 = vmul.f32 %v239, %v239
  %v304 = vmul.f32 %v240, %v240
  %v305 = vmul.f32 %v241, %v241
  %v306 = vmul.f32 %v242, %v242
  %v307 = vmul.f32 %v243, %v243
  %v308 = vmul.f32 %v244, %v244
  %v309 = vmul.f32 %v245, %v245
  %v310 = vmul.f32 %v246, %v246
  %v311 = vmul.f32 %v247, %v247
  %v312 = vmul.f32 %v248, %v248
  %v313 = vmul.f32 %v249, %v249
  %v314 = vmul.f32 %v250, %v250
  %v315 = vmul.f32 %v251, %v251
  %v316 = vmul.f32 %v252, %v252
  %v317 = vmul.f32 %v253, %v253
  %v318 = vmul.f32 %v254, %v254
  %v319 = vmul.f32 %v255, %v255
  %v320 = vmul.f32 %v256, %v256
  %v321 = vmul.f32 %v257, %v257
  %v322 = vmul.f32 %v258, %v258
  %v323 = vmul.f32 %v259, %v259
  %v324 = vmul.f32 %v260, %v260
  %v325 = vmul.f32 %v261, %v261
  %v326 = vmul.f32 %v262, %v262
  %v327 = vmul.f32 %v263, %v263
  %v328 = vmul.f32 %v264, %v264
  %v329 = vmul.f32 %v265, %v265
  %v330 = vmul.f32 %v266, %v266
  %v331 = vmul.f32 %v267, %v267
  %v332 = vmul.f32 %v268, %v268
  %v333 = vmul.f32 %v269, %v269
  %v334 = vmul.f32 %v270, %v270
  %v335 = vmul.f32 %v271, %v271
  %v336 = vmul.f32 %v272, %v272
  %v337 = vmul.f32 %v273, %v273
  %v338 = vmul.f32 %v274, %v274
  %v339 = vmul.f32 %v275, %v275
  %v340 = vmul.f32 %v276, %v276
  %v341 = vmul.f32 %v277, %v277
  %v342 = vmul.f32 %v278, %v278
  %v343 = vmul.f32 %v279, %v279
  %v344 = vmul.f32 %v280, %v280
  %v345 = vmul.f32 %v281, %v281
  %v346 = vmul.f32 %v282, %v282
  %v347 = vmul.f32 %v283, %v283
  %v348 = vmul.f32 %v284, %v284
  %v349 = vmul.f32 %v285, %v285
  %v350 = vmul.f32 %v286, %v286
  %v351 = vmul.f32 %v287, %v287
  %v352 = vmul.f32 %v288, %v288
  %v353 = vmul.f32 %v289, %v289
  %v354 = vmul.f32 %v290, %v290
  %v355 = vmul.f32 %v291, %v291
  %v356 = vmul.f32 %v292, %v292
  %v357 = vmul.f32 %v293, %v293
  %v358 = vmul.f32 %v294, %v294
  %v359 = vmul.f32 %v295, %v295
  %v360 = vmul.f32 %v296, %v296
  %v361 = vmul.f32 %v297, %v297
  %v362 = vmul.f32 %v298, %v298
  %v363 = vmul.f32 %v299, %v299
  %v364 = vmul.f32 %v300, %v300
  %v365 = vmul.f32 %v301, %v301
  %v366 = vmul.f32 %v302, %v302
  %v367 = vadd.f32 %v303, %v304
  %368 = vadd.xlane.f32.xlu0 %v367
  %v369 = vpop.xlane.xlu0 %368
  %v370 = vadd.f32 %v305, %v306
  %371 = vadd.xlane.f32.xlu0 %v370
  %v372 = vpop.xlane.xlu0 %371
  %v373 = vadd.f32 %v307, %v308
  %374 = vadd.xlane.f32.xlu0 %v373
  %v375 = vpop.xlane.xlu0 %374
  %v376 = vadd.f32 %v309, %v310
  %377 = vadd.xlane.f32.xlu0 %v376
  %v378 = vpop.xlane.xlu0 %377
  %v379 = vadd.f32 %v311, %v312
  %380 = vadd.xlane.f32.xlu0 %v379
  %v381 = vpop.xlane.xlu0 %380
  %v382 = vadd.f32 %v313, %v314
  %383 = vadd.xlane.f32.xlu0 %v382
  %v384 = vpop.xlane.xlu0 %383
  %v385 = vadd.f32 %v315, %v316
  %386 = vadd.xlane.f32.xlu0 %v385
  %v387 = vpop.xlane.xlu0 %386
  %v388 = vadd.f32 %v317, %v318
  %389 = vadd.xlane.f32.xlu0 %v388
  %v390 = vpop.xlane.xlu0 %389
  %v391 = vadd.f32 %v319, %v320
  %392 = vadd.xlane.f32.xlu0 %v391
  %v393 = vpop.xlane.xlu0 %392
  %v394 = vadd.f32 %v321, %v322
  %395 = vadd.xlane.f32.xlu0 %v394
  %v396 = vpop.xlane.xlu0 %395
  %v397 = vadd.f32 %v323, %v324
  %398 = vadd.xlane.f32.xlu0 %v397
  %v399 = vpop.xlane.xlu0 %398
  %v400 = vadd.f32 %v325, %v326
  %401 = vadd.xlane.f32.xlu0 %v400
  %v402 = vpop.xlane.xlu0 %401
  %v403 = vadd.f32 %v327, %v328
  %404 = vadd.xlane.f32.xlu0 %v403
  %v405 = vpop.xlane.xlu0 %404
  %v406 = vadd.f32 %v329, %v330
  %407 = vadd.xlane.f32.xlu0 %v406
  %v408 = vpop.xlane.xlu0 %407
  %v409 = vadd.f32 %v331, %v332
  %410 = vadd.xlane.f32.xlu0 %v409
  %v411 = vpop.xlane.xlu0 %410
  %v412 = vadd.f32 %v333, %v334
  %413 = vadd.xlane.f32.xlu0 %v412
  %v414 = vpop.xlane.xlu0 %413
  %v415 = vadd.f32 %v335, %v336
  %416 = vadd.xlane.f32.xlu0 %v415
  %v417 = vpop.xlane.xlu0 %416
  %v418 = vadd.f32 %v337, %v338
  %419 = vadd.xlane.f32.xlu0 %v418
  %v420 = vpop.xlane.xlu0 %419
  %v421 = vadd.f32 %v339, %v340
  %422 = vadd.xlane.f32.xlu0 %v421
  %v423 = vpop.xlane.xlu0 %422
  %v424 = vadd.f32 %v341, %v342
  %425 = vadd.xlane.f32.xlu0 %v424
  %v426 = vpop.xlane.xlu0 %425
  %v427 = vadd.f32 %v343, %v344
  %428 = vadd.xlane.f32.xlu0 %v427
  %v429 = vpop.xlane.xlu0 %428
  %v430 = vadd.f32 %v345, %v346
  %431 = vadd.xlane.f32.xlu0 %v430
  %v432 = vpop.xlane.xlu0 %431
  %v433 = vadd.f32 %v347, %v348
  %434 = vadd.xlane.f32.xlu0 %v433
  %v435 = vpop.xlane.xlu0 %434
  %v436 = vadd.f32 %v349, %v350
  %437 = vadd.xlane.f32.xlu0 %v436
  %v438 = vpop.xlane.xlu0 %437
  %v439 = vadd.f32 %v351, %v352
  %440 = vadd.xlane.f32.xlu0 %v439
  %v441 = vpop.xlane.xlu0 %440
  %v442 = vadd.f32 %v353, %v354
  %443 = vadd.xlane.f32.xlu0 %v442
  %v444 = vpop.xlane.xlu0 %443
  %v445 = vadd.f32 %v355, %v356
  %446 = vadd.xlane.f32.xlu0 %v445
  %v447 = vpop.xlane.xlu0 %446
  %v448 = vadd.f32 %v357, %v358
  %449 = vadd.xlane.f32.xlu0 %v448
  %v450 = vpop.xlane.xlu0 %449
  %v451 = vadd.f32 %v359, %v360
  %452 = vadd.xlane.f32.xlu0 %v451
  %v453 = vpop.xlane.xlu0 %452
  %v454 = vadd.f32 %v361, %v362
  %455 = vadd.xlane.f32.xlu0 %v454
  %v456 = vpop.xlane.xlu0 %455
  %v457 = vadd.f32 %v363, %v364
  %458 = vadd.xlane.f32.xlu0 %v457
  %v459 = vpop.xlane.xlu0 %458
  %v460 = vadd.f32 %v365, %v366
  %461 = vadd.xlane.f32.xlu0 %v460
  %v462 = vpop.xlane.xlu0 %461
  %v463 = vmul.f32 %v369, %v206
  %v464 = vmul.f32 %v372, %v206
  %v465 = vmul.f32 %v375, %v206
  %v466 = vmul.f32 %v378, %v206
  %v467 = vmul.f32 %v381, %v206
  %v468 = vmul.f32 %v384, %v206
  %v469 = vmul.f32 %v387, %v206
  %v470 = vmul.f32 %v390, %v206
  %v471 = vmul.f32 %v393, %v206
  %v472 = vmul.f32 %v396, %v206
  %v473 = vmul.f32 %v399, %v206
  %v474 = vmul.f32 %v402, %v206
  %v475 = vmul.f32 %v405, %v206
  %v476 = vmul.f32 %v408, %v206
  %v477 = vmul.f32 %v411, %v206
  %v478 = vmul.f32 %v414, %v206
  %v479 = vmul.f32 %v417, %v206
  %v480 = vmul.f32 %v420, %v206
  %v481 = vmul.f32 %v423, %v206
  %v482 = vmul.f32 %v426, %v206
  %v483 = vmul.f32 %v429, %v206
  %v484 = vmul.f32 %v432, %v206
  %v485 = vmul.f32 %v435, %v206
  %v486 = vmul.f32 %v438, %v206
  %v487 = vmul.f32 %v441, %v206
  %v488 = vmul.f32 %v444, %v206
  %v489 = vmul.f32 %v447, %v206
  %v490 = vmul.f32 %v450, %v206
  %v491 = vmul.f32 %v453, %v206
  %v492 = vmul.f32 %v456, %v206
  %v493 = vmul.f32 %v459, %v206
  %v494 = vmul.f32 %v462, %v206
  %v495 = vadd.f32 %v463, 1e-12
  %v496 = vadd.f32 %v464, 1e-12
  %v497 = vadd.f32 %v465, 1e-12
  %v498 = vadd.f32 %v466, 1e-12
  %v499 = vadd.f32 %v467, 1e-12
  %v500 = vadd.f32 %v468, 1e-12
  %v501 = vadd.f32 %v469, 1e-12
  %v502 = vadd.f32 %v470, 1e-12
  %v503 = vadd.f32 %v471, 1e-12
  %v504 = vadd.f32 %v472, 1e-12
  %v505 = vadd.f32 %v473, 1e-12
  %v506 = vadd.f32 %v474, 1e-12
  %v507 = vadd.f32 %v475, 1e-12
  %v508 = vadd.f32 %v476, 1e-12
  %v509 = vadd.f32 %v477, 1e-12
  %v510 = vadd.f32 %v478, 1e-12
  %v511 = vadd.f32 %v479, 1e-12
  %v512 = vadd.f32 %v480, 1e-12
  %v513 = vadd.f32 %v481, 1e-12
  %v514 = vadd.f32 %v482, 1e-12
  %v515 = vadd.f32 %v483, 1e-12
  %v516 = vadd.f32 %v484, 1e-12
  %v517 = vadd.f32 %v485, 1e-12
  %v518 = vadd.f32 %v486, 1e-12
  %v519 = vadd.f32 %v487, 1e-12
  %v520 = vadd.f32 %v488, 1e-12
  %v521 = vadd.f32 %v489, 1e-12
  %v522 = vadd.f32 %v490, 1e-12
  %v523 = vadd.f32 %v491, 1e-12
  %v524 = vadd.f32 %v492, 1e-12
  %v525 = vadd.f32 %v493, 1e-12
  %v526 = vadd.f32 %v494, 1e-12
  %v527 = vrsqrt.pop %v495
  %v528 = vrsqrt.pop %v496
  %v529 = vrsqrt.pop %v497
  %v530 = vrsqrt.pop %v498
  %v531 = vrsqrt.pop %v499
  %v532 = vrsqrt.pop %v500
  %v533 = vrsqrt.pop %v501
  %v534 = vrsqrt.pop %v502
  %v535 = vrsqrt.pop %v503
  %v536 = vrsqrt.pop %v504
  %v537 = vrsqrt.pop %v505
  %v538 = vrsqrt.pop %v506
  %v539 = vrsqrt.pop %v507
  %v540 = vrsqrt.pop %v508
  %v541 = vrsqrt.pop %v509
  %v542 = vrsqrt.pop %v510
  %v543 = vrsqrt.pop %v511
  %v544 = vrsqrt.pop %v512
  %v545 = vrsqrt.pop %v513
  %v546 = vrsqrt.pop %v514
  %v547 = vrsqrt.pop %v515
  %v548 = vrsqrt.pop %v516
  %v549 = vrsqrt.pop %v517
  %v550 = vrsqrt.pop %v518
  %v551 = vrsqrt.pop %v519
  %v552 = vrsqrt.pop %v520
  %v553 = vrsqrt.pop %v521
  %v554 = vrsqrt.pop %v522
  %v555 = vrsqrt.pop %v523
  %v556 = vrsqrt.pop %v524
  %v557 = vrsqrt.pop %v525
  %v558 = vrsqrt.pop %v526
  %v559 = vmul.f32 %v239, %v527
  %v560 = vmul.f32 %v240, %v527
  %v561 = vmul.f32 %v241, %v528
  %v562 = vmul.f32 %v242, %v528
  %v563 = vmul.f32 %v243, %v529
  %v564 = vmul.f32 %v244, %v529
  %v565 = vmul.f32 %v245, %v530
  %v566 = vmul.f32 %v246, %v530
  %v567 = vmul.f32 %v247, %v531
  %v568 = vmul.f32 %v248, %v531
  %v569 = vmul.f32 %v249, %v532
  %v570 = vmul.f32 %v250, %v532
  %v571 = vmul.f32 %v251, %v533
  %v572 = vmul.f32 %v252, %v533
  %v573 = vmul.f32 %v253, %v534
  %v574 = vmul.f32 %v254, %v534
  %v575 = vmul.f32 %v255, %v535
  %v576 = vmul.f32 %v256, %v535
  %v577 = vmul.f32 %v257, %v536
  %v578 = vmul.f32 %v258, %v536
  %v579 = vmul.f32 %v259, %v537
  %v580 = vmul.f32 %v260, %v537
  %v581 = vmul.f32 %v261, %v538
  %v582 = vmul.f32 %v262, %v538
  %v583 = vmul.f32 %v263, %v539
  %v584 = vmul.f32 %v264, %v539
  %v585 = vmul.f32 %v265, %v540
  %v586 = vmul.f32 %v266, %v540
  %v587 = vmul.f32 %v267, %v541
  %v588 = vmul.f32 %v268, %v541
  %v589 = vmul.f32 %v269, %v542
  %v590 = vmul.f32 %v270, %v542
  %v591 = vmul.f32 %v271, %v543
  %v592 = vmul.f32 %v272, %v543
  %v593 = vmul.f32 %v273, %v544
  %v594 = vmul.f32 %v274, %v544
  %v595 = vmul.f32 %v275, %v545
  %v596 = vmul.f32 %v276, %v545
  %v597 = vmul.f32 %v277, %v546
  %v598 = vmul.f32 %v278, %v546
  %v599 = vmul.f32 %v279, %v547
  %v600 = vmul.f32 %v280, %v547
  %v601 = vmul.f32 %v281, %v548
  %v602 = vmul.f32 %v282, %v548
  %v603 = vmul.f32 %v283, %v549
  %v604 = vmul.f32 %v284, %v549
  %v605 = vmul.f32 %v285, %v550
  %v606 = vmul.f32 %v286, %v550
  %v607 = vmul.f32 %v287, %v551
  %v608 = vmul.f32 %v288, %v551
  %v609 = vmul.f32 %v289, %v552
  %v610 = vmul.f32 %v290, %v552
  %v611 = vmul.f32 %v291, %v553
  %v612 = vmul.f32 %v292, %v553
  %v613 = vmul.f32 %v293, %v554
  %v614 = vmul.f32 %v294, %v554
  %v615 = vmul.f32 %v295, %v555
  %v616 = vmul.f32 %v296, %v555
  %v617 = vmul.f32 %v297, %v556
  %v618 = vmul.f32 %v298, %v556
  %v619 = vmul.f32 %v299, %v557
  %v620 = vmul.f32 %v300, %v557
  %v621 = vmul.f32 %v301, %v558
  %v622 = vmul.f32 %v302, %v558
  %v623 = vld [vmem:[%s1] sm:$0x3]
  %v625 = vlaneseq
  %v626 = vshrl.u32 %v625, 7
  %v627 = vsub.s32 0, %v626
  %v628 = vrot.slane %v623, %v627
  %v629 = vlaneseq
  %v630 = vshrl.u32 %v629, 7
  %v631 = vsub.s32 1, %v630
  %v632 = vrot.slane %v623, %v631
  %v635 = vmul.f32 %v559, %v628
  %v636 = vmul.f32 %v560, %v632
  %v637 = vmul.f32 %v561, %v628
  %v638 = vmul.f32 %v562, %v632
  %v639 = vmul.f32 %v563, %v628
  %v640 = vmul.f32 %v564, %v632
  %v641 = vmul.f32 %v565, %v628
  %v642 = vmul.f32 %v566, %v632
  %v643 = vmul.f32 %v567, %v628
  %v644 = vmul.f32 %v568, %v632
  %v645 = vmul.f32 %v569, %v628
  %v646 = vmul.f32 %v570, %v632
  %v647 = vmul.f32 %v571, %v628
  %v648 = vmul.f32 %v572, %v632
  %v649 = vmul.f32 %v573, %v628
  %v650 = vmul.f32 %v574, %v632
  %v651 = vmul.f32 %v575, %v628
  %v652 = vmul.f32 %v576, %v632
  %v653 = vmul.f32 %v577, %v628
  %v654 = vmul.f32 %v578, %v632
  %v655 = vmul.f32 %v579, %v628
  %v656 = vmul.f32 %v580, %v632
  %v657 = vmul.f32 %v581, %v628
  %v658 = vmul.f32 %v582, %v632
  %v659 = vmul.f32 %v583, %v628
  %v660 = vmul.f32 %v584, %v632
  %v661 = vmul.f32 %v585, %v628
  %v662 = vmul.f32 %v586, %v632
  %v663 = vmul.f32 %v587, %v628
  %v664 = vmul.f32 %v588, %v632
  %v665 = vmul.f32 %v589, %v628
  %v666 = vmul.f32 %v590, %v632
  %v667 = vmul.f32 %v591, %v628
  %v668 = vmul.f32 %v592, %v632
  %v669 = vmul.f32 %v593, %v628
  %v670 = vmul.f32 %v594, %v632
  %v671 = vmul.f32 %v595, %v628
  %v672 = vmul.f32 %v596, %v632
  %v673 = vmul.f32 %v597, %v628
  %v674 = vmul.f32 %v598, %v632
  %v675 = vmul.f32 %v599, %v628
  %v676 = vmul.f32 %v600, %v632
  %v677 = vmul.f32 %v601, %v628
  %v678 = vmul.f32 %v602, %v632
  %v679 = vmul.f32 %v603, %v628
  %v680 = vmul.f32 %v604, %v632
  %v681 = vmul.f32 %v605, %v628
  %v682 = vmul.f32 %v606, %v632
  %v683 = vmul.f32 %v607, %v628
  %v684 = vmul.f32 %v608, %v632
  %v685 = vmul.f32 %v609, %v628
  %v686 = vmul.f32 %v610, %v632
  %v687 = vmul.f32 %v611, %v628
  %v688 = vmul.f32 %v612, %v632
  %v689 = vmul.f32 %v613, %v628
  %v690 = vmul.f32 %v614, %v632
  %v691 = vmul.f32 %v615, %v628
  %v692 = vmul.f32 %v616, %v632
  %v693 = vmul.f32 %v617, %v628
  %v694 = vmul.f32 %v618, %v632
  %v695 = vmul.f32 %v619, %v628
  %v696 = vmul.f32 %v620, %v632
  %v697 = vmul.f32 %v621, %v628
  %v698 = vmul.f32 %v622, %v632
  %v699 = vld [vmem:[%s2] sm:$0x3]
  %v701 = vlaneseq
  %v702 = vshrl.u32 %v701, 7
  %v703 = vsub.s32 0, %v702
  %v704 = vrot.slane %v699, %v703
  %v705 = vlaneseq
  %v706 = vshrl.u32 %v705, 7
  %v707 = vsub.s32 1, %v706
  %v708 = vrot.slane %v699, %v707
  %v711 = vadd.f32 %v635, %v704
  %v712 = vadd.f32 %v636, %v708
  %v713 = vadd.f32 %v637, %v704
  %v714 = vadd.f32 %v638, %v708
  %v715 = vadd.f32 %v639, %v704
  %v716 = vadd.f32 %v640, %v708
  %v717 = vadd.f32 %v641, %v704
  %v718 = vadd.f32 %v642, %v708
  %v719 = vadd.f32 %v643, %v704
  %v720 = vadd.f32 %v644, %v708
  %v721 = vadd.f32 %v645, %v704
  %v722 = vadd.f32 %v646, %v708
  %v723 = vadd.f32 %v647, %v704
  %v724 = vadd.f32 %v648, %v708
  %v725 = vadd.f32 %v649, %v704
  %v726 = vadd.f32 %v650, %v708
  %v727 = vadd.f32 %v651, %v704
  %v728 = vadd.f32 %v652, %v708
  %v729 = vadd.f32 %v653, %v704
  %v730 = vadd.f32 %v654, %v708
  %v731 = vadd.f32 %v655, %v704
  %v732 = vadd.f32 %v656, %v708
  %v733 = vadd.f32 %v657, %v704
  %v734 = vadd.f32 %v658, %v708
  %v735 = vadd.f32 %v659, %v704
  %v736 = vadd.f32 %v660, %v708
  %v737 = vadd.f32 %v661, %v704
  %v738 = vadd.f32 %v662, %v708
  %v739 = vadd.f32 %v663, %v704
  %v740 = vadd.f32 %v664, %v708
  %v741 = vadd.f32 %v665, %v704
  %v742 = vadd.f32 %v666, %v708
  %v743 = vadd.f32 %v667, %v704
  %v744 = vadd.f32 %v668, %v708
  %v745 = vadd.f32 %v669, %v704
  %v746 = vadd.f32 %v670, %v708
  %v747 = vadd.f32 %v671, %v704
  %v748 = vadd.f32 %v672, %v708
  %v749 = vadd.f32 %v673, %v704
  %v750 = vadd.f32 %v674, %v708
  %v751 = vadd.f32 %v675, %v704
  %v752 = vadd.f32 %v676, %v708
  %v753 = vadd.f32 %v677, %v704
  %v754 = vadd.f32 %v678, %v708
  %v755 = vadd.f32 %v679, %v704
  %v756 = vadd.f32 %v680, %v708
  %v757 = vadd.f32 %v681, %v704
  %v758 = vadd.f32 %v682, %v708
  %v759 = vadd.f32 %v683, %v704
  %v760 = vadd.f32 %v684, %v708
  %v761 = vadd.f32 %v685, %v704
  %v762 = vadd.f32 %v686, %v708
  %v763 = vadd.f32 %v687, %v704
  %v764 = vadd.f32 %v688, %v708
  %v765 = vadd.f32 %v689, %v704
  %v766 = vadd.f32 %v690, %v708
  %v767 = vadd.f32 %v691, %v704
  %v768 = vadd.f32 %v692, %v708
  %v769 = vadd.f32 %v693, %v704
  %v770 = vadd.f32 %v694, %v708
  %v771 = vadd.f32 %v695, %v704
  %v772 = vadd.f32 %v696, %v708
  %v773 = vadd.f32 %v697, %v704
  %v774 = vadd.f32 %v698, %v708
  %v775 = vpack.c.bf16 %v713, %v711
  %v776 = vpack.c.bf16 %v714, %v712
  %v777 = vpack.c.bf16 %v717, %v715
  %v778 = vpack.c.bf16 %v718, %v716
  %v779 = vpack.c.bf16 %v721, %v719
  %v780 = vpack.c.bf16 %v722, %v720
  %v781 = vpack.c.bf16 %v725, %v723
  %v782 = vpack.c.bf16 %v726, %v724
  %v783 = vpack.c.bf16 %v729, %v727
  %v784 = vpack.c.bf16 %v730, %v728
  %v785 = vpack.c.bf16 %v733, %v731
  %v786 = vpack.c.bf16 %v734, %v732
  %v787 = vpack.c.bf16 %v737, %v735
  %v788 = vpack.c.bf16 %v738, %v736
  %v789 = vpack.c.bf16 %v741, %v739
  %v790 = vpack.c.bf16 %v742, %v740
  %v791 = vpack.c.bf16 %v745, %v743
  %v792 = vpack.c.bf16 %v746, %v744
  %v793 = vpack.c.bf16 %v749, %v747
  %v794 = vpack.c.bf16 %v750, %v748
  %v795 = vpack.c.bf16 %v753, %v751
  %v796 = vpack.c.bf16 %v754, %v752
  %v797 = vpack.c.bf16 %v757, %v755
  %v798 = vpack.c.bf16 %v758, %v756
  %v799 = vpack.c.bf16 %v761, %v759
  %v800 = vpack.c.bf16 %v762, %v760
  %v801 = vpack.c.bf16 %v765, %v763
  %v802 = vpack.c.bf16 %v766, %v764
  %v803 = vpack.c.bf16 %v769, %v767
  %v804 = vpack.c.bf16 %v770, %v768
  %v805 = vpack.c.bf16 %v773, %v771
  %v806 = vpack.c.bf16 %v774, %v772
  %v839 = vunpack.c.l.b16 %v775
  %v840 = vunpack.c.l.b16 %v776
  %v841 = vunpack.c.h.b16 %v775
  %v842 = vunpack.c.h.b16 %v776
  %v843 = vunpack.c.l.b16 %v777
  %v844 = vunpack.c.l.b16 %v778
  %v845 = vunpack.c.h.b16 %v777
  %v846 = vunpack.c.h.b16 %v778
  %v847 = vunpack.c.l.b16 %v779
  %v848 = vunpack.c.l.b16 %v780
  %v849 = vunpack.c.h.b16 %v779
  %v850 = vunpack.c.h.b16 %v780
  %v851 = vunpack.c.l.b16 %v781
  %v852 = vunpack.c.l.b16 %v782
  %v853 = vunpack.c.h.b16 %v781
  %v854 = vunpack.c.h.b16 %v782
  %v855 = vunpack.c.l.b16 %v783
  %v856 = vunpack.c.l.b16 %v784
  %v857 = vunpack.c.h.b16 %v783
  %v858 = vunpack.c.h.b16 %v784
  %v859 = vunpack.c.l.b16 %v785
  %v860 = vunpack.c.l.b16 %v786
  %v861 = vunpack.c.h.b16 %v785
  %v862 = vunpack.c.h.b16 %v786
  %v863 = vunpack.c.l.b16 %v787
  %v864 = vunpack.c.l.b16 %v788
  %v865 = vunpack.c.h.b16 %v787
  %v866 = vunpack.c.h.b16 %v788
  %v867 = vunpack.c.l.b16 %v789
  %v868 = vunpack.c.l.b16 %v790
  %v869 = vunpack.c.h.b16 %v789
  %v870 = vunpack.c.h.b16 %v790
  %v871 = vunpack.c.l.b16 %v791
  %v872 = vunpack.c.l.b16 %v792
  %v873 = vunpack.c.h.b16 %v791
  %v874 = vunpack.c.h.b16 %v792
  %v875 = vunpack.c.l.b16 %v793
  %v876 = vunpack.c.l.b16 %v794
  %v877 = vunpack.c.h.b16 %v793
  %v878 = vunpack.c.h.b16 %v794
  %v879 = vunpack.c.l.b16 %v795
  %v880 = vunpack.c.l.b16 %v796
  %v881 = vunpack.c.h.b16 %v795
  %v882 = vunpack.c.h.b16 %v796
  %v883 = vunpack.c.l.b16 %v797
  %v884 = vunpack.c.l.b16 %v798
  %v885 = vunpack.c.h.b16 %v797
  %v886 = vunpack.c.h.b16 %v798
  %v887 = vunpack.c.l.b16 %v799
  %v888 = vunpack.c.l.b16 %v800
  %v889 = vunpack.c.h.b16 %v799
  %v890 = vunpack.c.h.b16 %v800
  %v891 = vunpack.c.l.b16 %v801
  %v892 = vunpack.c.l.b16 %v802
  %v893 = vunpack.c.h.b16 %v801
  %v894 = vunpack.c.h.b16 %v802
  %v895 = vunpack.c.l.b16 %v803
  %v896 = vunpack.c.l.b16 %v804
  %v897 = vunpack.c.h.b16 %v803
  %v898 = vunpack.c.h.b16 %v804
  %v899 = vunpack.c.l.b16 %v805
  %v900 = vunpack.c.l.b16 %v806
  %v901 = vunpack.c.h.b16 %v805
  %v902 = vunpack.c.h.b16 %v806
  %v903 = vpack.c.b16 %v840, %v839
  %v904 = vpack.c.b16 %v842, %v841
  %v905 = vpack.c.b16 %v844, %v843
  %v906 = vpack.c.b16 %v846, %v845
  %v907 = vpack.c.b16 %v848, %v847
  %v908 = vpack.c.b16 %v850, %v849
  %v909 = vpack.c.b16 %v852, %v851
  %v910 = vpack.c.b16 %v854, %v853
  %v911 = vpack.c.b16 %v856, %v855
  %v912 = vpack.c.b16 %v858, %v857
  %v913 = vpack.c.b16 %v860, %v859
  %v914 = vpack.c.b16 %v862, %v861
  %v915 = vpack.c.b16 %v864, %v863
  %v916 = vpack.c.b16 %v866, %v865
  %v917 = vpack.c.b16 %v868, %v867
  %v918 = vpack.c.b16 %v870, %v869
  %v919 = vpack.c.b16 %v872, %v871
  %v920 = vpack.c.b16 %v874, %v873
  %v921 = vpack.c.b16 %v876, %v875
  %v922 = vpack.c.b16 %v878, %v877
  %v923 = vpack.c.b16 %v880, %v879
  %v924 = vpack.c.b16 %v882, %v881
  %v925 = vpack.c.b16 %v884, %v883
  %v926 = vpack.c.b16 %v886, %v885
  %v927 = vpack.c.b16 %v888, %v887
  %v928 = vpack.c.b16 %v890, %v889
  %v929 = vpack.c.b16 %v892, %v891
  %v930 = vpack.c.b16 %v894, %v893
  %v931 = vpack.c.b16 %v896, %v895
  %v932 = vpack.c.b16 %v898, %v897
  %v933 = vpack.c.b16 %v900, %v899
  %v934 = vpack.c.b16 %v902, %v901
  %967 = vst [vmem:[%s3] sm:$0xff] %v903
  %968 = vst [vmem:[%s3 + $0x8] sm:$0xff] %v904
  %969 = vst [vmem:[%s3 + $0x10] sm:$0xff] %v905
  %970 = vst [vmem:[%s3 + $0x18] sm:$0xff] %v906
  %971 = vst [vmem:[%s3 + $0x20] sm:$0xff] %v907
  %972 = vst [vmem:[%s3 + $0x28] sm:$0xff] %v908
  %973 = vst [vmem:[%s3 + $0x30] sm:$0xff] %v909
  %974 = vst [vmem:[%s3 + $0x38] sm:$0xff] %v910
  %975 = vst [vmem:[%s3 + $0x40] sm:$0xff] %v911
  %976 = vst [vmem:[%s3 + $0x48] sm:$0xff] %v912
  %977 = vst [vmem:[%s3 + $0x50] sm:$0xff] %v913
  %978 = vst [vmem:[%s3 + $0x58] sm:$0xff] %v914
  %979 = vst [vmem:[%s3 + $0x60] sm:$0xff] %v915
  %980 = vst [vmem:[%s3 + $0x68] sm:$0xff] %v916
  %981 = vst [vmem:[%s3 + $0x70] sm:$0xff] %v917
  %982 = vst [vmem:[%s3 + $0x78] sm:$0xff] %v918
  %983 = vst [vmem:[%s3 + $0x80] sm:$0xff] %v919
  %984 = vst [vmem:[%s3 + $0x88] sm:$0xff] %v920
  %985 = vst [vmem:[%s3 + $0x90] sm:$0xff] %v921
  %986 = vst [vmem:[%s3 + $0x98] sm:$0xff] %v922
  %987 = vst [vmem:[%s3 + $0xa0] sm:$0xff] %v923
  %988 = vst [vmem:[%s3 + $0xa8] sm:$0xff] %v924
  %989 = vst [vmem:[%s3 + $0xb0] sm:$0xff] %v925
  %990 = vst [vmem:[%s3 + $0xb8] sm:$0xff] %v926
  %991 = vst [vmem:[%s3 + $0xc0] sm:$0xff] %v927
  %992 = vst [vmem:[%s3 + $0xc8] sm:$0xff] %v928
  %993 = vst [vmem:[%s3 + $0xd0] sm:$0xff] %v929
  %994 = vst [vmem:[%s3 + $0xd8] sm:$0xff] %v930
  %995 = vst [vmem:[%s3 + $0xe0] sm:$0xff] %v931
  %996 = vst [vmem:[%s3 + $0xe8] sm:$0xff] %v932
  %997 = vst [vmem:[%s3 + $0xf0] sm:$0xff] %v933
  %998 = vst [vmem:[%s3 + $0xf8] sm:$0xff] %v934
  // Predicated region
  $region14: #{bert_encoder_forward.12} parent=0 // pred_check
    _
  $region15: #{bert_encoder_forward.12} parent=0 // pred_check_branch
    %1000 = sbr.rel (0) target = $region17
  $region16: #{bert_encoder_forward.12} parent=0 // pred_region
    _
  $region17: #{bert_encoder_forward.12} parent=0 // pred_fallthru
    _
  // Predicated region
  $region18: #{bert_encoder_forward.12} parent=0 // pred_check
    _
  $region19: #{bert_encoder_forward.12} parent=0 // pred_check_branch
    %1002 = sbr.rel (0) target = $region21
  $region20: #{bert_encoder_forward.12} parent=0 // pred_region
    _
  $region21: #{bert_encoder_forward.12} parent=0 // pred_fallthru
    _

// kernel: bert_encoder_forward.13
$region0: #{bert_encoder_forward.13}
  #allocation0 [shape = 'u32[]', space=smem, size = 0x4, offset = 0x4, fixed_abs, tag = 'smem constant byte address 0x4 - core index']
  #allocation1 [shape = 'u32[144,128]{1,0:T(1,128)}', space=vmem, size = 0x12000, scoped, tag = 'internal scratch']
  #allocation2 [shape = 'f32[128,256]{1,0:T(8,128)}', space=vmem, size = 0x20000, scoped, tag = 'scratch operand']
  %s0 = inlined_call_operand.vmem [shape: bf16[256,256], index: 0, kind: input, shape index: {}]
  %s1 = inlined_call_operand.vmem [shape: bf16[256,768], index: 1, kind: input, shape index: {}]
  %s2 = inlined_call_operand.vmem [shape: f32[1,768], index: 2, kind: input, shape index: {}]
  %s3 = inlined_call_operand.vmem [shape: bf16[256,768], index: 3, kind: output, shape index: {}]
  %s4 = sld [smem:[#allocation0]]
  $region125: #{bert_encoder_forward.13} parent=0
    _
  %s6 = ssub.s32 1, %s4
  %s7 = scalar_select 0, %s6, %s4
  $region1: #{bert_encoder_forward.13} parent=0
    #allocation3 [shape = 'u8[262144]{0}', space=vmem, size = 0x40000, scoped, tag = 'input window, operand 1']
    #allocation4 [shape = 'u8[131072]{0}', space=vmem, size = 0x20000, scoped, tag = 'output window, operand 0']
    loop: start=0, step=1, limit=8
    $region2: #{bert_encoder_forward.13} parent=1 // loop_pre_header
      _
    $region3: #{bert_encoder_forward.13} parent=1 // loop_header
      %s9 = sphi 0, %s13
      %p10 = scmp.ge.s32.totalorder %s9, 8
      %s16 = sphi 0, %s35
      %s17 = sphi 0, %s31
      %s18 = sphi 0, %s27
      %s19 = sphi 0, %s16
      %s20 = sphi 0, %s17
      %s21 = sphi 0, %s18
      %s22 = sphi 0, %s19
      %s23 = sphi 0, %s20
      %s24 = sphi 0, %s21
      %s40 = sphi 0, %s42
      %s43 = sphi 0, %s40
      %s44 = sphi 0, %s43
      %s60 = sphi 0, %s44
      %s68 = sphi 0, %s70
      %s71 = sphi 0, %s68
      %s72 = sphi 0, %s71
      %s88 = sphi 0, %s72
      %s94 = sphi 0, %s96
      %s97 = sphi 0, %s94
      %s98 = sphi 0, %s97
      %s114 = sphi 0, %s98
      %s122 = sphi 0, %s124
      %s125 = sphi 0, %s122
      %s126 = sphi 0, %s125
      %s142 = sphi 0, %s126
    $region4: #{bert_encoder_forward.13} parent=1 // loop_header_branch
      %12 = sbr.rel (%p10) target = $region8
    $region5: #{bert_encoder_forward.13} parent=1 // loop_body
      %s14 = ssub.s32 %s9, 1
      %s15 = ssub.s32 %s9, 2
      %s25 = sadd.s32 1, %s18
      %p26 = scmp.ge.s32.totalorder %s25, 1
      %s27 = scalar_select %p26, 0, %s25
      %s28 = sadd.s32 1, %s17
      %s29 = scalar_select %p26, %s28, %s17
      %p30 = scmp.ge.s32.totalorder %s29, 3
      %s31 = scalar_select %p30, 0, %s29
      %s32 = sadd.s32 1, %s16
      %s33 = scalar_select %p30, %s32, %s16
      %p34 = scmp.ge.s32.totalorder %s33, 2
      %s35 = scalar_select %p34, 0, %s33
      %s36 = ssub.s32 %s16, %s35
      %s37 = ssub.s32 %s18, %s27
      %s38 = sor.u32 %s36, %s37
      %p39 = scmp.eq.s32.totalorder %s38, 0
      %s41 = sadd.s32 %s40, 1
      %s42 = scalar_select %p39, %s40, %s41
      %p45 = pneg %p39
      %p46 = scmp.eq.s32.totalorder %s9, 5
      %p47 = por %p45, %p46
      %p48 = scmp.ne.s32.totalorder %s40, %s43
      %p49 = scmp.eq.s32.totalorder %s9, 0
      %p50 = por %p48, %p49
      %p51 = scmp.ne.s32.totalorder %s40, %s43
      %p52 = scmp.eq.s32.totalorder %s14, 5
      %p53 = por %p51, %p52
      %p54 = scmp.ne.s32.totalorder %s43, %s44
      %p55 = scmp.eq.s32.totalorder %s14, 0
      %p56 = por %p54, %p55
      %p57 = scmp.ne.s32.totalorder %s43, %s44
      %p58 = scmp.eq.s32.totalorder %s15, 5
      %p59 = por %p57, %p58
      %p61 = scmp.ne.s32.totalorder %s44, %s60
      %p62 = scmp.eq.s32.totalorder %s15, 0
      %p63 = por %p61, %p62
      %s64 = ssub.s32 %s18, %s27
      %s65 = ssub.s32 %s17, %s31
      %s66 = sor.u32 %s64, %s65
      %p67 = scmp.eq.s32.totalorder %s66, 0
      %s69 = sadd.s32 %s68, 1
      %s70 = scalar_select %p67, %s68, %s69
      %p73 = pneg %p67
      %p74 = scmp.eq.s32.totalorder %s9, 5
      %p75 = por %p73, %p74
      %p76 = scmp.ne.s32.totalorder %s68, %s71
      %p77 = scmp.eq.s32.totalorder %s9, 0
      %p78 = por %p76, %p77
      %p79 = scmp.ne.s32.totalorder %s68, %s71
      %p80 = scmp.eq.s32.totalorder %s14, 5
      %p81 = por %p79, %p80
      %p82 = scmp.ne.s32.totalorder %s71, %s72
      %p83 = scmp.eq.s32.totalorder %s14, 0
      %p84 = por %p82, %p83
      %p85 = scmp.ne.s32.totalorder %s71, %s72
      %p86 = scmp.eq.s32.totalorder %s15, 5
      %p87 = por %p85, %p86
      %p89 = scmp.ne.s32.totalorder %s72, %s88
      %p90 = scmp.eq.s32.totalorder %s15, 0
      %p91 = por %p89, %p90
      %s92 = ssub.s32 %s17, %s31
      %p93 = scmp.eq.s32.totalorder %s92, 0
      %s95 = sadd.s32 %s94, 1
      %s96 = scalar_select %p93, %s94, %s95
      %p99 = pneg %p93
      %p100 = scmp.eq.s32.totalorder %s9, 5
      %p101 = por %p99, %p100
      %p102 = scmp.ne.s32.totalorder %s94, %s97
      %p103 = scmp.eq.s32.totalorder %s9, 0
      %p104 = por %p102, %p103
      %p105 = scmp.ne.s32.totalorder %s94, %s97
      %p106 = scmp.eq.s32.totalorder %s14, 5
      %p107 = por %p105, %p106
      %p108 = scmp.ne.s32.totalorder %s97, %s98
      %p109 = scmp.eq.s32.totalorder %s14, 0
      %p110 = por %p108, %p109
      %p111 = scmp.ne.s32.totalorder %s97, %s98
      %p112 = scmp.eq.s32.totalorder %s15, 5
      %p113 = por %p111, %p112
      %p115 = scmp.ne.s32.totalorder %s98, %s114
      %p116 = scmp.eq.s32.totalorder %s15, 0
      %p117 = por %p115, %p116
      %s118 = ssub.s32 %s16, %s35
      %s119 = ssub.s32 %s17, %s31
      %s120 = sor.u32 %s118, %s119
      %p121 = scmp.eq.s32.totalorder %s120, 0
      %s123 = sadd.s32 %s122, 1
      %s124 = scalar_select %p121, %s122, %s123
      %p127 = pneg %p121
      %p128 = scmp.eq.s32.totalorder %s9, 5
      %p129 = por %p127, %p128
      %p130 = scmp.ne.s32.totalorder %s122, %s125
      %p131 = scmp.eq.s32.totalorder %s9, 0
      %p132 = por %p130, %p131
      %p133 = scmp.ne.s32.totalorder %s122, %s125
      %p134 = scmp.eq.s32.totalorder %s14, 5
      %p135 = por %p133, %p134
      %p136 = scmp.ne.s32.totalorder %s125, %s126
      %p137 = scmp.eq.s32.totalorder %s14, 0
      %p138 = por %p136, %p137
      %p139 = scmp.ne.s32.totalorder %s125, %s126
      %p140 = scmp.eq.s32.totalorder %s15, 5
      %p141 = por %p139, %p140
      %p143 = scmp.ne.s32.totalorder %s126, %s142
      %p144 = scmp.eq.s32.totalorder %s15, 0
      %p145 = por %p143, %p144
      %p146 = scmp.le.s32.totalorder 1, %s9
      %p147 = scmp.lt.s32.totalorder %s9, 7
      %p148 = pnand %p146, %p147
      %p149 = pneg %p148
      // Predicated region
      $region9: #{bert_encoder_forward.13} parent=5 // pred_check
        _
      $region10: #{bert_encoder_forward.13} parent=5 // pred_check_branch
        %151 = sbr.rel (%p148) target = $region12
      $region11: #{bert_encoder_forward.13} parent=5 // pred_region
        %s152 = ssub.s32 %s9, 1
      $region12: #{bert_encoder_forward.13} parent=5 // pred_fallthru
        _
      %p153 = scmp.lt.s32.totalorder %s9, 6
      // Predicated region
      $region13: #{bert_encoder_forward.13} parent=5 // pred_check
        %p154 = pneg %p153
      $region14: #{bert_encoder_forward.13} parent=5 // pred_check_branch
        %156 = sbr.rel (%p154) target = $region16
      $region15: #{bert_encoder_forward.13} parent=5 // pred_region
        // Predicated region
        $region17: #{bert_encoder_forward.13} parent=15 // pred_check
          %p157 = pneg %p50
        $region18: #{bert_encoder_forward.13} parent=15 // pred_check_branch
          %159 = sbr.rel (%p157) target = $region20
        $region19: #{bert_encoder_forward.13} parent=15 // pred_region
          %s160 = smul.u32 16, %s16
          %s161 = smul.u32 2, %s18
          %p162 = scmp.lt.s32.totalorder %s160, 31
          %s163 = scalar_select %p162, %s160, 31
          %p164 = scmp.lt.s32.totalorder %s161, 1
          %s165 = scalar_select %p164, %s161, 1
          %s166 = smul.addr %s163, 2
          %s167 = sadd.s32 %s165, %s166
          %s168 = smul.addr %s167, 4
          %s169 = scalar_lea.vmem %s0, %s168
          %s170 = smul.u32 16, %s16
          %s171 = smul.u32 2, %s18
        $region20: #{bert_encoder_forward.13} parent=15 // pred_fallthru
          _
        // Predicated region
        $region21: #{bert_encoder_forward.13} parent=15 // pred_check
          %p172 = pneg %p78
        $region22: #{bert_encoder_forward.13} parent=15 // pred_check_branch
          %174 = sbr.rel (%p172) target = $region24
        $region23: #{bert_encoder_forward.13} parent=15 // pred_region
          %s175 = sand.u32 %s68, 1
          %s176 = sand.u32 %s68, 1
          %s177 = smul.addr %s176, 256
          %s178 = scalar_lea.vmem [#allocation3], %s177
          %s179 = smul.u32 32, %s18
          %s180 = smul.u32 2, %s17
          %s181 = smul.addr %s179, 6
          %s182 = sadd.s32 %s180, %s181
          %s183 = smul.addr %s182, 4
          %s184 = scalar_lea.vmem %s1, %s183
          // Predicated region
          $region25: #{bert_encoder_forward.13} parent=23 // pred_check
            _
          $region26: #{bert_encoder_forward.13} parent=23 // pred_check_branch
            %186 = sbr.rel (0) target = $region28
          $region27: #{bert_encoder_forward.13} parent=23 // pred_region
            // Predicated region
            $region29: #{bert_encoder_forward.13} parent=27 // pred_check
              _
            $region30: #{bert_encoder_forward.13} parent=27 // pred_check_branch
              %188 = sbr.rel (0) target = $region32
            $region31: #{bert_encoder_forward.13} parent=27 // pred_region
              // Predicated region
              $region44: #{bert_encoder_forward.13} parent=31 // pred_check
                _
              $region45: #{bert_encoder_forward.13} parent=31 // pred_check_branch
                %266 = sbr.rel (0) target = $region47
              $region46: #{bert_encoder_forward.13} parent=31 // pred_region
                loop: start=0, step=1, limit=1
                $region48: #{bert_encoder_forward.13} parent=46 // loop_pre_header
                  _
                $region49: #{bert_encoder_forward.13} parent=46 // loop_header
                  %s268 = sphi 0, %s272
                  %p269 = scmp.ge.s32.totalorder %s268, 1
                  %s273 = sphi %s184, %s184
                  %s274 = sphi %s178, %s178
                $region50: #{bert_encoder_forward.13} parent=46 // loop_header_branch
                  %271 = sbr.rel (%p269) target = $region54
                $region51: #{bert_encoder_forward.13} parent=46 // loop_body
                  %v275 = vld [vmem:[%s273] sm:$0xff]
                  %276 = vst [vmem:[%s274] sm:$0xff] %v275
                  %v277 = vld [vmem:[%s273 + $0x18] sm:$0xff]
                  %278 = vst [vmem:[%s274 + $0x8] sm:$0xff] %v277
                  %v279 = vld [vmem:[%s273 + $0x30] sm:$0xff]
                  %280 = vst [vmem:[%s274 + $0x10] sm:$0xff] %v279
                  %v281 = vld [vmem:[%s273 + $0x48] sm:$0xff]
                  %282 = vst [vmem:[%s274 + $0x18] sm:$0xff] %v281
                  %v283 = vld [vmem:[%s273 + $0x60] sm:$0xff]
                  %284 = vst [vmem:[%s274 + $0x20] sm:$0xff] %v283
                  %v285 = vld [vmem:[%s273 + $0x78] sm:$0xff]
                  %286 = vst [vmem:[%s274 + $0x28] sm:$0xff] %v285
                  %v287 = vld [vmem:[%s273 + $0x90] sm:$0xff]
                  %288 = vst [vmem:[%s274 + $0x30] sm:$0xff] %v287
                  %v289 = vld [vmem:[%s273 + $0xa8] sm:$0xff]
                  %290 = vst [vmem:[%s274 + $0x38] sm:$0xff] %v289
                  %v291 = vld [vmem:[%s273 + $0xc0] sm:$0xff]
                  %292 = vst [vmem:[%s274 + $0x40] sm:$0xff] %v291
                  %v293 = vld [vmem:[%s273 + $0xd8] sm:$0xff]
                  %294 = vst [vmem:[%s274 + $0x48] sm:$0xff] %v293
                  %v295 = vld [vmem:[%s273 + $0xf0] sm:$0xff]
                  %296 = vst [vmem:[%s274 + $0x50] sm:$0xff] %v295
                  %v297 = vld [vmem:[%s273 + $0x108] sm:$0xff]
                  %298 = vst [vmem:[%s274 + $0x58] sm:$0xff] %v297
                  %v299 = vld [vmem:[%s273 + $0x120] sm:$0xff]
                  %300 = vst [vmem:[%s274 + $0x60] sm:$0xff] %v299
                  %v301 = vld [vmem:[%s273 + $0x138] sm:$0xff]
                  %302 = vst [vmem:[%s274 + $0x68] sm:$0xff] %v301
                  %v303 = vld [vmem:[%s273 + $0x150] sm:$0xff]
                  %304 = vst [vmem:[%s274 + $0x70] sm:$0xff] %v303
                  %v305 = vld [vmem:[%s273 + $0x168] sm:$0xff]
                  %306 = vst [vmem:[%s274 + $0x78] sm:$0xff] %v305
                  %v307 = vld [vmem:[%s273 + $0x180] sm:$0xff]
                  %308 = vst [vmem:[%s274 + $0x80] sm:$0xff] %v307
                  %v309 = vld [vmem:[%s273 + $0x198] sm:$0xff]
                  %310 = vst [vmem:[%s274 + $0x88] sm:$0xff] %v309
                  %v311 = vld [vmem:[%s273 + $0x1b0] sm:$0xff]
                  %312 = vst [vmem:[%s274 + $0x90] sm:$0xff] %v311
                  %v313 = vld [vmem:[%s273 + $0x1c8] sm:$0xff]
                  %314 = vst [vmem:[%s274 + $0x98] sm:$0xff] %v313
                  %v315 = vld [vmem:[%s273 + $0x1e0] sm:$0xff]
                  %316 = vst [vmem:[%s274 + $0xa0] sm:$0xff] %v315
                  %v317 = vld [vmem:[%s273 + $0x1f8] sm:$0xff]
                  %318 = vst [vmem:[%s274 + $0xa8] sm:$0xff] %v317
                  %v319 = vld [vmem:[%s273 + $0x210] sm:$0xff]
                  %320 = vst [vmem:[%s274 + $0xb0] sm:$0xff] %v319
                  %v321 = vld [vmem:[%s273 + $0x228] sm:$0xff]
                  %322 = vst [vmem:[%s274 + $0xb8] sm:$0xff] %v321
                  %v323 = vld [vmem:[%s273 + $0x240] sm:$0xff]
                  %324 = vst [vmem:[%s274 + $0xc0] sm:$0xff] %v323
                  %v325 = vld [vmem:[%s273 + $0x258] sm:$0xff]
                  %326 = vst [vmem:[%s274 + $0xc8] sm:$0xff] %v325
                  %v327 = vld [vmem:[%s273 + $0x270] sm:$0xff]
                  %328 = vst [vmem:[%s274 + $0xd0] sm:$0xff] %v327
                  %v329 = vld [vmem:[%s273 + $0x288] sm:$0xff]
                  %330 = vst [vmem:[%s274 + $0xd8] sm:$0xff] %v329
                  %v331 = vld [vmem:[%s273 + $0x2a0] sm:$0xff]
                  %332 = vst [vmem:[%s274 + $0xe0] sm:$0xff] %v331
                  %v333 = vld [vmem:[%s273 + $0x2b8] sm:$0xff]
                  %334 = vst [vmem:[%s274 + $0xe8] sm:$0xff] %v333
                  %v335 = vld [vmem:[%s273 + $0x2d0] sm:$0xff]
                  %336 = vst [vmem:[%s274 + $0xf0] sm:$0xff] %v335
                  %v337 = vld [vmem:[%s273 + $0x2e8] sm:$0xff]
                  %338 = vst [vmem:[%s274 + $0xf8] sm:$0xff] %v337
                $region52: #{bert_encoder_forward.13} parent=46 // loop_footer
                  %s272 = sadd.s32 1, %s268
                $region53: #{bert_encoder_forward.13} parent=46 // loop_footer_branch
                  %267 = sbr.rel target = $region49
                $region54: #{bert_encoder_forward.13} parent=46 // loop_exit
                  _
              $region47: #{bert_encoder_forward.13} parent=31 // pred_fallthru
                _
              // Predicated region
              $region55: #{bert_encoder_forward.13} parent=31 // pred_check
                _
              $region56: #{bert_encoder_forward.13} parent=31 // pred_check_branch
                %340 = sbr.rel target = $region58
              $region57: #{bert_encoder_forward.13} parent=31 // pred_region
                _
              $region58: #{bert_encoder_forward.13} parent=31 // pred_fallthru
                _
            $region32: #{bert_encoder_forward.13} parent=27 // pred_fallthru
              _
            // Predicated region
            $region33: #{bert_encoder_forward.13} parent=27 // pred_check
              _
            $region34: #{bert_encoder_forward.13} parent=27 // pred_check_branch
              %190 = sbr.rel target = $region36
            $region35: #{bert_encoder_forward.13} parent=27 // pred_region
              %s192 = ssub.s32 256, 1
              loop: start=0, step=1, limit=1
              $region37: #{bert_encoder_forward.13} parent=35 // loop_pre_header
                _
              $region38: #{bert_encoder_forward.13} parent=35 // loop_header
                %s194 = sphi 0, %s198
                %p195 = scmp.ge.s32.totalorder %s194, 1
                %s199 = sphi %s184, %s184
                %s200 = sphi %s178, %s178
              $region39: #{bert_encoder_forward.13} parent=35 // loop_header_branch
                %197 = sbr.rel (%p195) target = $region43
              $region40: #{bert_encoder_forward.13} parent=35 // loop_body
                %v201 = vld [vmem:[%s199] sm:%s192]
                %202 = vst [vmem:[%s200] sm:%s192] %v201
                %v203 = vld [vmem:[%s199 + $0x18] sm:%s192]
                %204 = vst [vmem:[%s200 + $0x8] sm:%s192] %v203
                %v205 = vld [vmem:[%s199 + $0x30] sm:%s192]
                %206 = vst [vmem:[%s200 + $0x10] sm:%s192] %v205
                %v207 = vld [vmem:[%s199 + $0x48] sm:%s192]
                %208 = vst [vmem:[%s200 + $0x18] sm:%s192] %v207
                %v209 = vld [vmem:[%s199 + $0x60] sm:%s192]
                %210 = vst [vmem:[%s200 + $0x20] sm:%s192] %v209
                %v211 = vld [vmem:[%s199 + $0x78] sm:%s192]
                %212 = vst [vmem:[%s200 + $0x28] sm:%s192] %v211
                %v213 = vld [vmem:[%s199 + $0x90] sm:%s192]
                %214 = vst [vmem:[%s200 + $0x30] sm:%s192] %v213
                %v215 = vld [vmem:[%s199 + $0xa8] sm:%s192]
                %216 = vst [vmem:[%s200 + $0x38] sm:%s192] %v215
                %v217 = vld [vmem:[%s199 + $0xc0] sm:%s192]
                %218 = vst [vmem:[%s200 + $0x40] sm:%s192] %v217
                %v219 = vld [vmem:[%s199 + $0xd8] sm:%s192]
                %220 = vst [vmem:[%s200 + $0x48] sm:%s192] %v219
                %v221 = vld [vmem:[%s199 + $0xf0] sm:%s192]
                %222 = vst [vmem:[%s200 + $0x50] sm:%s192] %v221
                %v223 = vld [vmem:[%s199 + $0x108] sm:%s192]
                %224 = vst [vmem:[%s200 + $0x58] sm:%s192] %v223
                %v225 = vld [vmem:[%s199 + $0x120] sm:%s192]
                %226 = vst [vmem:[%s200 + $0x60] sm:%s192] %v225
                %v227 = vld [vmem:[%s199 + $0x138] sm:%s192]
                %228 = vst [vmem:[%s200 + $0x68] sm:%s192] %v227
                %v229 = vld [vmem:[%s199 + $0x150] sm:%s192]
                %230 = vst [vmem:[%s200 + $0x70] sm:%s192] %v229
                %v231 = vld [vmem:[%s199 + $0x168] sm:%s192]
                %232 = vst [vmem:[%s200 + $0x78] sm:%s192] %v231
                %v233 = vld [vmem:[%s199 + $0x180] sm:%s192]
                %234 = vst [vmem:[%s200 + $0x80] sm:%s192] %v233
                %v235 = vld [vmem:[%s199 + $0x198] sm:%s192]
                %236 = vst [vmem:[%s200 + $0x88] sm:%s192] %v235
                %v237 = vld [vmem:[%s199 + $0x1b0] sm:%s192]
                %238 = vst [vmem:[%s200 + $0x90] sm:%s192] %v237
                %v239 = vld [vmem:[%s199 + $0x1c8] sm:%s192]
                %240 = vst [vmem:[%s200 + $0x98] sm:%s192] %v239
                %v241 = vld [vmem:[%s199 + $0x1e0] sm:%s192]
                %242 = vst [vmem:[%s200 + $0xa0] sm:%s192] %v241
                %v243 = vld [vmem:[%s199 + $0x1f8] sm:%s192]
                %244 = vst [vmem:[%s200 + $0xa8] sm:%s192] %v243
                %v245 = vld [vmem:[%s199 + $0x210] sm:%s192]
                %246 = vst [vmem:[%s200 + $0xb0] sm:%s192] %v245
                %v247 = vld [vmem:[%s199 + $0x228] sm:%s192]
                %248 = vst [vmem:[%s200 + $0xb8] sm:%s192] %v247
                %v249 = vld [vmem:[%s199 + $0x240] sm:%s192]
                %250 = vst [vmem:[%s200 + $0xc0] sm:%s192] %v249
                %v251 = vld [vmem:[%s199 + $0x258] sm:%s192]
                %252 = vst [vmem:[%s200 + $0xc8] sm:%s192] %v251
                %v253 = vld [vmem:[%s199 + $0x270] sm:%s192]
                %254 = vst [vmem:[%s200 + $0xd0] sm:%s192] %v253
                %v255 = vld [vmem:[%s199 + $0x288] sm:%s192]
                %256 = vst [vmem:[%s200 + $0xd8] sm:%s192] %v255
                %v257 = vld [vmem:[%s199 + $0x2a0] sm:%s192]
                %258 = vst [vmem:[%s200 + $0xe0] sm:%s192] %v257
                %v259 = vld [vmem:[%s199 + $0x2b8] sm:%s192]
                %260 = vst [vmem:[%s200 + $0xe8] sm:%s192] %v259
                %v261 = vld [vmem:[%s199 + $0x2d0] sm:%s192]
                %262 = vst [vmem:[%s200 + $0xf0] sm:%s192] %v261
                %v263 = vld [vmem:[%s199 + $0x2e8] sm:%s192]
                %264 = vst [vmem:[%s200 + $0xf8] sm:%s192] %v263
              $region41: #{bert_encoder_forward.13} parent=35 // loop_footer
                %s198 = sadd.s32 1, %s194
              $region42: #{bert_encoder_forward.13} parent=35 // loop_footer_branch
                %193 = sbr.rel target = $region38
              $region43: #{bert_encoder_forward.13} parent=35 // loop_exit
                _
            $region36: #{bert_encoder_forward.13} parent=27 // pred_fallthru
              _
          $region28: #{bert_encoder_forward.13} parent=23 // pred_fallthru
            _
          %341 = vnop
        $region24: #{bert_encoder_forward.13} parent=15 // pred_fallthru
          _
        // Predicated region
        $region59: #{bert_encoder_forward.13} parent=15 // pred_check
          %p342 = pneg %p104
        $region60: #{bert_encoder_forward.13} parent=15 // pred_check_branch
          %344 = sbr.rel (%p342) target = $region62
        $region61: #{bert_encoder_forward.13} parent=15 // pred_region
          %s345 = smul.u32 2, %s17
          %p346 = scmp.lt.s32.totalorder %s345, 5
          %s347 = scalar_select %p346, %s345, 5
          %s348 = scalar_lea.vmem %s2, %s347
          %s349 = smul.u32 2, %s17
        $region62: #{bert_encoder_forward.13} parent=15 // pred_fallthru
          _
      $region16: #{bert_encoder_forward.13} parent=5 // pred_fallthru
        _
      %p350 = scmp.le.s32.totalorder 1, %s9
      %p351 = scmp.lt.s32.totalorder %s9, 7
      %p352 = pnand %p350, %p351
      %p353 = pneg %p352
      // Predicated region
      $region63: #{bert_encoder_forward.13} parent=5 // pred_check
        _
      $region64: #{bert_encoder_forward.13} parent=5 // pred_check_branch
        %355 = sbr.rel (%p352) target = $region66
      $region65: #{bert_encoder_forward.13} parent=5 // pred_region
        %s356 = ssub.s32 %s9, 1
        %s357 = sand.u32 %s71, 1
        %s358 = sand.u32 %s71, 1
        %s359 = smul.addr %s358, 256
        %s360 = scalar_lea.vmem [#allocation3], %s359
        // Predicated region
        $region67: #{bert_encoder_forward.13} parent=65 // pred_check
          %p361 = pneg %p84
        $region68: #{bert_encoder_forward.13} parent=65 // pred_check_branch
          %363 = sbr.rel (%p361) target = $region70
        $region69: #{bert_encoder_forward.13} parent=65 // pred_region
          _
        $region70: #{bert_encoder_forward.13} parent=65 // pred_fallthru
          _
        %s364 = smul.u32 16, %s19
        %s365 = smul.u32 2, %s21
        %p366 = scmp.lt.s32.totalorder %s364, 31
        %s367 = scalar_select %p366, %s364, 31
        %p368 = scmp.lt.s32.totalorder %s365, 1
        %s369 = scalar_select %p368, %s365, 1
        %s370 = smul.addr %s367, 2
        %s371 = sadd.s32 %s369, %s370
        %s372 = smul.addr %s371, 4
        %s373 = scalar_lea.vmem %s0, %s372
        %p374 = pneg %p56
        %p375 = pneg %p53
        %s376 = sand.u32 %s71, 1
        %s377 = sand.u32 %s71, 1
        %s378 = smul.addr %s377, 256
        %s379 = scalar_lea.vmem [#allocation3], %s378
        %p380 = pneg %p84
        %p381 = pneg %p81
        %s382 = smul.u32 2, %s20
        %p383 = scmp.lt.s32.totalorder %s382, 5
        %s384 = scalar_select %p383, %s382, 5
        %s385 = scalar_lea.vmem %s2, %s384
        %p386 = pneg %p110
        %p387 = pneg %p107
        %p388 = pneg %p138
        %p389 = pneg %p135
        %s390 = sand.u32 %s125, 1
        %s391 = sand.u32 %s125, 1
        %s392 = smul.addr %s391, 128
        %s393 = scalar_lea.vmem [#allocation4], %s392
        %s394 = smul.u32 16, %s19
        %s395 = smul.u32 2, %s21
        %p396 = scmp.lt.s32.totalorder %s394, 31
        %s397 = scalar_select %p396, %s394, 31
        %p398 = scmp.lt.s32.totalorder %s395, 1
        %s399 = scalar_select %p398, %s395, 1
        %s400 = smul.addr %s397, 2
        %s401 = sadd.s32 %s399, %s400
        %s402 = smul.addr %s401, 4
        %s403 = scalar_lea.vmem %s0, %s402
        %s404 = smul.u32 16, %s19
        %s405 = smul.u32 2, %s21
        %s406 = smul.u32 32, %s21
        %s407 = smul.u32 2, %s20
        %s408 = smul.u32 2, %s20
        %p409 = scmp.lt.s32.totalorder %s408, 5
        %s410 = scalar_select %p409, %s408, 5
        %s411 = scalar_lea.vmem %s2, %s410
        %s412 = smul.u32 2, %s20
        %s413 = smul.u32 16, %s19
        %s414 = smul.u32 2, %s20
        %p415 = scmp.eq.s32.totalorder %s21, 0
        // Predicated region
        $region71: #{bert_encoder_forward.13} parent=65 // pred_check
          %p416 = pneg %p415
        $region72: #{bert_encoder_forward.13} parent=65 // pred_check_branch
          %418 = sbr.rel (%p416) target = $region74
        $region73: #{bert_encoder_forward.13} parent=65 // pred_region
          %419 = vst [vmem:[#allocation2] sm:$0xff] 0.0
          %420 = vst [vmem:[#allocation2 + $0x8] sm:$0xff] 0.0
          %421 = vst [vmem:[#allocation2 + $0x10] sm:$0xff] 0.0
          %422 = vst [vmem:[#allocation2 + $0x18] sm:$0xff] 0.0
          %423 = vst [vmem:[#allocation2 + $0x20] sm:$0xff] 0.0
          %424 = vst [vmem:[#allocation2 + $0x28] sm:$0xff] 0.0
          %425 = vst [vmem:[#allocation2 + $0x30] sm:$0xff] 0.0
          %426 = vst [vmem:[#allocation2 + $0x38] sm:$0xff] 0.0
          %427 = vst [vmem:[#allocation2 + $0x40] sm:$0xff] 0.0
          %428 = vst [vmem:[#allocation2 + $0x48] sm:$0xff] 0.0
          %429 = vst [vmem:[#allocation2 + $0x50] sm:$0xff] 0.0
          %430 = vst [vmem:[#allocation2 + $0x58] sm:$0xff] 0.0
          %431 = vst [vmem:[#allocation2 + $0x60] sm:$0xff] 0.0
          %432 = vst [vmem:[#allocation2 + $0x68] sm:$0xff] 0.0
          %433 = vst [vmem:[#allocation2 + $0x70] sm:$0xff] 0.0
          %434 = vst [vmem:[#allocation2 + $0x78] sm:$0xff] 0.0
          %435 = vst [vmem:[#allocation2 + $0x80] sm:$0xff] 0.0
          %436 = vst [vmem:[#allocation2 + $0x88] sm:$0xff] 0.0
          %437 = vst [vmem:[#allocation2 + $0x90] sm:$0xff] 0.0
          %438 = vst [vmem:[#allocation2 + $0x98] sm:$0xff] 0.0
          %439 = vst [vmem:[#allocation2 + $0xa0] sm:$0xff] 0.0
          %440 = vst [vmem:[#allocation2 + $0xa8] sm:$0xff] 0.0
          %441 = vst [vmem:[#allocation2 + $0xb0] sm:$0xff] 0.0
          %442 = vst [vmem:[#allocation2 + $0xb8] sm:$0xff] 0.0
          %443 = vst [vmem:[#allocation2 + $0xc0] sm:$0xff] 0.0
          %444 = vst [vmem:[#allocation2 + $0xc8] sm:$0xff] 0.0
          %445 = vst [vmem:[#allocation2 + $0xd0] sm:$0xff] 0.0
          %446 = vst [vmem:[#allocation2 + $0xd8] sm:$0xff] 0.0
          %447 = vst [vmem:[#allocation2 + $0xe0] sm:$0xff] 0.0
          %448 = vst [vmem:[#allocation2 + $0xe8] sm:$0xff] 0.0
          %449 = vst [vmem:[#allocation2 + $0xf0] sm:$0xff] 0.0
          %450 = vst [vmem:[#allocation2 + $0xf8] sm:$0xff] 0.0
        $region74: #{bert_encoder_forward.13} parent=65 // pred_fallthru
          _
        %v451 = vld [vmem:[#allocation2] sm:$0xff]
        %v452 = vld [vmem:[#allocation2 + $0x8] sm:$0xff]
        %v453 = vld [vmem:[#allocation2 + $0x10] sm:$0xff]
        %v454 = vld [vmem:[#allocation2 + $0x18] sm:$0xff]
        %v455 = vld [vmem:[#allocation2 + $0x20] sm:$0xff]
        %v456 = vld [vmem:[#allocation2 + $0x28] sm:$0xff]
        %v457 = vld [vmem:[#allocation2 + $0x30] sm:$0xff]
        %v458 = vld [vmem:[#allocation2 + $0x38] sm:$0xff]
        %v459 = vld [vmem:[#allocation2 + $0x40] sm:$0xff]
        %v460 = vld [vmem:[#allocation2 + $0x48] sm:$0xff]
        %v461 = vld [vmem:[#allocation2 + $0x50] sm:$0xff]
        %v462 = vld [vmem:[#allocation2 + $0x58] sm:$0xff]
        %v463 = vld [vmem:[#allocation2 + $0x60] sm:$0xff]
        %v464 = vld [vmem:[#allocation2 + $0x68] sm:$0xff]
        %v465 = vld [vmem:[#allocation2 + $0x70] sm:$0xff]
        %v466 = vld [vmem:[#allocation2 + $0x78] sm:$0xff]
        %v467 = vld [vmem:[#allocation2 + $0x80] sm:$0xff]
        %v468 = vld [vmem:[#allocation2 + $0x88] sm:$0xff]
        %v469 = vld [vmem:[#allocation2 + $0x90] sm:$0xff]
        %v470 = vld [vmem:[#allocation2 + $0x98] sm:$0xff]
        %v471 = vld [vmem:[#allocation2 + $0xa0] sm:$0xff]
        %v472 = vld [vmem:[#allocation2 + $0xa8] sm:$0xff]
        %v473 = vld [vmem:[#allocation2 + $0xb0] sm:$0xff]
        %v474 = vld [vmem:[#allocation2 + $0xb8] sm:$0xff]
        %v475 = vld [vmem:[#allocation2 + $0xc0] sm:$0xff]
        %v476 = vld [vmem:[#allocation2 + $0xc8] sm:$0xff]
        %v477 = vld [vmem:[#allocation2 + $0xd0] sm:$0xff]
        %v478 = vld [vmem:[#allocation2 + $0xd8] sm:$0xff]
        %v479 = vld [vmem:[#allocation2 + $0xe0] sm:$0xff]
        %v480 = vld [vmem:[#allocation2 + $0xe8] sm:$0xff]
        %v481 = vld [vmem:[#allocation2 + $0xf0] sm:$0xff]
        %v482 = vld [vmem:[#allocation2 + $0xf8] sm:$0xff]
        %v483 = vld [vmem:[%s403] sm:$0xff]
        %v484 = vld [vmem:[%s403 + $0x8] sm:$0xff]
        %v485 = vld [vmem:[%s403 + $0x10] sm:$0xff]
        %v486 = vld [vmem:[%s403 + $0x18] sm:$0xff]
        %v487 = vld [vmem:[%s403 + $0x20] sm:$0xff]
        %v488 = vld [vmem:[%s403 + $0x28] sm:$0xff]
        %v489 = vld [vmem:[%s403 + $0x30] sm:$0xff]
        %v490 = vld [vmem:[%s403 + $0x38] sm:$0xff]
        %v491 = vld [vmem:[%s403 + $0x40] sm:$0xff]
        %v492 = vld [vmem:[%s403 + $0x48] sm:$0xff]
        %v493 = vld [vmem:[%s403 + $0x50] sm:$0xff]
        %v494 = vld [vmem:[%s403 + $0x58] sm:$0xff]
        %v495 = vld [vmem:[%s403 + $0x60] sm:$0xff]
        %v496 = vld [vmem:[%s403 + $0x68] sm:$0xff]
        %v497 = vld [vmem:[%s403 + $0x70] sm:$0xff]
        %v498 = vld [vmem:[%s403 + $0x78] sm:$0xff]
        %v499 = vld [vmem:[%s360] sm:$0xff]
        %v500 = vld [vmem:[%s360 + $0x8] sm:$0xff]
        %v501 = vld [vmem:[%s360 + $0x10] sm:$0xff]
        %v502 = vld [vmem:[%s360 + $0x18] sm:$0xff]
        %v503 = vld [vmem:[%s360 + $0x20] sm:$0xff]
        %v504 = vld [vmem:[%s360 + $0x28] sm:$0xff]
        %v505 = vld [vmem:[%s360 + $0x30] sm:$0xff]
        %v506 = vld [vmem:[%s360 + $0x38] sm:$0xff]
        %v507 = vld [vmem:[%s360 + $0x40] sm:$0xff]
        %v508 = vld [vmem:[%s360 + $0x48] sm:$0xff]
        %v509 = vld [vmem:[%s360 + $0x50] sm:$0xff]
        %v510 = vld [vmem:[%s360 + $0x58] sm:$0xff]
        %v511 = vld [vmem:[%s360 + $0x60] sm:$0xff]
        %v512 = vld [vmem:[%s360 + $0x68] sm:$0xff]
        %v513 = vld [vmem:[%s360 + $0x70] sm:$0xff]
        %v514 = vld [vmem:[%s360 + $0x78] sm:$0xff]
        %v515 = vld [vmem:[%s360 + $0x80] sm:$0xff]
        %v516 = vld [vmem:[%s360 + $0x88] sm:$0xff]
        %v517 = vld [vmem:[%s360 + $0x90] sm:$0xff]
        %v518 = vld [vmem:[%s360 + $0x98] sm:$0xff]
        %v519 = vld [vmem:[%s360 + $0xa0] sm:$0xff]
        %v520 = vld [vmem:[%s360 + $0xa8] sm:$0xff]
        %v521 = vld [vmem:[%s360 + $0xb0] sm:$0xff]
        %v522 = vld [vmem:[%s360 + $0xb8] sm:$0xff]
        %v523 = vld [vmem:[%s360 + $0xc0] sm:$0xff]
        %v524 = vld [vmem:[%s360 + $0xc8] sm:$0xff]
        %v525 = vld [vmem:[%s360 + $0xd0] sm:$0xff]
        %v526 = vld [vmem:[%s360 + $0xd8] sm:$0xff]
        %v527 = vld [vmem:[%s360 + $0xe0] sm:$0xff]
        %v528 = vld [vmem:[%s360 + $0xe8] sm:$0xff]
        %v529 = vld [vmem:[%s360 + $0xf0] sm:$0xff]
        %v530 = vld [vmem:[%s360 + $0xf8] sm:$0xff]
        %v547 = vunpack.c.l.b16 %v483
        %v548 = vunpack.c.h.b16 %v483
        %v549 = vunpack.c.l.b16 %v484
        %v550 = vunpack.c.h.b16 %v484
        %v551 = vunpack.c.l.b16 %v485
        %v552 = vunpack.c.h.b16 %v485
        %v553 = vunpack.c.l.b16 %v486
        %v554 = vunpack.c.h.b16 %v486
        %v555 = vunpack.c.l.b16 %v487
        %v556 = vunpack.c.h.b16 %v487
        %v557 = vunpack.c.l.b16 %v488
        %v558 = vunpack.c.h.b16 %v488
        %v559 = vunpack.c.l.b16 %v489
        %v560 = vunpack.c.h.b16 %v489
        %v561 = vunpack.c.l.b16 %v490
        %v562 = vunpack.c.h.b16 %v490
        %v563 = vunpack.c.l.b16 %v491
        %v564 = vunpack.c.h.b16 %v491
        %v565 = vunpack.c.l.b16 %v492
        %v566 = vunpack.c.h.b16 %v492
        %v567 = vunpack.c.l.b16 %v493
        %v568 = vunpack.c.h.b16 %v493
        %v569 = vunpack.c.l.b16 %v494
        %v570 = vunpack.c.h.b16 %v494
        %v571 = vunpack.c.l.b16 %v495
        %v572 = vunpack.c.h.b16 %v495
        %v573 = vunpack.c.l.b16 %v496
        %v574 = vunpack.c.h.b16 %v496
        %v575 = vunpack.c.l.b16 %v497
        %v576 = vunpack.c.h.b16 %v497
        %v577 = vunpack.c.l.b16 %v498
        %v578 = vunpack.c.h.b16 %v498
        %v579 = vpack.c.b16 %v549, %v547
        %v580 = vpack.c.b16 %v550, %v548
        %v581 = vpack.c.b16 %v553, %v551
        %v582 = vpack.c.b16 %v554, %v552
        %v583 = vpack.c.b16 %v557, %v555
        %v584 = vpack.c.b16 %v558, %v556
        %v585 = vpack.c.b16 %v561, %v559
        %v586 = vpack.c.b16 %v562, %v560
        %v587 = vpack.c.b16 %v565, %v563
        %v588 = vpack.c.b16 %v566, %v564
        %v589 = vpack.c.b16 %v569, %v567
        %v590 = vpack.c.b16 %v570, %v568
        %v591 = vpack.c.b16 %v573, %v571
        %v592 = vpack.c.b16 %v574, %v572
        %v593 = vpack.c.b16 %v577, %v575
        %v594 = vpack.c.b16 %v578, %v576
        %v643 = vunpack.c.l.b16 %v499
        %v644 = vunpack.c.h.b16 %v499
        %v645 = vunpack.c.l.b16 %v500
        %v646 = vunpack.c.h.b16 %v500
        %v647 = vunpack.c.l.b16 %v501
        %v648 = vunpack.c.h.b16 %v501
        %v649 = vunpack.c.l.b16 %v502
        %v650 = vunpack.c.h.b16 %v502
        %v651 = vunpack.c.l.b16 %v503
        %v652 = vunpack.c.h.b16 %v503
        %v653 = vunpack.c.l.b16 %v504
        %v654 = vunpack.c.h.b16 %v504
        %v655 = vunpack.c.l.b16 %v505
        %v656 = vunpack.c.h.b16 %v505
        %v657 = vunpack.c.l.b16 %v506
        %v658 = vunpack.c.h.b16 %v506
        %v659 = vunpack.c.l.b16 %v507
        %v660 = vunpack.c.h.b16 %v507
        %v661 = vunpack.c.l.b16 %v508
        %v662 = vunpack.c.h.b16 %v508
        %v663 = vunpack.c.l.b16 %v509
        %v664 = vunpack.c.h.b16 %v509
        %v665 = vunpack.c.l.b16 %v510
        %v666 = vunpack.c.h.b16 %v510
        %v667 = vunpack.c.l.b16 %v511
        %v668 = vunpack.c.h.b16 %v511
        %v669 = vunpack.c.l.b16 %v512
        %v670 = vunpack.c.h.b16 %v512
        %v671 = vunpack.c.l.b16 %v513
        %v672 = vunpack.c.h.b16 %v513
        %v673 = vunpack.c.l.b16 %v514
        %v674 = vunpack.c.h.b16 %v514
        %v675 = vunpack.c.l.b16 %v515
        %v676 = vunpack.c.h.b16 %v515
        %v677 = vunpack.c.l.b16 %v516
        %v678 = vunpack.c.h.b16 %v516
        %v679 = vunpack.c.l.b16 %v517
        %v680 = vunpack.c.h.b16 %v517
        %v681 = vunpack.c.l.b16 %v518
        %v682 = vunpack.c.h.b16 %v518
        %v683 = vunpack.c.l.b16 %v519
        %v684 = vunpack.c.h.b16 %v519
        %v685 = vunpack.c.l.b16 %v520
        %v686 = vunpack.c.h.b16 %v520
        %v687 = vunpack.c.l.b16 %v521
        %v688 = vunpack.c.h.b16 %v521
        %v689 = vunpack.c.l.b16 %v522
        %v690 = vunpack.c.h.b16 %v522
        %v691 = vunpack.c.l.b16 %v523
        %v692 = vunpack.c.h.b16 %v523
        %v693 = vunpack.c.l.b16 %v524
        %v694 = vunpack.c.h.b16 %v524
        %v695 = vunpack.c.l.b16 %v525
        %v696 = vunpack.c.h.b16 %v525
        %v697 = vunpack.c.l.b16 %v526
        %v698 = vunpack.c.h.b16 %v526
        %v699 = vunpack.c.l.b16 %v527
        %v700 = vunpack.c.h.b16 %v527
        %v701 = vunpack.c.l.b16 %v528
        %v702 = vunpack.c.h.b16 %v528
        %v703 = vunpack.c.l.b16 %v529
        %v704 = vunpack.c.h.b16 %v529
        %v705 = vunpack.c.l.b16 %v530
        %v706 = vunpack.c.h.b16 %v530
        %v707 = vpack.c.b16 %v645, %v643
        %v708 = vpack.c.b16 %v646, %v644
        %v709 = vpack.c.b16 %v649, %v647
        %v710 = vpack.c.b16 %v650, %v648
        %v711 = vpack.c.b16 %v653, %v651
        %v712 = vpack.c.b16 %v654, %v652
        %v713 = vpack.c.b16 %v657, %v655
        %v714 = vpack.c.b16 %v658, %v656
        %v715 = vpack.c.b16 %v661, %v659
        %v716 = vpack.c.b16 %v662, %v660
        %v717 = vpack.c.b16 %v665, %v663
        %v718 = vpack.c.b16 %v666, %v664
        %v719 = vpack.c.b16 %v669, %v667
        %v720 = vpack.c.b16 %v670, %v668
        %v721 = vpack.c.b16 %v673, %v671
        %v722 = vpack.c.b16 %v674, %v672
        %v723 = vpack.c.b16 %v677, %v675
        %v724 = vpack.c.b16 %v678, %v676
        %v725 = vpack.c.b16 %v681, %v679
        %v726 = vpack.c.b16 %v682, %v680
        %v727 = vpack.c.b16 %v685, %v683
        %v728 = vpack.c.b16 %v686, %v684
        %v729 = vpack.c.b16 %v689, %v687
        %v730 = vpack.c.b16 %v690, %v688
        %v731 = vpack.c.b16 %v693, %v691
        %v732 = vpack.c.b16 %v694, %v692
        %v733 = vpack.c.b16 %v697, %v695
        %v734 = vpack.c.b16 %v698, %v696
        %v735 = vpack.c.b16 %v701, %v699
        %v736 = vpack.c.b16 %v702, %v700
        %v737 = vpack.c.b16 %v705, %v703
        %v738 = vpack.c.b16 %v706, %v704
        %771 = vmatprep.subr.bf16.mxu0 %v722
        %772 = vmatpush1.bf16.msra.mxu0 %v721
        %773 = vmatprep.subr.bf16.mxu0 %v720
        %774 = vmatpush1.bf16.msra.mxu0 %v719
        %775 = vmatprep.subr.bf16.mxu0 %v718
        %776 = vmatpush1.bf16.msra.mxu0 %v717
        %777 = vmatprep.subr.bf16.mxu0 %v716
        %778 = vmatpush1.bf16.msra.mxu0 %v715
        %779 = vmatprep.subr.bf16.mxu0 %v714
        %780 = vmatpush1.bf16.msra.mxu0 %v713
        %781 = vmatprep.subr.bf16.mxu0 %v712
        %782 = vmatpush1.bf16.msra.mxu0 %v711
        %783 = vmatprep.subr.bf16.mxu0 %v710
        %784 = vmatpush1.bf16.msra.mxu0 %v709
        %785 = vmatprep.subr.bf16.mxu0 %v708
        %786 = vmatpush1.bf16.msra.mxu0 %v707
        %787 = vmatprep.subr.bf16.mxu0 %v738
        %788 = vmatpush2.bf16.msra.mxu0 %v737
        %789 = vmatprep.subr.bf16.mxu0 %v736
        %790 = vmatpush2.bf16.msra.mxu0 %v735
        %791 = vmatprep.subr.bf16.mxu0 %v734
        %792 = vmatpush2.bf16.msra.mxu0 %v733
        %793 = vmatprep.subr.bf16.mxu0 %v732
        %794 = vmatpush2.bf16.msra.mxu0 %v731
        %795 = vmatprep.subr.bf16.mxu0 %v730
        %796 = vmatpush2.bf16.msra.mxu0 %v729
        %797 = vmatprep.subr.bf16.mxu0 %v728
        %798 = vmatpush2.bf16.msra.mxu0 %v727
        %799 = vmatprep.subr.bf16.mxu0 %v726
        %800 = vmatpush2.bf16.msra.mxu0 %v725
        %801 = vmatprep.subr.bf16.mxu0 %v724
        %802 = vmatpush2.bf16.msra.mxu0 %v723
        %803 = vmatprep.mubr.bf16.mxu0 %v580
        %804 = vmatmul.mubr.bf16.gmra.mxu0 %v579
        %v805 = vpop.f32.mrf.mxu0
        %v806 = vadd.f32 0.0, %v805
        %v807 = vpop.f32.mrf.mxu0
        %v808 = vadd.f32 0.0, %v807
        %v809 = vpop.f32.mrf.mxu0
        %v810 = vadd.f32 0.0, %v809
        %v811 = vpop.f32.mrf.mxu0
        %v812 = vadd.f32 0.0, %v811
        %813 = vmatprep.mubr.bf16.mxu0 %v582
        %814 = vmatmul.mubr.bf16.gmra.mxu0 %v581
        %v815 = vpop.f32.mrf.mxu0
        %v816 = vadd.f32 0.0, %v815
        %v817 = vpop.f32.mrf.mxu0
        %v818 = vadd.f32 0.0, %v817
        %v819 = vpop.f32.mrf.mxu0
        %v820 = vadd.f32 0.0, %v819
        %v821 = vpop.f32.mrf.mxu0
        %v822 = vadd.f32 0.0, %v821
        %823 = vmatprep.mubr.bf16.mxu0 %v584
        %824 = vmatmul.mubr.bf16.gmra.mxu0 %v583
        %v825 = vpop.f32.mrf.mxu0
        %v826 = vadd.f32 0.0, %v825
        %v827 = vpop.f32.mrf.mxu0
        %v828 = vadd.f32 0.0, %v827
        %v829 = vpop.f32.mrf.mxu0
        %v830 = vadd.f32 0.0, %v829
        %v831 = vpop.f32.mrf.mxu0
        %v832 = vadd.f32 0.0, %v831
        %833 = vmatprep.mubr.bf16.mxu0 %v586
        %834 = vmatmul.mubr.bf16.gmra.mxu0 %v585
        %v835 = vpop.f32.mrf.mxu0
        %v836 = vadd.f32 0.0, %v835
        %v837 = vpop.f32.mrf.mxu0
        %v838 = vadd.f32 0.0, %v837
        %v839 = vpop.f32.mrf.mxu0
        %v840 = vadd.f32 0.0, %v839
        %v841 = vpop.f32.mrf.mxu0
        %v842 = vadd.f32 0.0, %v841
        %843 = vmatprep.mubr.bf16.mxu0 %v588
        %844 = vmatmul.mubr.bf16.gmra.mxu0 %v587
        %v845 = vpop.f32.mrf.mxu0
        %v846 = vadd.f32 0.0, %v845
        %v847 = vpop.f32.mrf.mxu0
        %v848 = vadd.f32 0.0, %v847
        %v849 = vpop.f32.mrf.mxu0
        %v850 = vadd.f32 0.0, %v849
        %v851 = vpop.f32.mrf.mxu0
        %v852 = vadd.f32 0.0, %v851
        %853 = vmatprep.mubr.bf16.mxu0 %v590
        %854 = vmatmul.mubr.bf16.gmra.mxu0 %v589
        %v855 = vpop.f32.mrf.mxu0
        %v856 = vadd.f32 0.0, %v855
        %v857 = vpop.f32.mrf.mxu0
        %v858 = vadd.f32 0.0, %v857
        %v859 = vpop.f32.mrf.mxu0
        %v860 = vadd.f32 0.0, %v859
        %v861 = vpop.f32.mrf.mxu0
        %v862 = vadd.f32 0.0, %v861
        %863 = vmatprep.mubr.bf16.mxu0 %v592
        %864 = vmatmul.mubr.bf16.gmra.mxu0 %v591
        %v865 = vpop.f32.mrf.mxu0
        %v866 = vadd.f32 0.0, %v865
        %v867 = vpop.f32.mrf.mxu0
        %v868 = vadd.f32 0.0, %v867
        %v869 = vpop.f32.mrf.mxu0
        %v870 = vadd.f32 0.0, %v869
        %v871 = vpop.f32.mrf.mxu0
        %v872 = vadd.f32 0.0, %v871
        %873 = vmatprep.mubr.bf16.mxu0 %v594
        %874 = vmatmul.mubr.bf16.gmra.mxu0 %v593
        %v875 = vpop.f32.mrf.mxu0
        %v876 = vadd.f32 0.0, %v875
        %v877 = vpop.f32.mrf.mxu0
        %v878 = vadd.f32 0.0, %v877
        %v879 = vpop.f32.mrf.mxu0
        %v880 = vadd.f32 0.0, %v879
        %v881 = vpop.f32.mrf.mxu0
        %v882 = vadd.f32 0.0, %v881
        %883 = vdwg.mxu0
        %v884 = vadd.f32 %v451, %v806
        %v885 = vadd.f32 %v452, %v808
        %v886 = vadd.f32 %v453, %v810
        %v887 = vadd.f32 %v454, %v812
        %v888 = vadd.f32 %v455, %v816
        %v889 = vadd.f32 %v456, %v818
        %v890 = vadd.f32 %v457, %v820
        %v891 = vadd.f32 %v458, %v822
        %v892 = vadd.f32 %v459, %v826
        %v893 = vadd.f32 %v460, %v828
        %v894 = vadd.f32 %v461, %v830
        %v895 = vadd.f32 %v462, %v832
        %v896 = vadd.f32 %v463, %v836
        %v897 = vadd.f32 %v464, %v838
        %v898 = vadd.f32 %v465, %v840
        %v899 = vadd.f32 %v466, %v842
        %v900 = vadd.f32 %v467, %v846
        %v901 = vadd.f32 %v468, %v848
        %v902 = vadd.f32 %v469, %v850
        %v903 = vadd.f32 %v470, %v852
        %v904 = vadd.f32 %v471, %v856
        %v905 = vadd.f32 %v472, %v858
        %v906 = vadd.f32 %v473, %v860
        %v907 = vadd.f32 %v474, %v862
        %v908 = vadd.f32 %v475, %v866
        %v909 = vadd.f32 %v476, %v868
        %v910 = vadd.f32 %v477, %v870
        %v911 = vadd.f32 %v478, %v872
        %v912 = vadd.f32 %v479, %v876
        %v913 = vadd.f32 %v480, %v878
        %v914 = vadd.f32 %v481, %v880
        %v915 = vadd.f32 %v482, %v882
        %916 = vst [vmem:[#allocation2] sm:$0xff] %v884
        %917 = vst [vmem:[#allocation2 + $0x8] sm:$0xff] %v885
        %918 = vst [vmem:[#allocation2 + $0x10] sm:$0xff] %v886
        %919 = vst [vmem:[#allocation2 + $0x18] sm:$0xff] %v887
        %920 = vst [vmem:[#allocation2 + $0x20] sm:$0xff] %v888
        %921 = vst [vmem:[#allocation2 + $0x28] sm:$0xff] %v889
        %922 = vst [vmem:[#allocation2 + $0x30] sm:$0xff] %v890
        %923 = vst [vmem:[#allocation2 + $0x38] sm:$0xff] %v891
        %924 = vst [vmem:[#allocation2 + $0x40] sm:$0xff] %v892
        %925 = vst [vmem:[#allocation2 + $0x48] sm:$0xff] %v893
        %926 = vst [vmem:[#allocation2 + $0x50] sm:$0xff] %v894
        %927 = vst [vmem:[#allocation2 + $0x58] sm:$0xff] %v895
        %928 = vst [vmem:[#allocation2 + $0x60] sm:$0xff] %v896
        %929 = vst [vmem:[#allocation2 + $0x68] sm:$0xff] %v897
        %930 = vst [vmem:[#allocation2 + $0x70] sm:$0xff] %v898
        %931 = vst [vmem:[#allocation2 + $0x78] sm:$0xff] %v899
        %932 = vst [vmem:[#allocation2 + $0x80] sm:$0xff] %v900
        %933 = vst [vmem:[#allocation2 + $0x88] sm:$0xff] %v901
        %934 = vst [vmem:[#allocation2 + $0x90] sm:$0xff] %v902
        %935 = vst [vmem:[#allocation2 + $0x98] sm:$0xff] %v903
        %936 = vst [vmem:[#allocation2 + $0xa0] sm:$0xff] %v904
        %937 = vst [vmem:[#allocation2 + $0xa8] sm:$0xff] %v905
        %938 = vst [vmem:[#allocation2 + $0xb0] sm:$0xff] %v906
        %939 = vst [vmem:[#allocation2 + $0xb8] sm:$0xff] %v907
        %940 = vst [vmem:[#allocation2 + $0xc0] sm:$0xff] %v908
        %941 = vst [vmem:[#allocation2 + $0xc8] sm:$0xff] %v909
        %942 = vst [vmem:[#allocation2 + $0xd0] sm:$0xff] %v910
        %943 = vst [vmem:[#allocation2 + $0xd8] sm:$0xff] %v911
        %944 = vst [vmem:[#allocation2 + $0xe0] sm:$0xff] %v912
        %945 = vst [vmem:[#allocation2 + $0xe8] sm:$0xff] %v913
        %946 = vst [vmem:[#allocation2 + $0xf0] sm:$0xff] %v914
        %947 = vst [vmem:[#allocation2 + $0xf8] sm:$0xff] %v915
        // Predicated region
        $region75: #{bert_encoder_forward.13} parent=65 // pred_check
          %p948 = pneg %p415
        $region76: #{bert_encoder_forward.13} parent=65 // pred_check_branch
          %950 = sbr.rel (%p948) target = $region78
        $region77: #{bert_encoder_forward.13} parent=65 // pred_region
          %v951 = vld [vmem:[#allocation2] sm:$0xff]
          %v952 = vld [vmem:[#allocation2 + $0x8] sm:$0xff]
          %v953 = vld [vmem:[#allocation2 + $0x10] sm:$0xff]
          %v954 = vld [vmem:[#allocation2 + $0x18] sm:$0xff]
          %v955 = vld [vmem:[#allocation2 + $0x20] sm:$0xff]
          %v956 = vld [vmem:[#allocation2 + $0x28] sm:$0xff]
          %v957 = vld [vmem:[#allocation2 + $0x30] sm:$0xff]
          %v958 = vld [vmem:[#allocation2 + $0x38] sm:$0xff]
          %v959 = vld [vmem:[#allocation2 + $0x40] sm:$0xff]
          %v960 = vld [vmem:[#allocation2 + $0x48] sm:$0xff]
          %v961 = vld [vmem:[#allocation2 + $0x50] sm:$0xff]
          %v962 = vld [vmem:[#allocation2 + $0x58] sm:$0xff]
          %v963 = vld [vmem:[#allocation2 + $0x60] sm:$0xff]
          %v964 = vld [vmem:[#allocation2 + $0x68] sm:$0xff]
          %v965 = vld [vmem:[#allocation2 + $0x70] sm:$0xff]
          %v966 = vld [vmem:[#allocation2 + $0x78] sm:$0xff]
          %v967 = vld [vmem:[#allocation2 + $0x80] sm:$0xff]
          %v968 = vld [vmem:[#allocation2 + $0x88] sm:$0xff]
          %v969 = vld [vmem:[#allocation2 + $0x90] sm:$0xff]
          %v970 = vld [vmem:[#allocation2 + $0x98] sm:$0xff]
          %v971 = vld [vmem:[#allocation2 + $0xa0] sm:$0xff]
          %v972 = vld [vmem:[#allocation2 + $0xa8] sm:$0xff]
          %v973 = vld [vmem:[#allocation2 + $0xb0] sm:$0xff]
          %v974 = vld [vmem:[#allocation2 + $0xb8] sm:$0xff]
          %v975 = vld [vmem:[#allocation2 + $0xc0] sm:$0xff]
          %v976 = vld [vmem:[#allocation2 + $0xc8] sm:$0xff]
          %v977 = vld [vmem:[#allocation2 + $0xd0] sm:$0xff]
          %v978 = vld [vmem:[#allocation2 + $0xd8] sm:$0xff]
          %v979 = vld [vmem:[#allocation2 + $0xe0] sm:$0xff]
          %v980 = vld [vmem:[#allocation2 + $0xe8] sm:$0xff]
          %v981 = vld [vmem:[#allocation2 + $0xf0] sm:$0xff]
          %v982 = vld [vmem:[#allocation2 + $0xf8] sm:$0xff]
          %v983 = vld [vmem:[%s411] sm:$0x3]
          %v985 = vlaneseq
          %v986 = vshrl.u32 %v985, 7
          %v987 = vsub.s32 0, %v986
          %v988 = vrot.slane %v983, %v987
          %v989 = vlaneseq
          %v990 = vshrl.u32 %v989, 7
          %v991 = vsub.s32 1, %v990
          %v992 = vrot.slane %v983, %v991
          %v995 = vadd.f32 %v951, %v988
          %v996 = vadd.f32 %v952, %v992
          %v997 = vadd.f32 %v953, %v988
          %v998 = vadd.f32 %v954, %v992
          %v999 = vadd.f32 %v955, %v988
          %v1000 = vadd.f32 %v956, %v992
          %v1001 = vadd.f32 %v957, %v988
          %v1002 = vadd.f32 %v958, %v992
          %v1003 = vadd.f32 %v959, %v988
          %v1004 = vadd.f32 %v960, %v992
          %v1005 = vadd.f32 %v961, %v988
          %v1006 = vadd.f32 %v962, %v992
          %v1007 = vadd.f32 %v963, %v988
          %v1008 = vadd.f32 %v964, %v992
          %v1009 = vadd.f32 %v965, %v988
          %v1010 = vadd.f32 %v966, %v992
          %v1011 = vadd.f32 %v967, %v988
          %v1012 = vadd.f32 %v968, %v992
          %v1013 = vadd.f32 %v969, %v988
          %v1014 = vadd.f32 %v970, %v992
          %v1015 = vadd.f32 %v971, %v988
          %v1016 = vadd.f32 %v972, %v992
          %v1017 = vadd.f32 %v973, %v988
          %v1018 = vadd.f32 %v974, %v992
          %v1019 = vadd.f32 %v975, %v988
          %v1020 = vadd.f32 %v976, %v992
          %v1021 = vadd.f32 %v977, %v988
          %v1022 = vadd.f32 %v978, %v992
          %v1023 = vadd.f32 %v979, %v988
          %v1024 = vadd.f32 %v980, %v992
          %v1025 = vadd.f32 %v981, %v988
          %v1026 = vadd.f32 %v982, %v992
          %v1027 = vpack.c.bf16 %v997, %v995
          %v1028 = vpack.c.bf16 %v998, %v996
          %v1029 = vpack.c.bf16 %v1001, %v999
          %v1030 = vpack.c.bf16 %v1002, %v1000
          %v1031 = vpack.c.bf16 %v1005, %v1003
          %v1032 = vpack.c.bf16 %v1006, %v1004
          %v1033 = vpack.c.bf16 %v1009, %v1007
          %v1034 = vpack.c.bf16 %v1010, %v1008
          %v1035 = vpack.c.bf16 %v1013, %v1011
          %v1036 = vpack.c.bf16 %v1014, %v1012
          %v1037 = vpack.c.bf16 %v1017, %v1015
          %v1038 = vpack.c.bf16 %v1018, %v1016
          %v1039 = vpack.c.bf16 %v1021, %v1019
          %v1040 = vpack.c.bf16 %v1022, %v1020
          %v1041 = vpack.c.bf16 %v1025, %v1023
          %v1042 = vpack.c.bf16 %v1026, %v1024
          %v1059 = vunpack.c.l.b16 %v1027
          %v1060 = vunpack.c.l.b16 %v1028
          %v1061 = vunpack.c.h.b16 %v1027
          %v1062 = vunpack.c.h.b16 %v1028
          %v1063 = vunpack.c.l.b16 %v1029
          %v1064 = vunpack.c.l.b16 %v1030
          %v1065 = vunpack.c.h.b16 %v1029
          %v1066 = vunpack.c.h.b16 %v1030
          %v1067 = vunpack.c.l.b16 %v1031
          %v1068 = vunpack.c.l.b16 %v1032
          %v1069 = vunpack.c.h.b16 %v1031
          %v1070 = vunpack.c.h.b16 %v1032
          %v1071 = vunpack.c.l.b16 %v1033
          %v1072 = vunpack.c.l.b16 %v1034
          %v1073 = vunpack.c.h.b16 %v1033
          %v1074 = vunpack.c.h.b16 %v1034
          %v1075 = vunpack.c.l.b16 %v1035
          %v1076 = vunpack.c.l.b16 %v1036
          %v1077 = vunpack.c.h.b16 %v1035
          %v1078 = vunpack.c.h.b16 %v1036
          %v1079 = vunpack.c.l.b16 %v1037
          %v1080 = vunpack.c.l.b16 %v1038
          %v1081 = vunpack.c.h.b16 %v1037
          %v1082 = vunpack.c.h.b16 %v1038
          %v1083 = vunpack.c.l.b16 %v1039
          %v1084 = vunpack.c.l.b16 %v1040
          %v1085 = vunpack.c.h.b16 %v1039
          %v1086 = vunpack.c.h.b16 %v1040
          %v1087 = vunpack.c.l.b16 %v1041
          %v1088 = vunpack.c.l.b16 %v1042
          %v1089 = vunpack.c.h.b16 %v1041
          %v1090 = vunpack.c.h.b16 %v1042
          %v1091 = vpack.c.b16 %v1060, %v1059
          %v1092 = vpack.c.b16 %v1062, %v1061
          %v1093 = vpack.c.b16 %v1064, %v1063
          %v1094 = vpack.c.b16 %v1066, %v1065
          %v1095 = vpack.c.b16 %v1068, %v1067
          %v1096 = vpack.c.b16 %v1070, %v1069
          %v1097 = vpack.c.b16 %v1072, %v1071
          %v1098 = vpack.c.b16 %v1074, %v1073
          %v1099 = vpack.c.b16 %v1076, %v1075
          %v1100 = vpack.c.b16 %v1078, %v1077
          %v1101 = vpack.c.b16 %v1080, %v1079
          %v1102 = vpack.c.b16 %v1082, %v1081
          %v1103 = vpack.c.b16 %v1084, %v1083
          %v1104 = vpack.c.b16 %v1086, %v1085
          %v1105 = vpack.c.b16 %v1088, %v1087
          %v1106 = vpack.c.b16 %v1090, %v1089
          %1123 = vst [vmem:[%s393] sm:$0xff] %v1091
          %1124 = vst [vmem:[%s393 + $0x8] sm:$0xff] %v1092
          %1125 = vst [vmem:[%s393 + $0x10] sm:$0xff] %v1093
          %1126 = vst [vmem:[%s393 + $0x18] sm:$0xff] %v1094
          %1127 = vst [vmem:[%s393 + $0x20] sm:$0xff] %v1095
          %1128 = vst [vmem:[%s393 + $0x28] sm:$0xff] %v1096
          %1129 = vst [vmem:[%s393 + $0x30] sm:$0xff] %v1097
          %1130 = vst [vmem:[%s393 + $0x38] sm:$0xff] %v1098
          %1131 = vst [vmem:[%s393 + $0x40] sm:$0xff] %v1099
          %1132 = vst [vmem:[%s393 + $0x48] sm:$0xff] %v1100
          %1133 = vst [vmem:[%s393 + $0x50] sm:$0xff] %v1101
          %1134 = vst [vmem:[%s393 + $0x58] sm:$0xff] %v1102
          %1135 = vst [vmem:[%s393 + $0x60] sm:$0xff] %v1103
          %1136 = vst [vmem:[%s393 + $0x68] sm:$0xff] %v1104
          %1137 = vst [vmem:[%s393 + $0x70] sm:$0xff] %v1105
          %1138 = vst [vmem:[%s393 + $0x78] sm:$0xff] %v1106
        $region78: #{bert_encoder_forward.13} parent=65 // pred_fallthru
          _
        %s1139 = sand.u32 %s125, 1
        %s1140 = sand.u32 %s125, 1
        %s1141 = smul.addr %s1140, 128
        %s1142 = scalar_lea.vmem [#allocation4], %s1141
        // Predicated region
        $region79: #{bert_encoder_forward.13} parent=65 // pred_check
          %p1143 = pneg %p135
        $region80: #{bert_encoder_forward.13} parent=65 // pred_check_branch
          %1145 = sbr.rel (%p1143) target = $region82
        $region81: #{bert_encoder_forward.13} parent=65 // pred_region
          %s1146 = smul.u32 16, %s19
          %s1147 = smul.u32 2, %s20
          %s1148 = smul.addr %s1146, 6
          %s1149 = sadd.s32 %s1147, %s1148
          %s1150 = smul.addr %s1149, 4
          %s1151 = scalar_lea.vmem %s3, %s1150
          // Predicated region
          $region83: #{bert_encoder_forward.13} parent=81 // pred_check
            _
          $region84: #{bert_encoder_forward.13} parent=81 // pred_check_branch
            %1153 = sbr.rel (0) target = $region86
          $region85: #{bert_encoder_forward.13} parent=81 // pred_region
            // Predicated region
            $region87: #{bert_encoder_forward.13} parent=85 // pred_check
              _
            $region88: #{bert_encoder_forward.13} parent=85 // pred_check_branch
              %1155 = sbr.rel (0) target = $region90
            $region89: #{bert_encoder_forward.13} parent=85 // pred_region
              // Predicated region
              $region102: #{bert_encoder_forward.13} parent=89 // pred_check
                _
              $region103: #{bert_encoder_forward.13} parent=89 // pred_check_branch
                %1201 = sbr.rel (0) target = $region105
              $region104: #{bert_encoder_forward.13} parent=89 // pred_region
                loop: start=0, step=1, limit=1
                $region106: #{bert_encoder_forward.13} parent=104 // loop_pre_header
                  _
                $region107: #{bert_encoder_forward.13} parent=104 // loop_header
                  %s1203 = sphi 0, %s1207
                  %p1204 = scmp.ge.s32.totalorder %s1203, 1
                  %s1208 = sphi %s1142, %s1142
                  %s1209 = sphi %s1151, %s1151
                $region108: #{bert_encoder_forward.13} parent=104 // loop_header_branch
                  %1206 = sbr.rel (%p1204) target = $region112
                $region109: #{bert_encoder_forward.13} parent=104 // loop_body
                  %v1210 = vld [vmem:[%s1208] sm:$0xff]
                  %1211 = vst [vmem:[%s1209] sm:$0xff] %v1210
                  %v1212 = vld [vmem:[%s1208 + $0x8] sm:$0xff]
                  %1213 = vst [vmem:[%s1209 + $0x18] sm:$0xff] %v1212
                  %v1214 = vld [vmem:[%s1208 + $0x10] sm:$0xff]
                  %1215 = vst [vmem:[%s1209 + $0x30] sm:$0xff] %v1214
                  %v1216 = vld [vmem:[%s1208 + $0x18] sm:$0xff]
                  %1217 = vst [vmem:[%s1209 + $0x48] sm:$0xff] %v1216
                  %v1218 = vld [vmem:[%s1208 + $0x20] sm:$0xff]
                  %1219 = vst [vmem:[%s1209 + $0x60] sm:$0xff] %v1218
                  %v1220 = vld [vmem:[%s1208 + $0x28] sm:$0xff]
                  %1221 = vst [vmem:[%s1209 + $0x78] sm:$0xff] %v1220
                  %v1222 = vld [vmem:[%s1208 + $0x30] sm:$0xff]
                  %1223 = vst [vmem:[%s1209 + $0x90] sm:$0xff] %v1222
                  %v1224 = vld [vmem:[%s1208 + $0x38] sm:$0xff]
                  %1225 = vst [vmem:[%s1209 + $0xa8] sm:$0xff] %v1224
                  %v1226 = vld [vmem:[%s1208 + $0x40] sm:$0xff]
                  %1227 = vst [vmem:[%s1209 + $0xc0] sm:$0xff] %v1226
                  %v1228 = vld [vmem:[%s1208 + $0x48] sm:$0xff]
                  %1229 = vst [vmem:[%s1209 + $0xd8] sm:$0xff] %v1228
                  %v1230 = vld [vmem:[%s1208 + $0x50] sm:$0xff]
                  %1231 = vst [vmem:[%s1209 + $0xf0] sm:$0xff] %v1230
                  %v1232 = vld [vmem:[%s1208 + $0x58] sm:$0xff]
                  %1233 = vst [vmem:[%s1209 + $0x108] sm:$0xff] %v1232
                  %v1234 = vld [vmem:[%s1208 + $0x60] sm:$0xff]
                  %1235 = vst [vmem:[%s1209 + $0x120] sm:$0xff] %v1234
                  %v1236 = vld [vmem:[%s1208 + $0x68] sm:$0xff]
                  %1237 = vst [vmem:[%s1209 + $0x138] sm:$0xff] %v1236
                  %v1238 = vld [vmem:[%s1208 + $0x70] sm:$0xff]
                  %1239 = vst [vmem:[%s1209 + $0x150] sm:$0xff] %v1238
                  %v1240 = vld [vmem:[%s1208 + $0x78] sm:$0xff]
                  %1241 = vst [vmem:[%s1209 + $0x168] sm:$0xff] %v1240
                $region110: #{bert_encoder_forward.13} parent=104 // loop_footer
                  %s1207 = sadd.s32 1, %s1203
                $region111: #{bert_encoder_forward.13} parent=104 // loop_footer_branch
                  %1202 = sbr.rel target = $region107
                $region112: #{bert_encoder_forward.13} parent=104 // loop_exit
                  _
              $region105: #{bert_encoder_forward.13} parent=89 // pred_fallthru
                _
              // Predicated region
              $region113: #{bert_encoder_forward.13} parent=89 // pred_check
                _
              $region114: #{bert_encoder_forward.13} parent=89 // pred_check_branch
                %1243 = sbr.rel target = $region116
              $region115: #{bert_encoder_forward.13} parent=89 // pred_region
                _
              $region116: #{bert_encoder_forward.13} parent=89 // pred_fallthru
                _
            $region90: #{bert_encoder_forward.13} parent=85 // pred_fallthru
              _
            // Predicated region
            $region91: #{bert_encoder_forward.13} parent=85 // pred_check
              _
            $region92: #{bert_encoder_forward.13} parent=85 // pred_check_branch
              %1157 = sbr.rel target = $region94
            $region93: #{bert_encoder_forward.13} parent=85 // pred_region
              %s1159 = ssub.s32 256, 1
              loop: start=0, step=1, limit=1
              $region95: #{bert_encoder_forward.13} parent=93 // loop_pre_header
                _
              $region96: #{bert_encoder_forward.13} parent=93 // loop_header
                %s1161 = sphi 0, %s1165
                %p1162 = scmp.ge.s32.totalorder %s1161, 1
                %s1166 = sphi %s1142, %s1142
                %s1167 = sphi %s1151, %s1151
              $region97: #{bert_encoder_forward.13} parent=93 // loop_header_branch
                %1164 = sbr.rel (%p1162) target = $region101
              $region98: #{bert_encoder_forward.13} parent=93 // loop_body
                %v1168 = vld [vmem:[%s1166] sm:%s1159]
                %1169 = vst [vmem:[%s1167] sm:%s1159] %v1168
                %v1170 = vld [vmem:[%s1166 + $0x8] sm:%s1159]
                %1171 = vst [vmem:[%s1167 + $0x18] sm:%s1159] %v1170
                %v1172 = vld [vmem:[%s1166 + $0x10] sm:%s1159]
                %1173 = vst [vmem:[%s1167 + $0x30] sm:%s1159] %v1172
                %v1174 = vld [vmem:[%s1166 + $0x18] sm:%s1159]
                %1175 = vst [vmem:[%s1167 + $0x48] sm:%s1159] %v1174
                %v1176 = vld [vmem:[%s1166 + $0x20] sm:%s1159]
                %1177 = vst [vmem:[%s1167 + $0x60] sm:%s1159] %v1176
                %v1178 = vld [vmem:[%s1166 + $0x28] sm:%s1159]
                %1179 = vst [vmem:[%s1167 + $0x78] sm:%s1159] %v1178
                %v1180 = vld [vmem:[%s1166 + $0x30] sm:%s1159]
                %1181 = vst [vmem:[%s1167 + $0x90] sm:%s1159] %v1180
                %v1182 = vld [vmem:[%s1166 + $0x38] sm:%s1159]
                %1183 = vst [vmem:[%s1167 + $0xa8] sm:%s1159] %v1182
                %v1184 = vld [vmem:[%s1166 + $0x40] sm:%s1159]
                %1185 = vst [vmem:[%s1167 + $0xc0] sm:%s1159] %v1184
                %v1186 = vld [vmem:[%s1166 + $0x48] sm:%s1159]
                %1187 = vst [vmem:[%s1167 + $0xd8] sm:%s1159] %v1186
                %v1188 = vld [vmem:[%s1166 + $0x50] sm:%s1159]
                %1189 = vst [vmem:[%s1167 + $0xf0] sm:%s1159] %v1188
                %v1190 = vld [vmem:[%s1166 + $0x58] sm:%s1159]
                %1191 = vst [vmem:[%s1167 + $0x108] sm:%s1159] %v1190
                %v1192 = vld [vmem:[%s1166 + $0x60] sm:%s1159]
                %1193 = vst [vmem:[%s1167 + $0x120] sm:%s1159] %v1192
                %v1194 = vld [vmem:[%s1166 + $0x68] sm:%s1159]
                %1195 = vst [vmem:[%s1167 + $0x138] sm:%s1159] %v1194
                %v1196 = vld [vmem:[%s1166 + $0x70] sm:%s1159]
                %1197 = vst [vmem:[%s1167 + $0x150] sm:%s1159] %v1196
                %v1198 = vld [vmem:[%s1166 + $0x78] sm:%s1159]
                %1199 = vst [vmem:[%s1167 + $0x168] sm:%s1159] %v1198
              $region99: #{bert_encoder_forward.13} parent=93 // loop_footer
                %s1165 = sadd.s32 1, %s1161
              $region100: #{bert_encoder_forward.13} parent=93 // loop_footer_branch
                %1160 = sbr.rel target = $region96
              $region101: #{bert_encoder_forward.13} parent=93 // loop_exit
                _
            $region94: #{bert_encoder_forward.13} parent=85 // pred_fallthru
              _
          $region86: #{bert_encoder_forward.13} parent=81 // pred_fallthru
            _
          %1244 = vnop
        $region82: #{bert_encoder_forward.13} parent=65 // pred_fallthru
          _
      $region66: #{bert_encoder_forward.13} parent=5 // pred_fallthru
        _
      %p1245 = scmp.le.s32.totalorder 2, %s9
      // Predicated region
      $region117: #{bert_encoder_forward.13} parent=5 // pred_check
        %p1246 = pneg %p1245
      $region118: #{bert_encoder_forward.13} parent=5 // pred_check_branch
        %1248 = sbr.rel (%p1246) target = $region120
      $region119: #{bert_encoder_forward.13} parent=5 // pred_region
        %s1249 = ssub.s32 %s9, 2
        // Predicated region
        $region121: #{bert_encoder_forward.13} parent=119 // pred_check
          %p1250 = pneg %p141
        $region122: #{bert_encoder_forward.13} parent=119 // pred_check_branch
          %1252 = sbr.rel (%p1250) target = $region124
        $region123: #{bert_encoder_forward.13} parent=119 // pred_region
          %s1253 = sand.u32 %s126, 1
          %s1254 = sand.u32 %s126, 1
          %s1255 = smul.addr %s1254, 128
          %s1256 = scalar_lea.vmem [#allocation4], %s1255
        $region124: #{bert_encoder_forward.13} parent=119 // pred_fallthru
          _
      $region120: #{bert_encoder_forward.13} parent=5 // pred_fallthru
        _
    $region6: #{bert_encoder_forward.13} parent=1 // loop_footer
      %s13 = sadd.s32 1, %s9
    $region7: #{bert_encoder_forward.13} parent=1 // loop_footer_branch
      %8 = sbr.rel target = $region3
    $region8: #{bert_encoder_forward.13} parent=1 // loop_exit
      _

// kernel: bert_encoder_forward.14
$region0: #{bert_encoder_forward.14}
  #allocation0 [shape = 'u32[]', space=smem, size = 0x4, offset = 0x4, fixed_abs, tag = 'smem constant byte address 0x4 - core index']
  #allocation1 [shape = 'u32[144,128]{1,0:T(1,128)}', space=vmem, size = 0x12000, scoped, tag = 'internal scratch']
  %s0 = inlined_call_operand.vmem [shape: bf16[256,768], index: 0, kind: input, shape index: {}, may-alias: {0,1,2}]
  %s1 = inlined_call_operand.vmem [shape: bf16[256,768], index: 1, kind: input, shape index: {}, may-alias: {0,1,2}]
  %s2 = inlined_call_operand.vmem [shape: bf16[256,768], index: 2, kind: input, shape index: {}, may-alias: {0,1,2}]
  %s3 = inlined_call_operand.vmem [shape: bf16[256,256], index: 3, kind: output, shape index: {}]
  %s4 = sld [smem:[#allocation0]]
  $region205: #{bert_encoder_forward.14} parent=0
    _
  %s6 = ssub.s32 1, %s4
  %s7 = scalar_select 0, %s6, %s4
  $region1: #{bert_encoder_forward.14} parent=0
    #allocation2 [shape = 'u8[65536]{0}', space=vmem, size = 0x10000, scoped, tag = 'input window, operand 0']
    #allocation3 [shape = 'u8[65536]{0}', space=vmem, size = 0x10000, scoped, tag = 'input window, operand 1']
    #allocation4 [shape = 'u8[65536]{0}', space=vmem, size = 0x10000, scoped, tag = 'input window, operand 2']
    #allocation5 [shape = 'u8[65536]{0}', space=vmem, size = 0x10000, scoped, tag = 'output window, operand 0']
    loop: start=0, step=1, limit=6
    $region2: #{bert_encoder_forward.14} parent=1 // loop_pre_header
      _
    $region3: #{bert_encoder_forward.14} parent=1 // loop_header
      %s9 = sphi 0, %s13
      %p10 = scmp.ge.s32.totalorder %s9, 6
      %s16 = sphi 0, %s28
      %s17 = sphi 0, %s24
      %s18 = sphi 0, %s16
      %s19 = sphi 0, %s17
      %s20 = sphi 0, %s18
      %s21 = sphi 0, %s19
      %s33 = sphi 0, %s35
      %s36 = sphi 0, %s33
      %s37 = sphi 0, %s36
      %s53 = sphi 0, %s37
      %s63 = sphi 0, %s65
      %s66 = sphi 0, %s63
      %s67 = sphi 0, %s66
      %s83 = sphi 0, %s67
      %s93 = sphi 0, %s95
      %s96 = sphi 0, %s93
      %s97 = sphi 0, %s96
      %s113 = sphi 0, %s97
      %s121 = sphi 0, %s123
      %s124 = sphi 0, %s121
      %s125 = sphi 0, %s124
      %s141 = sphi 0, %s125
    $region4: #{bert_encoder_forward.14} parent=1 // loop_header_branch
      %12 = sbr.rel (%p10) target = $region8
    $region5: #{bert_encoder_forward.14} parent=1 // loop_body
      %s14 = ssub.s32 %s9, 1
      %s15 = ssub.s32 %s9, 2
      %s22 = sadd.s32 1, %s17
      %p23 = scmp.ge.s32.totalorder %s22, 2
      %s24 = scalar_select %p23, 0, %s22
      %s25 = sadd.s32 1, %s16
      %s26 = scalar_select %p23, %s25, %s16
      %p27 = scmp.ge.s32.totalorder %s26, 2
      %s28 = scalar_select %p27, 0, %s26
      %s29 = ssub.s32 %s16, %s28
      %s30 = ssub.s32 %s17, %s24
      %s31 = sor.u32 %s29, %s30
      %p32 = scmp.eq.s32.totalorder %s31, 0
      %s34 = sadd.s32 %s33, 1
      %s35 = scalar_select %p32, %s33, %s34
      %p38 = pneg %p32
      %p39 = scmp.eq.s32.totalorder %s9, 3
      %p40 = por %p38, %p39
      %p41 = scmp.ne.s32.totalorder %s33, %s36
      %p42 = scmp.eq.s32.totalorder %s9, 0
      %p43 = por %p41, %p42
      %p44 = scmp.ne.s32.totalorder %s33, %s36
      %p45 = scmp.eq.s32.totalorder %s14, 3
      %p46 = por %p44, %p45
      %p47 = scmp.ne.s32.totalorder %s36, %s37
      %p48 = scmp.eq.s32.totalorder %s14, 0
      %p49 = por %p47, %p48
      %p50 = scmp.ne.s32.totalorder %s36, %s37
      %p51 = scmp.eq.s32.totalorder %s15, 3
      %p52 = por %p50, %p51
      %p54 = scmp.ne.s32.totalorder %s37, %s53
      %p55 = scmp.eq.s32.totalorder %s15, 0
      %p56 = por %p54, %p55
      %s57 = sadd.s32 %s17, 2
      %s58 = sadd.s32 %s24, 2
      %s59 = ssub.s32 %s16, %s28
      %s60 = ssub.s32 %s57, %s58
      %s61 = sor.u32 %s59, %s60
      %p62 = scmp.eq.s32.totalorder %s61, 0
      %s64 = sadd.s32 %s63, 1
      %s65 = scalar_select %p62, %s63, %s64
      %p68 = pneg %p62
      %p69 = scmp.eq.s32.totalorder %s9, 3
      %p70 = por %p68, %p69
      %p71 = scmp.ne.s32.totalorder %s63, %s66
      %p72 = scmp.eq.s32.totalorder %s9, 0
      %p73 = por %p71, %p72
      %p74 = scmp.ne.s32.totalorder %s63, %s66
      %p75 = scmp.eq.s32.totalorder %s14, 3
      %p76 = por %p74, %p75
      %p77 = scmp.ne.s32.totalorder %s66, %s67
      %p78 = scmp.eq.s32.totalorder %s14, 0
      %p79 = por %p77, %p78
      %p80 = scmp.ne.s32.totalorder %s66, %s67
      %p81 = scmp.eq.s32.totalorder %s15, 3
      %p82 = por %p80, %p81
      %p84 = scmp.ne.s32.totalorder %s67, %s83
      %p85 = scmp.eq.s32.totalorder %s15, 0
      %p86 = por %p84, %p85
      %s87 = sadd.s32 %s17, 4
      %s88 = sadd.s32 %s24, 4
      %s89 = ssub.s32 %s16, %s28
      %s90 = ssub.s32 %s87, %s88
      %s91 = sor.u32 %s89, %s90
      %p92 = scmp.eq.s32.totalorder %s91, 0
      %s94 = sadd.s32 %s93, 1
      %s95 = scalar_select %p92, %s93, %s94
      %p98 = pneg %p92
      %p99 = scmp.eq.s32.totalorder %s9, 3
      %p100 = por %p98, %p99
      %p101 = scmp.ne.s32.totalorder %s93, %s96
      %p102 = scmp.eq.s32.totalorder %s9, 0
      %p103 = por %p101, %p102
      %p104 = scmp.ne.s32.totalorder %s93, %s96
      %p105 = scmp.eq.s32.totalorder %s14, 3
      %p106 = por %p104, %p105
      %p107 = scmp.ne.s32.totalorder %s96, %s97
      %p108 = scmp.eq.s32.totalorder %s14, 0
      %p109 = por %p107, %p108
      %p110 = scmp.ne.s32.totalorder %s96, %s97
      %p111 = scmp.eq.s32.totalorder %s15, 3
      %p112 = por %p110, %p111
      %p114 = scmp.ne.s32.totalorder %s97, %s113
      %p115 = scmp.eq.s32.totalorder %s15, 0
      %p116 = por %p114, %p115
      %s117 = ssub.s32 %s16, %s28
      %s118 = ssub.s32 %s17, %s24
      %s119 = sor.u32 %s117, %s118
      %p120 = scmp.eq.s32.totalorder %s119, 0
      %s122 = sadd.s32 %s121, 1
      %s123 = scalar_select %p120, %s121, %s122
      %p126 = pneg %p120
      %p127 = scmp.eq.s32.totalorder %s9, 3
      %p128 = por %p126, %p127
      %p129 = scmp.ne.s32.totalorder %s121, %s124
      %p130 = scmp.eq.s32.totalorder %s9, 0
      %p131 = por %p129, %p130
      %p132 = scmp.ne.s32.totalorder %s121, %s124
      %p133 = scmp.eq.s32.totalorder %s14, 3
      %p134 = por %p132, %p133
      %p135 = scmp.ne.s32.totalorder %s124, %s125
      %p136 = scmp.eq.s32.totalorder %s14, 0
      %p137 = por %p135, %p136
      %p138 = scmp.ne.s32.totalorder %s124, %s125
      %p139 = scmp.eq.s32.totalorder %s15, 3
      %p140 = por %p138, %p139
      %p142 = scmp.ne.s32.totalorder %s125, %s141
      %p143 = scmp.eq.s32.totalorder %s15, 0
      %p144 = por %p142, %p143
      %p145 = scmp.le.s32.totalorder 1, %s9
      %p146 = scmp.lt.s32.totalorder %s9, 5
      %p147 = pnand %p145, %p146
      %p148 = pneg %p147
      // Predicated region
      $region9: #{bert_encoder_forward.14} parent=5 // pred_check
        _
      $region10: #{bert_encoder_forward.14} parent=5 // pred_check_branch
        %150 = sbr.rel (%p147) target = $region12
      $region11: #{bert_encoder_forward.14} parent=5 // pred_region
        %s151 = ssub.s32 %s9, 1
      $region12: #{bert_encoder_forward.14} parent=5 // pred_fallthru
        _
      %p152 = scmp.lt.s32.totalorder %s9, 4
      // Predicated region
      $region13: #{bert_encoder_forward.14} parent=5 // pred_check
        %p153 = pneg %p152
      $region14: #{bert_encoder_forward.14} parent=5 // pred_check_branch
        %155 = sbr.rel (%p153) target = $region16
      $region15: #{bert_encoder_forward.14} parent=5 // pred_region
        // Predicated region
        $region17: #{bert_encoder_forward.14} parent=15 // pred_check
          %p156 = pneg %p43
        $region18: #{bert_encoder_forward.14} parent=15 // pred_check_branch
          %158 = sbr.rel (%p156) target = $region20
        $region19: #{bert_encoder_forward.14} parent=15 // pred_region
          %s159 = sand.u32 %s33, 1
          %s160 = sand.u32 %s33, 1
          %s161 = smul.addr %s160, 64
          %s162 = scalar_lea.vmem [#allocation2], %s161
          %s163 = smul.u32 16, %s16
          %s164 = smul.addr %s163, 6
          %s165 = sadd.s32 %s17, %s164
          %s166 = smul.addr %s165, 4
          %s167 = scalar_lea.vmem %s0, %s166
          // Predicated region
          $region21: #{bert_encoder_forward.14} parent=19 // pred_check
            _
          $region22: #{bert_encoder_forward.14} parent=19 // pred_check_branch
            %169 = sbr.rel (0) target = $region24
          $region23: #{bert_encoder_forward.14} parent=19 // pred_region
            // Predicated region
            $region25: #{bert_encoder_forward.14} parent=23 // pred_check
              _
            $region26: #{bert_encoder_forward.14} parent=23 // pred_check_branch
              %171 = sbr.rel target = $region28
            $region27: #{bert_encoder_forward.14} parent=23 // pred_region
              // Predicated region
              $region40: #{bert_encoder_forward.14} parent=27 // pred_check
                _
              $region41: #{bert_encoder_forward.14} parent=27 // pred_check_branch
                %217 = sbr.rel (0) target = $region43
              $region42: #{bert_encoder_forward.14} parent=27 // pred_region
                loop: start=0, step=1, limit=1
                $region44: #{bert_encoder_forward.14} parent=42 // loop_pre_header
                  _
                $region45: #{bert_encoder_forward.14} parent=42 // loop_header
                  %s219 = sphi 0, %s223
                  %p220 = scmp.ge.s32.totalorder %s219, 1
                  %s224 = sphi %s167, %s167
                  %s225 = sphi %s162, %s162
                $region46: #{bert_encoder_forward.14} parent=42 // loop_header_branch
                  %222 = sbr.rel (%p220) target = $region50
                $region47: #{bert_encoder_forward.14} parent=42 // loop_body
                  _
                $region48: #{bert_encoder_forward.14} parent=42 // loop_footer
                  %s223 = sadd.s32 1, %s219
                $region49: #{bert_encoder_forward.14} parent=42 // loop_footer_branch
                  %218 = sbr.rel target = $region45
                $region50: #{bert_encoder_forward.14} parent=42 // loop_exit
                  _
                %s227 = ssub.s32 16, 1
                loop: start=0, step=1, limit=1
                $region51: #{bert_encoder_forward.14} parent=42 // loop_pre_header
                  _
                $region52: #{bert_encoder_forward.14} parent=42 // loop_header
                  %s229 = sphi 0, %s233
                  %p230 = scmp.ge.s32.totalorder %s229, 1
                  %s234 = sphi %s167, %s167
                  %s235 = sphi %s162, %s162
                $region53: #{bert_encoder_forward.14} parent=42 // loop_header_branch
                  %232 = sbr.rel (%p230) target = $region57
                $region54: #{bert_encoder_forward.14} parent=42 // loop_body
                  %v236 = vld [vmem:[%s234] sm:%s227]
                  %237 = vst [vmem:[%s235] sm:%s227] %v236
                  %v238 = vld [vmem:[%s234 + $0x18] sm:%s227]
                  %239 = vst [vmem:[%s235 + $0x4] sm:%s227] %v238
                  %v240 = vld [vmem:[%s234 + $0x30] sm:%s227]
                  %241 = vst [vmem:[%s235 + $0x8] sm:%s227] %v240
                  %v242 = vld [vmem:[%s234 + $0x48] sm:%s227]
                  %243 = vst [vmem:[%s235 + $0xc] sm:%s227] %v242
                  %v244 = vld [vmem:[%s234 + $0x60] sm:%s227]
                  %245 = vst [vmem:[%s235 + $0x10] sm:%s227] %v244
                  %v246 = vld [vmem:[%s234 + $0x78] sm:%s227]
                  %247 = vst [vmem:[%s235 + $0x14] sm:%s227] %v246
                  %v248 = vld [vmem:[%s234 + $0x90] sm:%s227]
                  %249 = vst [vmem:[%s235 + $0x18] sm:%s227] %v248
                  %v250 = vld [vmem:[%s234 + $0xa8] sm:%s227]
                  %251 = vst [vmem:[%s235 + $0x1c] sm:%s227] %v250
                  %v252 = vld [vmem:[%s234 + $0xc0] sm:%s227]
                  %253 = vst [vmem:[%s235 + $0x20] sm:%s227] %v252
                  %v254 = vld [vmem:[%s234 + $0xd8] sm:%s227]
                  %255 = vst [vmem:[%s235 + $0x24] sm:%s227] %v254
                  %v256 = vld [vmem:[%s234 + $0xf0] sm:%s227]
                  %257 = vst [vmem:[%s235 + $0x28] sm:%s227] %v256
                  %v258 = vld [vmem:[%s234 + $0x108] sm:%s227]
                  %259 = vst [vmem:[%s235 + $0x2c] sm:%s227] %v258
                  %v260 = vld [vmem:[%s234 + $0x120] sm:%s227]
                  %261 = vst [vmem:[%s235 + $0x30] sm:%s227] %v260
                  %v262 = vld [vmem:[%s234 + $0x138] sm:%s227]
                  %263 = vst [vmem:[%s235 + $0x34] sm:%s227] %v262
                  %v264 = vld [vmem:[%s234 + $0x150] sm:%s227]
                  %265 = vst [vmem:[%s235 + $0x38] sm:%s227] %v264
                  %v266 = vld [vmem:[%s234 + $0x168] sm:%s227]
                  %267 = vst [vmem:[%s235 + $0x3c] sm:%s227] %v266
                $region55: #{bert_encoder_forward.14} parent=42 // loop_footer
                  %s233 = sadd.s32 1, %s229
                $region56: #{bert_encoder_forward.14} parent=42 // loop_footer_branch
                  %228 = sbr.rel target = $region52
                $region57: #{bert_encoder_forward.14} parent=42 // loop_exit
                  _
              $region43: #{bert_encoder_forward.14} parent=27 // pred_fallthru
                _
            $region28: #{bert_encoder_forward.14} parent=23 // pred_fallthru
              _
            // Predicated region
            $region29: #{bert_encoder_forward.14} parent=23 // pred_check
              _
            $region30: #{bert_encoder_forward.14} parent=23 // pred_check_branch
              %173 = sbr.rel (0) target = $region32
            $region31: #{bert_encoder_forward.14} parent=23 // pred_region
              %s175 = ssub.s32 16, 1
              loop: start=0, step=1, limit=1
              $region33: #{bert_encoder_forward.14} parent=31 // loop_pre_header
                _
              $region34: #{bert_encoder_forward.14} parent=31 // loop_header
                %s177 = sphi 0, %s181
                %p178 = scmp.ge.s32.totalorder %s177, 1
                %s182 = sphi %s167, %s167
                %s183 = sphi %s162, %s162
              $region35: #{bert_encoder_forward.14} parent=31 // loop_header_branch
                %180 = sbr.rel (%p178) target = $region39
              $region36: #{bert_encoder_forward.14} parent=31 // loop_body
                %v184 = vld [vmem:[%s182] sm:%s175]
                %185 = vst [vmem:[%s183] sm:%s175] %v184
                %v186 = vld [vmem:[%s182 + $0x18] sm:%s175]
                %187 = vst [vmem:[%s183 + $0x4] sm:%s175] %v186
                %v188 = vld [vmem:[%s182 + $0x30] sm:%s175]
                %189 = vst [vmem:[%s183 + $0x8] sm:%s175] %v188
                %v190 = vld [vmem:[%s182 + $0x48] sm:%s175]
                %191 = vst [vmem:[%s183 + $0xc] sm:%s175] %v190
                %v192 = vld [vmem:[%s182 + $0x60] sm:%s175]
                %193 = vst [vmem:[%s183 + $0x10] sm:%s175] %v192
                %v194 = vld [vmem:[%s182 + $0x78] sm:%s175]
                %195 = vst [vmem:[%s183 + $0x14] sm:%s175] %v194
                %v196 = vld [vmem:[%s182 + $0x90] sm:%s175]
                %197 = vst [vmem:[%s183 + $0x18] sm:%s175] %v196
                %v198 = vld [vmem:[%s182 + $0xa8] sm:%s175]
                %199 = vst [vmem:[%s183 + $0x1c] sm:%s175] %v198
                %v200 = vld [vmem:[%s182 + $0xc0] sm:%s175]
                %201 = vst [vmem:[%s183 + $0x20] sm:%s175] %v200
                %v202 = vld [vmem:[%s182 + $0xd8] sm:%s175]
                %203 = vst [vmem:[%s183 + $0x24] sm:%s175] %v202
                %v204 = vld [vmem:[%s182 + $0xf0] sm:%s175]
                %205 = vst [vmem:[%s183 + $0x28] sm:%s175] %v204
                %v206 = vld [vmem:[%s182 + $0x108] sm:%s175]
                %207 = vst [vmem:[%s183 + $0x2c] sm:%s175] %v206
                %v208 = vld [vmem:[%s182 + $0x120] sm:%s175]
                %209 = vst [vmem:[%s183 + $0x30] sm:%s175] %v208
                %v210 = vld [vmem:[%s182 + $0x138] sm:%s175]
                %211 = vst [vmem:[%s183 + $0x34] sm:%s175] %v210
                %v212 = vld [vmem:[%s182 + $0x150] sm:%s175]
                %213 = vst [vmem:[%s183 + $0x38] sm:%s175] %v212
                %v214 = vld [vmem:[%s182 + $0x168] sm:%s175]
                %215 = vst [vmem:[%s183 + $0x3c] sm:%s175] %v214
              $region37: #{bert_encoder_forward.14} parent=31 // loop_footer
                %s181 = sadd.s32 1, %s177
              $region38: #{bert_encoder_forward.14} parent=31 // loop_footer_branch
                %176 = sbr.rel target = $region34
              $region39: #{bert_encoder_forward.14} parent=31 // loop_exit
                _
            $region32: #{bert_encoder_forward.14} parent=23 // pred_fallthru
              _
          $region24: #{bert_encoder_forward.14} parent=19 // pred_fallthru
            _
          %268 = vnop
        $region20: #{bert_encoder_forward.14} parent=15 // pred_fallthru
          _
        // Predicated region
        $region58: #{bert_encoder_forward.14} parent=15 // pred_check
          %p269 = pneg %p73
        $region59: #{bert_encoder_forward.14} parent=15 // pred_check_branch
          %271 = sbr.rel (%p269) target = $region61
        $region60: #{bert_encoder_forward.14} parent=15 // pred_region
          %s272 = sand.u32 %s63, 1
          %s273 = sand.u32 %s63, 1
          %s274 = smul.addr %s273, 64
          %s275 = scalar_lea.vmem [#allocation3], %s274
          %s276 = sadd.s32 %s17, 2
          %s277 = smul.u32 16, %s16
          %s278 = smul.addr %s277, 6
          %s279 = sadd.s32 %s276, %s278
          %s280 = smul.addr %s279, 4
          %s281 = scalar_lea.vmem %s1, %s280
          // Predicated region
          $region62: #{bert_encoder_forward.14} parent=60 // pred_check
            _
          $region63: #{bert_encoder_forward.14} parent=60 // pred_check_branch
            %283 = sbr.rel (0) target = $region65
          $region64: #{bert_encoder_forward.14} parent=60 // pred_region
            // Predicated region
            $region66: #{bert_encoder_forward.14} parent=64 // pred_check
              _
            $region67: #{bert_encoder_forward.14} parent=64 // pred_check_branch
              %285 = sbr.rel target = $region69
            $region68: #{bert_encoder_forward.14} parent=64 // pred_region
              // Predicated region
              $region81: #{bert_encoder_forward.14} parent=68 // pred_check
                _
              $region82: #{bert_encoder_forward.14} parent=68 // pred_check_branch
                %331 = sbr.rel (0) target = $region84
              $region83: #{bert_encoder_forward.14} parent=68 // pred_region
                loop: start=0, step=1, limit=1
                $region85: #{bert_encoder_forward.14} parent=83 // loop_pre_header
                  _
                $region86: #{bert_encoder_forward.14} parent=83 // loop_header
                  %s333 = sphi 0, %s337
                  %p334 = scmp.ge.s32.totalorder %s333, 1
                  %s338 = sphi %s281, %s281
                  %s339 = sphi %s275, %s275
                $region87: #{bert_encoder_forward.14} parent=83 // loop_header_branch
                  %336 = sbr.rel (%p334) target = $region91
                $region88: #{bert_encoder_forward.14} parent=83 // loop_body
                  _
                $region89: #{bert_encoder_forward.14} parent=83 // loop_footer
                  %s337 = sadd.s32 1, %s333
                $region90: #{bert_encoder_forward.14} parent=83 // loop_footer_branch
                  %332 = sbr.rel target = $region86
                $region91: #{bert_encoder_forward.14} parent=83 // loop_exit
                  _
                %s341 = ssub.s32 16, 1
                loop: start=0, step=1, limit=1
                $region92: #{bert_encoder_forward.14} parent=83 // loop_pre_header
                  _
                $region93: #{bert_encoder_forward.14} parent=83 // loop_header
                  %s343 = sphi 0, %s347
                  %p344 = scmp.ge.s32.totalorder %s343, 1
                  %s348 = sphi %s281, %s281
                  %s349 = sphi %s275, %s275
                $region94: #{bert_encoder_forward.14} parent=83 // loop_header_branch
                  %346 = sbr.rel (%p344) target = $region98
                $region95: #{bert_encoder_forward.14} parent=83 // loop_body
                  %v350 = vld [vmem:[%s348] sm:%s341]
                  %351 = vst [vmem:[%s349] sm:%s341] %v350
                  %v352 = vld [vmem:[%s348 + $0x18] sm:%s341]
                  %353 = vst [vmem:[%s349 + $0x4] sm:%s341] %v352
                  %v354 = vld [vmem:[%s348 + $0x30] sm:%s341]
                  %355 = vst [vmem:[%s349 + $0x8] sm:%s341] %v354
                  %v356 = vld [vmem:[%s348 + $0x48] sm:%s341]
                  %357 = vst [vmem:[%s349 + $0xc] sm:%s341] %v356
                  %v358 = vld [vmem:[%s348 + $0x60] sm:%s341]
                  %359 = vst [vmem:[%s349 + $0x10] sm:%s341] %v358
                  %v360 = vld [vmem:[%s348 + $0x78] sm:%s341]
                  %361 = vst [vmem:[%s349 + $0x14] sm:%s341] %v360
                  %v362 = vld [vmem:[%s348 + $0x90] sm:%s341]
                  %363 = vst [vmem:[%s349 + $0x18] sm:%s341] %v362
                  %v364 = vld [vmem:[%s348 + $0xa8] sm:%s341]
                  %365 = vst [vmem:[%s349 + $0x1c] sm:%s341] %v364
                  %v366 = vld [vmem:[%s348 + $0xc0] sm:%s341]
                  %367 = vst [vmem:[%s349 + $0x20] sm:%s341] %v366
                  %v368 = vld [vmem:[%s348 + $0xd8] sm:%s341]
                  %369 = vst [vmem:[%s349 + $0x24] sm:%s341] %v368
                  %v370 = vld [vmem:[%s348 + $0xf0] sm:%s341]
                  %371 = vst [vmem:[%s349 + $0x28] sm:%s341] %v370
                  %v372 = vld [vmem:[%s348 + $0x108] sm:%s341]
                  %373 = vst [vmem:[%s349 + $0x2c] sm:%s341] %v372
                  %v374 = vld [vmem:[%s348 + $0x120] sm:%s341]
                  %375 = vst [vmem:[%s349 + $0x30] sm:%s341] %v374
                  %v376 = vld [vmem:[%s348 + $0x138] sm:%s341]
                  %377 = vst [vmem:[%s349 + $0x34] sm:%s341] %v376
                  %v378 = vld [vmem:[%s348 + $0x150] sm:%s341]
                  %379 = vst [vmem:[%s349 + $0x38] sm:%s341] %v378
                  %v380 = vld [vmem:[%s348 + $0x168] sm:%s341]
                  %381 = vst [vmem:[%s349 + $0x3c] sm:%s341] %v380
                $region96: #{bert_encoder_forward.14} parent=83 // loop_footer
                  %s347 = sadd.s32 1, %s343
                $region97: #{bert_encoder_forward.14} parent=83 // loop_footer_branch
                  %342 = sbr.rel target = $region93
                $region98: #{bert_encoder_forward.14} parent=83 // loop_exit
                  _
              $region84: #{bert_encoder_forward.14} parent=68 // pred_fallthru
                _
            $region69: #{bert_encoder_forward.14} parent=64 // pred_fallthru
              _
            // Predicated region
            $region70: #{bert_encoder_forward.14} parent=64 // pred_check
              _
            $region71: #{bert_encoder_forward.14} parent=64 // pred_check_branch
              %287 = sbr.rel (0) target = $region73
            $region72: #{bert_encoder_forward.14} parent=64 // pred_region
              %s289 = ssub.s32 16, 1
              loop: start=0, step=1, limit=1
              $region74: #{bert_encoder_forward.14} parent=72 // loop_pre_header
                _
              $region75: #{bert_encoder_forward.14} parent=72 // loop_header
                %s291 = sphi 0, %s295
                %p292 = scmp.ge.s32.totalorder %s291, 1
                %s296 = sphi %s281, %s281
                %s297 = sphi %s275, %s275
              $region76: #{bert_encoder_forward.14} parent=72 // loop_header_branch
                %294 = sbr.rel (%p292) target = $region80
              $region77: #{bert_encoder_forward.14} parent=72 // loop_body
                %v298 = vld [vmem:[%s296] sm:%s289]
                %299 = vst [vmem:[%s297] sm:%s289] %v298
                %v300 = vld [vmem:[%s296 + $0x18] sm:%s289]
                %301 = vst [vmem:[%s297 + $0x4] sm:%s289] %v300
                %v302 = vld [vmem:[%s296 + $0x30] sm:%s289]
                %303 = vst [vmem:[%s297 + $0x8] sm:%s289] %v302
                %v304 = vld [vmem:[%s296 + $0x48] sm:%s289]
                %305 = vst [vmem:[%s297 + $0xc] sm:%s289] %v304
                %v306 = vld [vmem:[%s296 + $0x60] sm:%s289]
                %307 = vst [vmem:[%s297 + $0x10] sm:%s289] %v306
                %v308 = vld [vmem:[%s296 + $0x78] sm:%s289]
                %309 = vst [vmem:[%s297 + $0x14] sm:%s289] %v308
                %v310 = vld [vmem:[%s296 + $0x90] sm:%s289]
                %311 = vst [vmem:[%s297 + $0x18] sm:%s289] %v310
                %v312 = vld [vmem:[%s296 + $0xa8] sm:%s289]
                %313 = vst [vmem:[%s297 + $0x1c] sm:%s289] %v312
                %v314 = vld [vmem:[%s296 + $0xc0] sm:%s289]
                %315 = vst [vmem:[%s297 + $0x20] sm:%s289] %v314
                %v316 = vld [vmem:[%s296 + $0xd8] sm:%s289]
                %317 = vst [vmem:[%s297 + $0x24] sm:%s289] %v316
                %v318 = vld [vmem:[%s296 + $0xf0] sm:%s289]
                %319 = vst [vmem:[%s297 + $0x28] sm:%s289] %v318
                %v320 = vld [vmem:[%s296 + $0x108] sm:%s289]
                %321 = vst [vmem:[%s297 + $0x2c] sm:%s289] %v320
                %v322 = vld [vmem:[%s296 + $0x120] sm:%s289]
                %323 = vst [vmem:[%s297 + $0x30] sm:%s289] %v322
                %v324 = vld [vmem:[%s296 + $0x138] sm:%s289]
                %325 = vst [vmem:[%s297 + $0x34] sm:%s289] %v324
                %v326 = vld [vmem:[%s296 + $0x150] sm:%s289]
                %327 = vst [vmem:[%s297 + $0x38] sm:%s289] %v326
                %v328 = vld [vmem:[%s296 + $0x168] sm:%s289]
                %329 = vst [vmem:[%s297 + $0x3c] sm:%s289] %v328
              $region78: #{bert_encoder_forward.14} parent=72 // loop_footer
                %s295 = sadd.s32 1, %s291
              $region79: #{bert_encoder_forward.14} parent=72 // loop_footer_branch
                %290 = sbr.rel target = $region75
              $region80: #{bert_encoder_forward.14} parent=72 // loop_exit
                _
            $region73: #{bert_encoder_forward.14} parent=64 // pred_fallthru
              _
          $region65: #{bert_encoder_forward.14} parent=60 // pred_fallthru
            _
          %382 = vnop
        $region61: #{bert_encoder_forward.14} parent=15 // pred_fallthru
          _
        // Predicated region
        $region99: #{bert_encoder_forward.14} parent=15 // pred_check
          %p383 = pneg %p103
        $region100: #{bert_encoder_forward.14} parent=15 // pred_check_branch
          %385 = sbr.rel (%p383) target = $region102
        $region101: #{bert_encoder_forward.14} parent=15 // pred_region
          %s386 = sand.u32 %s93, 1
          %s387 = sand.u32 %s93, 1
          %s388 = smul.addr %s387, 64
          %s389 = scalar_lea.vmem [#allocation4], %s388
          %s390 = sadd.s32 %s17, 4
          %s391 = smul.u32 16, %s16
          %s392 = smul.addr %s391, 6
          %s393 = sadd.s32 %s390, %s392
          %s394 = smul.addr %s393, 4
          %s395 = scalar_lea.vmem %s2, %s394
          // Predicated region
          $region103: #{bert_encoder_forward.14} parent=101 // pred_check
            _
          $region104: #{bert_encoder_forward.14} parent=101 // pred_check_branch
            %397 = sbr.rel (0) target = $region106
          $region105: #{bert_encoder_forward.14} parent=101 // pred_region
            // Predicated region
            $region107: #{bert_encoder_forward.14} parent=105 // pred_check
              _
            $region108: #{bert_encoder_forward.14} parent=105 // pred_check_branch
              %399 = sbr.rel target = $region110
            $region109: #{bert_encoder_forward.14} parent=105 // pred_region
              // Predicated region
              $region122: #{bert_encoder_forward.14} parent=109 // pred_check
                _
              $region123: #{bert_encoder_forward.14} parent=109 // pred_check_branch
                %445 = sbr.rel (0) target = $region125
              $region124: #{bert_encoder_forward.14} parent=109 // pred_region
                loop: start=0, step=1, limit=1
                $region126: #{bert_encoder_forward.14} parent=124 // loop_pre_header
                  _
                $region127: #{bert_encoder_forward.14} parent=124 // loop_header
                  %s447 = sphi 0, %s451
                  %p448 = scmp.ge.s32.totalorder %s447, 1
                  %s452 = sphi %s395, %s395
                  %s453 = sphi %s389, %s389
                $region128: #{bert_encoder_forward.14} parent=124 // loop_header_branch
                  %450 = sbr.rel (%p448) target = $region132
                $region129: #{bert_encoder_forward.14} parent=124 // loop_body
                  _
                $region130: #{bert_encoder_forward.14} parent=124 // loop_footer
                  %s451 = sadd.s32 1, %s447
                $region131: #{bert_encoder_forward.14} parent=124 // loop_footer_branch
                  %446 = sbr.rel target = $region127
                $region132: #{bert_encoder_forward.14} parent=124 // loop_exit
                  _
                %s455 = ssub.s32 16, 1
                loop: start=0, step=1, limit=1
                $region133: #{bert_encoder_forward.14} parent=124 // loop_pre_header
                  _
                $region134: #{bert_encoder_forward.14} parent=124 // loop_header
                  %s457 = sphi 0, %s461
                  %p458 = scmp.ge.s32.totalorder %s457, 1
                  %s462 = sphi %s395, %s395
                  %s463 = sphi %s389, %s389
                $region135: #{bert_encoder_forward.14} parent=124 // loop_header_branch
                  %460 = sbr.rel (%p458) target = $region139
                $region136: #{bert_encoder_forward.14} parent=124 // loop_body
                  %v464 = vld [vmem:[%s462] sm:%s455]
                  %465 = vst [vmem:[%s463] sm:%s455] %v464
                  %v466 = vld [vmem:[%s462 + $0x18] sm:%s455]
                  %467 = vst [vmem:[%s463 + $0x4] sm:%s455] %v466
                  %v468 = vld [vmem:[%s462 + $0x30] sm:%s455]
                  %469 = vst [vmem:[%s463 + $0x8] sm:%s455] %v468
                  %v470 = vld [vmem:[%s462 + $0x48] sm:%s455]
                  %471 = vst [vmem:[%s463 + $0xc] sm:%s455] %v470
                  %v472 = vld [vmem:[%s462 + $0x60] sm:%s455]
                  %473 = vst [vmem:[%s463 + $0x10] sm:%s455] %v472
                  %v474 = vld [vmem:[%s462 + $0x78] sm:%s455]
                  %475 = vst [vmem:[%s463 + $0x14] sm:%s455] %v474
                  %v476 = vld [vmem:[%s462 + $0x90] sm:%s455]
                  %477 = vst [vmem:[%s463 + $0x18] sm:%s455] %v476
                  %v478 = vld [vmem:[%s462 + $0xa8] sm:%s455]
                  %479 = vst [vmem:[%s463 + $0x1c] sm:%s455] %v478
                  %v480 = vld [vmem:[%s462 + $0xc0] sm:%s455]
                  %481 = vst [vmem:[%s463 + $0x20] sm:%s455] %v480
                  %v482 = vld [vmem:[%s462 + $0xd8] sm:%s455]
                  %483 = vst [vmem:[%s463 + $0x24] sm:%s455] %v482
                  %v484 = vld [vmem:[%s462 + $0xf0] sm:%s455]
                  %485 = vst [vmem:[%s463 + $0x28] sm:%s455] %v484
                  %v486 = vld [vmem:[%s462 + $0x108] sm:%s455]
                  %487 = vst [vmem:[%s463 + $0x2c] sm:%s455] %v486
                  %v488 = vld [vmem:[%s462 + $0x120] sm:%s455]
                  %489 = vst [vmem:[%s463 + $0x30] sm:%s455] %v488
                  %v490 = vld [vmem:[%s462 + $0x138] sm:%s455]
                  %491 = vst [vmem:[%s463 + $0x34] sm:%s455] %v490
                  %v492 = vld [vmem:[%s462 + $0x150] sm:%s455]
                  %493 = vst [vmem:[%s463 + $0x38] sm:%s455] %v492
                  %v494 = vld [vmem:[%s462 + $0x168] sm:%s455]
                  %495 = vst [vmem:[%s463 + $0x3c] sm:%s455] %v494
                $region137: #{bert_encoder_forward.14} parent=124 // loop_footer
                  %s461 = sadd.s32 1, %s457
                $region138: #{bert_encoder_forward.14} parent=124 // loop_footer_branch
                  %456 = sbr.rel target = $region134
                $region139: #{bert_encoder_forward.14} parent=124 // loop_exit
                  _
              $region125: #{bert_encoder_forward.14} parent=109 // pred_fallthru
                _
            $region110: #{bert_encoder_forward.14} parent=105 // pred_fallthru
              _
            // Predicated region
            $region111: #{bert_encoder_forward.14} parent=105 // pred_check
              _
            $region112: #{bert_encoder_forward.14} parent=105 // pred_check_branch
              %401 = sbr.rel (0) target = $region114
            $region113: #{bert_encoder_forward.14} parent=105 // pred_region
              %s403 = ssub.s32 16, 1
              loop: start=0, step=1, limit=1
              $region115: #{bert_encoder_forward.14} parent=113 // loop_pre_header
                _
              $region116: #{bert_encoder_forward.14} parent=113 // loop_header
                %s405 = sphi 0, %s409
                %p406 = scmp.ge.s32.totalorder %s405, 1
                %s410 = sphi %s395, %s395
                %s411 = sphi %s389, %s389
              $region117: #{bert_encoder_forward.14} parent=113 // loop_header_branch
                %408 = sbr.rel (%p406) target = $region121
              $region118: #{bert_encoder_forward.14} parent=113 // loop_body
                %v412 = vld [vmem:[%s410] sm:%s403]
                %413 = vst [vmem:[%s411] sm:%s403] %v412
                %v414 = vld [vmem:[%s410 + $0x18] sm:%s403]
                %415 = vst [vmem:[%s411 + $0x4] sm:%s403] %v414
                %v416 = vld [vmem:[%s410 + $0x30] sm:%s403]
                %417 = vst [vmem:[%s411 + $0x8] sm:%s403] %v416
                %v418 = vld [vmem:[%s410 + $0x48] sm:%s403]
                %419 = vst [vmem:[%s411 + $0xc] sm:%s403] %v418
                %v420 = vld [vmem:[%s410 + $0x60] sm:%s403]
                %421 = vst [vmem:[%s411 + $0x10] sm:%s403] %v420
                %v422 = vld [vmem:[%s410 + $0x78] sm:%s403]
                %423 = vst [vmem:[%s411 + $0x14] sm:%s403] %v422
                %v424 = vld [vmem:[%s410 + $0x90] sm:%s403]
                %425 = vst [vmem:[%s411 + $0x18] sm:%s403] %v424
                %v426 = vld [vmem:[%s410 + $0xa8] sm:%s403]
                %427 = vst [vmem:[%s411 + $0x1c] sm:%s403] %v426
                %v428 = vld [vmem:[%s410 + $0xc0] sm:%s403]
                %429 = vst [vmem:[%s411 + $0x20] sm:%s403] %v428
                %v430 = vld [vmem:[%s410 + $0xd8] sm:%s403]
                %431 = vst [vmem:[%s411 + $0x24] sm:%s403] %v430
                %v432 = vld [vmem:[%s410 + $0xf0] sm:%s403]
                %433 = vst [vmem:[%s411 + $0x28] sm:%s403] %v432
                %v434 = vld [vmem:[%s410 + $0x108] sm:%s403]
                %435 = vst [vmem:[%s411 + $0x2c] sm:%s403] %v434
                %v436 = vld [vmem:[%s410 + $0x120] sm:%s403]
                %437 = vst [vmem:[%s411 + $0x30] sm:%s403] %v436
                %v438 = vld [vmem:[%s410 + $0x138] sm:%s403]
                %439 = vst [vmem:[%s411 + $0x34] sm:%s403] %v438
                %v440 = vld [vmem:[%s410 + $0x150] sm:%s403]
                %441 = vst [vmem:[%s411 + $0x38] sm:%s403] %v440
                %v442 = vld [vmem:[%s410 + $0x168] sm:%s403]
                %443 = vst [vmem:[%s411 + $0x3c] sm:%s403] %v442
              $region119: #{bert_encoder_forward.14} parent=113 // loop_footer
                %s409 = sadd.s32 1, %s405
              $region120: #{bert_encoder_forward.14} parent=113 // loop_footer_branch
                %404 = sbr.rel target = $region116
              $region121: #{bert_encoder_forward.14} parent=113 // loop_exit
                _
            $region114: #{bert_encoder_forward.14} parent=105 // pred_fallthru
              _
          $region106: #{bert_encoder_forward.14} parent=101 // pred_fallthru
            _
          %496 = vnop
        $region102: #{bert_encoder_forward.14} parent=15 // pred_fallthru
          _
      $region16: #{bert_encoder_forward.14} parent=5 // pred_fallthru
        _
      %p497 = scmp.le.s32.totalorder 1, %s9
      %p498 = scmp.lt.s32.totalorder %s9, 5
      %p499 = pnand %p497, %p498
      %p500 = pneg %p499
      // Predicated region
      $region140: #{bert_encoder_forward.14} parent=5 // pred_check
        _
      $region141: #{bert_encoder_forward.14} parent=5 // pred_check_branch
        %502 = sbr.rel (%p499) target = $region143
      $region142: #{bert_encoder_forward.14} parent=5 // pred_region
        %s503 = ssub.s32 %s9, 1
        %s504 = sand.u32 %s36, 1
        %s505 = sand.u32 %s36, 1
        %s506 = smul.addr %s505, 64
        %s507 = scalar_lea.vmem [#allocation2], %s506
        // Predicated region
        $region144: #{bert_encoder_forward.14} parent=142 // pred_check
          %p508 = pneg %p49
        $region145: #{bert_encoder_forward.14} parent=142 // pred_check_branch
          %510 = sbr.rel (%p508) target = $region147
        $region146: #{bert_encoder_forward.14} parent=142 // pred_region
          _
        $region147: #{bert_encoder_forward.14} parent=142 // pred_fallthru
          _
        %s511 = sand.u32 %s66, 1
        %s512 = sand.u32 %s66, 1
        %s513 = smul.addr %s512, 64
        %s514 = scalar_lea.vmem [#allocation3], %s513
        // Predicated region
        $region148: #{bert_encoder_forward.14} parent=142 // pred_check
          %p515 = pneg %p79
        $region149: #{bert_encoder_forward.14} parent=142 // pred_check_branch
          %517 = sbr.rel (%p515) target = $region151
        $region150: #{bert_encoder_forward.14} parent=142 // pred_region
          _
        $region151: #{bert_encoder_forward.14} parent=142 // pred_fallthru
          _
        %s518 = sand.u32 %s96, 1
        %s519 = sand.u32 %s96, 1
        %s520 = smul.addr %s519, 64
        %s521 = scalar_lea.vmem [#allocation4], %s520
        // Predicated region
        $region152: #{bert_encoder_forward.14} parent=142 // pred_check
          %p522 = pneg %p109
        $region153: #{bert_encoder_forward.14} parent=142 // pred_check_branch
          %524 = sbr.rel (%p522) target = $region155
        $region154: #{bert_encoder_forward.14} parent=142 // pred_region
          _
        $region155: #{bert_encoder_forward.14} parent=142 // pred_fallthru
          _
        %s525 = sand.u32 %s36, 1
        %s526 = sand.u32 %s36, 1
        %s527 = smul.addr %s526, 64
        %s528 = scalar_lea.vmem [#allocation2], %s527
        %p529 = pneg %p49
        %p530 = pneg %p46
        %s531 = sand.u32 %s66, 1
        %s532 = sand.u32 %s66, 1
        %s533 = smul.addr %s532, 64
        %s534 = scalar_lea.vmem [#allocation3], %s533
        %p535 = pneg %p79
        %p536 = pneg %p76
        %s537 = sand.u32 %s96, 1
        %s538 = sand.u32 %s96, 1
        %s539 = smul.addr %s538, 64
        %s540 = scalar_lea.vmem [#allocation4], %s539
        %p541 = pneg %p109
        %p542 = pneg %p106
        %p543 = pneg %p137
        %p544 = pneg %p134
        %s545 = sand.u32 %s124, 1
        %s546 = sand.u32 %s124, 1
        %s547 = smul.addr %s546, 64
        %s548 = scalar_lea.vmem [#allocation5], %s547
        %s549 = smul.u32 16, %s18
        %s550 = sadd.s32 %s19, 2
        %s551 = smul.u32 16, %s18
        %s552 = sadd.s32 %s19, 4
        %s553 = smul.u32 16, %s18
        %s554 = smul.u32 16, %s18
        %v556 = vld [vmem:[%s507] sm:$0xf]
        %v557 = vld [vmem:[%s507 + $0x4] sm:$0xf]
        %v558 = vld [vmem:[%s507 + $0x8] sm:$0xf]
        %v559 = vld [vmem:[%s507 + $0xc] sm:$0xf]
        %v560 = vld [vmem:[%s507 + $0x10] sm:$0xf]
        %v561 = vld [vmem:[%s507 + $0x14] sm:$0xf]
        %v562 = vld [vmem:[%s507 + $0x18] sm:$0xf]
        %v563 = vld [vmem:[%s507 + $0x1c] sm:$0xf]
        %v564 = vld [vmem:[%s507 + $0x20] sm:$0xf]
        %v565 = vld [vmem:[%s507 + $0x24] sm:$0xf]
        %v566 = vld [vmem:[%s507 + $0x28] sm:$0xf]
        %v567 = vld [vmem:[%s507 + $0x2c] sm:$0xf]
        %v568 = vld [vmem:[%s507 + $0x30] sm:$0xf]
        %v569 = vld [vmem:[%s507 + $0x34] sm:$0xf]
        %v570 = vld [vmem:[%s507 + $0x38] sm:$0xf]
        %v571 = vld [vmem:[%s507 + $0x3c] sm:$0xf]
        %v572 = vld [vmem:[%s514] sm:$0xf]
        %v573 = vld [vmem:[%s514 + $0x4] sm:$0xf]
        %v574 = vld [vmem:[%s514 + $0x8] sm:$0xf]
        %v575 = vld [vmem:[%s514 + $0xc] sm:$0xf]
        %v576 = vld [vmem:[%s514 + $0x10] sm:$0xf]
        %v577 = vld [vmem:[%s514 + $0x14] sm:$0xf]
        %v578 = vld [vmem:[%s514 + $0x18] sm:$0xf]
        %v579 = vld [vmem:[%s514 + $0x1c] sm:$0xf]
        %v580 = vld [vmem:[%s514 + $0x20] sm:$0xf]
        %v581 = vld [vmem:[%s514 + $0x24] sm:$0xf]
        %v582 = vld [vmem:[%s514 + $0x28] sm:$0xf]
        %v583 = vld [vmem:[%s514 + $0x2c] sm:$0xf]
        %v584 = vld [vmem:[%s514 + $0x30] sm:$0xf]
        %v585 = vld [vmem:[%s514 + $0x34] sm:$0xf]
        %v586 = vld [vmem:[%s514 + $0x38] sm:$0xf]
        %v587 = vld [vmem:[%s514 + $0x3c] sm:$0xf]
        %v588 = vld [vmem:[%s521] sm:$0xf]
        %v589 = vld [vmem:[%s521 + $0x4] sm:$0xf]
        %v590 = vld [vmem:[%s521 + $0x8] sm:$0xf]
        %v591 = vld [vmem:[%s521 + $0xc] sm:$0xf]
        %v592 = vld [vmem:[%s521 + $0x10] sm:$0xf]
        %v593 = vld [vmem:[%s521 + $0x14] sm:$0xf]
        %v594 = vld [vmem:[%s521 + $0x18] sm:$0xf]
        %v595 = vld [vmem:[%s521 + $0x1c] sm:$0xf]
        %v596 = vld [vmem:[%s521 + $0x20] sm:$0xf]
        %v597 = vld [vmem:[%s521 + $0x24] sm:$0xf]
        %v598 = vld [vmem:[%s521 + $0x28] sm:$0xf]
        %v599 = vld [vmem:[%s521 + $0x2c] sm:$0xf]
        %v600 = vld [vmem:[%s521 + $0x30] sm:$0xf]
        %v601 = vld [vmem:[%s521 + $0x34] sm:$0xf]
        %v602 = vld [vmem:[%s521 + $0x38] sm:$0xf]
        %v603 = vld [vmem:[%s521 + $0x3c] sm:$0xf]
        %v620 = vunpack.c.l.b16 %v556
        %v621 = vunpack.c.l.b16 %v557
        %v622 = vunpack.c.l.b16 %v558
        %v623 = vunpack.c.l.b16 %v559
        %v624 = vunpack.c.l.b16 %v560
        %v625 = vunpack.c.l.b16 %v561
        %v626 = vunpack.c.l.b16 %v562
        %v627 = vunpack.c.l.b16 %v563
        %v628 = vunpack.c.l.b16 %v564
        %v629 = vunpack.c.l.b16 %v565
        %v630 = vunpack.c.l.b16 %v566
        %v631 = vunpack.c.l.b16 %v567
        %v632 = vunpack.c.l.b16 %v568
        %v633 = vunpack.c.l.b16 %v569
        %v634 = vunpack.c.l.b16 %v570
        %v635 = vunpack.c.l.b16 %v571
        %v636 = vpack.c.b16 %v621, %v620
        %v637 = vpack.c.b16 %v623, %v622
        %v638 = vpack.c.b16 %v625, %v624
        %v639 = vpack.c.b16 %v627, %v626
        %v640 = vpack.c.b16 %v629, %v628
        %v641 = vpack.c.b16 %v631, %v630
        %v642 = vpack.c.b16 %v633, %v632
        %v643 = vpack.c.b16 %v635, %v634
        %v668 = vunpack.c.l.b16 %v572
        %v669 = vunpack.c.l.b16 %v573
        %v670 = vunpack.c.l.b16 %v574
        %v671 = vunpack.c.l.b16 %v575
        %v672 = vunpack.c.l.b16 %v576
        %v673 = vunpack.c.l.b16 %v577
        %v674 = vunpack.c.l.b16 %v578
        %v675 = vunpack.c.l.b16 %v579
        %v676 = vunpack.c.l.b16 %v580
        %v677 = vunpack.c.l.b16 %v581
        %v678 = vunpack.c.l.b16 %v582
        %v679 = vunpack.c.l.b16 %v583
        %v680 = vunpack.c.l.b16 %v584
        %v681 = vunpack.c.l.b16 %v585
        %v682 = vunpack.c.l.b16 %v586
        %v683 = vunpack.c.l.b16 %v587
        %v684 = vpack.c.b16 %v669, %v668
        %v685 = vpack.c.b16 %v671, %v670
        %v686 = vpack.c.b16 %v673, %v672
        %v687 = vpack.c.b16 %v675, %v674
        %v688 = vpack.c.b16 %v677, %v676
        %v689 = vpack.c.b16 %v679, %v678
        %v690 = vpack.c.b16 %v681, %v680
        %v691 = vpack.c.b16 %v683, %v682
        %700 = vmatprep.subr.bf16.mxu0 0
        %701 = vmatpush1.bf16.xpose.msra.mxu0 %v691
        %702 = vmatprep.subr.bf16.mxu0 0
        %703 = vmatpush1.bf16.xpose.msra.mxu0 %v690
        %704 = vmatprep.subr.bf16.mxu0 0
        %705 = vmatpush1.bf16.xpose.msra.mxu0 %v689
        %706 = vmatprep.subr.bf16.mxu0 0
        %707 = vmatpush1.bf16.xpose.msra.mxu0 %v688
        %708 = vmatprep.subr.bf16.mxu0 0
        %709 = vmatpush1.bf16.xpose.msra.mxu0 %v687
        %710 = vmatprep.subr.bf16.mxu0 0
        %711 = vmatpush1.bf16.xpose.msra.mxu0 %v686
        %712 = vmatprep.subr.bf16.mxu0 0
        %713 = vmatpush1.bf16.xpose.msra.mxu0 %v685
        %714 = vmatprep.subr.bf16.mxu0 0
        %715 = vmatpush1.bf16.xpose.msra.mxu0 %v684
        %716 = vmatprep.subr.bf16.mxu0 0
        %717 = vmatpush2.bf16.xpose.msra.mxu0 0
        %718 = vmatprep.subr.bf16.mxu0 0
        %719 = vmatpush2.bf16.xpose.msra.mxu0 0
        %720 = vmatprep.subr.bf16.mxu0 0
        %721 = vmatpush2.bf16.xpose.msra.mxu0 0
        %722 = vmatprep.subr.bf16.mxu0 0
        %723 = vmatpush2.bf16.xpose.msra.mxu0 0
        %724 = vmatprep.subr.bf16.mxu0 0
        %725 = vmatpush2.bf16.xpose.msra.mxu0 0
        %726 = vmatprep.subr.bf16.mxu0 0
        %727 = vmatpush2.bf16.xpose.msra.mxu0 0
        %728 = vmatprep.subr.bf16.mxu0 0
        %729 = vmatpush2.bf16.xpose.msra.mxu0 0
        %730 = vmatprep.subr.bf16.mxu0 0
        %731 = vmatpush2.bf16.xpose.msra.mxu0 0
        %732 = vmatprep.mubr.bf16.mxu0 0
        %733 = vmatmul.mubr.bf16.gmra.mxu0 %v636
        %v734 = vpop.f32.mrf.mxu0
        %v735 = vadd.f32 0.0, %v734
        %v736 = vpop.f32.mrf.mxu0
        %v737 = vpop.f32.mrf.mxu0
        %v738 = vadd.f32 0.0, %v737
        %v739 = vpop.f32.mrf.mxu0
        %740 = vmatprep.mubr.bf16.mxu0 0
        %741 = vmatmul.mubr.bf16.gmra.mxu0 %v637
        %v742 = vpop.f32.mrf.mxu0
        %v743 = vadd.f32 0.0, %v742
        %v744 = vpop.f32.mrf.mxu0
        %v745 = vpop.f32.mrf.mxu0
        %v746 = vadd.f32 0.0, %v745
        %v747 = vpop.f32.mrf.mxu0
        %748 = vmatprep.mubr.bf16.mxu0 0
        %749 = vmatmul.mubr.bf16.gmra.mxu0 %v638
        %v750 = vpop.f32.mrf.mxu0
        %v751 = vadd.f32 0.0, %v750
        %v752 = vpop.f32.mrf.mxu0
        %v753 = vpop.f32.mrf.mxu0
        %v754 = vadd.f32 0.0, %v753
        %v755 = vpop.f32.mrf.mxu0
        %756 = vmatprep.mubr.bf16.mxu0 0
        %757 = vmatmul.mubr.bf16.gmra.mxu0 %v639
        %v758 = vpop.f32.mrf.mxu0
        %v759 = vadd.f32 0.0, %v758
        %v760 = vpop.f32.mrf.mxu0
        %v761 = vpop.f32.mrf.mxu0
        %v762 = vadd.f32 0.0, %v761
        %v763 = vpop.f32.mrf.mxu0
        %764 = vmatprep.mubr.bf16.mxu0 0
        %765 = vmatmul.mubr.bf16.gmra.mxu0 %v640
        %v766 = vpop.f32.mrf.mxu0
        %v767 = vadd.f32 0.0, %v766
        %v768 = vpop.f32.mrf.mxu0
        %v769 = vpop.f32.mrf.mxu0
        %v770 = vadd.f32 0.0, %v769
        %v771 = vpop.f32.mrf.mxu0
        %772 = vmatprep.mubr.bf16.mxu0 0
        %773 = vmatmul.mubr.bf16.gmra.mxu0 %v641
        %v774 = vpop.f32.mrf.mxu0
        %v775 = vadd.f32 0.0, %v774
        %v776 = vpop.f32.mrf.mxu0
        %v777 = vpop.f32.mrf.mxu0
        %v778 = vadd.f32 0.0, %v777
        %v779 = vpop.f32.mrf.mxu0
        %780 = vmatprep.mubr.bf16.mxu0 0
        %781 = vmatmul.mubr.bf16.gmra.mxu0 %v642
        %v782 = vpop.f32.mrf.mxu0
        %v783 = vadd.f32 0.0, %v782
        %v784 = vpop.f32.mrf.mxu0
        %v785 = vpop.f32.mrf.mxu0
        %v786 = vadd.f32 0.0, %v785
        %v787 = vpop.f32.mrf.mxu0
        %788 = vmatprep.mubr.bf16.mxu0 0
        %789 = vmatmul.mubr.bf16.gmra.mxu0 %v643
        %v790 = vpop.f32.mrf.mxu0
        %v791 = vadd.f32 0.0, %v790
        %v792 = vpop.f32.mrf.mxu0
        %v793 = vpop.f32.mrf.mxu0
        %v794 = vadd.f32 0.0, %v793
        %v795 = vpop.f32.mrf.mxu0
        %796 = vdwg.mxu0
        %v797 = vmul.f32 %v735, 0.088388346
        %v798 = vmul.f32 %v738, 0.088388346
        %v799 = vmul.f32 %v743, 0.088388346
        %v800 = vmul.f32 %v746, 0.088388346
        %v801 = vmul.f32 %v751, 0.088388346
        %v802 = vmul.f32 %v754, 0.088388346
        %v803 = vmul.f32 %v759, 0.088388346
        %v804 = vmul.f32 %v762, 0.088388346
        %v805 = vmul.f32 %v767, 0.088388346
        %v806 = vmul.f32 %v770, 0.088388346
        %v807 = vmul.f32 %v775, 0.088388346
        %v808 = vmul.f32 %v778, 0.088388346
        %v809 = vmul.f32 %v783, 0.088388346
        %v810 = vmul.f32 %v786, 0.088388346
        %v811 = vmul.f32 %v791, 0.088388346
        %v812 = vmul.f32 %v794, 0.088388346
        %813 = vmax.xlane.f32.xlu0 %v797
        %v814 = vpop.xlane.xlu0 %813
        %815 = vmax.xlane.f32.xlu0 %v798
        %v816 = vpop.xlane.xlu0 %815
        %817 = vmax.xlane.f32.xlu0 %v799
        %v818 = vpop.xlane.xlu0 %817
        %819 = vmax.xlane.f32.xlu0 %v800
        %v820 = vpop.xlane.xlu0 %819
        %821 = vmax.xlane.f32.xlu0 %v801
        %v822 = vpop.xlane.xlu0 %821
        %823 = vmax.xlane.f32.xlu0 %v802
        %v824 = vpop.xlane.xlu0 %823
        %825 = vmax.xlane.f32.xlu0 %v803
        %v826 = vpop.xlane.xlu0 %825
        %827 = vmax.xlane.f32.xlu0 %v804
        %v828 = vpop.xlane.xlu0 %827
        %829 = vmax.xlane.f32.xlu0 %v805
        %v830 = vpop.xlane.xlu0 %829
        %831 = vmax.xlane.f32.xlu0 %v806
        %v832 = vpop.xlane.xlu0 %831
        %833 = vmax.xlane.f32.xlu0 %v807
        %v834 = vpop.xlane.xlu0 %833
        %835 = vmax.xlane.f32.xlu0 %v808
        %v836 = vpop.xlane.xlu0 %835
        %837 = vmax.xlane.f32.xlu0 %v809
        %v838 = vpop.xlane.xlu0 %837
        %839 = vmax.xlane.f32.xlu0 %v810
        %v840 = vpop.xlane.xlu0 %839
        %841 = vmax.xlane.f32.xlu0 %v811
        %v842 = vpop.xlane.xlu0 %841
        %843 = vmax.xlane.f32.xlu0 %v812
        %v844 = vpop.xlane.xlu0 %843
        %v845 = vsub.f32 %v797, %v814
        %v846 = vsub.f32 %v798, %v816
        %v847 = vsub.f32 %v799, %v818
        %v848 = vsub.f32 %v800, %v820
        %v849 = vsub.f32 %v801, %v822
        %v850 = vsub.f32 %v802, %v824
        %v851 = vsub.f32 %v803, %v826
        %v852 = vsub.f32 %v804, %v828
        %v853 = vsub.f32 %v805, %v830
        %v854 = vsub.f32 %v806, %v832
        %v855 = vsub.f32 %v807, %v834
        %v856 = vsub.f32 %v808, %v836
        %v857 = vsub.f32 %v809, %v838
        %v858 = vsub.f32 %v810, %v840
        %v859 = vsub.f32 %v811, %v842
        %v860 = vsub.f32 %v812, %v844
        %v861 = vmul.f32 %v845, 1.442695
        %v862 = vpow.pop %v861
        %v863 = vmul.f32 %v846, 1.442695
        %v864 = vpow.pop %v863
        %v865 = vmul.f32 %v847, 1.442695
        %v866 = vpow.pop %v865
        %v867 = vmul.f32 %v848, 1.442695
        %v868 = vpow.pop %v867
        %v869 = vmul.f32 %v849, 1.442695
        %v870 = vpow.pop %v869
        %v871 = vmul.f32 %v850, 1.442695
        %v872 = vpow.pop %v871
        %v873 = vmul.f32 %v851, 1.442695
        %v874 = vpow.pop %v873
        %v875 = vmul.f32 %v852, 1.442695
        %v876 = vpow.pop %v875
        %v877 = vmul.f32 %v853, 1.442695
        %v878 = vpow.pop %v877
        %v879 = vmul.f32 %v854, 1.442695
        %v880 = vpow.pop %v879
        %v881 = vmul.f32 %v855, 1.442695
        %v882 = vpow.pop %v881
        %v883 = vmul.f32 %v856, 1.442695
        %v884 = vpow.pop %v883
        %v885 = vmul.f32 %v857, 1.442695
        %v886 = vpow.pop %v885
        %v887 = vmul.f32 %v858, 1.442695
        %v888 = vpow.pop %v887
        %v889 = vmul.f32 %v859, 1.442695
        %v890 = vpow.pop %v889
        %v891 = vmul.f32 %v860, 1.442695
        %v892 = vpow.pop %v891
        %893 = vadd.xlane.f32.xlu0 %v862
        %v894 = vpop.xlane.xlu0 %893
        %895 = vadd.xlane.f32.xlu0 %v864
        %v896 = vpop.xlane.xlu0 %895
        %897 = vadd.xlane.f32.xlu0 %v866
        %v898 = vpop.xlane.xlu0 %897
        %899 = vadd.xlane.f32.xlu0 %v868
        %v900 = vpop.xlane.xlu0 %899
        %901 = vadd.xlane.f32.xlu0 %v870
        %v902 = vpop.xlane.xlu0 %901
        %903 = vadd.xlane.f32.xlu0 %v872
        %v904 = vpop.xlane.xlu0 %903
        %905 = vadd.xlane.f32.xlu0 %v874
        %v906 = vpop.xlane.xlu0 %905
        %907 = vadd.xlane.f32.xlu0 %v876
        %v908 = vpop.xlane.xlu0 %907
        %909 = vadd.xlane.f32.xlu0 %v878
        %v910 = vpop.xlane.xlu0 %909
        %911 = vadd.xlane.f32.xlu0 %v880
        %v912 = vpop.xlane.xlu0 %911
        %913 = vadd.xlane.f32.xlu0 %v882
        %v914 = vpop.xlane.xlu0 %913
        %915 = vadd.xlane.f32.xlu0 %v884
        %v916 = vpop.xlane.xlu0 %915
        %917 = vadd.xlane.f32.xlu0 %v886
        %v918 = vpop.xlane.xlu0 %917
        %919 = vadd.xlane.f32.xlu0 %v888
        %v920 = vpop.xlane.xlu0 %919
        %921 = vadd.xlane.f32.xlu0 %v890
        %v922 = vpop.xlane.xlu0 %921
        %923 = vadd.xlane.f32.xlu0 %v892
        %v924 = vpop.xlane.xlu0 %923
        %v925 = vrcp.pop %v894
        %v926 = vrcp.pop %v896
        %v927 = vrcp.pop %v898
        %v928 = vrcp.pop %v900
        %v929 = vrcp.pop %v902
        %v930 = vrcp.pop %v904
        %v931 = vrcp.pop %v906
        %v932 = vrcp.pop %v908
        %v933 = vrcp.pop %v910
        %v934 = vrcp.pop %v912
        %v935 = vrcp.pop %v914
        %v936 = vrcp.pop %v916
        %v937 = vrcp.pop %v918
        %v938 = vrcp.pop %v920
        %v939 = vrcp.pop %v922
        %v940 = vrcp.pop %v924
        %v941 = vmul.f32 %v862, %v925
        %v942 = vmul.f32 %v864, %v926
        %v943 = vmul.f32 %v866, %v927
        %v944 = vmul.f32 %v868, %v928
        %v945 = vmul.f32 %v870, %v929
        %v946 = vmul.f32 %v872, %v930
        %v947 = vmul.f32 %v874, %v931
        %v948 = vmul.f32 %v876, %v932
        %v949 = vmul.f32 %v878, %v933
        %v950 = vmul.f32 %v880, %v934
        %v951 = vmul.f32 %v882, %v935
        %v952 = vmul.f32 %v884, %v936
        %v953 = vmul.f32 %v886, %v937
        %v954 = vmul.f32 %v888, %v938
        %v955 = vmul.f32 %v890, %v939
        %v956 = vmul.f32 %v892, %v940
        %v957 = vpack.c.bf16 %v942, %v941
        %v958 = vpack.c.bf16 %v944, %v943
        %v959 = vpack.c.bf16 %v946, %v945
        %v960 = vpack.c.bf16 %v948, %v947
        %v961 = vpack.c.bf16 %v950, %v949
        %v962 = vpack.c.bf16 %v952, %v951
        %v963 = vpack.c.bf16 %v954, %v953
        %v964 = vpack.c.bf16 %v956, %v955
        %v981 = vunpack.c.l.b16 %v588
        %v982 = vunpack.c.l.b16 %v589
        %v983 = vunpack.c.l.b16 %v590
        %v984 = vunpack.c.l.b16 %v591
        %v985 = vunpack.c.l.b16 %v592
        %v986 = vunpack.c.l.b16 %v593
        %v987 = vunpack.c.l.b16 %v594
        %v988 = vunpack.c.l.b16 %v595
        %v989 = vunpack.c.l.b16 %v596
        %v990 = vunpack.c.l.b16 %v597
        %v991 = vunpack.c.l.b16 %v598
        %v992 = vunpack.c.l.b16 %v599
        %v993 = vunpack.c.l.b16 %v600
        %v994 = vunpack.c.l.b16 %v601
        %v995 = vunpack.c.l.b16 %v602
        %v996 = vunpack.c.l.b16 %v603
        %v997 = vpack.c.b16 %v982, %v981
        %v998 = vpack.c.b16 %v984, %v983
        %v999 = vpack.c.b16 %v986, %v985
        %v1000 = vpack.c.b16 %v988, %v987
        %v1001 = vpack.c.b16 %v990, %v989
        %v1002 = vpack.c.b16 %v992, %v991
        %v1003 = vpack.c.b16 %v994, %v993
        %v1004 = vpack.c.b16 %v996, %v995
        %1013 = vmatprep.subr.bf16.mxu0 0
        %1014 = vmatpush1.bf16.msra.mxu0 %v1004
        %1015 = vmatprep.subr.bf16.mxu0 0
        %1016 = vmatpush1.bf16.msra.mxu0 %v1003
        %1017 = vmatprep.subr.bf16.mxu0 0
        %1018 = vmatpush1.bf16.msra.mxu0 %v1002
        %1019 = vmatprep.subr.bf16.mxu0 0
        %1020 = vmatpush1.bf16.msra.mxu0 %v1001
        %1021 = vmatprep.subr.bf16.mxu0 0
        %1022 = vmatpush1.bf16.msra.mxu0 %v1000
        %1023 = vmatprep.subr.bf16.mxu0 0
        %1024 = vmatpush1.bf16.msra.mxu0 %v999
        %1025 = vmatprep.subr.bf16.mxu0 0
        %1026 = vmatpush1.bf16.msra.mxu0 %v998
        %1027 = vmatprep.subr.bf16.mxu0 0
        %1028 = vmatpush1.bf16.msra.mxu0 %v997
        %1029 = vmatprep.subr.bf16.mxu0 0
        %1030 = vmatpush2.bf16.msra.mxu0 0
        %1031 = vmatprep.subr.bf16.mxu0 0
        %1032 = vmatpush2.bf16.msra.mxu0 0
        %1033 = vmatprep.subr.bf16.mxu0 0
        %1034 = vmatpush2.bf16.msra.mxu0 0
        %1035 = vmatprep.subr.bf16.mxu0 0
        %1036 = vmatpush2.bf16.msra.mxu0 0
        %1037 = vmatprep.subr.bf16.mxu0 0
        %1038 = vmatpush2.bf16.msra.mxu0 0
        %1039 = vmatprep.subr.bf16.mxu0 0
        %1040 = vmatpush2.bf16.msra.mxu0 0
        %1041 = vmatprep.subr.bf16.mxu0 0
        %1042 = vmatpush2.bf16.msra.mxu0 0
        %1043 = vmatprep.subr.bf16.mxu0 0
        %1044 = vmatpush2.bf16.msra.mxu0 0
        %1045 = vmatprep.mubr.bf16.mxu0 0
        %1046 = vmatmul.mubr.bf16.gmra.mxu0 %v957
        %v1047 = vpop.f32.mrf.mxu0
        %v1048 = vadd.f32 0.0, %v1047
        %v1049 = vpop.f32.mrf.mxu0
        %v1050 = vpop.f32.mrf.mxu0
        %v1051 = vadd.f32 0.0, %v1050
        %v1052 = vpop.f32.mrf.mxu0
        %1053 = vmatprep.mubr.bf16.mxu0 0
        %1054 = vmatmul.mubr.bf16.gmra.mxu0 %v958
        %v1055 = vpop.f32.mrf.mxu0
        %v1056 = vadd.f32 0.0, %v1055
        %v1057 = vpop.f32.mrf.mxu0
        %v1058 = vpop.f32.mrf.mxu0
        %v1059 = vadd.f32 0.0, %v1058
        %v1060 = vpop.f32.mrf.mxu0
        %1061 = vmatprep.mubr.bf16.mxu0 0
        %1062 = vmatmul.mubr.bf16.gmra.mxu0 %v959
        %v1063 = vpop.f32.mrf.mxu0
        %v1064 = vadd.f32 0.0, %v1063
        %v1065 = vpop.f32.mrf.mxu0
        %v1066 = vpop.f32.mrf.mxu0
        %v1067 = vadd.f32 0.0, %v1066
        %v1068 = vpop.f32.mrf.mxu0
        %1069 = vmatprep.mubr.bf16.mxu0 0
        %1070 = vmatmul.mubr.bf16.gmra.mxu0 %v960
        %v1071 = vpop.f32.mrf.mxu0
        %v1072 = vadd.f32 0.0, %v1071
        %v1073 = vpop.f32.mrf.mxu0
        %v1074 = vpop.f32.mrf.mxu0
        %v1075 = vadd.f32 0.0, %v1074
        %v1076 = vpop.f32.mrf.mxu0
        %1077 = vmatprep.mubr.bf16.mxu0 0
        %1078 = vmatmul.mubr.bf16.gmra.mxu0 %v961
        %v1079 = vpop.f32.mrf.mxu0
        %v1080 = vadd.f32 0.0, %v1079
        %v1081 = vpop.f32.mrf.mxu0
        %v1082 = vpop.f32.mrf.mxu0
        %v1083 = vadd.f32 0.0, %v1082
        %v1084 = vpop.f32.mrf.mxu0
        %1085 = vmatprep.mubr.bf16.mxu0 0
        %1086 = vmatmul.mubr.bf16.gmra.mxu0 %v962
        %v1087 = vpop.f32.mrf.mxu0
        %v1088 = vadd.f32 0.0, %v1087
        %v1089 = vpop.f32.mrf.mxu0
        %v1090 = vpop.f32.mrf.mxu0
        %v1091 = vadd.f32 0.0, %v1090
        %v1092 = vpop.f32.mrf.mxu0
        %1093 = vmatprep.mubr.bf16.mxu0 0
        %1094 = vmatmul.mubr.bf16.gmra.mxu0 %v963
        %v1095 = vpop.f32.mrf.mxu0
        %v1096 = vadd.f32 0.0, %v1095
        %v1097 = vpop.f32.mrf.mxu0
        %v1098 = vpop.f32.mrf.mxu0
        %v1099 = vadd.f32 0.0, %v1098
        %v1100 = vpop.f32.mrf.mxu0
        %1101 = vmatprep.mubr.bf16.mxu0 0
        %1102 = vmatmul.mubr.bf16.gmra.mxu0 %v964
        %v1103 = vpop.f32.mrf.mxu0
        %v1104 = vadd.f32 0.0, %v1103
        %v1105 = vpop.f32.mrf.mxu0
        %v1106 = vpop.f32.mrf.mxu0
        %v1107 = vadd.f32 0.0, %v1106
        %v1108 = vpop.f32.mrf.mxu0
        %1109 = vdwg.mxu0
        %v1110 = vpack.c.bf16 %v1051, %v1048
        %v1111 = vpack.c.bf16 %v1059, %v1056
        %v1112 = vpack.c.bf16 %v1067, %v1064
        %v1113 = vpack.c.bf16 %v1075, %v1072
        %v1114 = vpack.c.bf16 %v1083, %v1080
        %v1115 = vpack.c.bf16 %v1091, %v1088
        %v1116 = vpack.c.bf16 %v1099, %v1096
        %v1117 = vpack.c.bf16 %v1107, %v1104
        %v1126 = vunpack.c.l.b16 %v1110
        %v1127 = vunpack.c.h.b16 %v1110
        %v1128 = vunpack.c.l.b16 %v1111
        %v1129 = vunpack.c.h.b16 %v1111
        %v1130 = vunpack.c.l.b16 %v1112
        %v1131 = vunpack.c.h.b16 %v1112
        %v1132 = vunpack.c.l.b16 %v1113
        %v1133 = vunpack.c.h.b16 %v1113
        %v1134 = vunpack.c.l.b16 %v1114
        %v1135 = vunpack.c.h.b16 %v1114
        %v1136 = vunpack.c.l.b16 %v1115
        %v1137 = vunpack.c.h.b16 %v1115
        %v1138 = vunpack.c.l.b16 %v1116
        %v1139 = vunpack.c.h.b16 %v1116
        %v1140 = vunpack.c.l.b16 %v1117
        %v1141 = vunpack.c.h.b16 %v1117
        %v1142 = vpack.c.b16 %v1126, %v1126
        %v1143 = vpack.c.b16 %v1127, %v1127
        %v1144 = vpack.c.b16 %v1128, %v1128
        %v1145 = vpack.c.b16 %v1129, %v1129
        %v1146 = vpack.c.b16 %v1130, %v1130
        %v1147 = vpack.c.b16 %v1131, %v1131
        %v1148 = vpack.c.b16 %v1132, %v1132
        %v1149 = vpack.c.b16 %v1133, %v1133
        %v1150 = vpack.c.b16 %v1134, %v1134
        %v1151 = vpack.c.b16 %v1135, %v1135
        %v1152 = vpack.c.b16 %v1136, %v1136
        %v1153 = vpack.c.b16 %v1137, %v1137
        %v1154 = vpack.c.b16 %v1138, %v1138
        %v1155 = vpack.c.b16 %v1139, %v1139
        %v1156 = vpack.c.b16 %v1140, %v1140
        %v1157 = vpack.c.b16 %v1141, %v1141
        %1174 = vst [vmem:[%s548] sm:$0xf] %v1142
        %1175 = vst [vmem:[%s548 + $0x4] sm:$0xf] %v1143
        %1176 = vst [vmem:[%s548 + $0x8] sm:$0xf] %v1144
        %1177 = vst [vmem:[%s548 + $0xc] sm:$0xf] %v1145
        %1178 = vst [vmem:[%s548 + $0x10] sm:$0xf] %v1146
        %1179 = vst [vmem:[%s548 + $0x14] sm:$0xf] %v1147
        %1180 = vst [vmem:[%s548 + $0x18] sm:$0xf] %v1148
        %1181 = vst [vmem:[%s548 + $0x1c] sm:$0xf] %v1149
        %1182 = vst [vmem:[%s548 + $0x20] sm:$0xf] %v1150
        %1183 = vst [vmem:[%s548 + $0x24] sm:$0xf] %v1151
        %1184 = vst [vmem:[%s548 + $0x28] sm:$0xf] %v1152
        %1185 = vst [vmem:[%s548 + $0x2c] sm:$0xf] %v1153
        %1186 = vst [vmem:[%s548 + $0x30] sm:$0xf] %v1154
        %1187 = vst [vmem:[%s548 + $0x34] sm:$0xf] %v1155
        %1188 = vst [vmem:[%s548 + $0x38] sm:$0xf] %v1156
        %1189 = vst [vmem:[%s548 + $0x3c] sm:$0xf] %v1157
        %s1190 = sand.u32 %s124, 1
        %s1191 = sand.u32 %s124, 1
        %s1192 = smul.addr %s1191, 64
        %s1193 = scalar_lea.vmem [#allocation5], %s1192
        // Predicated region
        $region156: #{bert_encoder_forward.14} parent=142 // pred_check
          %p1194 = pneg %p134
        $region157: #{bert_encoder_forward.14} parent=142 // pred_check_branch
          %1196 = sbr.rel (%p1194) target = $region159
        $region158: #{bert_encoder_forward.14} parent=142 // pred_region
          %s1197 = smul.u32 16, %s18
          %s1198 = smul.addr %s1197, 2
          %s1199 = sadd.s32 %s19, %s1198
          %s1200 = smul.addr %s1199, 4
          %s1201 = scalar_lea.vmem %s3, %s1200
          // Predicated region
          $region160: #{bert_encoder_forward.14} parent=158 // pred_check
            _
          $region161: #{bert_encoder_forward.14} parent=158 // pred_check_branch
            %1203 = sbr.rel (0) target = $region163
          $region162: #{bert_encoder_forward.14} parent=158 // pred_region
            // Predicated region
            $region164: #{bert_encoder_forward.14} parent=162 // pred_check
              _
            $region165: #{bert_encoder_forward.14} parent=162 // pred_check_branch
              %1205 = sbr.rel target = $region167
            $region166: #{bert_encoder_forward.14} parent=162 // pred_region
              // Predicated region
              $region179: #{bert_encoder_forward.14} parent=166 // pred_check
                _
              $region180: #{bert_encoder_forward.14} parent=166 // pred_check_branch
                %1251 = sbr.rel (0) target = $region182
              $region181: #{bert_encoder_forward.14} parent=166 // pred_region
                loop: start=0, step=1, limit=1
                $region183: #{bert_encoder_forward.14} parent=181 // loop_pre_header
                  _
                $region184: #{bert_encoder_forward.14} parent=181 // loop_header
                  %s1253 = sphi 0, %s1257
                  %p1254 = scmp.ge.s32.totalorder %s1253, 1
                  %s1258 = sphi %s1193, %s1193
                  %s1259 = sphi %s1201, %s1201
                $region185: #{bert_encoder_forward.14} parent=181 // loop_header_branch
                  %1256 = sbr.rel (%p1254) target = $region189
                $region186: #{bert_encoder_forward.14} parent=181 // loop_body
                  _
                $region187: #{bert_encoder_forward.14} parent=181 // loop_footer
                  %s1257 = sadd.s32 1, %s1253
                $region188: #{bert_encoder_forward.14} parent=181 // loop_footer_branch
                  %1252 = sbr.rel target = $region184
                $region189: #{bert_encoder_forward.14} parent=181 // loop_exit
                  _
                %s1261 = ssub.s32 16, 1
                loop: start=0, step=1, limit=1
                $region190: #{bert_encoder_forward.14} parent=181 // loop_pre_header
                  _
                $region191: #{bert_encoder_forward.14} parent=181 // loop_header
                  %s1263 = sphi 0, %s1267
                  %p1264 = scmp.ge.s32.totalorder %s1263, 1
                  %s1268 = sphi %s1193, %s1193
                  %s1269 = sphi %s1201, %s1201
                $region192: #{bert_encoder_forward.14} parent=181 // loop_header_branch
                  %1266 = sbr.rel (%p1264) target = $region196
                $region193: #{bert_encoder_forward.14} parent=181 // loop_body
                  %v1270 = vld [vmem:[%s1268] sm:%s1261]
                  %1271 = vst [vmem:[%s1269] sm:%s1261] %v1270
                  %v1272 = vld [vmem:[%s1268 + $0x4] sm:%s1261]
                  %1273 = vst [vmem:[%s1269 + $0x8] sm:%s1261] %v1272
                  %v1274 = vld [vmem:[%s1268 + $0x8] sm:%s1261]
                  %1275 = vst [vmem:[%s1269 + $0x10] sm:%s1261] %v1274
                  %v1276 = vld [vmem:[%s1268 + $0xc] sm:%s1261]
                  %1277 = vst [vmem:[%s1269 + $0x18] sm:%s1261] %v1276
                  %v1278 = vld [vmem:[%s1268 + $0x10] sm:%s1261]
                  %1279 = vst [vmem:[%s1269 + $0x20] sm:%s1261] %v1278
                  %v1280 = vld [vmem:[%s1268 + $0x14] sm:%s1261]
                  %1281 = vst [vmem:[%s1269 + $0x28] sm:%s1261] %v1280
                  %v1282 = vld [vmem:[%s1268 + $0x18] sm:%s1261]
                  %1283 = vst [vmem:[%s1269 + $0x30] sm:%s1261] %v1282
                  %v1284 = vld [vmem:[%s1268 + $0x1c] sm:%s1261]
                  %1285 = vst [vmem:[%s1269 + $0x38] sm:%s1261] %v1284
                  %v1286 = vld [vmem:[%s1268 + $0x20] sm:%s1261]
                  %1287 = vst [vmem:[%s1269 + $0x40] sm:%s1261] %v1286
                  %v1288 = vld [vmem:[%s1268 + $0x24] sm:%s1261]
                  %1289 = vst [vmem:[%s1269 + $0x48] sm:%s1261] %v1288
                  %v1290 = vld [vmem:[%s1268 + $0x28] sm:%s1261]
                  %1291 = vst [vmem:[%s1269 + $0x50] sm:%s1261] %v1290
                  %v1292 = vld [vmem:[%s1268 + $0x2c] sm:%s1261]
                  %1293 = vst [vmem:[%s1269 + $0x58] sm:%s1261] %v1292
                  %v1294 = vld [vmem:[%s1268 + $0x30] sm:%s1261]
                  %1295 = vst [vmem:[%s1269 + $0x60] sm:%s1261] %v1294
                  %v1296 = vld [vmem:[%s1268 + $0x34] sm:%s1261]
                  %1297 = vst [vmem:[%s1269 + $0x68] sm:%s1261] %v1296
                  %v1298 = vld [vmem:[%s1268 + $0x38] sm:%s1261]
                  %1299 = vst [vmem:[%s1269 + $0x70] sm:%s1261] %v1298
                  %v1300 = vld [vmem:[%s1268 + $0x3c] sm:%s1261]
                  %1301 = vst [vmem:[%s1269 + $0x78] sm:%s1261] %v1300
                $region194: #{bert_encoder_forward.14} parent=181 // loop_footer
                  %s1267 = sadd.s32 1, %s1263
                $region195: #{bert_encoder_forward.14} parent=181 // loop_footer_branch
                  %1262 = sbr.rel target = $region191
                $region196: #{bert_encoder_forward.14} parent=181 // loop_exit
                  _
              $region182: #{bert_encoder_forward.14} parent=166 // pred_fallthru
                _
            $region167: #{bert_encoder_forward.14} parent=162 // pred_fallthru
              _
            // Predicated region
            $region168: #{bert_encoder_forward.14} parent=162 // pred_check
              _
            $region169: #{bert_encoder_forward.14} parent=162 // pred_check_branch
              %1207 = sbr.rel (0) target = $region171
            $region170: #{bert_encoder_forward.14} parent=162 // pred_region
              %s1209 = ssub.s32 16, 1
              loop: start=0, step=1, limit=1
              $region172: #{bert_encoder_forward.14} parent=170 // loop_pre_header
                _
              $region173: #{bert_encoder_forward.14} parent=170 // loop_header
                %s1211 = sphi 0, %s1215
                %p1212 = scmp.ge.s32.totalorder %s1211, 1
                %s1216 = sphi %s1193, %s1193
                %s1217 = sphi %s1201, %s1201
              $region174: #{bert_encoder_forward.14} parent=170 // loop_header_branch
                %1214 = sbr.rel (%p1212) target = $region178
              $region175: #{bert_encoder_forward.14} parent=170 // loop_body
                %v1218 = vld [vmem:[%s1216] sm:%s1209]
                %1219 = vst [vmem:[%s1217] sm:%s1209] %v1218
                %v1220 = vld [vmem:[%s1216 + $0x4] sm:%s1209]
                %1221 = vst [vmem:[%s1217 + $0x8] sm:%s1209] %v1220
                %v1222 = vld [vmem:[%s1216 + $0x8] sm:%s1209]
                %1223 = vst [vmem:[%s1217 + $0x10] sm:%s1209] %v1222
                %v1224 = vld [vmem:[%s1216 + $0xc] sm:%s1209]
                %1225 = vst [vmem:[%s1217 + $0x18] sm:%s1209] %v1224
                %v1226 = vld [vmem:[%s1216 + $0x10] sm:%s1209]
                %1227 = vst [vmem:[%s1217 + $0x20] sm:%s1209] %v1226
                %v1228 = vld [vmem:[%s1216 + $0x14] sm:%s1209]
                %1229 = vst [vmem:[%s1217 + $0x28] sm:%s1209] %v1228
                %v1230 = vld [vmem:[%s1216 + $0x18] sm:%s1209]
                %1231 = vst [vmem:[%s1217 + $0x30] sm:%s1209] %v1230
                %v1232 = vld [vmem:[%s1216 + $0x1c] sm:%s1209]
                %1233 = vst [vmem:[%s1217 + $0x38] sm:%s1209] %v1232
                %v1234 = vld [vmem:[%s1216 + $0x20] sm:%s1209]
                %1235 = vst [vmem:[%s1217 + $0x40] sm:%s1209] %v1234
                %v1236 = vld [vmem:[%s1216 + $0x24] sm:%s1209]
                %1237 = vst [vmem:[%s1217 + $0x48] sm:%s1209] %v1236
                %v1238 = vld [vmem:[%s1216 + $0x28] sm:%s1209]
                %1239 = vst [vmem:[%s1217 + $0x50] sm:%s1209] %v1238
                %v1240 = vld [vmem:[%s1216 + $0x2c] sm:%s1209]
                %1241 = vst [vmem:[%s1217 + $0x58] sm:%s1209] %v1240
                %v1242 = vld [vmem:[%s1216 + $0x30] sm:%s1209]
                %1243 = vst [vmem:[%s1217 + $0x60] sm:%s1209] %v1242
                %v1244 = vld [vmem:[%s1216 + $0x34] sm:%s1209]
                %1245 = vst [vmem:[%s1217 + $0x68] sm:%s1209] %v1244
                %v1246 = vld [vmem:[%s1216 + $0x38] sm:%s1209]
                %1247 = vst [vmem:[%s1217 + $0x70] sm:%s1209] %v1246
                %v1248 = vld [vmem:[%s1216 + $0x3c] sm:%s1209]
                %1249 = vst [vmem:[%s1217 + $0x78] sm:%s1209] %v1248
              $region176: #{bert_encoder_forward.14} parent=170 // loop_footer
                %s1215 = sadd.s32 1, %s1211
              $region177: #{bert_encoder_forward.14} parent=170 // loop_footer_branch
                %1210 = sbr.rel target = $region173
              $region178: #{bert_encoder_forward.14} parent=170 // loop_exit
                _
            $region171: #{bert_encoder_forward.14} parent=162 // pred_fallthru
              _
          $region163: #{bert_encoder_forward.14} parent=158 // pred_fallthru
            _
          %1302 = vnop
        $region159: #{bert_encoder_forward.14} parent=142 // pred_fallthru
          _
      $region143: #{bert_encoder_forward.14} parent=5 // pred_fallthru
        _
      %p1303 = scmp.le.s32.totalorder 2, %s9
      // Predicated region
      $region197: #{bert_encoder_forward.14} parent=5 // pred_check
        %p1304 = pneg %p1303
      $region198: #{bert_encoder_forward.14} parent=5 // pred_check_branch
        %1306 = sbr.rel (%p1304) target = $region200
      $region199: #{bert_encoder_forward.14} parent=5 // pred_region
        %s1307 = ssub.s32 %s9, 2
        // Predicated region
        $region201: #{bert_encoder_forward.14} parent=199 // pred_check
          %p1308 = pneg %p140
        $region202: #{bert_encoder_forward.14} parent=199 // pred_check_branch
          %1310 = sbr.rel (%p1308) target = $region204
        $region203: #{bert_encoder_forward.14} parent=199 // pred_region
          %s1311 = sand.u32 %s125, 1
          %s1312 = sand.u32 %s125, 1
          %s1313 = smul.addr %s1312, 64
          %s1314 = scalar_lea.vmem [#allocation5], %s1313
        $region204: #{bert_encoder_forward.14} parent=199 // pred_fallthru
          _
      $region200: #{bert_encoder_forward.14} parent=5 // pred_fallthru
        _
    $region6: #{bert_encoder_forward.14} parent=1 // loop_footer
      %s13 = sadd.s32 1, %s9
    $region7: #{bert_encoder_forward.14} parent=1 // loop_footer_branch
      %8 = sbr.rel target = $region3
    $region8: #{bert_encoder_forward.14} parent=1 // loop_exit
      _

// kernel: bert_encoder_forward.15
$region0: #{bert_encoder_forward.15}
  #allocation0 [shape = 'u32[]', space=smem, size = 0x4, offset = 0x4, fixed_abs, tag = 'smem constant byte address 0x4 - core index']
  #allocation1 [shape = 'u32[144,128]{1,0:T(1,128)}', space=vmem, size = 0x12000, scoped, tag = 'internal scratch']
  #allocation2 [shape = 'f32[128,256]{1,0:T(8,128)}', space=vmem, size = 0x20000, scoped, tag = 'scratch operand']
  %s0 = inlined_call_operand.vmem [shape: bf16[256,256], index: 0, kind: input, shape index: {}]
  %s1 = inlined_call_operand.vmem [shape: bf16[256,256], index: 1, kind: input, shape index: {}]
  %s2 = inlined_call_operand.vmem [shape: f32[1,256], index: 2, kind: input, shape index: {}]
  %s3 = inlined_call_operand.vmem [shape: bf16[256,256], index: 3, kind: input, shape index: {}]
  %s4 = inlined_call_operand.vmem [shape: f32[1,256], index: 4, kind: input, shape index: {}]
  %s5 = inlined_call_operand.vmem [shape: f32[1,256], index: 5, kind: input, shape index: {}]
  %s6 = inlined_call_operand.vmem [shape: bf16[256,256], index: 6, kind: output, shape index: {}]
  %s7 = sld [smem:[#allocation0]]
  $region65: #{bert_encoder_forward.15} parent=0
    _
  %s9 = ssub.s32 1, %s7
  %s10 = scalar_select 0, %s9, %s7
  loop: start=0, step=1, limit=4
  $region2: #{bert_encoder_forward.15} parent=0 // loop_pre_header
    _
  $region3: #{bert_encoder_forward.15} parent=0 // loop_header
    %s12 = sphi 0, %s16
    %p13 = scmp.ge.s32.totalorder %s12, 4
    %s19 = sphi 0, %s38
    %s20 = sphi 0, %s34
    %s21 = sphi 0, %s30
    %s22 = sphi 0, %s19
    %s23 = sphi 0, %s20
    %s24 = sphi 0, %s21
    %s25 = sphi 0, %s22
    %s26 = sphi 0, %s23
    %s27 = sphi 0, %s24
    %s43 = sphi 0, %s45
    %s46 = sphi 0, %s43
    %s47 = sphi 0, %s46
    %s63 = sphi 0, %s47
    %s71 = sphi 0, %s73
    %s74 = sphi 0, %s71
    %s75 = sphi 0, %s74
    %s91 = sphi 0, %s75
    %s97 = sphi 0, %s99
    %s100 = sphi 0, %s97
    %s101 = sphi 0, %s100
    %s117 = sphi 0, %s101
    %s125 = sphi 0, %s127
    %s128 = sphi 0, %s125
    %s129 = sphi 0, %s128
    %s145 = sphi 0, %s129
    %s151 = sphi 0, %s153
    %s154 = sphi 0, %s151
    %s155 = sphi 0, %s154
    %s171 = sphi 0, %s155
    %s177 = sphi 0, %s179
    %s180 = sphi 0, %s177
    %s181 = sphi 0, %s180
    %s197 = sphi 0, %s181
    %s205 = sphi 0, %s207
    %s208 = sphi 0, %s205
    %s209 = sphi 0, %s208
    %s225 = sphi 0, %s209
  $region4: #{bert_encoder_forward.15} parent=0 // loop_header_branch
    %15 = sbr.rel (%p13) target = $region8
  $region5: #{bert_encoder_forward.15} parent=0 // loop_body
    %s17 = ssub.s32 %s12, 1
    %s18 = ssub.s32 %s12, 2
    %s28 = sadd.s32 1, %s21
    %p29 = scmp.ge.s32.totalorder %s28, 1
    %s30 = scalar_select %p29, 0, %s28
    %s31 = sadd.s32 1, %s20
    %s32 = scalar_select %p29, %s31, %s20
    %p33 = scmp.ge.s32.totalorder %s32, 1
    %s34 = scalar_select %p33, 0, %s32
    %s35 = sadd.s32 1, %s19
    %s36 = scalar_select %p33, %s35, %s19
    %p37 = scmp.ge.s32.totalorder %s36, 2
    %s38 = scalar_select %p37, 0, %s36
    %s39 = ssub.s32 %s19, %s38
    %s40 = ssub.s32 %s21, %s30
    %s41 = sor.u32 %s39, %s40
    %p42 = scmp.eq.s32.totalorder %s41, 0
    %s44 = sadd.s32 %s43, 1
    %s45 = scalar_select %p42, %s43, %s44
    %p48 = pneg %p42
    %p49 = scmp.eq.s32.totalorder %s12, 1
    %p50 = por %p48, %p49
    %p51 = scmp.ne.s32.totalorder %s43, %s46
    %p52 = scmp.eq.s32.totalorder %s12, 0
    %p53 = por %p51, %p52
    %p54 = scmp.ne.s32.totalorder %s43, %s46
    %p55 = scmp.eq.s32.totalorder %s17, 1
    %p56 = por %p54, %p55
    %p57 = scmp.ne.s32.totalorder %s46, %s47
    %p58 = scmp.eq.s32.totalorder %s17, 0
    %p59 = por %p57, %p58
    %p60 = scmp.ne.s32.totalorder %s46, %s47
    %p61 = scmp.eq.s32.totalorder %s18, 1
    %p62 = por %p60, %p61
    %p64 = scmp.ne.s32.totalorder %s47, %s63
    %p65 = scmp.eq.s32.totalorder %s18, 0
    %p66 = por %p64, %p65
    %s67 = ssub.s32 %s21, %s30
    %s68 = ssub.s32 %s20, %s34
    %s69 = sor.u32 %s67, %s68
    %p70 = scmp.eq.s32.totalorder %s69, 0
    %s72 = sadd.s32 %s71, 1
    %s73 = scalar_select %p70, %s71, %s72
    %p76 = pneg %p70
    %p77 = scmp.eq.s32.totalorder %s12, 1
    %p78 = por %p76, %p77
    %p79 = scmp.ne.s32.totalorder %s71, %s74
    %p80 = scmp.eq.s32.totalorder %s12, 0
    %p81 = por %p79, %p80
    %p82 = scmp.ne.s32.totalorder %s71, %s74
    %p83 = scmp.eq.s32.totalorder %s17, 1
    %p84 = por %p82, %p83
    %p85 = scmp.ne.s32.totalorder %s74, %s75
    %p86 = scmp.eq.s32.totalorder %s17, 0
    %p87 = por %p85, %p86
    %p88 = scmp.ne.s32.totalorder %s74, %s75
    %p89 = scmp.eq.s32.totalorder %s18, 1
    %p90 = por %p88, %p89
    %p92 = scmp.ne.s32.totalorder %s75, %s91
    %p93 = scmp.eq.s32.totalorder %s18, 0
    %p94 = por %p92, %p93
    %s95 = ssub.s32 %s20, %s34
    %p96 = scmp.eq.s32.totalorder %s95, 0
    %s98 = sadd.s32 %s97, 1
    %s99 = scalar_select %p96, %s97, %s98
    %p102 = pneg %p96
    %p103 = scmp.eq.s32.totalorder %s12, 1
    %p104 = por %p102, %p103
    %p105 = scmp.ne.s32.totalorder %s97, %s100
    %p106 = scmp.eq.s32.totalorder %s12, 0
    %p107 = por %p105, %p106
    %p108 = scmp.ne.s32.totalorder %s97, %s100
    %p109 = scmp.eq.s32.totalorder %s17, 1
    %p110 = por %p108, %p109
    %p111 = scmp.ne.s32.totalorder %s100, %s101
    %p112 = scmp.eq.s32.totalorder %s17, 0
    %p113 = por %p111, %p112
    %p114 = scmp.ne.s32.totalorder %s100, %s101
    %p115 = scmp.eq.s32.totalorder %s18, 1
    %p116 = por %p114, %p115
    %p118 = scmp.ne.s32.totalorder %s101, %s117
    %p119 = scmp.eq.s32.totalorder %s18, 0
    %p120 = por %p118, %p119
    %s121 = ssub.s32 %s19, %s38
    %s122 = ssub.s32 %s20, %s34
    %s123 = sor.u32 %s121, %s122
    %p124 = scmp.eq.s32.totalorder %s123, 0
    %s126 = sadd.s32 %s125, 1
    %s127 = scalar_select %p124, %s125, %s126
    %p130 = pneg %p124
    %p131 = scmp.eq.s32.totalorder %s12, 1
    %p132 = por %p130, %p131
    %p133 = scmp.ne.s32.totalorder %s125, %s128
    %p134 = scmp.eq.s32.totalorder %s12, 0
    %p135 = por %p133, %p134
    %p136 = scmp.ne.s32.totalorder %s125, %s128
    %p137 = scmp.eq.s32.totalorder %s17, 1
    %p138 = por %p136, %p137
    %p139 = scmp.ne.s32.totalorder %s128, %s129
    %p140 = scmp.eq.s32.totalorder %s17, 0
    %p141 = por %p139, %p140
    %p142 = scmp.ne.s32.totalorder %s128, %s129
    %p143 = scmp.eq.s32.totalorder %s18, 1
    %p144 = por %p142, %p143
    %p146 = scmp.ne.s32.totalorder %s129, %s145
    %p147 = scmp.eq.s32.totalorder %s18, 0
    %p148 = por %p146, %p147
    %s149 = ssub.s32 %s20, %s34
    %p150 = scmp.eq.s32.totalorder %s149, 0
    %s152 = sadd.s32 %s151, 1
    %s153 = scalar_select %p150, %s151, %s152
    %p156 = pneg %p150
    %p157 = scmp.eq.s32.totalorder %s12, 1
    %p158 = por %p156, %p157
    %p159 = scmp.ne.s32.totalorder %s151, %s154
    %p160 = scmp.eq.s32.totalorder %s12, 0
    %p161 = por %p159, %p160
    %p162 = scmp.ne.s32.totalorder %s151, %s154
    %p163 = scmp.eq.s32.totalorder %s17, 1
    %p164 = por %p162, %p163
    %p165 = scmp.ne.s32.totalorder %s154, %s155
    %p166 = scmp.eq.s32.totalorder %s17, 0
    %p167 = por %p165, %p166
    %p168 = scmp.ne.s32.totalorder %s154, %s155
    %p169 = scmp.eq.s32.totalorder %s18, 1
    %p170 = por %p168, %p169
    %p172 = scmp.ne.s32.totalorder %s155, %s171
    %p173 = scmp.eq.s32.totalorder %s18, 0
    %p174 = por %p172, %p173
    %s175 = ssub.s32 %s20, %s34
    %p176 = scmp.eq.s32.totalorder %s175, 0
    %s178 = sadd.s32 %s177, 1
    %s179 = scalar_select %p176, %s177, %s178
    %p182 = pneg %p176
    %p183 = scmp.eq.s32.totalorder %s12, 1
    %p184 = por %p182, %p183
    %p185 = scmp.ne.s32.totalorder %s177, %s180
    %p186 = scmp.eq.s32.totalorder %s12, 0
    %p187 = por %p185, %p186
    %p188 = scmp.ne.s32.totalorder %s177, %s180
    %p189 = scmp.eq.s32.totalorder %s17, 1
    %p190 = por %p188, %p189
    %p191 = scmp.ne.s32.totalorder %s180, %s181
    %p192 = scmp.eq.s32.totalorder %s17, 0
    %p193 = por %p191, %p192
    %p194 = scmp.ne.s32.totalorder %s180, %s181
    %p195 = scmp.eq.s32.totalorder %s18, 1
    %p196 = por %p194, %p195
    %p198 = scmp.ne.s32.totalorder %s181, %s197
    %p199 = scmp.eq.s32.totalorder %s18, 0
    %p200 = por %p198, %p199
    %s201 = ssub.s32 %s19, %s38
    %s202 = ssub.s32 %s20, %s34
    %s203 = sor.u32 %s201, %s202
    %p204 = scmp.eq.s32.totalorder %s203, 0
    %s206 = sadd.s32 %s205, 1
    %s207 = scalar_select %p204, %s205, %s206
    %p210 = pneg %p204
    %p211 = scmp.eq.s32.totalorder %s12, 1
    %p212 = por %p210, %p211
    %p213 = scmp.ne.s32.totalorder %s205, %s208
    %p214 = scmp.eq.s32.totalorder %s12, 0
    %p215 = por %p213, %p214
    %p216 = scmp.ne.s32.totalorder %s205, %s208
    %p217 = scmp.eq.s32.totalorder %s17, 1
    %p218 = por %p216, %p217
    %p219 = scmp.ne.s32.totalorder %s208, %s209
    %p220 = scmp.eq.s32.totalorder %s17, 0
    %p221 = por %p219, %p220
    %p222 = scmp.ne.s32.totalorder %s208, %s209
    %p223 = scmp.eq.s32.totalorder %s18, 1
    %p224 = por %p222, %p223
    %p226 = scmp.ne.s32.totalorder %s209, %s225
    %p227 = scmp.eq.s32.totalorder %s18, 0
    %p228 = por %p226, %p227
    %p229 = scmp.le.s32.totalorder 1, %s12
    %p230 = scmp.lt.s32.totalorder %s12, 3
    %p231 = pnand %p229, %p230
    %p232 = pneg %p231
    // Predicated region
    $region9: #{bert_encoder_forward.15} parent=5 // pred_check
      _
    $region10: #{bert_encoder_forward.15} parent=5 // pred_check_branch
      %234 = sbr.rel (%p231) target = $region12
    $region11: #{bert_encoder_forward.15} parent=5 // pred_region
      %s235 = ssub.s32 %s12, 1
      // Predicated region
      $region13: #{bert_encoder_forward.15} parent=11 // pred_check
        %p236 = pneg %p87
      $region14: #{bert_encoder_forward.15} parent=11 // pred_check_branch
        %238 = sbr.rel (%p236) target = $region16
      $region15: #{bert_encoder_forward.15} parent=11 // pred_region
        %s239 = smul.u32 32, %s24
        %s240 = smul.u32 2, %s23
        %p241 = scmp.lt.s32.totalorder %s239, 31
        %s242 = scalar_select %p241, %s239, 31
        %p243 = scmp.lt.s32.totalorder %s240, 1
        %s244 = scalar_select %p243, %s240, 1
        %s245 = smul.addr %s242, 2
        %s246 = sadd.s32 %s244, %s245
        %s247 = smul.addr %s246, 4
        %s248 = scalar_lea.vmem %s1, %s247
        %s249 = smul.u32 32, %s24
        %s250 = smul.u32 2, %s23
      $region16: #{bert_encoder_forward.15} parent=11 // pred_fallthru
        _
      // Predicated region
      $region17: #{bert_encoder_forward.15} parent=11 // pred_check
        %p251 = pneg %p113
      $region18: #{bert_encoder_forward.15} parent=11 // pred_check_branch
        %253 = sbr.rel (%p251) target = $region20
      $region19: #{bert_encoder_forward.15} parent=11 // pred_region
        %s254 = smul.u32 2, %s23
        %p255 = scmp.lt.s32.totalorder %s254, 1
        %s256 = scalar_select %p255, %s254, 1
        %s257 = scalar_lea.vmem %s2, %s256
        %s258 = smul.u32 2, %s23
      $region20: #{bert_encoder_forward.15} parent=11 // pred_fallthru
        _
      // Predicated region
      $region21: #{bert_encoder_forward.15} parent=11 // pred_check
        %p259 = pneg %p167
      $region22: #{bert_encoder_forward.15} parent=11 // pred_check_branch
        %261 = sbr.rel (%p259) target = $region24
      $region23: #{bert_encoder_forward.15} parent=11 // pred_region
        %s262 = smul.u32 2, %s23
        %p263 = scmp.lt.s32.totalorder %s262, 1
        %s264 = scalar_select %p263, %s262, 1
        %s265 = scalar_lea.vmem %s4, %s264
        %s266 = smul.u32 2, %s23
      $region24: #{bert_encoder_forward.15} parent=11 // pred_fallthru
        _
      // Predicated region
      $region25: #{bert_encoder_forward.15} parent=11 // pred_check
        %p267 = pneg %p193
      $region26: #{bert_encoder_forward.15} parent=11 // pred_check_branch
        %269 = sbr.rel (%p267) target = $region28
      $region27: #{bert_encoder_forward.15} parent=11 // pred_region
        %s270 = smul.u32 2, %s23
        %p271 = scmp.lt.s32.totalorder %s270, 1
        %s272 = scalar_select %p271, %s270, 1
        %s273 = scalar_lea.vmem %s5, %s272
        %s274 = smul.u32 2, %s23
      $region28: #{bert_encoder_forward.15} parent=11 // pred_fallthru
        _
    $region12: #{bert_encoder_forward.15} parent=5 // pred_fallthru
      _
    %p275 = scmp.lt.s32.totalorder %s12, 2
    // Predicated region
    $region29: #{bert_encoder_forward.15} parent=5 // pred_check
      %p276 = pneg %p275
    $region30: #{bert_encoder_forward.15} parent=5 // pred_check_branch
      %278 = sbr.rel (%p276) target = $region32
    $region31: #{bert_encoder_forward.15} parent=5 // pred_region
      // Predicated region
      $region33: #{bert_encoder_forward.15} parent=31 // pred_check
        %p279 = pneg %p53
      $region34: #{bert_encoder_forward.15} parent=31 // pred_check_branch
        %281 = sbr.rel (%p279) target = $region36
      $region35: #{bert_encoder_forward.15} parent=31 // pred_region
        %s282 = smul.u32 16, %s19
        %s283 = smul.u32 2, %s21
        %p284 = scmp.lt.s32.totalorder %s282, 31
        %s285 = scalar_select %p284, %s282, 31
        %p286 = scmp.lt.s32.totalorder %s283, 1
        %s287 = scalar_select %p286, %s283, 1
        %s288 = smul.addr %s285, 2
        %s289 = sadd.s32 %s287, %s288
        %s290 = smul.addr %s289, 4
        %s291 = scalar_lea.vmem %s0, %s290
        %s292 = smul.u32 16, %s19
        %s293 = smul.u32 2, %s21
      $region36: #{bert_encoder_forward.15} parent=31 // pred_fallthru
        _
      // Predicated region
      $region37: #{bert_encoder_forward.15} parent=31 // pred_check
        %p294 = pneg %p135
      $region38: #{bert_encoder_forward.15} parent=31 // pred_check_branch
        %296 = sbr.rel (%p294) target = $region40
      $region39: #{bert_encoder_forward.15} parent=31 // pred_region
        %s297 = smul.u32 16, %s19
        %s298 = smul.u32 2, %s20
        %p299 = scmp.lt.s32.totalorder %s297, 31
        %s300 = scalar_select %p299, %s297, 31
        %p301 = scmp.lt.s32.totalorder %s298, 1
        %s302 = scalar_select %p301, %s298, 1
        %s303 = smul.addr %s300, 2
        %s304 = sadd.s32 %s302, %s303
        %s305 = smul.addr %s304, 4
        %s306 = scalar_lea.vmem %s3, %s305
        %s307 = smul.u32 16, %s19
        %s308 = smul.u32 2, %s20
      $region40: #{bert_encoder_forward.15} parent=31 // pred_fallthru
        _
    $region32: #{bert_encoder_forward.15} parent=5 // pred_fallthru
      _
    %p309 = scmp.le.s32.totalorder 1, %s12
    %p310 = scmp.lt.s32.totalorder %s12, 3
    %p311 = pnand %p309, %p310
    %p312 = pneg %p311
    // Predicated region
    $region41: #{bert_encoder_forward.15} parent=5 // pred_check
      _
    $region42: #{bert_encoder_forward.15} parent=5 // pred_check_branch
      %314 = sbr.rel (%p311) target = $region44
    $region43: #{bert_encoder_forward.15} parent=5 // pred_region
      %s315 = ssub.s32 %s12, 1
      %s316 = smul.u32 16, %s22
      %s317 = smul.u32 2, %s24
      %p318 = scmp.lt.s32.totalorder %s316, 31
      %s319 = scalar_select %p318, %s316, 31
      %p320 = scmp.lt.s32.totalorder %s317, 1
      %s321 = scalar_select %p320, %s317, 1
      %s322 = smul.addr %s319, 2
      %s323 = sadd.s32 %s321, %s322
      %s324 = smul.addr %s323, 4
      %s325 = scalar_lea.vmem %s0, %s324
      %p326 = pneg %p59
      %p327 = pneg %p56
      %s328 = smul.u32 32, %s24
      %s329 = smul.u32 2, %s23
      %p330 = scmp.lt.s32.totalorder %s328, 31
      %s331 = scalar_select %p330, %s328, 31
      %p332 = scmp.lt.s32.totalorder %s329, 1
      %s333 = scalar_select %p332, %s329, 1
      %s334 = smul.addr %s331, 2
      %s335 = sadd.s32 %s333, %s334
      %s336 = smul.addr %s335, 4
      %s337 = scalar_lea.vmem %s1, %s336
      %p338 = pneg %p87
      %p339 = pneg %p84
      %s340 = smul.u32 2, %s23
      %p341 = scmp.lt.s32.totalorder %s340, 1
      %s342 = scalar_select %p341, %s340, 1
      %s343 = scalar_lea.vmem %s2, %s342
      %p344 = pneg %p113
      %p345 = pneg %p110
      %s346 = smul.u32 16, %s22
      %s347 = smul.u32 2, %s23
      %p348 = scmp.lt.s32.totalorder %s346, 31
      %s349 = scalar_select %p348, %s346, 31
      %p350 = scmp.lt.s32.totalorder %s347, 1
      %s351 = scalar_select %p350, %s347, 1
      %s352 = smul.addr %s349, 2
      %s353 = sadd.s32 %s351, %s352
      %s354 = smul.addr %s353, 4
      %s355 = scalar_lea.vmem %s3, %s354
      %p356 = pneg %p141
      %p357 = pneg %p138
      %s358 = smul.u32 2, %s23
      %p359 = scmp.lt.s32.totalorder %s358, 1
      %s360 = scalar_select %p359, %s358, 1
      %s361 = scalar_lea.vmem %s4, %s360
      %p362 = pneg %p167
      %p363 = pneg %p164
      %s364 = smul.u32 2, %s23
      %p365 = scmp.lt.s32.totalorder %s364, 1
      %s366 = scalar_select %p365, %s364, 1
      %s367 = scalar_lea.vmem %s5, %s366
      %p368 = pneg %p193
      %p369 = pneg %p190
      %p370 = pneg %p221
      %p371 = pneg %p218
      %s372 = smul.u32 16, %s22
      %s373 = smul.u32 2, %s23
      %p374 = scmp.lt.s32.totalorder %s372, 31
      %s375 = scalar_select %p374, %s372, 31
      %p376 = scmp.lt.s32.totalorder %s373, 1
      %s377 = scalar_select %p376, %s373, 1
      %s378 = smul.addr %s375, 2
      %s379 = sadd.s32 %s377, %s378
      %s380 = smul.addr %s379, 4
      %s381 = scalar_lea.vmem %s6, %s380
      %s382 = smul.u32 16, %s22
      %s383 = smul.u32 2, %s24
      %p384 = scmp.lt.s32.totalorder %s382, 31
      %s385 = scalar_select %p384, %s382, 31
      %p386 = scmp.lt.s32.totalorder %s383, 1
      %s387 = scalar_select %p386, %s383, 1
      %s388 = smul.addr %s385, 2
      %s389 = sadd.s32 %s387, %s388
      %s390 = smul.addr %s389, 4
      %s391 = scalar_lea.vmem %s0, %s390
      %s392 = smul.u32 16, %s22
      %s393 = smul.u32 2, %s24
      %s394 = smul.u32 32, %s24
      %s395 = smul.u32 2, %s23
      %p396 = scmp.lt.s32.totalorder %s394, 31
      %s397 = scalar_select %p396, %s394, 31
      %p398 = scmp.lt.s32.totalorder %s395, 1
      %s399 = scalar_select %p398, %s395, 1
      %s400 = smul.addr %s397, 2
      %s401 = sadd.s32 %s399, %s400
      %s402 = smul.addr %s401, 4
      %s403 = scalar_lea.vmem %s1, %s402
      %s404 = smul.u32 32, %s24
      %s405 = smul.u32 2, %s23
      %s406 = smul.u32 2, %s23
      %p407 = scmp.lt.s32.totalorder %s406, 1
      %s408 = scalar_select %p407, %s406, 1
      %s409 = scalar_lea.vmem %s2, %s408
      %s410 = smul.u32 2, %s23
      %s411 = smul.u32 16, %s22
      %s412 = smul.u32 2, %s23
      %p413 = scmp.lt.s32.totalorder %s411, 31
      %s414 = scalar_select %p413, %s411, 31
      %p415 = scmp.lt.s32.totalorder %s412, 1
      %s416 = scalar_select %p415, %s412, 1
      %s417 = smul.addr %s414, 2
      %s418 = sadd.s32 %s416, %s417
      %s419 = smul.addr %s418, 4
      %s420 = scalar_lea.vmem %s3, %s419
      %s421 = smul.u32 16, %s22
      %s422 = smul.u32 2, %s23
      %s423 = smul.u32 2, %s23
      %p424 = scmp.lt.s32.totalorder %s423, 1
      %s425 = scalar_select %p424, %s423, 1
      %s426 = scalar_lea.vmem %s4, %s425
      %s427 = smul.u32 2, %s23
      %s428 = smul.u32 2, %s23
      %p429 = scmp.lt.s32.totalorder %s428, 1
      %s430 = scalar_select %p429, %s428, 1
      %s431 = scalar_lea.vmem %s5, %s430
      %s432 = smul.u32 2, %s23
      %s433 = smul.u32 16, %s22
      %s434 = smul.u32 2, %s23
      %p435 = scmp.lt.s32.totalorder %s433, 31
      %s436 = scalar_select %p435, %s433, 31
      %p437 = scmp.lt.s32.totalorder %s434, 1
      %s438 = scalar_select %p437, %s434, 1
      %s439 = smul.addr %s436, 2
      %s440 = sadd.s32 %s438, %s439
      %s441 = smul.addr %s440, 4
      %s442 = scalar_lea.vmem %s6, %s441
      %s443 = smul.u32 16, %s22
      %s444 = smul.u32 2, %s23
      %p445 = scmp.eq.s32.totalorder %s24, 0
      // Predicated region
      $region45: #{bert_encoder_forward.15} parent=43 // pred_check
        %p446 = pneg %p445
      $region46: #{bert_encoder_forward.15} parent=43 // pred_check_branch
        %448 = sbr.rel (%p446) target = $region48
      $region47: #{bert_encoder_forward.15} parent=43 // pred_region
        %449 = vst [vmem:[#allocation2] sm:$0xff] 0.0
        %450 = vst [vmem:[#allocation2 + $0x8] sm:$0xff] 0.0
        %451 = vst [vmem:[#allocation2 + $0x10] sm:$0xff] 0.0
        %452 = vst [vmem:[#allocation2 + $0x18] sm:$0xff] 0.0
        %453 = vst [vmem:[#allocation2 + $0x20] sm:$0xff] 0.0
        %454 = vst [vmem:[#allocation2 + $0x28] sm:$0xff] 0.0
        %455 = vst [vmem:[#allocation2 + $0x30] sm:$0xff] 0.0
        %456 = vst [vmem:[#allocation2 + $0x38] sm:$0xff] 0.0
        %457 = vst [vmem:[#allocation2 + $0x40] sm:$0xff] 0.0
        %458 = vst [vmem:[#allocation2 + $0x48] sm:$0xff] 0.0
        %459 = vst [vmem:[#allocation2 + $0x50] sm:$0xff] 0.0
        %460 = vst [vmem:[#allocation2 + $0x58] sm:$0xff] 0.0
        %461 = vst [vmem:[#allocation2 + $0x60] sm:$0xff] 0.0
        %462 = vst [vmem:[#allocation2 + $0x68] sm:$0xff] 0.0
        %463 = vst [vmem:[#allocation2 + $0x70] sm:$0xff] 0.0
        %464 = vst [vmem:[#allocation2 + $0x78] sm:$0xff] 0.0
        %465 = vst [vmem:[#allocation2 + $0x80] sm:$0xff] 0.0
        %466 = vst [vmem:[#allocation2 + $0x88] sm:$0xff] 0.0
        %467 = vst [vmem:[#allocation2 + $0x90] sm:$0xff] 0.0
        %468 = vst [vmem:[#allocation2 + $0x98] sm:$0xff] 0.0
        %469 = vst [vmem:[#allocation2 + $0xa0] sm:$0xff] 0.0
        %470 = vst [vmem:[#allocation2 + $0xa8] sm:$0xff] 0.0
        %471 = vst [vmem:[#allocation2 + $0xb0] sm:$0xff] 0.0
        %472 = vst [vmem:[#allocation2 + $0xb8] sm:$0xff] 0.0
        %473 = vst [vmem:[#allocation2 + $0xc0] sm:$0xff] 0.0
        %474 = vst [vmem:[#allocation2 + $0xc8] sm:$0xff] 0.0
        %475 = vst [vmem:[#allocation2 + $0xd0] sm:$0xff] 0.0
        %476 = vst [vmem:[#allocation2 + $0xd8] sm:$0xff] 0.0
        %477 = vst [vmem:[#allocation2 + $0xe0] sm:$0xff] 0.0
        %478 = vst [vmem:[#allocation2 + $0xe8] sm:$0xff] 0.0
        %479 = vst [vmem:[#allocation2 + $0xf0] sm:$0xff] 0.0
        %480 = vst [vmem:[#allocation2 + $0xf8] sm:$0xff] 0.0
      $region48: #{bert_encoder_forward.15} parent=43 // pred_fallthru
        _
      %v481 = vld [vmem:[#allocation2] sm:$0xff]
      %v482 = vld [vmem:[#allocation2 + $0x8] sm:$0xff]
      %v483 = vld [vmem:[#allocation2 + $0x10] sm:$0xff]
      %v484 = vld [vmem:[#allocation2 + $0x18] sm:$0xff]
      %v485 = vld [vmem:[#allocation2 + $0x20] sm:$0xff]
      %v486 = vld [vmem:[#allocation2 + $0x28] sm:$0xff]
      %v487 = vld [vmem:[#allocation2 + $0x30] sm:$0xff]
      %v488 = vld [vmem:[#allocation2 + $0x38] sm:$0xff]
      %v489 = vld [vmem:[#allocation2 + $0x40] sm:$0xff]
      %v490 = vld [vmem:[#allocation2 + $0x48] sm:$0xff]
      %v491 = vld [vmem:[#allocation2 + $0x50] sm:$0xff]
      %v492 = vld [vmem:[#allocation2 + $0x58] sm:$0xff]
      %v493 = vld [vmem:[#allocation2 + $0x60] sm:$0xff]
      %v494 = vld [vmem:[#allocation2 + $0x68] sm:$0xff]
      %v495 = vld [vmem:[#allocation2 + $0x70] sm:$0xff]
      %v496 = vld [vmem:[#allocation2 + $0x78] sm:$0xff]
      %v497 = vld [vmem:[#allocation2 + $0x80] sm:$0xff]
      %v498 = vld [vmem:[#allocation2 + $0x88] sm:$0xff]
      %v499 = vld [vmem:[#allocation2 + $0x90] sm:$0xff]
      %v500 = vld [vmem:[#allocation2 + $0x98] sm:$0xff]
      %v501 = vld [vmem:[#allocation2 + $0xa0] sm:$0xff]
      %v502 = vld [vmem:[#allocation2 + $0xa8] sm:$0xff]
      %v503 = vld [vmem:[#allocation2 + $0xb0] sm:$0xff]
      %v504 = vld [vmem:[#allocation2 + $0xb8] sm:$0xff]
      %v505 = vld [vmem:[#allocation2 + $0xc0] sm:$0xff]
      %v506 = vld [vmem:[#allocation2 + $0xc8] sm:$0xff]
      %v507 = vld [vmem:[#allocation2 + $0xd0] sm:$0xff]
      %v508 = vld [vmem:[#allocation2 + $0xd8] sm:$0xff]
      %v509 = vld [vmem:[#allocation2 + $0xe0] sm:$0xff]
      %v510 = vld [vmem:[#allocation2 + $0xe8] sm:$0xff]
      %v511 = vld [vmem:[#allocation2 + $0xf0] sm:$0xff]
      %v512 = vld [vmem:[#allocation2 + $0xf8] sm:$0xff]
      %v513 = vld [vmem:[%s391] sm:$0xff]
      %v514 = vld [vmem:[%s391 + $0x8] sm:$0xff]
      %v515 = vld [vmem:[%s391 + $0x10] sm:$0xff]
      %v516 = vld [vmem:[%s391 + $0x18] sm:$0xff]
      %v517 = vld [vmem:[%s391 + $0x20] sm:$0xff]
      %v518 = vld [vmem:[%s391 + $0x28] sm:$0xff]
      %v519 = vld [vmem:[%s391 + $0x30] sm:$0xff]
      %v520 = vld [vmem:[%s391 + $0x38] sm:$0xff]
      %v521 = vld [vmem:[%s391 + $0x40] sm:$0xff]
      %v522 = vld [vmem:[%s391 + $0x48] sm:$0xff]
      %v523 = vld [vmem:[%s391 + $0x50] sm:$0xff]
      %v524 = vld [vmem:[%s391 + $0x58] sm:$0xff]
      %v525 = vld [vmem:[%s391 + $0x60] sm:$0xff]
      %v526 = vld [vmem:[%s391 + $0x68] sm:$0xff]
      %v527 = vld [vmem:[%s391 + $0x70] sm:$0xff]
      %v528 = vld [vmem:[%s391 + $0x78] sm:$0xff]
      %v529 = vld [vmem:[%s403] sm:$0xff]
      %v530 = vld [vmem:[%s403 + $0x8] sm:$0xff]
      %v531 = vld [vmem:[%s403 + $0x10] sm:$0xff]
      %v532 = vld [vmem:[%s403 + $0x18] sm:$0xff]
      %v533 = vld [vmem:[%s403 + $0x20] sm:$0xff]
      %v534 = vld [vmem:[%s403 + $0x28] sm:$0xff]
      %v535 = vld [vmem:[%s403 + $0x30] sm:$0xff]
      %v536 = vld [vmem:[%s403 + $0x38] sm:$0xff]
      %v537 = vld [vmem:[%s403 + $0x40] sm:$0xff]
      %v538 = vld [vmem:[%s403 + $0x48] sm:$0xff]
      %v539 = vld [vmem:[%s403 + $0x50] sm:$0xff]
      %v540 = vld [vmem:[%s403 + $0x58] sm:$0xff]
      %v541 = vld [vmem:[%s403 + $0x60] sm:$0xff]
      %v542 = vld [vmem:[%s403 + $0x68] sm:$0xff]
      %v543 = vld [vmem:[%s403 + $0x70] sm:$0xff]
      %v544 = vld [vmem:[%s403 + $0x78] sm:$0xff]
      %v545 = vld [vmem:[%s403 + $0x80] sm:$0xff]
      %v546 = vld [vmem:[%s403 + $0x88] sm:$0xff]
      %v547 = vld [vmem:[%s403 + $0x90] sm:$0xff]
      %v548 = vld [vmem:[%s403 + $0x98] sm:$0xff]
      %v549 = vld [vmem:[%s403 + $0xa0] sm:$0xff]
      %v550 = vld [vmem:[%s403 + $0xa8] sm:$0xff]
      %v551 = vld [vmem:[%s403 + $0xb0] sm:$0xff]
      %v552 = vld [vmem:[%s403 + $0xb8] sm:$0xff]
      %v553 = vld [vmem:[%s403 + $0xc0] sm:$0xff]
      %v554 = vld [vmem:[%s403 + $0xc8] sm:$0xff]
      %v555 = vld [vmem:[%s403 + $0xd0] sm:$0xff]
      %v556 = vld [vmem:[%s403 + $0xd8] sm:$0xff]
      %v557 = vld [vmem:[%s403 + $0xe0] sm:$0xff]
      %v558 = vld [vmem:[%s403 + $0xe8] sm:$0xff]
      %v559 = vld [vmem:[%s403 + $0xf0] sm:$0xff]
      %v560 = vld [vmem:[%s403 + $0xf8] sm:$0xff]
      %v577 = vunpack.c.l.b16 %v513
      %v578 = vunpack.c.h.b16 %v513
      %v579 = vunpack.c.l.b16 %v514
      %v580 = vunpack.c.h.b16 %v514
      %v581 = vunpack.c.l.b16 %v515
      %v582 = vunpack.c.h.b16 %v515
      %v583 = vunpack.c.l.b16 %v516
      %v584 = vunpack.c.h.b16 %v516
      %v585 = vunpack.c.l.b16 %v517
      %v586 = vunpack.c.h.b16 %v517
      %v587 = vunpack.c.l.b16 %v518
      %v588 = vunpack.c.h.b16 %v518
      %v589 = vunpack.c.l.b16 %v519
      %v590 = vunpack.c.h.b16 %v519
      %v591 = vunpack.c.l.b16 %v520
      %v592 = vunpack.c.h.b16 %v520
      %v593 = vunpack.c.l.b16 %v521
      %v594 = vunpack.c.h.b16 %v521
      %v595 = vunpack.c.l.b16 %v522
      %v596 = vunpack.c.h.b16 %v522
      %v597 = vunpack.c.l.b16 %v523
      %v598 = vunpack.c.h.b16 %v523
      %v599 = vunpack.c.l.b16 %v524
      %v600 = vunpack.c.h.b16 %v524
      %v601 = vunpack.c.l.b16 %v525
      %v602 = vunpack.c.h.b16 %v525
      %v603 = vunpack.c.l.b16 %v526
      %v604 = vunpack.c.h.b16 %v526
      %v605 = vunpack.c.l.b16 %v527
      %v606 = vunpack.c.h.b16 %v527
      %v607 = vunpack.c.l.b16 %v528
      %v608 = vunpack.c.h.b16 %v528
      %v609 = vpack.c.b16 %v579, %v577
      %v610 = vpack.c.b16 %v580, %v578
      %v611 = vpack.c.b16 %v583, %v581
      %v612 = vpack.c.b16 %v584, %v582
      %v613 = vpack.c.b16 %v587, %v585
      %v614 = vpack.c.b16 %v588, %v586
      %v615 = vpack.c.b16 %v591, %v589
      %v616 = vpack.c.b16 %v592, %v590
      %v617 = vpack.c.b16 %v595, %v593
      %v618 = vpack.c.b16 %v596, %v594
      %v619 = vpack.c.b16 %v599, %v597
      %v620 = vpack.c.b16 %v600, %v598
      %v621 = vpack.c.b16 %v603, %v601
      %v622 = vpack.c.b16 %v604, %v602
      %v623 = vpack.c.b16 %v607, %v605
      %v624 = vpack.c.b16 %v608, %v606
      %v673 = vunpack.c.l.b16 %v529
      %v674 = vunpack.c.h.b16 %v529
      %v675 = vunpack.c.l.b16 %v530
      %v676 = vunpack.c.h.b16 %v530
      %v677 = vunpack.c.l.b16 %v531
      %v678 = vunpack.c.h.b16 %v531
      %v679 = vunpack.c.l.b16 %v532
      %v680 = vunpack.c.h.b16 %v532
      %v681 = vunpack.c.l.b16 %v533
      %v682 = vunpack.c.h.b16 %v533
      %v683 = vunpack.c.l.b16 %v534
      %v684 = vunpack.c.h.b16 %v534
      %v685 = vunpack.c.l.b16 %v535
      %v686 = vunpack.c.h.b16 %v535
      %v687 = vunpack.c.l.b16 %v536
      %v688 = vunpack.c.h.b16 %v536
      %v689 = vunpack.c.l.b16 %v537
      %v690 = vunpack.c.h.b16 %v537
      %v691 = vunpack.c.l.b16 %v538
      %v692 = vunpack.c.h.b16 %v538
      %v693 = vunpack.c.l.b16 %v539
      %v694 = vunpack.c.h.b16 %v539
      %v695 = vunpack.c.l.b16 %v540
      %v696 = vunpack.c.h.b16 %v540
      %v697 = vunpack.c.l.b16 %v541
      %v698 = vunpack.c.h.b16 %v541
      %v699 = vunpack.c.l.b16 %v542
      %v700 = vunpack.c.h.b16 %v542
      %v701 = vunpack.c.l.b16 %v543
      %v702 = vunpack.c.h.b16 %v543
      %v703 = vunpack.c.l.b16 %v544
      %v704 = vunpack.c.h.b16 %v544
      %v705 = vunpack.c.l.b16 %v545
      %v706 = vunpack.c.h.b16 %v545
      %v707 = vunpack.c.l.b16 %v546
      %v708 = vunpack.c.h.b16 %v546
      %v709 = vunpack.c.l.b16 %v547
      %v710 = vunpack.c.h.b16 %v547
      %v711 = vunpack.c.l.b16 %v548
      %v712 = vunpack.c.h.b16 %v548
      %v713 = vunpack.c.l.b16 %v549
      %v714 = vunpack.c.h.b16 %v549
      %v715 = vunpack.c.l.b16 %v550
      %v716 = vunpack.c.h.b16 %v550
      %v717 = vunpack.c.l.b16 %v551
      %v718 = vunpack.c.h.b16 %v551
      %v719 = vunpack.c.l.b16 %v552
      %v720 = vunpack.c.h.b16 %v552
      %v721 = vunpack.c.l.b16 %v553
      %v722 = vunpack.c.h.b16 %v553
      %v723 = vunpack.c.l.b16 %v554
      %v724 = vunpack.c.h.b16 %v554
      %v725 = vunpack.c.l.b16 %v555
      %v726 = vunpack.c.h.b16 %v555
      %v727 = vunpack.c.l.b16 %v556
      %v728 = vunpack.c.h.b16 %v556
      %v729 = vunpack.c.l.b16 %v557
      %v730 = vunpack.c.h.b16 %v557
      %v731 = vunpack.c.l.b16 %v558
      %v732 = vunpack.c.h.b16 %v558
      %v733 = vunpack.c.l.b16 %v559
      %v734 = vunpack.c.h.b16 %v559
      %v735 = vunpack.c.l.b16 %v560
      %v736 = vunpack.c.h.b16 %v560
      %v737 = vpack.c.b16 %v675, %v673
      %v738 = vpack.c.b16 %v676, %v674
      %v739 = vpack.c.b16 %v679, %v677
      %v740 = vpack.c.b16 %v680, %v678
      %v741 = vpack.c.b16 %v683, %v681
      %v742 = vpack.c.b16 %v684, %v682
      %v743 = vpack.c.b16 %v687, %v685
      %v744 = vpack.c.b16 %v688, %v686
      %v745 = vpack.c.b16 %v691, %v689
      %v746 = vpack.c.b16 %v692, %v690
      %v747 = vpack.c.b16 %v695, %v693
      %v748 = vpack.c.b16 %v696, %v694
      %v749 = vpack.c.b16 %v699, %v697
      %v750 = vpack.c.b16 %v700, %v698
      %v751 = vpack.c.b16 %v703, %v701
      %v752 = vpack.c.b16 %v704, %v702
      %v753 = vpack.c.b16 %v707, %v705
      %v754 = vpack.c.b16 %v708, %v706
      %v755 = vpack.c.b16 %v711, %v709
      %v756 = vpack.c.b16 %v712, %v710
      %v757 = vpack.c.b16 %v715, %v713
      %v758 = vpack.c.b16 %v716, %v714
      %v759 = vpack.c.b16 %v719, %v717
      %v760 = vpack.c.b16 %v720, %v718
      %v761 = vpack.c.b16 %v723, %v721
      %v762 = vpack.c.b16 %v724, %v722
      %v763 = vpack.c.b16 %v727, %v725
      %v764 = vpack.c.b16 %v728, %v726
      %v765 = vpack.c.b16 %v731, %v729
      %v766 = vpack.c.b16 %v732, %v730
      %v767 = vpack.c.b16 %v735, %v733
      %v768 = vpack.c.b16 %v736, %v734
      %801 = vmatprep.subr.bf16.mxu0 %v752
      %802 = vmatpush1.bf16.msra.mxu0 %v751
      %803 = vmatprep.subr.bf16.mxu0 %v750
      %804 = vmatpush1.bf16.msra.mxu0 %v749
      %805 = vmatprep.subr.bf16.mxu0 %v748
      %806 = vmatpush1.bf16.msra.mxu0 %v747
      %807 = vmatprep.subr.bf16.mxu0 %v746
      %808 = vmatpush1.bf16.msra.mxu0 %v745
      %809 = vmatprep.subr.bf16.mxu0 %v744
      %810 = vmatpush1.bf16.msra.mxu0 %v743
      %811 = vmatprep.subr.bf16.mxu0 %v742
      %812 = vmatpush1.bf16.msra.mxu0 %v741
      %813 = vmatprep.subr.bf16.mxu0 %v740
      %814 = vmatpush1.bf16.msra.mxu0 %v739
      %815 = vmatprep.subr.bf16.mxu0 %v738
      %816 = vmatpush1.bf16.msra.mxu0 %v737
      %817 = vmatprep.subr.bf16.mxu0 %v768
      %818 = vmatpush2.bf16.msra.mxu0 %v767
      %819 = vmatprep.subr.bf16.mxu0 %v766
      %820 = vmatpush2.bf16.msra.mxu0 %v765
      %821 = vmatprep.subr.bf16.mxu0 %v764
      %822 = vmatpush2.bf16.msra.mxu0 %v763
      %823 = vmatprep.subr.bf16.mxu0 %v762
      %824 = vmatpush2.bf16.msra.mxu0 %v761
      %825 = vmatprep.subr.bf16.mxu0 %v760
      %826 = vmatpush2.bf16.msra.mxu0 %v759
      %827 = vmatprep.subr.bf16.mxu0 %v758
      %828 = vmatpush2.bf16.msra.mxu0 %v757
      %829 = vmatprep.subr.bf16.mxu0 %v756
      %830 = vmatpush2.bf16.msra.mxu0 %v755
      %831 = vmatprep.subr.bf16.mxu0 %v754
      %832 = vmatpush2.bf16.msra.mxu0 %v753
      %833 = vmatprep.mubr.bf16.mxu0 %v610
      %834 = vmatmul.mubr.bf16.gmra.mxu0 %v609
      %v835 = vpop.f32.mrf.mxu0
      %v836 = vadd.f32 0.0, %v835
      %v837 = vpop.f32.mrf.mxu0
      %v838 = vadd.f32 0.0, %v837
      %v839 = vpop.f32.mrf.mxu0
      %v840 = vadd.f32 0.0, %v839
      %v841 = vpop.f32.mrf.mxu0
      %v842 = vadd.f32 0.0, %v841
      %843 = vmatprep.mubr.bf16.mxu0 %v612
      %844 = vmatmul.mubr.bf16.gmra.mxu0 %v611
      %v845 = vpop.f32.mrf.mxu0
      %v846 = vadd.f32 0.0, %v845
      %v847 = vpop.f32.mrf.mxu0
      %v848 = vadd.f32 0.0, %v847
      %v849 = vpop.f32.mrf.mxu0
      %v850 = vadd.f32 0.0, %v849
      %v851 = vpop.f32.mrf.mxu0
      %v852 = vadd.f32 0.0, %v851
      %853 = vmatprep.mubr.bf16.mxu0 %v614
      %854 = vmatmul.mubr.bf16.gmra.mxu0 %v613
      %v855 = vpop.f32.mrf.mxu0
      %v856 = vadd.f32 0.0, %v855
      %v857 = vpop.f32.mrf.mxu0
      %v858 = vadd.f32 0.0, %v857
      %v859 = vpop.f32.mrf.mxu0
      %v860 = vadd.f32 0.0, %v859
      %v861 = vpop.f32.mrf.mxu0
      %v862 = vadd.f32 0.0, %v861
      %863 = vmatprep.mubr.bf16.mxu0 %v616
      %864 = vmatmul.mubr.bf16.gmra.mxu0 %v615
      %v865 = vpop.f32.mrf.mxu0
      %v866 = vadd.f32 0.0, %v865
      %v867 = vpop.f32.mrf.mxu0
      %v868 = vadd.f32 0.0, %v867
      %v869 = vpop.f32.mrf.mxu0
      %v870 = vadd.f32 0.0, %v869
      %v871 = vpop.f32.mrf.mxu0
      %v872 = vadd.f32 0.0, %v871
      %873 = vmatprep.mubr.bf16.mxu0 %v618
      %874 = vmatmul.mubr.bf16.gmra.mxu0 %v617
      %v875 = vpop.f32.mrf.mxu0
      %v876 = vadd.f32 0.0, %v875
      %v877 = vpop.f32.mrf.mxu0
      %v878 = vadd.f32 0.0, %v877
      %v879 = vpop.f32.mrf.mxu0
      %v880 = vadd.f32 0.0, %v879
      %v881 = vpop.f32.mrf.mxu0
      %v882 = vadd.f32 0.0, %v881
      %883 = vmatprep.mubr.bf16.mxu0 %v620
      %884 = vmatmul.mubr.bf16.gmra.mxu0 %v619
      %v885 = vpop.f32.mrf.mxu0
      %v886 = vadd.f32 0.0, %v885
      %v887 = vpop.f32.mrf.mxu0
      %v888 = vadd.f32 0.0, %v887
      %v889 = vpop.f32.mrf.mxu0
      %v890 = vadd.f32 0.0, %v889
      %v891 = vpop.f32.mrf.mxu0
      %v892 = vadd.f32 0.0, %v891
      %893 = vmatprep.mubr.bf16.mxu0 %v622
      %894 = vmatmul.mubr.bf16.gmra.mxu0 %v621
      %v895 = vpop.f32.mrf.mxu0
      %v896 = vadd.f32 0.0, %v895
      %v897 = vpop.f32.mrf.mxu0
      %v898 = vadd.f32 0.0, %v897
      %v899 = vpop.f32.mrf.mxu0
      %v900 = vadd.f32 0.0, %v899
      %v901 = vpop.f32.mrf.mxu0
      %v902 = vadd.f32 0.0, %v901
      %903 = vmatprep.mubr.bf16.mxu0 %v624
      %904 = vmatmul.mubr.bf16.gmra.mxu0 %v623
      %v905 = vpop.f32.mrf.mxu0
      %v906 = vadd.f32 0.0, %v905
      %v907 = vpop.f32.mrf.mxu0
      %v908 = vadd.f32 0.0, %v907
      %v909 = vpop.f32.mrf.mxu0
      %v910 = vadd.f32 0.0, %v909
      %v911 = vpop.f32.mrf.mxu0
      %v912 = vadd.f32 0.0, %v911
      %913 = vdwg.mxu0
      %v914 = vadd.f32 %v481, %v836
      %v915 = vadd.f32 %v482, %v838
      %v916 = vadd.f32 %v483, %v840
      %v917 = vadd.f32 %v484, %v842
      %v918 = vadd.f32 %v485, %v846
      %v919 = vadd.f32 %v486, %v848
      %v920 = vadd.f32 %v487, %v850
      %v921 = vadd.f32 %v488, %v852
      %v922 = vadd.f32 %v489, %v856
      %v923 = vadd.f32 %v490, %v858
      %v924 = vadd.f32 %v491, %v860
      %v925 = vadd.f32 %v492, %v862
      %v926 = vadd.f32 %v493, %v866
      %v927 = vadd.f32 %v494, %v868
      %v928 = vadd.f32 %v495, %v870
      %v929 = vadd.f32 %v496, %v872
      %v930 = vadd.f32 %v497, %v876
      %v931 = vadd.f32 %v498, %v878
      %v932 = vadd.f32 %v499, %v880
      %v933 = vadd.f32 %v500, %v882
      %v934 = vadd.f32 %v501, %v886
      %v935 = vadd.f32 %v502, %v888
      %v936 = vadd.f32 %v503, %v890
      %v937 = vadd.f32 %v504, %v892
      %v938 = vadd.f32 %v505, %v896
      %v939 = vadd.f32 %v506, %v898
      %v940 = vadd.f32 %v507, %v900
      %v941 = vadd.f32 %v508, %v902
      %v942 = vadd.f32 %v509, %v906
      %v943 = vadd.f32 %v510, %v908
      %v944 = vadd.f32 %v511, %v910
      %v945 = vadd.f32 %v512, %v912
      %946 = vst [vmem:[#allocation2] sm:$0xff] %v914
      %947 = vst [vmem:[#allocation2 + $0x8] sm:$0xff] %v915
      %948 = vst [vmem:[#allocation2 + $0x10] sm:$0xff] %v916
      %949 = vst [vmem:[#allocation2 + $0x18] sm:$0xff] %v917
      %950 = vst [vmem:[#allocation2 + $0x20] sm:$0xff] %v918
      %951 = vst [vmem:[#allocation2 + $0x28] sm:$0xff] %v919
      %952 = vst [vmem:[#allocation2 + $0x30] sm:$0xff] %v920
      %953 = vst [vmem:[#allocation2 + $0x38] sm:$0xff] %v921
      %954 = vst [vmem:[#allocation2 + $0x40] sm:$0xff] %v922
      %955 = vst [vmem:[#allocation2 + $0x48] sm:$0xff] %v923
      %956 = vst [vmem:[#allocation2 + $0x50] sm:$0xff] %v924
      %957 = vst [vmem:[#allocation2 + $0x58] sm:$0xff] %v925
      %958 = vst [vmem:[#allocation2 + $0x60] sm:$0xff] %v926
      %959 = vst [vmem:[#allocation2 + $0x68] sm:$0xff] %v927
      %960 = vst [vmem:[#allocation2 + $0x70] sm:$0xff] %v928
      %961 = vst [vmem:[#allocation2 + $0x78] sm:$0xff] %v929
      %962 = vst [vmem:[#allocation2 + $0x80] sm:$0xff] %v930
      %963 = vst [vmem:[#allocation2 + $0x88] sm:$0xff] %v931
      %964 = vst [vmem:[#allocation2 + $0x90] sm:$0xff] %v932
      %965 = vst [vmem:[#allocation2 + $0x98] sm:$0xff] %v933
      %966 = vst [vmem:[#allocation2 + $0xa0] sm:$0xff] %v934
      %967 = vst [vmem:[#allocation2 + $0xa8] sm:$0xff] %v935
      %968 = vst [vmem:[#allocation2 + $0xb0] sm:$0xff] %v936
      %969 = vst [vmem:[#allocation2 + $0xb8] sm:$0xff] %v937
      %970 = vst [vmem:[#allocation2 + $0xc0] sm:$0xff] %v938
      %971 = vst [vmem:[#allocation2 + $0xc8] sm:$0xff] %v939
      %972 = vst [vmem:[#allocation2 + $0xd0] sm:$0xff] %v940
      %973 = vst [vmem:[#allocation2 + $0xd8] sm:$0xff] %v941
      %974 = vst [vmem:[#allocation2 + $0xe0] sm:$0xff] %v942
      %975 = vst [vmem:[#allocation2 + $0xe8] sm:$0xff] %v943
      %976 = vst [vmem:[#allocation2 + $0xf0] sm:$0xff] %v944
      %977 = vst [vmem:[#allocation2 + $0xf8] sm:$0xff] %v945
      // Predicated region
      $region49: #{bert_encoder_forward.15} parent=43 // pred_check
        %p978 = pneg %p445
      $region50: #{bert_encoder_forward.15} parent=43 // pred_check_branch
        %980 = sbr.rel (%p978) target = $region52
      $region51: #{bert_encoder_forward.15} parent=43 // pred_region
        %v981 = vld [vmem:[#allocation2] sm:$0xff]
        %v982 = vld [vmem:[#allocation2 + $0x8] sm:$0xff]
        %v983 = vld [vmem:[#allocation2 + $0x10] sm:$0xff]
        %v984 = vld [vmem:[#allocation2 + $0x18] sm:$0xff]
        %v985 = vld [vmem:[#allocation2 + $0x20] sm:$0xff]
        %v986 = vld [vmem:[#allocation2 + $0x28] sm:$0xff]
        %v987 = vld [vmem:[#allocation2 + $0x30] sm:$0xff]
        %v988 = vld [vmem:[#allocation2 + $0x38] sm:$0xff]
        %v989 = vld [vmem:[#allocation2 + $0x40] sm:$0xff]
        %v990 = vld [vmem:[#allocation2 + $0x48] sm:$0xff]
        %v991 = vld [vmem:[#allocation2 + $0x50] sm:$0xff]
        %v992 = vld [vmem:[#allocation2 + $0x58] sm:$0xff]
        %v993 = vld [vmem:[#allocation2 + $0x60] sm:$0xff]
        %v994 = vld [vmem:[#allocation2 + $0x68] sm:$0xff]
        %v995 = vld [vmem:[#allocation2 + $0x70] sm:$0xff]
        %v996 = vld [vmem:[#allocation2 + $0x78] sm:$0xff]
        %v997 = vld [vmem:[#allocation2 + $0x80] sm:$0xff]
        %v998 = vld [vmem:[#allocation2 + $0x88] sm:$0xff]
        %v999 = vld [vmem:[#allocation2 + $0x90] sm:$0xff]
        %v1000 = vld [vmem:[#allocation2 + $0x98] sm:$0xff]
        %v1001 = vld [vmem:[#allocation2 + $0xa0] sm:$0xff]
        %v1002 = vld [vmem:[#allocation2 + $0xa8] sm:$0xff]
        %v1003 = vld [vmem:[#allocation2 + $0xb0] sm:$0xff]
        %v1004 = vld [vmem:[#allocation2 + $0xb8] sm:$0xff]
        %v1005 = vld [vmem:[#allocation2 + $0xc0] sm:$0xff]
        %v1006 = vld [vmem:[#allocation2 + $0xc8] sm:$0xff]
        %v1007 = vld [vmem:[#allocation2 + $0xd0] sm:$0xff]
        %v1008 = vld [vmem:[#allocation2 + $0xd8] sm:$0xff]
        %v1009 = vld [vmem:[#allocation2 + $0xe0] sm:$0xff]
        %v1010 = vld [vmem:[#allocation2 + $0xe8] sm:$0xff]
        %v1011 = vld [vmem:[#allocation2 + $0xf0] sm:$0xff]
        %v1012 = vld [vmem:[#allocation2 + $0xf8] sm:$0xff]
        %v1013 = vld [vmem:[%s409] sm:$0x3]
        %v1015 = vlaneseq
        %v1016 = vshrl.u32 %v1015, 7
        %v1017 = vsub.s32 0, %v1016
        %v1018 = vrot.slane %v1013, %v1017
        %v1019 = vlaneseq
        %v1020 = vshrl.u32 %v1019, 7
        %v1021 = vsub.s32 1, %v1020
        %v1022 = vrot.slane %v1013, %v1021
        %v1025 = vadd.f32 %v981, %v1018
        %v1026 = vadd.f32 %v982, %v1022
        %v1027 = vadd.f32 %v983, %v1018
        %v1028 = vadd.f32 %v984, %v1022
        %v1029 = vadd.f32 %v985, %v1018
        %v1030 = vadd.f32 %v986, %v1022
        %v1031 = vadd.f32 %v987, %v1018
        %v1032 = vadd.f32 %v988, %v1022
        %v1033 = vadd.f32 %v989, %v1018
        %v1034 = vadd.f32 %v990, %v1022
        %v1035 = vadd.f32 %v991, %v1018
        %v1036 = vadd.f32 %v992, %v1022
        %v1037 = vadd.f32 %v993, %v1018
        %v1038 = vadd.f32 %v994, %v1022
        %v1039 = vadd.f32 %v995, %v1018
        %v1040 = vadd.f32 %v996, %v1022
        %v1041 = vadd.f32 %v997, %v1018
        %v1042 = vadd.f32 %v998, %v1022
        %v1043 = vadd.f32 %v999, %v1018
        %v1044 = vadd.f32 %v1000, %v1022
        %v1045 = vadd.f32 %v1001, %v1018
        %v1046 = vadd.f32 %v1002, %v1022
        %v1047 = vadd.f32 %v1003, %v1018
        %v1048 = vadd.f32 %v1004, %v1022
        %v1049 = vadd.f32 %v1005, %v1018
        %v1050 = vadd.f32 %v1006, %v1022
        %v1051 = vadd.f32 %v1007, %v1018
        %v1052 = vadd.f32 %v1008, %v1022
        %v1053 = vadd.f32 %v1009, %v1018
        %v1054 = vadd.f32 %v1010, %v1022
        %v1055 = vadd.f32 %v1011, %v1018
        %v1056 = vadd.f32 %v1012, %v1022
        %v1057 = vld [vmem:[%s420] sm:$0xff]
        %v1058 = vld [vmem:[%s420 + $0x8] sm:$0xff]
        %v1059 = vld [vmem:[%s420 + $0x10] sm:$0xff]
        %v1060 = vld [vmem:[%s420 + $0x18] sm:$0xff]
        %v1061 = vld [vmem:[%s420 + $0x20] sm:$0xff]
        %v1062 = vld [vmem:[%s420 + $0x28] sm:$0xff]
        %v1063 = vld [vmem:[%s420 + $0x30] sm:$0xff]
        %v1064 = vld [vmem:[%s420 + $0x38] sm:$0xff]
        %v1065 = vld [vmem:[%s420 + $0x40] sm:$0xff]
        %v1066 = vld [vmem:[%s420 + $0x48] sm:$0xff]
        %v1067 = vld [vmem:[%s420 + $0x50] sm:$0xff]
        %v1068 = vld [vmem:[%s420 + $0x58] sm:$0xff]
        %v1069 = vld [vmem:[%s420 + $0x60] sm:$0xff]
        %v1070 = vld [vmem:[%s420 + $0x68] sm:$0xff]
        %v1071 = vld [vmem:[%s420 + $0x70] sm:$0xff]
        %v1072 = vld [vmem:[%s420 + $0x78] sm:$0xff]
        %v1073 = vunpack.c.l.bf16 %v1057
        %v1074 = vunpack.c.h.bf16 %v1057
        %v1075 = vunpack.c.l.bf16 %v1058
        %v1076 = vunpack.c.h.bf16 %v1058
        %v1077 = vunpack.c.l.bf16 %v1059
        %v1078 = vunpack.c.h.bf16 %v1059
        %v1079 = vunpack.c.l.bf16 %v1060
        %v1080 = vunpack.c.h.bf16 %v1060
        %v1081 = vunpack.c.l.bf16 %v1061
        %v1082 = vunpack.c.h.bf16 %v1061
        %v1083 = vunpack.c.l.bf16 %v1062
        %v1084 = vunpack.c.h.bf16 %v1062
        %v1085 = vunpack.c.l.bf16 %v1063
        %v1086 = vunpack.c.h.bf16 %v1063
        %v1087 = vunpack.c.l.bf16 %v1064
        %v1088 = vunpack.c.h.bf16 %v1064
        %v1089 = vunpack.c.l.bf16 %v1065
        %v1090 = vunpack.c.h.bf16 %v1065
        %v1091 = vunpack.c.l.bf16 %v1066
        %v1092 = vunpack.c.h.bf16 %v1066
        %v1093 = vunpack.c.l.bf16 %v1067
        %v1094 = vunpack.c.h.bf16 %v1067
        %v1095 = vunpack.c.l.bf16 %v1068
        %v1096 = vunpack.c.h.bf16 %v1068
        %v1097 = vunpack.c.l.bf16 %v1069
        %v1098 = vunpack.c.h.bf16 %v1069
        %v1099 = vunpack.c.l.bf16 %v1070
        %v1100 = vunpack.c.h.bf16 %v1070
        %v1101 = vunpack.c.l.bf16 %v1071
        %v1102 = vunpack.c.h.bf16 %v1071
        %v1103 = vunpack.c.l.bf16 %v1072
        %v1104 = vunpack.c.h.bf16 %v1072
        %v1105 = vadd.f32 %v1025, %v1073
        %v1106 = vadd.f32 %v1026, %v1074
        %v1107 = vadd.f32 %v1027, %v1075
        %v1108 = vadd.f32 %v1028, %v1076
        %v1109 = vadd.f32 %v1029, %v1077
        %v1110 = vadd.f32 %v1030, %v1078
        %v1111 = vadd.f32 %v1031, %v1079
        %v1112 = vadd.f32 %v1032, %v1080
        %v1113 = vadd.f32 %v1033, %v1081
        %v1114 = vadd.f32 %v1034, %v1082
        %v1115 = vadd.f32 %v1035, %v1083
        %v1116 = vadd.f32 %v1036, %v1084
        %v1117 = vadd.f32 %v1037, %v1085
        %v1118 = vadd.f32 %v1038, %v1086
        %v1119 = vadd.f32 %v1039, %v1087
        %v1120 = vadd.f32 %v1040, %v1088
        %v1121 = vadd.f32 %v1041, %v1089
        %v1122 = vadd.f32 %v1042, %v1090
        %v1123 = vadd.f32 %v1043, %v1091
        %v1124 = vadd.f32 %v1044, %v1092
        %v1125 = vadd.f32 %v1045, %v1093
        %v1126 = vadd.f32 %v1046, %v1094
        %v1127 = vadd.f32 %v1047, %v1095
        %v1128 = vadd.f32 %v1048, %v1096
        %v1129 = vadd.f32 %v1049, %v1097
        %v1130 = vadd.f32 %v1050, %v1098
        %v1131 = vadd.f32 %v1051, %v1099
        %v1132 = vadd.f32 %v1052, %v1100
        %v1133 = vadd.f32 %v1053, %v1101
        %v1134 = vadd.f32 %v1054, %v1102
        %v1135 = vadd.f32 %v1055, %v1103
        %v1136 = vadd.f32 %v1056, %v1104
        %v1137 = vadd.f32 %v1105, %v1106
        %1138 = vadd.xlane.f32.xlu0 %v1137
        %v1139 = vpop.xlane.xlu0 %1138
        %v1140 = vadd.f32 %v1107, %v1108
        %1141 = vadd.xlane.f32.xlu0 %v1140
        %v1142 = vpop.xlane.xlu0 %1141
        %v1143 = vadd.f32 %v1109, %v1110
        %1144 = vadd.xlane.f32.xlu0 %v1143
        %v1145 = vpop.xlane.xlu0 %1144
        %v1146 = vadd.f32 %v1111, %v1112
        %1147 = vadd.xlane.f32.xlu0 %v1146
        %v1148 = vpop.xlane.xlu0 %1147
        %v1149 = vadd.f32 %v1113, %v1114
        %1150 = vadd.xlane.f32.xlu0 %v1149
        %v1151 = vpop.xlane.xlu0 %1150
        %v1152 = vadd.f32 %v1115, %v1116
        %1153 = vadd.xlane.f32.xlu0 %v1152
        %v1154 = vpop.xlane.xlu0 %1153
        %v1155 = vadd.f32 %v1117, %v1118
        %1156 = vadd.xlane.f32.xlu0 %v1155
        %v1157 = vpop.xlane.xlu0 %1156
        %v1158 = vadd.f32 %v1119, %v1120
        %1159 = vadd.xlane.f32.xlu0 %v1158
        %v1160 = vpop.xlane.xlu0 %1159
        %v1161 = vadd.f32 %v1121, %v1122
        %1162 = vadd.xlane.f32.xlu0 %v1161
        %v1163 = vpop.xlane.xlu0 %1162
        %v1164 = vadd.f32 %v1123, %v1124
        %1165 = vadd.xlane.f32.xlu0 %v1164
        %v1166 = vpop.xlane.xlu0 %1165
        %v1167 = vadd.f32 %v1125, %v1126
        %1168 = vadd.xlane.f32.xlu0 %v1167
        %v1169 = vpop.xlane.xlu0 %1168
        %v1170 = vadd.f32 %v1127, %v1128
        %1171 = vadd.xlane.f32.xlu0 %v1170
        %v1172 = vpop.xlane.xlu0 %1171
        %v1173 = vadd.f32 %v1129, %v1130
        %1174 = vadd.xlane.f32.xlu0 %v1173
        %v1175 = vpop.xlane.xlu0 %1174
        %v1176 = vadd.f32 %v1131, %v1132
        %1177 = vadd.xlane.f32.xlu0 %v1176
        %v1178 = vpop.xlane.xlu0 %1177
        %v1179 = vadd.f32 %v1133, %v1134
        %1180 = vadd.xlane.f32.xlu0 %v1179
        %v1181 = vpop.xlane.xlu0 %1180
        %v1182 = vadd.f32 %v1135, %v1136
        %1183 = vadd.xlane.f32.xlu0 %v1182
        %v1184 = vpop.xlane.xlu0 %1183
        %v1185 = vrcp.pop 256.0
        %v1186 = vmul.f32 %v1139, %v1185
        %v1187 = vmul.f32 %v1142, %v1185
        %v1188 = vmul.f32 %v1145, %v1185
        %v1189 = vmul.f32 %v1148, %v1185
        %v1190 = vmul.f32 %v1151, %v1185
        %v1191 = vmul.f32 %v1154, %v1185
        %v1192 = vmul.f32 %v1157, %v1185
        %v1193 = vmul.f32 %v1160, %v1185
        %v1194 = vmul.f32 %v1163, %v1185
        %v1195 = vmul.f32 %v1166, %v1185
        %v1196 = vmul.f32 %v1169, %v1185
        %v1197 = vmul.f32 %v1172, %v1185
        %v1198 = vmul.f32 %v1175, %v1185
        %v1199 = vmul.f32 %v1178, %v1185
        %v1200 = vmul.f32 %v1181, %v1185
        %v1201 = vmul.f32 %v1184, %v1185
        %v1202 = vsub.f32 %v1105, %v1186
        %v1203 = vsub.f32 %v1106, %v1186
        %v1204 = vsub.f32 %v1107, %v1187
        %v1205 = vsub.f32 %v1108, %v1187
        %v1206 = vsub.f32 %v1109, %v1188
        %v1207 = vsub.f32 %v1110, %v1188
        %v1208 = vsub.f32 %v1111, %v1189
        %v1209 = vsub.f32 %v1112, %v1189
        %v1210 = vsub.f32 %v1113, %v1190
        %v1211 = vsub.f32 %v1114, %v1190
        %v1212 = vsub.f32 %v1115, %v1191
        %v1213 = vsub.f32 %v1116, %v1191
        %v1214 = vsub.f32 %v1117, %v1192
        %v1215 = vsub.f32 %v1118, %v1192
        %v1216 = vsub.f32 %v1119, %v1193
        %v1217 = vsub.f32 %v1120, %v1193
        %v1218 = vsub.f32 %v1121, %v1194
        %v1219 = vsub.f32 %v1122, %v1194
        %v1220 = vsub.f32 %v1123, %v1195
        %v1221 = vsub.f32 %v1124, %v1195
        %v1222 = vsub.f32 %v1125, %v1196
        %v1223 = vsub.f32 %v1126, %v1196
        %v1224 = vsub.f32 %v1127, %v1197
        %v1225 = vsub.f32 %v1128, %v1197
        %v1226 = vsub.f32 %v1129, %v1198
        %v1227 = vsub.f32 %v1130, %v1198
        %v1228 = vsub.f32 %v1131, %v1199
        %v1229 = vsub.f32 %v1132, %v1199
        %v1230 = vsub.f32 %v1133, %v1200
        %v1231 = vsub.f32 %v1134, %v1200
        %v1232 = vsub.f32 %v1135, %v1201
        %v1233 = vsub.f32 %v1136, %v1201
        %v1234 = vmul.f32 %v1202, %v1202
        %v1235 = vmul.f32 %v1203, %v1203
        %v1236 = vmul.f32 %v1204, %v1204
        %v1237 = vmul.f32 %v1205, %v1205
        %v1238 = vmul.f32 %v1206, %v1206
        %v1239 = vmul.f32 %v1207, %v1207
        %v1240 = vmul.f32 %v1208, %v1208
        %v1241 = vmul.f32 %v1209, %v1209
        %v1242 = vmul.f32 %v1210, %v1210
        %v1243 = vmul.f32 %v1211, %v1211
        %v1244 = vmul.f32 %v1212, %v1212
        %v1245 = vmul.f32 %v1213, %v1213
        %v1246 = vmul.f32 %v1214, %v1214
        %v1247 = vmul.f32 %v1215, %v1215
        %v1248 = vmul.f32 %v1216, %v1216
        %v1249 = vmul.f32 %v1217, %v1217
        %v1250 = vmul.f32 %v1218, %v1218
        %v1251 = vmul.f32 %v1219, %v1219
        %v1252 = vmul.f32 %v1220, %v1220
        %v1253 = vmul.f32 %v1221, %v1221
        %v1254 = vmul.f32 %v1222, %v1222
        %v1255 = vmul.f32 %v1223, %v1223
        %v1256 = vmul.f32 %v1224, %v1224
        %v1257 = vmul.f32 %v1225, %v1225
        %v1258 = vmul.f32 %v1226, %v1226
        %v1259 = vmul.f32 %v1227, %v1227
        %v1260 = vmul.f32 %v1228, %v1228
        %v1261 = vmul.f32 %v1229, %v1229
        %v1262 = vmul.f32 %v1230, %v1230
        %v1263 = vmul.f32 %v1231, %v1231
        %v1264 = vmul.f32 %v1232, %v1232
        %v1265 = vmul.f32 %v1233, %v1233
        %v1266 = vadd.f32 %v1234, %v1235
        %1267 = vadd.xlane.f32.xlu0 %v1266
        %v1268 = vpop.xlane.xlu0 %1267
        %v1269 = vadd.f32 %v1236, %v1237
        %1270 = vadd.xlane.f32.xlu0 %v1269
        %v1271 = vpop.xlane.xlu0 %1270
        %v1272 = vadd.f32 %v1238, %v1239
        %1273 = vadd.xlane.f32.xlu0 %v1272
        %v1274 = vpop.xlane.xlu0 %1273
        %v1275 = vadd.f32 %v1240, %v1241
        %1276 = vadd.xlane.f32.xlu0 %v1275
        %v1277 = vpop.xlane.xlu0 %1276
        %v1278 = vadd.f32 %v1242, %v1243
        %1279 = vadd.xlane.f32.xlu0 %v1278
        %v1280 = vpop.xlane.xlu0 %1279
        %v1281 = vadd.f32 %v1244, %v1245
        %1282 = vadd.xlane.f32.xlu0 %v1281
        %v1283 = vpop.xlane.xlu0 %1282
        %v1284 = vadd.f32 %v1246, %v1247
        %1285 = vadd.xlane.f32.xlu0 %v1284
        %v1286 = vpop.xlane.xlu0 %1285
        %v1287 = vadd.f32 %v1248, %v1249
        %1288 = vadd.xlane.f32.xlu0 %v1287
        %v1289 = vpop.xlane.xlu0 %1288
        %v1290 = vadd.f32 %v1250, %v1251
        %1291 = vadd.xlane.f32.xlu0 %v1290
        %v1292 = vpop.xlane.xlu0 %1291
        %v1293 = vadd.f32 %v1252, %v1253
        %1294 = vadd.xlane.f32.xlu0 %v1293
        %v1295 = vpop.xlane.xlu0 %1294
        %v1296 = vadd.f32 %v1254, %v1255
        %1297 = vadd.xlane.f32.xlu0 %v1296
        %v1298 = vpop.xlane.xlu0 %1297
        %v1299 = vadd.f32 %v1256, %v1257
        %1300 = vadd.xlane.f32.xlu0 %v1299
        %v1301 = vpop.xlane.xlu0 %1300
        %v1302 = vadd.f32 %v1258, %v1259
        %1303 = vadd.xlane.f32.xlu0 %v1302
        %v1304 = vpop.xlane.xlu0 %1303
        %v1305 = vadd.f32 %v1260, %v1261
        %1306 = vadd.xlane.f32.xlu0 %v1305
        %v1307 = vpop.xlane.xlu0 %1306
        %v1308 = vadd.f32 %v1262, %v1263
        %1309 = vadd.xlane.f32.xlu0 %v1308
        %v1310 = vpop.xlane.xlu0 %1309
        %v1311 = vadd.f32 %v1264, %v1265
        %1312 = vadd.xlane.f32.xlu0 %v1311
        %v1313 = vpop.xlane.xlu0 %1312
        %v1314 = vmul.f32 %v1268, %v1185
        %v1315 = vmul.f32 %v1271, %v1185
        %v1316 = vmul.f32 %v1274, %v1185
        %v1317 = vmul.f32 %v1277, %v1185
        %v1318 = vmul.f32 %v1280, %v1185
        %v1319 = vmul.f32 %v1283, %v1185
        %v1320 = vmul.f32 %v1286, %v1185
        %v1321 = vmul.f32 %v1289, %v1185
        %v1322 = vmul.f32 %v1292, %v1185
        %v1323 = vmul.f32 %v1295, %v1185
        %v1324 = vmul.f32 %v1298, %v1185
        %v1325 = vmul.f32 %v1301, %v1185
        %v1326 = vmul.f32 %v1304, %v1185
        %v1327 = vmul.f32 %v1307, %v1185
        %v1328 = vmul.f32 %v1310, %v1185
        %v1329 = vmul.f32 %v1313, %v1185
        %v1330 = vadd.f32 %v1314, 1e-12
        %v1331 = vadd.f32 %v1315, 1e-12
        %v1332 = vadd.f32 %v1316, 1e-12
        %v1333 = vadd.f32 %v1317, 1e-12
        %v1334 = vadd.f32 %v1318, 1e-12
        %v1335 = vadd.f32 %v1319, 1e-12
        %v1336 = vadd.f32 %v1320, 1e-12
        %v1337 = vadd.f32 %v1321, 1e-12
        %v1338 = vadd.f32 %v1322, 1e-12
        %v1339 = vadd.f32 %v1323, 1e-12
        %v1340 = vadd.f32 %v1324, 1e-12
        %v1341 = vadd.f32 %v1325, 1e-12
        %v1342 = vadd.f32 %v1326, 1e-12
        %v1343 = vadd.f32 %v1327, 1e-12
        %v1344 = vadd.f32 %v1328, 1e-12
        %v1345 = vadd.f32 %v1329, 1e-12
        %v1346 = vrsqrt.pop %v1330
        %v1347 = vrsqrt.pop %v1331
        %v1348 = vrsqrt.pop %v1332
        %v1349 = vrsqrt.pop %v1333
        %v1350 = vrsqrt.pop %v1334
        %v1351 = vrsqrt.pop %v1335
        %v1352 = vrsqrt.pop %v1336
        %v1353 = vrsqrt.pop %v1337
        %v1354 = vrsqrt.pop %v1338
        %v1355 = vrsqrt.pop %v1339
        %v1356 = vrsqrt.pop %v1340
        %v1357 = vrsqrt.pop %v1341
        %v1358 = vrsqrt.pop %v1342
        %v1359 = vrsqrt.pop %v1343
        %v1360 = vrsqrt.pop %v1344
        %v1361 = vrsqrt.pop %v1345
        %v1362 = vmul.f32 %v1202, %v1346
        %v1363 = vmul.f32 %v1203, %v1346
        %v1364 = vmul.f32 %v1204, %v1347
        %v1365 = vmul.f32 %v1205, %v1347
        %v1366 = vmul.f32 %v1206, %v1348
        %v1367 = vmul.f32 %v1207, %v1348
        %v1368 = vmul.f32 %v1208, %v1349
        %v1369 = vmul.f32 %v1209, %v1349
        %v1370 = vmul.f32 %v1210, %v1350
        %v1371 = vmul.f32 %v1211, %v1350
        %v1372 = vmul.f32 %v1212, %v1351
        %v1373 = vmul.f32 %v1213, %v1351
        %v1374 = vmul.f32 %v1214, %v1352
        %v1375 = vmul.f32 %v1215, %v1352
        %v1376 = vmul.f32 %v1216, %v1353
        %v1377 = vmul.f32 %v1217, %v1353
        %v1378 = vmul.f32 %v1218, %v1354
        %v1379 = vmul.f32 %v1219, %v1354
        %v1380 = vmul.f32 %v1220, %v1355
        %v1381 = vmul.f32 %v1221, %v1355
        %v1382 = vmul.f32 %v1222, %v1356
        %v1383 = vmul.f32 %v1223, %v1356
        %v1384 = vmul.f32 %v1224, %v1357
        %v1385 = vmul.f32 %v1225, %v1357
        %v1386 = vmul.f32 %v1226, %v1358
        %v1387 = vmul.f32 %v1227, %v1358
        %v1388 = vmul.f32 %v1228, %v1359
        %v1389 = vmul.f32 %v1229, %v1359
        %v1390 = vmul.f32 %v1230, %v1360
        %v1391 = vmul.f32 %v1231, %v1360
        %v1392 = vmul.f32 %v1232, %v1361
        %v1393 = vmul.f32 %v1233, %v1361
        %v1394 = vld [vmem:[%s426] sm:$0x3]
        %v1396 = vlaneseq
        %v1397 = vshrl.u32 %v1396, 7
        %v1398 = vsub.s32 0, %v1397
        %v1399 = vrot.slane %v1394, %v1398
        %v1400 = vlaneseq
        %v1401 = vshrl.u32 %v1400, 7
        %v1402 = vsub.s32 1, %v1401
        %v1403 = vrot.slane %v1394, %v1402
        %v1406 = vmul.f32 %v1362, %v1399
        %v1407 = vmul.f32 %v1363, %v1403
        %v1408 = vmul.f32 %v1364, %v1399
        %v1409 = vmul.f32 %v1365, %v1403
        %v1410 = vmul.f32 %v1366, %v1399
        %v1411 = vmul.f32 %v1367, %v1403
        %v1412 = vmul.f32 %v1368, %v1399
        %v1413 = vmul.f32 %v1369, %v1403
        %v1414 = vmul.f32 %v1370, %v1399
        %v1415 = vmul.f32 %v1371, %v1403
        %v1416 = vmul.f32 %v1372, %v1399
        %v1417 = vmul.f32 %v1373, %v1403
        %v1418 = vmul.f32 %v1374, %v1399
        %v1419 = vmul.f32 %v1375, %v1403
        %v1420 = vmul.f32 %v1376, %v1399
        %v1421 = vmul.f32 %v1377, %v1403
        %v1422 = vmul.f32 %v1378, %v1399
        %v1423 = vmul.f32 %v1379, %v1403
        %v1424 = vmul.f32 %v1380, %v1399
        %v1425 = vmul.f32 %v1381, %v1403
        %v1426 = vmul.f32 %v1382, %v1399
        %v1427 = vmul.f32 %v1383, %v1403
        %v1428 = vmul.f32 %v1384, %v1399
        %v1429 = vmul.f32 %v1385, %v1403
        %v1430 = vmul.f32 %v1386, %v1399
        %v1431 = vmul.f32 %v1387, %v1403
        %v1432 = vmul.f32 %v1388, %v1399
        %v1433 = vmul.f32 %v1389, %v1403
        %v1434 = vmul.f32 %v1390, %v1399
        %v1435 = vmul.f32 %v1391, %v1403
        %v1436 = vmul.f32 %v1392, %v1399
        %v1437 = vmul.f32 %v1393, %v1403
        %v1438 = vld [vmem:[%s431] sm:$0x3]
        %v1440 = vlaneseq
        %v1441 = vshrl.u32 %v1440, 7
        %v1442 = vsub.s32 0, %v1441
        %v1443 = vrot.slane %v1438, %v1442
        %v1444 = vlaneseq
        %v1445 = vshrl.u32 %v1444, 7
        %v1446 = vsub.s32 1, %v1445
        %v1447 = vrot.slane %v1438, %v1446
        %v1450 = vadd.f32 %v1406, %v1443
        %v1451 = vadd.f32 %v1407, %v1447
        %v1452 = vadd.f32 %v1408, %v1443
        %v1453 = vadd.f32 %v1409, %v1447
        %v1454 = vadd.f32 %v1410, %v1443
        %v1455 = vadd.f32 %v1411, %v1447
        %v1456 = vadd.f32 %v1412, %v1443
        %v1457 = vadd.f32 %v1413, %v1447
        %v1458 = vadd.f32 %v1414, %v1443
        %v1459 = vadd.f32 %v1415, %v1447
        %v1460 = vadd.f32 %v1416, %v1443
        %v1461 = vadd.f32 %v1417, %v1447
        %v1462 = vadd.f32 %v1418, %v1443
        %v1463 = vadd.f32 %v1419, %v1447
        %v1464 = vadd.f32 %v1420, %v1443
        %v1465 = vadd.f32 %v1421, %v1447
        %v1466 = vadd.f32 %v1422, %v1443
        %v1467 = vadd.f32 %v1423, %v1447
        %v1468 = vadd.f32 %v1424, %v1443
        %v1469 = vadd.f32 %v1425, %v1447
        %v1470 = vadd.f32 %v1426, %v1443
        %v1471 = vadd.f32 %v1427, %v1447
        %v1472 = vadd.f32 %v1428, %v1443
        %v1473 = vadd.f32 %v1429, %v1447
        %v1474 = vadd.f32 %v1430, %v1443
        %v1475 = vadd.f32 %v1431, %v1447
        %v1476 = vadd.f32 %v1432, %v1443
        %v1477 = vadd.f32 %v1433, %v1447
        %v1478 = vadd.f32 %v1434, %v1443
        %v1479 = vadd.f32 %v1435, %v1447
        %v1480 = vadd.f32 %v1436, %v1443
        %v1481 = vadd.f32 %v1437, %v1447
        %v1482 = vpack.c.bf16 %v1452, %v1450
        %v1483 = vpack.c.bf16 %v1453, %v1451
        %v1484 = vpack.c.bf16 %v1456, %v1454
        %v1485 = vpack.c.bf16 %v1457, %v1455
        %v1486 = vpack.c.bf16 %v1460, %v1458
        %v1487 = vpack.c.bf16 %v1461, %v1459
        %v1488 = vpack.c.bf16 %v1464, %v1462
        %v1489 = vpack.c.bf16 %v1465, %v1463
        %v1490 = vpack.c.bf16 %v1468, %v1466
        %v1491 = vpack.c.bf16 %v1469, %v1467
        %v1492 = vpack.c.bf16 %v1472, %v1470
        %v1493 = vpack.c.bf16 %v1473, %v1471
        %v1494 = vpack.c.bf16 %v1476, %v1474
        %v1495 = vpack.c.bf16 %v1477, %v1475
        %v1496 = vpack.c.bf16 %v1480, %v1478
        %v1497 = vpack.c.bf16 %v1481, %v1479
        %v1514 = vunpack.c.l.b16 %v1482
        %v1515 = vunpack.c.l.b16 %v1483
        %v1516 = vunpack.c.h.b16 %v1482
        %v1517 = vunpack.c.h.b16 %v1483
        %v1518 = vunpack.c.l.b16 %v1484
        %v1519 = vunpack.c.l.b16 %v1485
        %v1520 = vunpack.c.h.b16 %v1484
        %v1521 = vunpack.c.h.b16 %v1485
        %v1522 = vunpack.c.l.b16 %v1486
        %v1523 = vunpack.c.l.b16 %v1487
        %v1524 = vunpack.c.h.b16 %v1486
        %v1525 = vunpack.c.h.b16 %v1487
        %v1526 = vunpack.c.l.b16 %v1488
        %v1527 = vunpack.c.l.b16 %v1489
        %v1528 = vunpack.c.h.b16 %v1488
        %v1529 = vunpack.c.h.b16 %v1489
        %v1530 = vunpack.c.l.b16 %v1490
        %v1531 = vunpack.c.l.b16 %v1491
        %v1532 = vunpack.c.h.b16 %v1490
        %v1533 = vunpack.c.h.b16 %v1491
        %v1534 = vunpack.c.l.b16 %v1492
        %v1535 = vunpack.c.l.b16 %v1493
        %v1536 = vunpack.c.h.b16 %v1492
        %v1537 = vunpack.c.h.b16 %v1493
        %v1538 = vunpack.c.l.b16 %v1494
        %v1539 = vunpack.c.l.b16 %v1495
        %v1540 = vunpack.c.h.b16 %v1494
        %v1541 = vunpack.c.h.b16 %v1495
        %v1542 = vunpack.c.l.b16 %v1496
        %v1543 = vunpack.c.l.b16 %v1497
        %v1544 = vunpack.c.h.b16 %v1496
        %v1545 = vunpack.c.h.b16 %v1497
        %v1546 = vpack.c.b16 %v1515, %v1514
        %v1547 = vpack.c.b16 %v1517, %v1516
        %v1548 = vpack.c.b16 %v1519, %v1518
        %v1549 = vpack.c.b16 %v1521, %v1520
        %v1550 = vpack.c.b16 %v1523, %v1522
        %v1551 = vpack.c.b16 %v1525, %v1524
        %v1552 = vpack.c.b16 %v1527, %v1526
        %v1553 = vpack.c.b16 %v1529, %v1528
        %v1554 = vpack.c.b16 %v1531, %v1530
        %v1555 = vpack.c.b16 %v1533, %v1532
        %v1556 = vpack.c.b16 %v1535, %v1534
        %v1557 = vpack.c.b16 %v1537, %v1536
        %v1558 = vpack.c.b16 %v1539, %v1538
        %v1559 = vpack.c.b16 %v1541, %v1540
        %v1560 = vpack.c.b16 %v1543, %v1542
        %v1561 = vpack.c.b16 %v1545, %v1544
        %1578 = vst [vmem:[%s442] sm:$0xff] %v1546
        %1579 = vst [vmem:[%s442 + $0x8] sm:$0xff] %v1547
        %1580 = vst [vmem:[%s442 + $0x10] sm:$0xff] %v1548
        %1581 = vst [vmem:[%s442 + $0x18] sm:$0xff] %v1549
        %1582 = vst [vmem:[%s442 + $0x20] sm:$0xff] %v1550
        %1583 = vst [vmem:[%s442 + $0x28] sm:$0xff] %v1551
        %1584 = vst [vmem:[%s442 + $0x30] sm:$0xff] %v1552
        %1585 = vst [vmem:[%s442 + $0x38] sm:$0xff] %v1553
        %1586 = vst [vmem:[%s442 + $0x40] sm:$0xff] %v1554
        %1587 = vst [vmem:[%s442 + $0x48] sm:$0xff] %v1555
        %1588 = vst [vmem:[%s442 + $0x50] sm:$0xff] %v1556
        %1589 = vst [vmem:[%s442 + $0x58] sm:$0xff] %v1557
        %1590 = vst [vmem:[%s442 + $0x60] sm:$0xff] %v1558
        %1591 = vst [vmem:[%s442 + $0x68] sm:$0xff] %v1559
        %1592 = vst [vmem:[%s442 + $0x70] sm:$0xff] %v1560
        %1593 = vst [vmem:[%s442 + $0x78] sm:$0xff] %v1561
      $region52: #{bert_encoder_forward.15} parent=43 // pred_fallthru
        _
      %s1594 = smul.u32 16, %s22
      %s1595 = smul.u32 2, %s23
      %p1596 = scmp.lt.s32.totalorder %s1594, 31
      %s1597 = scalar_select %p1596, %s1594, 31
      %p1598 = scmp.lt.s32.totalorder %s1595, 1
      %s1599 = scalar_select %p1598, %s1595, 1
      %s1600 = smul.addr %s1597, 2
      %s1601 = sadd.s32 %s1599, %s1600
      %s1602 = smul.addr %s1601, 4
      %s1603 = scalar_lea.vmem %s6, %s1602
      // Predicated region
      $region53: #{bert_encoder_forward.15} parent=43 // pred_check
        %p1604 = pneg %p218
      $region54: #{bert_encoder_forward.15} parent=43 // pred_check_branch
        %1606 = sbr.rel (%p1604) target = $region56
      $region55: #{bert_encoder_forward.15} parent=43 // pred_region
        %s1607 = smul.u32 16, %s22
        %s1608 = smul.u32 2, %s23
      $region56: #{bert_encoder_forward.15} parent=43 // pred_fallthru
        _
    $region44: #{bert_encoder_forward.15} parent=5 // pred_fallthru
      _
    %p1609 = scmp.le.s32.totalorder 2, %s12
    // Predicated region
    $region57: #{bert_encoder_forward.15} parent=5 // pred_check
      %p1610 = pneg %p1609
    $region58: #{bert_encoder_forward.15} parent=5 // pred_check_branch
      %1612 = sbr.rel (%p1610) target = $region60
    $region59: #{bert_encoder_forward.15} parent=5 // pred_region
      %s1613 = ssub.s32 %s12, 2
      // Predicated region
      $region61: #{bert_encoder_forward.15} parent=59 // pred_check
        %p1614 = pneg %p224
      $region62: #{bert_encoder_forward.15} parent=59 // pred_check_branch
        %1616 = sbr.rel (%p1614) target = $region64
      $region63: #{bert_encoder_forward.15} parent=59 // pred_region
        %s1617 = smul.u32 16, %s25
        %s1618 = smul.u32 2, %s26
        %p1619 = scmp.lt.s32.totalorder %s1617, 31
        %s1620 = scalar_select %p1619, %s1617, 31
        %p1621 = scmp.lt.s32.totalorder %s1618, 1
        %s1622 = scalar_select %p1621, %s1618, 1
        %s1623 = smul.addr %s1620, 2
        %s1624 = sadd.s32 %s1622, %s1623
        %s1625 = smul.addr %s1624, 4
        %s1626 = scalar_lea.vmem %s6, %s1625
      $region64: #{bert_encoder_forward.15} parent=59 // pred_fallthru
        _
    $region60: #{bert_encoder_forward.15} parent=5 // pred_fallthru
      _
  $region6: #{bert_encoder_forward.15} parent=0 // loop_footer
    %s16 = sadd.s32 1, %s12
  $region7: #{bert_encoder_forward.15} parent=0 // loop_footer_branch
    %11 = sbr.rel target = $region3
  $region8: #{bert_encoder_forward.15} parent=0 // loop_exit
    _

// kernel: bert_encoder_forward.23
$region0: #{bert_encoder_forward.23}
  #allocation0 [shape = 'u32[]', space=smem, size = 0x4, offset = 0x4, fixed_abs, tag = 'smem constant byte address 0x4 - core index']
  #allocation1 [shape = 'u32[144,128]{1,0:T(1,128)}', space=vmem, size = 0x12000, scoped, tag = 'internal scratch']
  %s0 = inlined_call_operand.vmem [shape: bf16[2,256], index: 0, kind: input, shape index: {}]
  %s1 = inlined_call_operand.vmem [shape: bf16[256,256], index: 1, kind: input, shape index: {}]
  %s2 = inlined_call_operand.vmem [shape: f32[1,256], index: 2, kind: input, shape index: {}]
  %s3 = inlined_call_operand.vmem [shape: bf16[256,128], index: 3, kind: input, shape index: {}]
  %s4 = inlined_call_operand.vmem [shape: f32[1,128], index: 4, kind: input, shape index: {}]
  %s5 = inlined_call_operand.hbm [shape: f32[2,128], index: 5, kind: output, shape index: {}]
  %s6 = sld [smem:[#allocation0]]
  $region30: #{bert_encoder_forward.23} parent=0
    _
  %s8 = ssub.s32 1, %s6
  %s9 = scalar_select 0, %s8, %s6
  $region1: #{bert_encoder_forward.23} parent=0
    #allocation2 [shape = 'u8[1024]{0}', space=vmem, size = 0x400, scoped, tag = 'output window, operand 0, single buffered']
    #allocation3 [shape = 's32[1]{0}', space=sflag, size = 0x4, scoped, tag = 'scoped memory for bert_encoder_forward.23']
    %10 = vsyncpa [#allocation3], 0
    // Predicated region
    $region2: #{bert_encoder_forward.23} parent=1 // pred_check
      _
    $region3: #{bert_encoder_forward.23} parent=1 // pred_check_branch
      %12 = sbr.rel (0) target = $region5
    $region4: #{bert_encoder_forward.23} parent=1 // pred_region
      _
    $region5: #{bert_encoder_forward.23} parent=1 // pred_fallthru
      _
    // Predicated region
    $region6: #{bert_encoder_forward.23} parent=1 // pred_check
      _
    $region7: #{bert_encoder_forward.23} parent=1 // pred_check_branch
      %14 = sbr.rel (0) target = $region9
    $region8: #{bert_encoder_forward.23} parent=1 // pred_region
      _
    $region9: #{bert_encoder_forward.23} parent=1 // pred_fallthru
      _
    // Predicated region
    $region10: #{bert_encoder_forward.23} parent=1 // pred_check
      _
    $region11: #{bert_encoder_forward.23} parent=1 // pred_check_branch
      %16 = sbr.rel (0) target = $region13
    $region12: #{bert_encoder_forward.23} parent=1 // pred_region
      _
    $region13: #{bert_encoder_forward.23} parent=1 // pred_fallthru
      _
    // Predicated region
    $region14: #{bert_encoder_forward.23} parent=1 // pred_check
      _
    $region15: #{bert_encoder_forward.23} parent=1 // pred_check_branch
      %18 = sbr.rel (0) target = $region17
    $region16: #{bert_encoder_forward.23} parent=1 // pred_region
      _
    $region17: #{bert_encoder_forward.23} parent=1 // pred_fallthru
      _
    // Predicated region
    $region18: #{bert_encoder_forward.23} parent=1 // pred_check
      _
    $region19: #{bert_encoder_forward.23} parent=1 // pred_check_branch
      %20 = sbr.rel (0) target = $region21
    $region20: #{bert_encoder_forward.23} parent=1 // pred_region
      _
    $region21: #{bert_encoder_forward.23} parent=1 // pred_fallthru
      _
    %v22 = vld [vmem:[%s0] sm:$0x3]
    %v23 = vld [vmem:[%s1] sm:$0xff]
    %v24 = vld [vmem:[%s1 + $0x8] sm:$0xff]
    %v25 = vld [vmem:[%s1 + $0x10] sm:$0xff]
    %v26 = vld [vmem:[%s1 + $0x18] sm:$0xff]
    %v27 = vld [vmem:[%s1 + $0x20] sm:$0xff]
    %v28 = vld [vmem:[%s1 + $0x28] sm:$0xff]
    %v29 = vld [vmem:[%s1 + $0x30] sm:$0xff]
    %v30 = vld [vmem:[%s1 + $0x38] sm:$0xff]
    %v31 = vld [vmem:[%s1 + $0x40] sm:$0xff]
    %v32 = vld [vmem:[%s1 + $0x48] sm:$0xff]
    %v33 = vld [vmem:[%s1 + $0x50] sm:$0xff]
    %v34 = vld [vmem:[%s1 + $0x58] sm:$0xff]
    %v35 = vld [vmem:[%s1 + $0x60] sm:$0xff]
    %v36 = vld [vmem:[%s1 + $0x68] sm:$0xff]
    %v37 = vld [vmem:[%s1 + $0x70] sm:$0xff]
    %v38 = vld [vmem:[%s1 + $0x78] sm:$0xff]
    %v39 = vld [vmem:[%s1 + $0x80] sm:$0xff]
    %v40 = vld [vmem:[%s1 + $0x88] sm:$0xff]
    %v41 = vld [vmem:[%s1 + $0x90] sm:$0xff]
    %v42 = vld [vmem:[%s1 + $0x98] sm:$0xff]
    %v43 = vld [vmem:[%s1 + $0xa0] sm:$0xff]
    %v44 = vld [vmem:[%s1 + $0xa8] sm:$0xff]
    %v45 = vld [vmem:[%s1 + $0xb0] sm:$0xff]
    %v46 = vld [vmem:[%s1 + $0xb8] sm:$0xff]
    %v47 = vld [vmem:[%s1 + $0xc0] sm:$0xff]
    %v48 = vld [vmem:[%s1 + $0xc8] sm:$0xff]
    %v49 = vld [vmem:[%s1 + $0xd0] sm:$0xff]
    %v50 = vld [vmem:[%s1 + $0xd8] sm:$0xff]
    %v51 = vld [vmem:[%s1 + $0xe0] sm:$0xff]
    %v52 = vld [vmem:[%s1 + $0xe8] sm:$0xff]
    %v53 = vld [vmem:[%s1 + $0xf0] sm:$0xff]
    %v54 = vld [vmem:[%s1 + $0xf8] sm:$0xff]
    %v55 = vld [vmem:[%s2] sm:$0x3]
    %v57 = vlaneseq
    %v58 = vshrl.u32 %v57, 7
    %v59 = vsub.s32 0, %v58
    %v60 = vrot.slane %v55, %v59
    %v61 = vlaneseq
    %v62 = vshrl.u32 %v61, 7
    %v63 = vsub.s32 1, %v62
    %v64 = vrot.slane %v55, %v63
    %v69 = vunpack.c.l.s4 1966171168
    %v70 = vunpack.c.0.s8 %v69
    %v71 = vlaneseq
    %v72 = vshrl.u32 %v71, 7
    %v73 = vsub.s32 %v70, %v72
    %v74 = vrot.slane %v22, %v73
    %v75 = vcombine.high %v74, %v74
    %v77 = vunpack.c.l.s4 1966171168
    %v78 = vunpack.c.0.s8 %v77
    %v79 = vlaneseq
    %v80 = vshrl.u32 %v79, 7
    %v81 = vsub.s32 %v78, %v80
    %v82 = vrot.slane %v74, %v81
    %v84 = vunpack.c.l.s4 1966171168
    %v85 = vunpack.c.0.s8 %v84
    %v86 = vlaneseq
    %v87 = vshrl.u32 %v86, 7
    %v88 = vsub.s32 %v85, %v87
    %v89 = vrot.slane %v75, %v88
    %v124 = vunpack.c.l.b16 %v23
    %v125 = vunpack.c.h.b16 %v23
    %v126 = vunpack.c.l.b16 %v24
    %v127 = vunpack.c.h.b16 %v24
    %v128 = vunpack.c.l.b16 %v25
    %v129 = vunpack.c.h.b16 %v25
    %v130 = vunpack.c.l.b16 %v26
    %v131 = vunpack.c.h.b16 %v26
    %v132 = vunpack.c.l.b16 %v27
    %v133 = vunpack.c.h.b16 %v27
    %v134 = vunpack.c.l.b16 %v28
    %v135 = vunpack.c.h.b16 %v28
    %v136 = vunpack.c.l.b16 %v29
    %v137 = vunpack.c.h.b16 %v29
    %v138 = vunpack.c.l.b16 %v30
    %v139 = vunpack.c.h.b16 %v30
    %v140 = vunpack.c.l.b16 %v31
    %v141 = vunpack.c.h.b16 %v31
    %v142 = vunpack.c.l.b16 %v32
    %v143 = vunpack.c.h.b16 %v32
    %v144 = vunpack.c.l.b16 %v33
    %v145 = vunpack.c.h.b16 %v33
    %v146 = vunpack.c.l.b16 %v34
    %v147 = vunpack.c.h.b16 %v34
    %v148 = vunpack.c.l.b16 %v35
    %v149 = vunpack.c.h.b16 %v35
    %v150 = vunpack.c.l.b16 %v36
    %v151 = vunpack.c.h.b16 %v36
    %v152 = vunpack.c.l.b16 %v37
    %v153 = vunpack.c.h.b16 %v37
    %v154 = vunpack.c.l.b16 %v38
    %v155 = vunpack.c.h.b16 %v38
    %v156 = vunpack.c.l.b16 %v39
    %v157 = vunpack.c.h.b16 %v39
    %v158 = vunpack.c.l.b16 %v40
    %v159 = vunpack.c.h.b16 %v40
    %v160 = vunpack.c.l.b16 %v41
    %v161 = vunpack.c.h.b16 %v41
    %v162 = vunpack.c.l.b16 %v42
    %v163 = vunpack.c.h.b16 %v42
    %v164 = vunpack.c.l.b16 %v43
    %v165 = vunpack.c.h.b16 %v43
    %v166 = vunpack.c.l.b16 %v44
    %v167 = vunpack.c.h.b16 %v44
    %v168 = vunpack.c.l.b16 %v45
    %v169 = vunpack.c.h.b16 %v45
    %v170 = vunpack.c.l.b16 %v46
    %v171 = vunpack.c.h.b16 %v46
    %v172 = vunpack.c.l.b16 %v47
    %v173 = vunpack.c.h.b16 %v47
    %v174 = vunpack.c.l.b16 %v48
    %v175 = vunpack.c.h.b16 %v48
    %v176 = vunpack.c.l.b16 %v49
    %v177 = vunpack.c.h.b16 %v49
    %v178 = vunpack.c.l.b16 %v50
    %v179 = vunpack.c.h.b16 %v50
    %v180 = vunpack.c.l.b16 %v51
    %v181 = vunpack.c.h.b16 %v51
    %v182 = vunpack.c.l.b16 %v52
    %v183 = vunpack.c.h.b16 %v52
    %v184 = vunpack.c.l.b16 %v53
    %v185 = vunpack.c.h.b16 %v53
    %v186 = vunpack.c.l.b16 %v54
    %v187 = vunpack.c.h.b16 %v54
    %v188 = vpack.c.b16 %v126, %v124
    %v189 = vpack.c.b16 %v127, %v125
    %v190 = vpack.c.b16 %v130, %v128
    %v191 = vpack.c.b16 %v131, %v129
    %v192 = vpack.c.b16 %v134, %v132
    %v193 = vpack.c.b16 %v135, %v133
    %v194 = vpack.c.b16 %v138, %v136
    %v195 = vpack.c.b16 %v139, %v137
    %v196 = vpack.c.b16 %v142, %v140
    %v197 = vpack.c.b16 %v143, %v141
    %v198 = vpack.c.b16 %v146, %v144
    %v199 = vpack.c.b16 %v147, %v145
    %v200 = vpack.c.b16 %v150, %v148
    %v201 = vpack.c.b16 %v151, %v149
    %v202 = vpack.c.b16 %v154, %v152
    %v203 = vpack.c.b16 %v155, %v153
    %v204 = vpack.c.b16 %v158, %v156
    %v205 = vpack.c.b16 %v159, %v157
    %v206 = vpack.c.b16 %v162, %v160
    %v207 = vpack.c.b16 %v163, %v161
    %v208 = vpack.c.b16 %v166, %v164
    %v209 = vpack.c.b16 %v167, %v165
    %v210 = vpack.c.b16 %v170, %v168
    %v211 = vpack.c.b16 %v171, %v169
    %v212 = vpack.c.b16 %v174, %v172
    %v213 = vpack.c.b16 %v175, %v173
    %v214 = vpack.c.b16 %v178, %v176
    %v215 = vpack.c.b16 %v179, %v177
    %v216 = vpack.c.b16 %v182, %v180
    %v217 = vpack.c.b16 %v183, %v181
    %v218 = vpack.c.b16 %v186, %v184
    %v219 = vpack.c.b16 %v187, %v185
    %252 = vmatprep.subr.bf16.mxu0 %v203
    %253 = vmatpush1.bf16.msra.mxu0 %v202
    %254 = vmatprep.subr.bf16.mxu0 %v201
    %255 = vmatpush1.bf16.msra.mxu0 %v200
    %256 = vmatprep.subr.bf16.mxu0 %v199
    %257 = vmatpush1.bf16.msra.mxu0 %v198
    %258 = vmatprep.subr.bf16.mxu0 %v197
    %259 = vmatpush1.bf16.msra.mxu0 %v196
    %260 = vmatprep.subr.bf16.mxu0 %v195
    %261 = vmatpush1.bf16.msra.mxu0 %v194
    %262 = vmatprep.subr.bf16.mxu0 %v193
    %263 = vmatpush1.bf16.msra.mxu0 %v192
    %264 = vmatprep.subr.bf16.mxu0 %v191
    %265 = vmatpush1.bf16.msra.mxu0 %v190
    %266 = vmatprep.subr.bf16.mxu0 %v189
    %267 = vmatpush1.bf16.msra.mxu0 %v188
    %268 = vmatprep.subr.bf16.mxu0 %v219
    %269 = vmatpush2.bf16.msra.mxu0 %v218
    %270 = vmatprep.subr.bf16.mxu0 %v217
    %271 = vmatpush2.bf16.msra.mxu0 %v216
    %272 = vmatprep.subr.bf16.mxu0 %v215
    %273 = vmatpush2.bf16.msra.mxu0 %v214
    %274 = vmatprep.subr.bf16.mxu0 %v213
    %275 = vmatpush2.bf16.msra.mxu0 %v212
    %276 = vmatprep.subr.bf16.mxu0 %v211
    %277 = vmatpush2.bf16.msra.mxu0 %v210
    %278 = vmatprep.subr.bf16.mxu0 %v209
    %279 = vmatpush2.bf16.msra.mxu0 %v208
    %280 = vmatprep.subr.bf16.mxu0 %v207
    %281 = vmatpush2.bf16.msra.mxu0 %v206
    %282 = vmatprep.subr.bf16.mxu0 %v205
    %283 = vmatpush2.bf16.msra.mxu0 %v204
    %284 = vmatprep.mubr.bf16.mxu0 %v89
    %285 = vmatmul.mubr.bf16.gmra.mxu0 %v82
    %v286 = vpop.f32.mrf.mxu0
    %v287 = vadd.f32 %v60, %v286
    %v288 = vpop.f32.mrf.mxu0
    %v289 = vadd.f32 %v64, %v288
    %v290 = vpop.f32.mrf.mxu0
    %v291 = vpop.f32.mrf.mxu0
    %292 = vdwg.mxu0
    %v293 = vtanh.pop %v287
    %v294 = vtanh.pop %v289
    %v295 = vpack.c.bf16 %v293, %v293
    %v296 = vpack.c.bf16 %v294, %v294
    %v297 = vld [vmem:[%s3] sm:$0xf]
    %v298 = vld [vmem:[%s3 + $0x4] sm:$0xf]
    %v299 = vld [vmem:[%s3 + $0x8] sm:$0xf]
    %v300 = vld [vmem:[%s3 + $0xc] sm:$0xf]
    %v301 = vld [vmem:[%s3 + $0x10] sm:$0xf]
    %v302 = vld [vmem:[%s3 + $0x14] sm:$0xf]
    %v303 = vld [vmem:[%s3 + $0x18] sm:$0xf]
    %v304 = vld [vmem:[%s3 + $0x1c] sm:$0xf]
    %v305 = vld [vmem:[%s3 + $0x20] sm:$0xf]
    %v306 = vld [vmem:[%s3 + $0x24] sm:$0xf]
    %v307 = vld [vmem:[%s3 + $0x28] sm:$0xf]
    %v308 = vld [vmem:[%s3 + $0x2c] sm:$0xf]
    %v309 = vld [vmem:[%s3 + $0x30] sm:$0xf]
    %v310 = vld [vmem:[%s3 + $0x34] sm:$0xf]
    %v311 = vld [vmem:[%s3 + $0x38] sm:$0xf]
    %v312 = vld [vmem:[%s3 + $0x3c] sm:$0xf]
    %v313 = vld [vmem:[%s3 + $0x40] sm:$0xf]
    %v314 = vld [vmem:[%s3 + $0x44] sm:$0xf]
    %v315 = vld [vmem:[%s3 + $0x48] sm:$0xf]
    %v316 = vld [vmem:[%s3 + $0x4c] sm:$0xf]
    %v317 = vld [vmem:[%s3 + $0x50] sm:$0xf]
    %v318 = vld [vmem:[%s3 + $0x54] sm:$0xf]
    %v319 = vld [vmem:[%s3 + $0x58] sm:$0xf]
    %v320 = vld [vmem:[%s3 + $0x5c] sm:$0xf]
    %v321 = vld [vmem:[%s3 + $0x60] sm:$0xf]
    %v322 = vld [vmem:[%s3 + $0x64] sm:$0xf]
    %v323 = vld [vmem:[%s3 + $0x68] sm:$0xf]
    %v324 = vld [vmem:[%s3 + $0x6c] sm:$0xf]
    %v325 = vld [vmem:[%s3 + $0x70] sm:$0xf]
    %v326 = vld [vmem:[%s3 + $0x74] sm:$0xf]
    %v327 = vld [vmem:[%s3 + $0x78] sm:$0xf]
    %v328 = vld [vmem:[%s3 + $0x7c] sm:$0xf]
    %v329 = vld [vmem:[%s4] sm:$0x1]
    %v331 = vlaneseq
    %v332 = vshrl.u32 %v331, 7
    %v333 = vsub.s32 0, %v332
    %v334 = vrot.slane %v329, %v333
    %v368 = vunpack.c.l.b16 %v297
    %v369 = vunpack.c.l.b16 %v298
    %v370 = vunpack.c.l.b16 %v299
    %v371 = vunpack.c.l.b16 %v300
    %v372 = vunpack.c.l.b16 %v301
    %v373 = vunpack.c.l.b16 %v302
    %v374 = vunpack.c.l.b16 %v303
    %v375 = vunpack.c.l.b16 %v304
    %v376 = vunpack.c.l.b16 %v305
    %v377 = vunpack.c.l.b16 %v306
    %v378 = vunpack.c.l.b16 %v307
    %v379 = vunpack.c.l.b16 %v308
    %v380 = vunpack.c.l.b16 %v309
    %v381 = vunpack.c.l.b16 %v310
    %v382 = vunpack.c.l.b16 %v311
    %v383 = vunpack.c.l.b16 %v312
    %v384 = vunpack.c.l.b16 %v313
    %v385 = vunpack.c.l.b16 %v314
    %v386 = vunpack.c.l.b16 %v315
    %v387 = vunpack.c.l.b16 %v316
    %v388 = vunpack.c.l.b16 %v317
    %v389 = vunpack.c.l.b16 %v318
    %v390 = vunpack.c.l.b16 %v319
    %v391 = vunpack.c.l.b16 %v320
    %v392 = vunpack.c.l.b16 %v321
    %v393 = vunpack.c.l.b16 %v322
    %v394 = vunpack.c.l.b16 %v323
    %v395 = vunpack.c.l.b16 %v324
    %v396 = vunpack.c.l.b16 %v325
    %v397 = vunpack.c.l.b16 %v326
    %v398 = vunpack.c.l.b16 %v327
    %v399 = vunpack.c.l.b16 %v328
    %v400 = vpack.c.b16 %v369, %v368
    %v401 = vpack.c.b16 %v371, %v370
    %v402 = vpack.c.b16 %v373, %v372
    %v403 = vpack.c.b16 %v375, %v374
    %v404 = vpack.c.b16 %v377, %v376
    %v405 = vpack.c.b16 %v379, %v378
    %v406 = vpack.c.b16 %v381, %v380
    %v407 = vpack.c.b16 %v383, %v382
    %v408 = vpack.c.b16 %v385, %v384
    %v409 = vpack.c.b16 %v387, %v386
    %v410 = vpack.c.b16 %v389, %v388
    %v411 = vpack.c.b16 %v391, %v390
    %v412 = vpack.c.b16 %v393, %v392
    %v413 = vpack.c.b16 %v395, %v394
    %v414 = vpack.c.b16 %v397, %v396
    %v415 = vpack.c.b16 %v399, %v398
    %432 = vmatprep.subr.bf16.mxu0 0
    %433 = vmatpush1.bf16.msra.mxu0 %v407
    %434 = vmatprep.subr.bf16.mxu0 0
    %435 = vmatpush1.bf16.msra.mxu0 %v406
    %436 = vmatprep.subr.bf16.mxu0 0
    %437 = vmatpush1.bf16.msra.mxu0 %v405
    %438 = vmatprep.subr.bf16.mxu0 0
    %439 = vmatpush1.bf16.msra.mxu0 %v404
    %440 = vmatprep.subr.bf16.mxu0 0
    %441 = vmatpush1.bf16.msra.mxu0 %v403
    %442 = vmatprep.subr.bf16.mxu0 0
    %443 = vmatpush1.bf16.msra.mxu0 %v402
    %444 = vmatprep.subr.bf16.mxu0 0
    %445 = vmatpush1.bf16.msra.mxu0 %v401
    %446 = vmatprep.subr.bf16.mxu0 0
    %447 = vmatpush1.bf16.msra.mxu0 %v400
    %448 = vmatprep.subr.bf16.mxu0 0
    %449 = vmatpush2.bf16.msra.mxu0 %v415
    %450 = vmatprep.subr.bf16.mxu0 0
    %451 = vmatpush2.bf16.msra.mxu0 %v414
    %452 = vmatprep.subr.bf16.mxu0 0
    %453 = vmatpush2.bf16.msra.mxu0 %v413
    %454 = vmatprep.subr.bf16.mxu0 0
    %455 = vmatpush2.bf16.msra.mxu0 %v412
    %456 = vmatprep.subr.bf16.mxu0 0
    %457 = vmatpush2.bf16.msra.mxu0 %v411
    %458 = vmatprep.subr.bf16.mxu0 0
    %459 = vmatpush2.bf16.msra.mxu0 %v410
    %460 = vmatprep.subr.bf16.mxu0 0
    %461 = vmatpush2.bf16.msra.mxu0 %v409
    %462 = vmatprep.subr.bf16.mxu0 0
    %463 = vmatpush2.bf16.msra.mxu0 %v408
    %464 = vmatprep.mubr.bf16.mxu0 %v296
    %465 = vmatmul.mubr.bf16.gmra.mxu0 %v295
    %v466 = vpop.f32.mrf.mxu0
    %v467 = vadd.f32 %v334, %v466
    %v468 = vpop.f32.mrf.mxu0
    %v469 = vpop.f32.mrf.mxu0
    %v470 = vpop.f32.mrf.mxu0
    %471 = vdwg.mxu0
    %472 = vst [vmem:[#allocation2] sm:$0x3] %v467
    // Predicated region
    $region22: #{bert_encoder_forward.23} parent=1 // pred_check
      _
    $region23: #{bert_encoder_forward.23} parent=1 // pred_check_branch
      %474 = sbr.rel (0) target = $region25
    $region24: #{bert_encoder_forward.23} parent=1 // pred_region
      %s476 = ssub.s32 32, 32
      %477 = vsyncadd [#allocation3], %s476
      %s479 = sshll.u32 [#allocation2], 4
      %s480 = int_to_ptr.vmem [resolvable:$true] %s479
      %482 = dma.vmem_to_hbm [thread:$0]  %s480, 32, %s5, [#allocation3]
    $region25: #{bert_encoder_forward.23} parent=1 // pred_fallthru
      _
    // Predicated region
    $region26: #{bert_encoder_forward.23} parent=1 // pred_check
      _
    $region27: #{bert_encoder_forward.23} parent=1 // pred_check_branch
      %484 = sbr.rel (0) target = $region29
    $region28: #{bert_encoder_forward.23} parent=1 // pred_region
      %485 = dma.done [#allocation3], 32
    $region29: #{bert_encoder_forward.23} parent=1 // pred_fallthru
      _
    %486 = vsyncpa [#allocation3], 1

// kernel: bert_encoder_forward.17
$region0: #{bert_encoder_forward.17}
  #allocation0 [shape = 'u32[]', space=smem, size = 0x4, offset = 0x4, fixed_abs, tag = 'smem constant byte address 0x4 - core index']
  #allocation1 [shape = 'u32[144,128]{1,0:T(1,128)}', space=vmem, size = 0x12000, scoped, tag = 'internal scratch']
  #allocation2 [shape = 'f32[128,256]{1,0:T(8,128)}', space=vmem, size = 0x20000, scoped, tag = 'scratch operand']
  %s0 = inlined_call_operand.vmem [shape: bf16[256,512], index: 0, kind: input, shape index: {}]
  %s1 = inlined_call_operand.vmem [shape: bf16[512,256], index: 1, kind: input, shape index: {}]
  %s2 = inlined_call_operand.vmem [shape: f32[1,256], index: 2, kind: input, shape index: {}]
  %s3 = inlined_call_operand.vmem [shape: bf16[256,256], index: 3, kind: input, shape index: {}]
  %s4 = inlined_call_operand.vmem [shape: f32[1,256], index: 4, kind: input, shape index: {}]
  %s5 = inlined_call_operand.vmem [shape: f32[1,256], index: 5, kind: input, shape index: {}]
  %s6 = inlined_call_operand.vmem [shape: bf16[256,256], index: 6, kind: output, shape index: {}]
  %s7 = sld [smem:[#allocation0]]
  $region65: #{bert_encoder_forward.17} parent=0
    _
  %s9 = ssub.s32 1, %s7
  %s10 = scalar_select 0, %s9, %s7
  loop: start=0, step=1, limit=4
  $region2: #{bert_encoder_forward.17} parent=0 // loop_pre_header
    _
  $region3: #{bert_encoder_forward.17} parent=0 // loop_header
    %s12 = sphi 0, %s16
    %p13 = scmp.ge.s32.totalorder %s12, 4
    %s19 = sphi 0, %s38
    %s20 = sphi 0, %s34
    %s21 = sphi 0, %s30
    %s22 = sphi 0, %s19
    %s23 = sphi 0, %s20
    %s24 = sphi 0, %s21
    %s25 = sphi 0, %s22
    %s26 = sphi 0, %s23
    %s27 = sphi 0, %s24
    %s43 = sphi 0, %s45
    %s46 = sphi 0, %s43
    %s47 = sphi 0, %s46
    %s63 = sphi 0, %s47
    %s71 = sphi 0, %s73
    %s74 = sphi 0, %s71
    %s75 = sphi 0, %s74
    %s91 = sphi 0, %s75
    %s97 = sphi 0, %s99
    %s100 = sphi 0, %s97
    %s101 = sphi 0, %s100
    %s117 = sphi 0, %s101
    %s125 = sphi 0, %s127
    %s128 = sphi 0, %s125
    %s129 = sphi 0, %s128
    %s145 = sphi 0, %s129
    %s151 = sphi 0, %s153
    %s154 = sphi 0, %s151
    %s155 = sphi 0, %s154
    %s171 = sphi 0, %s155
    %s177 = sphi 0, %s179
    %s180 = sphi 0, %s177
    %s181 = sphi 0, %s180
    %s197 = sphi 0, %s181
    %s205 = sphi 0, %s207
    %s208 = sphi 0, %s205
    %s209 = sphi 0, %s208
    %s225 = sphi 0, %s209
  $region4: #{bert_encoder_forward.17} parent=0 // loop_header_branch
    %15 = sbr.rel (%p13) target = $region8
  $region5: #{bert_encoder_forward.17} parent=0 // loop_body
    %s17 = ssub.s32 %s12, 1
    %s18 = ssub.s32 %s12, 2
    %s28 = sadd.s32 1, %s21
    %p29 = scmp.ge.s32.totalorder %s28, 1
    %s30 = scalar_select %p29, 0, %s28
    %s31 = sadd.s32 1, %s20
    %s32 = scalar_select %p29, %s31, %s20
    %p33 = scmp.ge.s32.totalorder %s32, 1
    %s34 = scalar_select %p33, 0, %s32
    %s35 = sadd.s32 1, %s19
    %s36 = scalar_select %p33, %s35, %s19
    %p37 = scmp.ge.s32.totalorder %s36, 2
    %s38 = scalar_select %p37, 0, %s36
    %s39 = ssub.s32 %s19, %s38
    %s40 = ssub.s32 %s21, %s30
    %s41 = sor.u32 %s39, %s40
    %p42 = scmp.eq.s32.totalorder %s41, 0
    %s44 = sadd.s32 %s43, 1
    %s45 = scalar_select %p42, %s43, %s44
    %p48 = pneg %p42
    %p49 = scmp.eq.s32.totalorder %s12, 1
    %p50 = por %p48, %p49
    %p51 = scmp.ne.s32.totalorder %s43, %s46
    %p52 = scmp.eq.s32.totalorder %s12, 0
    %p53 = por %p51, %p52
    %p54 = scmp.ne.s32.totalorder %s43, %s46
    %p55 = scmp.eq.s32.totalorder %s17, 1
    %p56 = por %p54, %p55
    %p57 = scmp.ne.s32.totalorder %s46, %s47
    %p58 = scmp.eq.s32.totalorder %s17, 0
    %p59 = por %p57, %p58
    %p60 = scmp.ne.s32.totalorder %s46, %s47
    %p61 = scmp.eq.s32.totalorder %s18, 1
    %p62 = por %p60, %p61
    %p64 = scmp.ne.s32.totalorder %s47, %s63
    %p65 = scmp.eq.s32.totalorder %s18, 0
    %p66 = por %p64, %p65
    %s67 = ssub.s32 %s21, %s30
    %s68 = ssub.s32 %s20, %s34
    %s69 = sor.u32 %s67, %s68
    %p70 = scmp.eq.s32.totalorder %s69, 0
    %s72 = sadd.s32 %s71, 1
    %s73 = scalar_select %p70, %s71, %s72
    %p76 = pneg %p70
    %p77 = scmp.eq.s32.totalorder %s12, 1
    %p78 = por %p76, %p77
    %p79 = scmp.ne.s32.totalorder %s71, %s74
    %p80 = scmp.eq.s32.totalorder %s12, 0
    %p81 = por %p79, %p80
    %p82 = scmp.ne.s32.totalorder %s71, %s74
    %p83 = scmp.eq.s32.totalorder %s17, 1
    %p84 = por %p82, %p83
    %p85 = scmp.ne.s32.totalorder %s74, %s75
    %p86 = scmp.eq.s32.totalorder %s17, 0
    %p87 = por %p85, %p86
    %p88 = scmp.ne.s32.totalorder %s74, %s75
    %p89 = scmp.eq.s32.totalorder %s18, 1
    %p90 = por %p88, %p89
    %p92 = scmp.ne.s32.totalorder %s75, %s91
    %p93 = scmp.eq.s32.totalorder %s18, 0
    %p94 = por %p92, %p93
    %s95 = ssub.s32 %s20, %s34
    %p96 = scmp.eq.s32.totalorder %s95, 0
    %s98 = sadd.s32 %s97, 1
    %s99 = scalar_select %p96, %s97, %s98
    %p102 = pneg %p96
    %p103 = scmp.eq.s32.totalorder %s12, 1
    %p104 = por %p102, %p103
    %p105 = scmp.ne.s32.totalorder %s97, %s100
    %p106 = scmp.eq.s32.totalorder %s12, 0
    %p107 = por %p105, %p106
    %p108 = scmp.ne.s32.totalorder %s97, %s100
    %p109 = scmp.eq.s32.totalorder %s17, 1
    %p110 = por %p108, %p109
    %p111 = scmp.ne.s32.totalorder %s100, %s101
    %p112 = scmp.eq.s32.totalorder %s17, 0
    %p113 = por %p111, %p112
    %p114 = scmp.ne.s32.totalorder %s100, %s101
    %p115 = scmp.eq.s32.totalorder %s18, 1
    %p116 = por %p114, %p115
    %p118 = scmp.ne.s32.totalorder %s101, %s117
    %p119 = scmp.eq.s32.totalorder %s18, 0
    %p120 = por %p118, %p119
    %s121 = ssub.s32 %s19, %s38
    %s122 = ssub.s32 %s20, %s34
    %s123 = sor.u32 %s121, %s122
    %p124 = scmp.eq.s32.totalorder %s123, 0
    %s126 = sadd.s32 %s125, 1
    %s127 = scalar_select %p124, %s125, %s126
    %p130 = pneg %p124
    %p131 = scmp.eq.s32.totalorder %s12, 1
    %p132 = por %p130, %p131
    %p133 = scmp.ne.s32.totalorder %s125, %s128
    %p134 = scmp.eq.s32.totalorder %s12, 0
    %p135 = por %p133, %p134
    %p136 = scmp.ne.s32.totalorder %s125, %s128
    %p137 = scmp.eq.s32.totalorder %s17, 1
    %p138 = por %p136, %p137
    %p139 = scmp.ne.s32.totalorder %s128, %s129
    %p140 = scmp.eq.s32.totalorder %s17, 0
    %p141 = por %p139, %p140
    %p142 = scmp.ne.s32.totalorder %s128, %s129
    %p143 = scmp.eq.s32.totalorder %s18, 1
    %p144 = por %p142, %p143
    %p146 = scmp.ne.s32.totalorder %s129, %s145
    %p147 = scmp.eq.s32.totalorder %s18, 0
    %p148 = por %p146, %p147
    %s149 = ssub.s32 %s20, %s34
    %p150 = scmp.eq.s32.totalorder %s149, 0
    %s152 = sadd.s32 %s151, 1
    %s153 = scalar_select %p150, %s151, %s152
    %p156 = pneg %p150
    %p157 = scmp.eq.s32.totalorder %s12, 1
    %p158 = por %p156, %p157
    %p159 = scmp.ne.s32.totalorder %s151, %s154
    %p160 = scmp.eq.s32.totalorder %s12, 0
    %p161 = por %p159, %p160
    %p162 = scmp.ne.s32.totalorder %s151, %s154
    %p163 = scmp.eq.s32.totalorder %s17, 1
    %p164 = por %p162, %p163
    %p165 = scmp.ne.s32.totalorder %s154, %s155
    %p166 = scmp.eq.s32.totalorder %s17, 0
    %p167 = por %p165, %p166
    %p168 = scmp.ne.s32.totalorder %s154, %s155
    %p169 = scmp.eq.s32.totalorder %s18, 1
    %p170 = por %p168, %p169
    %p172 = scmp.ne.s32.totalorder %s155, %s171
    %p173 = scmp.eq.s32.totalorder %s18, 0
    %p174 = por %p172, %p173
    %s175 = ssub.s32 %s20, %s34
    %p176 = scmp.eq.s32.totalorder %s175, 0
    %s178 = sadd.s32 %s177, 1
    %s179 = scalar_select %p176, %s177, %s178
    %p182 = pneg %p176
    %p183 = scmp.eq.s32.totalorder %s12, 1
    %p184 = por %p182, %p183
    %p185 = scmp.ne.s32.totalorder %s177, %s180
    %p186 = scmp.eq.s32.totalorder %s12, 0
    %p187 = por %p185, %p186
    %p188 = scmp.ne.s32.totalorder %s177, %s180
    %p189 = scmp.eq.s32.totalorder %s17, 1
    %p190 = por %p188, %p189
    %p191 = scmp.ne.s32.totalorder %s180, %s181
    %p192 = scmp.eq.s32.totalorder %s17, 0
    %p193 = por %p191, %p192
    %p194 = scmp.ne.s32.totalorder %s180, %s181
    %p195 = scmp.eq.s32.totalorder %s18, 1
    %p196 = por %p194, %p195
    %p198 = scmp.ne.s32.totalorder %s181, %s197
    %p199 = scmp.eq.s32.totalorder %s18, 0
    %p200 = por %p198, %p199
    %s201 = ssub.s32 %s19, %s38
    %s202 = ssub.s32 %s20, %s34
    %s203 = sor.u32 %s201, %s202
    %p204 = scmp.eq.s32.totalorder %s203, 0
    %s206 = sadd.s32 %s205, 1
    %s207 = scalar_select %p204, %s205, %s206
    %p210 = pneg %p204
    %p211 = scmp.eq.s32.totalorder %s12, 1
    %p212 = por %p210, %p211
    %p213 = scmp.ne.s32.totalorder %s205, %s208
    %p214 = scmp.eq.s32.totalorder %s12, 0
    %p215 = por %p213, %p214
    %p216 = scmp.ne.s32.totalorder %s205, %s208
    %p217 = scmp.eq.s32.totalorder %s17, 1
    %p218 = por %p216, %p217
    %p219 = scmp.ne.s32.totalorder %s208, %s209
    %p220 = scmp.eq.s32.totalorder %s17, 0
    %p221 = por %p219, %p220
    %p222 = scmp.ne.s32.totalorder %s208, %s209
    %p223 = scmp.eq.s32.totalorder %s18, 1
    %p224 = por %p222, %p223
    %p226 = scmp.ne.s32.totalorder %s209, %s225
    %p227 = scmp.eq.s32.totalorder %s18, 0
    %p228 = por %p226, %p227
    %p229 = scmp.le.s32.totalorder 1, %s12
    %p230 = scmp.lt.s32.totalorder %s12, 3
    %p231 = pnand %p229, %p230
    %p232 = pneg %p231
    // Predicated region
    $region9: #{bert_encoder_forward.17} parent=5 // pred_check
      _
    $region10: #{bert_encoder_forward.17} parent=5 // pred_check_branch
      %234 = sbr.rel (%p231) target = $region12
    $region11: #{bert_encoder_forward.17} parent=5 // pred_region
      %s235 = ssub.s32 %s12, 1
      // Predicated region
      $region13: #{bert_encoder_forward.17} parent=11 // pred_check
        %p236 = pneg %p87
      $region14: #{bert_encoder_forward.17} parent=11 // pred_check_branch
        %238 = sbr.rel (%p236) target = $region16
      $region15: #{bert_encoder_forward.17} parent=11 // pred_region
        %s239 = smul.u32 64, %s24
        %s240 = smul.u32 2, %s23
        %p241 = scmp.lt.s32.totalorder %s239, 63
        %s242 = scalar_select %p241, %s239, 63
        %p243 = scmp.lt.s32.totalorder %s240, 1
        %s244 = scalar_select %p243, %s240, 1
        %s245 = smul.addr %s242, 2
        %s246 = sadd.s32 %s244, %s245
        %s247 = smul.addr %s246, 4
        %s248 = scalar_lea.vmem %s1, %s247
        %s249 = smul.u32 64, %s24
        %s250 = smul.u32 2, %s23
      $region16: #{bert_encoder_forward.17} parent=11 // pred_fallthru
        _
      // Predicated region
      $region17: #{bert_encoder_forward.17} parent=11 // pred_check
        %p251 = pneg %p113
      $region18: #{bert_encoder_forward.17} parent=11 // pred_check_branch
        %253 = sbr.rel (%p251) target = $region20
      $region19: #{bert_encoder_forward.17} parent=11 // pred_region
        %s254 = smul.u32 2, %s23
        %p255 = scmp.lt.s32.totalorder %s254, 1
        %s256 = scalar_select %p255, %s254, 1
        %s257 = scalar_lea.vmem %s2, %s256
        %s258 = smul.u32 2, %s23
      $region20: #{bert_encoder_forward.17} parent=11 // pred_fallthru
        _
      // Predicated region
      $region21: #{bert_encoder_forward.17} parent=11 // pred_check
        %p259 = pneg %p167
      $region22: #{bert_encoder_forward.17} parent=11 // pred_check_branch
        %261 = sbr.rel (%p259) target = $region24
      $region23: #{bert_encoder_forward.17} parent=11 // pred_region
        %s262 = smul.u32 2, %s23
        %p263 = scmp.lt.s32.totalorder %s262, 1
        %s264 = scalar_select %p263, %s262, 1
        %s265 = scalar_lea.vmem %s4, %s264
        %s266 = smul.u32 2, %s23
      $region24: #{bert_encoder_forward.17} parent=11 // pred_fallthru
        _
      // Predicated region
      $region25: #{bert_encoder_forward.17} parent=11 // pred_check
        %p267 = pneg %p193
      $region26: #{bert_encoder_forward.17} parent=11 // pred_check_branch
        %269 = sbr.rel (%p267) target = $region28
      $region27: #{bert_encoder_forward.17} parent=11 // pred_region
        %s270 = smul.u32 2, %s23
        %p271 = scmp.lt.s32.totalorder %s270, 1
        %s272 = scalar_select %p271, %s270, 1
        %s273 = scalar_lea.vmem %s5, %s272
        %s274 = smul.u32 2, %s23
      $region28: #{bert_encoder_forward.17} parent=11 // pred_fallthru
        _
    $region12: #{bert_encoder_forward.17} parent=5 // pred_fallthru
      _
    %p275 = scmp.lt.s32.totalorder %s12, 2
    // Predicated region
    $region29: #{bert_encoder_forward.17} parent=5 // pred_check
      %p276 = pneg %p275
    $region30: #{bert_encoder_forward.17} parent=5 // pred_check_branch
      %278 = sbr.rel (%p276) target = $region32
    $region31: #{bert_encoder_forward.17} parent=5 // pred_region
      // Predicated region
      $region33: #{bert_encoder_forward.17} parent=31 // pred_check
        %p279 = pneg %p53
      $region34: #{bert_encoder_forward.17} parent=31 // pred_check_branch
        %281 = sbr.rel (%p279) target = $region36
      $region35: #{bert_encoder_forward.17} parent=31 // pred_region
        %s282 = smul.u32 16, %s19
        %s283 = smul.u32 4, %s21
        %p284 = scmp.lt.s32.totalorder %s282, 31
        %s285 = scalar_select %p284, %s282, 31
        %p286 = scmp.lt.s32.totalorder %s283, 3
        %s287 = scalar_select %p286, %s283, 3
        %s288 = smul.addr %s285, 4
        %s289 = sadd.s32 %s287, %s288
        %s290 = smul.addr %s289, 4
        %s291 = scalar_lea.vmem %s0, %s290
        %s292 = smul.u32 16, %s19
        %s293 = smul.u32 4, %s21
      $region36: #{bert_encoder_forward.17} parent=31 // pred_fallthru
        _
      // Predicated region
      $region37: #{bert_encoder_forward.17} parent=31 // pred_check
        %p294 = pneg %p135
      $region38: #{bert_encoder_forward.17} parent=31 // pred_check_branch
        %296 = sbr.rel (%p294) target = $region40
      $region39: #{bert_encoder_forward.17} parent=31 // pred_region
        %s297 = smul.u32 16, %s19
        %s298 = smul.u32 2, %s20
        %p299 = scmp.lt.s32.totalorder %s297, 31
        %s300 = scalar_select %p299, %s297, 31
        %p301 = scmp.lt.s32.totalorder %s298, 1
        %s302 = scalar_select %p301, %s298, 1
        %s303 = smul.addr %s300, 2
        %s304 = sadd.s32 %s302, %s303
        %s305 = smul.addr %s304, 4
        %s306 = scalar_lea.vmem %s3, %s305
        %s307 = smul.u32 16, %s19
        %s308 = smul.u32 2, %s20
      $region40: #{bert_encoder_forward.17} parent=31 // pred_fallthru
        _
    $region32: #{bert_encoder_forward.17} parent=5 // pred_fallthru
      _
    %p309 = scmp.le.s32.totalorder 1, %s12
    %p310 = scmp.lt.s32.totalorder %s12, 3
    %p311 = pnand %p309, %p310
    %p312 = pneg %p311
    // Predicated region
    $region41: #{bert_encoder_forward.17} parent=5 // pred_check
      _
    $region42: #{bert_encoder_forward.17} parent=5 // pred_check_branch
      %314 = sbr.rel (%p311) target = $region44
    $region43: #{bert_encoder_forward.17} parent=5 // pred_region
      %s315 = ssub.s32 %s12, 1
      %s316 = smul.u32 16, %s22
      %s317 = smul.u32 4, %s24
      %p318 = scmp.lt.s32.totalorder %s316, 31
      %s319 = scalar_select %p318, %s316, 31
      %p320 = scmp.lt.s32.totalorder %s317, 3
      %s321 = scalar_select %p320, %s317, 3
      %s322 = smul.addr %s319, 4
      %s323 = sadd.s32 %s321, %s322
      %s324 = smul.addr %s323, 4
      %s325 = scalar_lea.vmem %s0, %s324
      %p326 = pneg %p59
      %p327 = pneg %p56
      %s328 = smul.u32 64, %s24
      %s329 = smul.u32 2, %s23
      %p330 = scmp.lt.s32.totalorder %s328, 63
      %s331 = scalar_select %p330, %s328, 63
      %p332 = scmp.lt.s32.totalorder %s329, 1
      %s333 = scalar_select %p332, %s329, 1
      %s334 = smul.addr %s331, 2
      %s335 = sadd.s32 %s333, %s334
      %s336 = smul.addr %s335, 4
      %s337 = scalar_lea.vmem %s1, %s336
      %p338 = pneg %p87
      %p339 = pneg %p84
      %s340 = smul.u32 2, %s23
      %p341 = scmp.lt.s32.totalorder %s340, 1
      %s342 = scalar_select %p341, %s340, 1
      %s343 = scalar_lea.vmem %s2, %s342
      %p344 = pneg %p113
      %p345 = pneg %p110
      %s346 = smul.u32 16, %s22
      %s347 = smul.u32 2, %s23
      %p348 = scmp.lt.s32.totalorder %s346, 31
      %s349 = scalar_select %p348, %s346, 31
      %p350 = scmp.lt.s32.totalorder %s347, 1
      %s351 = scalar_select %p350, %s347, 1
      %s352 = smul.addr %s349, 2
      %s353 = sadd.s32 %s351, %s352
      %s354 = smul.addr %s353, 4
      %s355 = scalar_lea.vmem %s3, %s354
      %p356 = pneg %p141
      %p357 = pneg %p138
      %s358 = smul.u32 2, %s23
      %p359 = scmp.lt.s32.totalorder %s358, 1
      %s360 = scalar_select %p359, %s358, 1
      %s361 = scalar_lea.vmem %s4, %s360
      %p362 = pneg %p167
      %p363 = pneg %p164
      %s364 = smul.u32 2, %s23
      %p365 = scmp.lt.s32.totalorder %s364, 1
      %s366 = scalar_select %p365, %s364, 1
      %s367 = scalar_lea.vmem %s5, %s366
      %p368 = pneg %p193
      %p369 = pneg %p190
      %p370 = pneg %p221
      %p371 = pneg %p218
      %s372 = smul.u32 16, %s22
      %s373 = smul.u32 2, %s23
      %p374 = scmp.lt.s32.totalorder %s372, 31
      %s375 = scalar_select %p374, %s372, 31
      %p376 = scmp.lt.s32.totalorder %s373, 1
      %s377 = scalar_select %p376, %s373, 1
      %s378 = smul.addr %s375, 2
      %s379 = sadd.s32 %s377, %s378
      %s380 = smul.addr %s379, 4
      %s381 = scalar_lea.vmem %s6, %s380
      %s382 = smul.u32 16, %s22
      %s383 = smul.u32 4, %s24
      %p384 = scmp.lt.s32.totalorder %s382, 31
      %s385 = scalar_select %p384, %s382, 31
      %p386 = scmp.lt.s32.totalorder %s383, 3
      %s387 = scalar_select %p386, %s383, 3
      %s388 = smul.addr %s385, 4
      %s389 = sadd.s32 %s387, %s388
      %s390 = smul.addr %s389, 4
      %s391 = scalar_lea.vmem %s0, %s390
      %s392 = smul.u32 16, %s22
      %s393 = smul.u32 4, %s24
      %s394 = smul.u32 64, %s24
      %s395 = smul.u32 2, %s23
      %p396 = scmp.lt.s32.totalorder %s394, 63
      %s397 = scalar_select %p396, %s394, 63
      %p398 = scmp.lt.s32.totalorder %s395, 1
      %s399 = scalar_select %p398, %s395, 1
      %s400 = smul.addr %s397, 2
      %s401 = sadd.s32 %s399, %s400
      %s402 = smul.addr %s401, 4
      %s403 = scalar_lea.vmem %s1, %s402
      %s404 = smul.u32 64, %s24
      %s405 = smul.u32 2, %s23
      %s406 = smul.u32 2, %s23
      %p407 = scmp.lt.s32.totalorder %s406, 1
      %s408 = scalar_select %p407, %s406, 1
      %s409 = scalar_lea.vmem %s2, %s408
      %s410 = smul.u32 2, %s23
      %s411 = smul.u32 16, %s22
      %s412 = smul.u32 2, %s23
      %p413 = scmp.lt.s32.totalorder %s411, 31
      %s414 = scalar_select %p413, %s411, 31
      %p415 = scmp.lt.s32.totalorder %s412, 1
      %s416 = scalar_select %p415, %s412, 1
      %s417 = smul.addr %s414, 2
      %s418 = sadd.s32 %s416, %s417
      %s419 = smul.addr %s418, 4
      %s420 = scalar_lea.vmem %s3, %s419
      %s421 = smul.u32 16, %s22
      %s422 = smul.u32 2, %s23
      %s423 = smul.u32 2, %s23
      %p424 = scmp.lt.s32.totalorder %s423, 1
      %s425 = scalar_select %p424, %s423, 1
      %s426 = scalar_lea.vmem %s4, %s425
      %s427 = smul.u32 2, %s23
      %s428 = smul.u32 2, %s23
      %p429 = scmp.lt.s32.totalorder %s428, 1
      %s430 = scalar_select %p429, %s428, 1
      %s431 = scalar_lea.vmem %s5, %s430
      %s432 = smul.u32 2, %s23
      %s433 = smul.u32 16, %s22
      %s434 = smul.u32 2, %s23
      %p435 = scmp.lt.s32.totalorder %s433, 31
      %s436 = scalar_select %p435, %s433, 31
      %p437 = scmp.lt.s32.totalorder %s434, 1
      %s438 = scalar_select %p437, %s434, 1
      %s439 = smul.addr %s436, 2
      %s440 = sadd.s32 %s438, %s439
      %s441 = smul.addr %s440, 4
      %s442 = scalar_lea.vmem %s6, %s441
      %s443 = smul.u32 16, %s22
      %s444 = smul.u32 2, %s23
      %p445 = scmp.eq.s32.totalorder %s24, 0
      // Predicated region
      $region45: #{bert_encoder_forward.17} parent=43 // pred_check
        %p446 = pneg %p445
      $region46: #{bert_encoder_forward.17} parent=43 // pred_check_branch
        %448 = sbr.rel (%p446) target = $region48
      $region47: #{bert_encoder_forward.17} parent=43 // pred_region
        %449 = vst [vmem:[#allocation2] sm:$0xff] 0.0
        %450 = vst [vmem:[#allocation2 + $0x8] sm:$0xff] 0.0
        %451 = vst [vmem:[#allocation2 + $0x10] sm:$0xff] 0.0
        %452 = vst [vmem:[#allocation2 + $0x18] sm:$0xff] 0.0
        %453 = vst [vmem:[#allocation2 + $0x20] sm:$0xff] 0.0
        %454 = vst [vmem:[#allocation2 + $0x28] sm:$0xff] 0.0
        %455 = vst [vmem:[#allocation2 + $0x30] sm:$0xff] 0.0
        %456 = vst [vmem:[#allocation2 + $0x38] sm:$0xff] 0.0
        %457 = vst [vmem:[#allocation2 + $0x40] sm:$0xff] 0.0
        %458 = vst [vmem:[#allocation2 + $0x48] sm:$0xff] 0.0
        %459 = vst [vmem:[#allocation2 + $0x50] sm:$0xff] 0.0
        %460 = vst [vmem:[#allocation2 + $0x58] sm:$0xff] 0.0
        %461 = vst [vmem:[#allocation2 + $0x60] sm:$0xff] 0.0
        %462 = vst [vmem:[#allocation2 + $0x68] sm:$0xff] 0.0
        %463 = vst [vmem:[#allocation2 + $0x70] sm:$0xff] 0.0
        %464 = vst [vmem:[#allocation2 + $0x78] sm:$0xff] 0.0
        %465 = vst [vmem:[#allocation2 + $0x80] sm:$0xff] 0.0
        %466 = vst [vmem:[#allocation2 + $0x88] sm:$0xff] 0.0
        %467 = vst [vmem:[#allocation2 + $0x90] sm:$0xff] 0.0
        %468 = vst [vmem:[#allocation2 + $0x98] sm:$0xff] 0.0
        %469 = vst [vmem:[#allocation2 + $0xa0] sm:$0xff] 0.0
        %470 = vst [vmem:[#allocation2 + $0xa8] sm:$0xff] 0.0
        %471 = vst [vmem:[#allocation2 + $0xb0] sm:$0xff] 0.0
        %472 = vst [vmem:[#allocation2 + $0xb8] sm:$0xff] 0.0
        %473 = vst [vmem:[#allocation2 + $0xc0] sm:$0xff] 0.0
        %474 = vst [vmem:[#allocation2 + $0xc8] sm:$0xff] 0.0
        %475 = vst [vmem:[#allocation2 + $0xd0] sm:$0xff] 0.0
        %476 = vst [vmem:[#allocation2 + $0xd8] sm:$0xff] 0.0
        %477 = vst [vmem:[#allocation2 + $0xe0] sm:$0xff] 0.0
        %478 = vst [vmem:[#allocation2 + $0xe8] sm:$0xff] 0.0
        %479 = vst [vmem:[#allocation2 + $0xf0] sm:$0xff] 0.0
        %480 = vst [vmem:[#allocation2 + $0xf8] sm:$0xff] 0.0
      $region48: #{bert_encoder_forward.17} parent=43 // pred_fallthru
        _
      %v481 = vld [vmem:[#allocation2] sm:$0xff]
      %v482 = vld [vmem:[#allocation2 + $0x8] sm:$0xff]
      %v483 = vld [vmem:[#allocation2 + $0x10] sm:$0xff]
      %v484 = vld [vmem:[#allocation2 + $0x18] sm:$0xff]
      %v485 = vld [vmem:[#allocation2 + $0x20] sm:$0xff]
      %v486 = vld [vmem:[#allocation2 + $0x28] sm:$0xff]
      %v487 = vld [vmem:[#allocation2 + $0x30] sm:$0xff]
      %v488 = vld [vmem:[#allocation2 + $0x38] sm:$0xff]
      %v489 = vld [vmem:[#allocation2 + $0x40] sm:$0xff]
      %v490 = vld [vmem:[#allocation2 + $0x48] sm:$0xff]
      %v491 = vld [vmem:[#allocation2 + $0x50] sm:$0xff]
      %v492 = vld [vmem:[#allocation2 + $0x58] sm:$0xff]
      %v493 = vld [vmem:[#allocation2 + $0x60] sm:$0xff]
      %v494 = vld [vmem:[#allocation2 + $0x68] sm:$0xff]
      %v495 = vld [vmem:[#allocation2 + $0x70] sm:$0xff]
      %v496 = vld [vmem:[#allocation2 + $0x78] sm:$0xff]
      %v497 = vld [vmem:[#allocation2 + $0x80] sm:$0xff]
      %v498 = vld [vmem:[#allocation2 + $0x88] sm:$0xff]
      %v499 = vld [vmem:[#allocation2 + $0x90] sm:$0xff]
      %v500 = vld [vmem:[#allocation2 + $0x98] sm:$0xff]
      %v501 = vld [vmem:[#allocation2 + $0xa0] sm:$0xff]
      %v502 = vld [vmem:[#allocation2 + $0xa8] sm:$0xff]
      %v503 = vld [vmem:[#allocation2 + $0xb0] sm:$0xff]
      %v504 = vld [vmem:[#allocation2 + $0xb8] sm:$0xff]
      %v505 = vld [vmem:[#allocation2 + $0xc0] sm:$0xff]
      %v506 = vld [vmem:[#allocation2 + $0xc8] sm:$0xff]
      %v507 = vld [vmem:[#allocation2 + $0xd0] sm:$0xff]
      %v508 = vld [vmem:[#allocation2 + $0xd8] sm:$0xff]
      %v509 = vld [vmem:[#allocation2 + $0xe0] sm:$0xff]
      %v510 = vld [vmem:[#allocation2 + $0xe8] sm:$0xff]
      %v511 = vld [vmem:[#allocation2 + $0xf0] sm:$0xff]
      %v512 = vld [vmem:[#allocation2 + $0xf8] sm:$0xff]
      %v513 = vld [vmem:[%s391] sm:$0xff]
      %v514 = vld [vmem:[%s391 + $0x8] sm:$0xff]
      %v515 = vld [vmem:[%s391 + $0x10] sm:$0xff]
      %v516 = vld [vmem:[%s391 + $0x18] sm:$0xff]
      %v517 = vld [vmem:[%s391 + $0x20] sm:$0xff]
      %v518 = vld [vmem:[%s391 + $0x28] sm:$0xff]
      %v519 = vld [vmem:[%s391 + $0x30] sm:$0xff]
      %v520 = vld [vmem:[%s391 + $0x38] sm:$0xff]
      %v521 = vld [vmem:[%s391 + $0x40] sm:$0xff]
      %v522 = vld [vmem:[%s391 + $0x48] sm:$0xff]
      %v523 = vld [vmem:[%s391 + $0x50] sm:$0xff]
      %v524 = vld [vmem:[%s391 + $0x58] sm:$0xff]
      %v525 = vld [vmem:[%s391 + $0x60] sm:$0xff]
      %v526 = vld [vmem:[%s391 + $0x68] sm:$0xff]
      %v527 = vld [vmem:[%s391 + $0x70] sm:$0xff]
      %v528 = vld [vmem:[%s391 + $0x78] sm:$0xff]
      %v529 = vld [vmem:[%s391 + $0x80] sm:$0xff]
      %v530 = vld [vmem:[%s391 + $0x88] sm:$0xff]
      %v531 = vld [vmem:[%s391 + $0x90] sm:$0xff]
      %v532 = vld [vmem:[%s391 + $0x98] sm:$0xff]
      %v533 = vld [vmem:[%s391 + $0xa0] sm:$0xff]
      %v534 = vld [vmem:[%s391 + $0xa8] sm:$0xff]
      %v535 = vld [vmem:[%s391 + $0xb0] sm:$0xff]
      %v536 = vld [vmem:[%s391 + $0xb8] sm:$0xff]
      %v537 = vld [vmem:[%s391 + $0xc0] sm:$0xff]
      %v538 = vld [vmem:[%s391 + $0xc8] sm:$0xff]
      %v539 = vld [vmem:[%s391 + $0xd0] sm:$0xff]
      %v540 = vld [vmem:[%s391 + $0xd8] sm:$0xff]
      %v541 = vld [vmem:[%s391 + $0xe0] sm:$0xff]
      %v542 = vld [vmem:[%s391 + $0xe8] sm:$0xff]
      %v543 = vld [vmem:[%s391 + $0xf0] sm:$0xff]
      %v544 = vld [vmem:[%s391 + $0xf8] sm:$0xff]
      %v545 = vld [vmem:[%s403] sm:$0xff]
      %v546 = vld [vmem:[%s403 + $0x8] sm:$0xff]
      %v547 = vld [vmem:[%s403 + $0x10] sm:$0xff]
      %v548 = vld [vmem:[%s403 + $0x18] sm:$0xff]
      %v549 = vld [vmem:[%s403 + $0x20] sm:$0xff]
      %v550 = vld [vmem:[%s403 + $0x28] sm:$0xff]
      %v551 = vld [vmem:[%s403 + $0x30] sm:$0xff]
      %v552 = vld [vmem:[%s403 + $0x38] sm:$0xff]
      %v553 = vld [vmem:[%s403 + $0x40] sm:$0xff]
      %v554 = vld [vmem:[%s403 + $0x48] sm:$0xff]
      %v555 = vld [vmem:[%s403 + $0x50] sm:$0xff]
      %v556 = vld [vmem:[%s403 + $0x58] sm:$0xff]
      %v557 = vld [vmem:[%s403 + $0x60] sm:$0xff]
      %v558 = vld [vmem:[%s403 + $0x68] sm:$0xff]
      %v559 = vld [vmem:[%s403 + $0x70] sm:$0xff]
      %v560 = vld [vmem:[%s403 + $0x78] sm:$0xff]
      %v561 = vld [vmem:[%s403 + $0x80] sm:$0xff]
      %v562 = vld [vmem:[%s403 + $0x88] sm:$0xff]
      %v563 = vld [vmem:[%s403 + $0x90] sm:$0xff]
      %v564 = vld [vmem:[%s403 + $0x98] sm:$0xff]
      %v565 = vld [vmem:[%s403 + $0xa0] sm:$0xff]
      %v566 = vld [vmem:[%s403 + $0xa8] sm:$0xff]
      %v567 = vld [vmem:[%s403 + $0xb0] sm:$0xff]
      %v568 = vld [vmem:[%s403 + $0xb8] sm:$0xff]
      %v569 = vld [vmem:[%s403 + $0xc0] sm:$0xff]
      %v570 = vld [vmem:[%s403 + $0xc8] sm:$0xff]
      %v571 = vld [vmem:[%s403 + $0xd0] sm:$0xff]
      %v572 = vld [vmem:[%s403 + $0xd8] sm:$0xff]
      %v573 = vld [vmem:[%s403 + $0xe0] sm:$0xff]
      %v574 = vld [vmem:[%s403 + $0xe8] sm:$0xff]
      %v575 = vld [vmem:[%s403 + $0xf0] sm:$0xff]
      %v576 = vld [vmem:[%s403 + $0xf8] sm:$0xff]
      %v577 = vld [vmem:[%s403 + $0x100] sm:$0xff]
      %v578 = vld [vmem:[%s403 + $0x108] sm:$0xff]
      %v579 = vld [vmem:[%s403 + $0x110] sm:$0xff]
      %v580 = vld [vmem:[%s403 + $0x118] sm:$0xff]
      %v581 = vld [vmem:[%s403 + $0x120] sm:$0xff]
      %v582 = vld [vmem:[%s403 + $0x128] sm:$0xff]
      %v583 = vld [vmem:[%s403 + $0x130] sm:$0xff]
      %v584 = vld [vmem:[%s403 + $0x138] sm:$0xff]
      %v585 = vld [vmem:[%s403 + $0x140] sm:$0xff]
      %v586 = vld [vmem:[%s403 + $0x148] sm:$0xff]
      %v587 = vld [vmem:[%s403 + $0x150] sm:$0xff]
      %v588 = vld [vmem:[%s403 + $0x158] sm:$0xff]
      %v589 = vld [vmem:[%s403 + $0x160] sm:$0xff]
      %v590 = vld [vmem:[%s403 + $0x168] sm:$0xff]
      %v591 = vld [vmem:[%s403 + $0x170] sm:$0xff]
      %v592 = vld [vmem:[%s403 + $0x178] sm:$0xff]
      %v593 = vld [vmem:[%s403 + $0x180] sm:$0xff]
      %v594 = vld [vmem:[%s403 + $0x188] sm:$0xff]
      %v595 = vld [vmem:[%s403 + $0x190] sm:$0xff]
      %v596 = vld [vmem:[%s403 + $0x198] sm:$0xff]
      %v597 = vld [vmem:[%s403 + $0x1a0] sm:$0xff]
      %v598 = vld [vmem:[%s403 + $0x1a8] sm:$0xff]
      %v599 = vld [vmem:[%s403 + $0x1b0] sm:$0xff]
      %v600 = vld [vmem:[%s403 + $0x1b8] sm:$0xff]
      %v601 = vld [vmem:[%s403 + $0x1c0] sm:$0xff]
      %v602 = vld [vmem:[%s403 + $0x1c8] sm:$0xff]
      %v603 = vld [vmem:[%s403 + $0x1d0] sm:$0xff]
      %v604 = vld [vmem:[%s403 + $0x1d8] sm:$0xff]
      %v605 = vld [vmem:[%s403 + $0x1e0] sm:$0xff]
      %v606 = vld [vmem:[%s403 + $0x1e8] sm:$0xff]
      %v607 = vld [vmem:[%s403 + $0x1f0] sm:$0xff]
      %v608 = vld [vmem:[%s403 + $0x1f8] sm:$0xff]
      %v641 = vunpack.c.l.b16 %v513
      %v642 = vunpack.c.h.b16 %v513
      %v643 = vunpack.c.l.b16 %v514
      %v644 = vunpack.c.h.b16 %v514
      %v645 = vunpack.c.l.b16 %v515
      %v646 = vunpack.c.h.b16 %v515
      %v647 = vunpack.c.l.b16 %v516
      %v648 = vunpack.c.h.b16 %v516
      %v649 = vunpack.c.l.b16 %v517
      %v650 = vunpack.c.h.b16 %v517
      %v651 = vunpack.c.l.b16 %v518
      %v652 = vunpack.c.h.b16 %v518
      %v653 = vunpack.c.l.b16 %v519
      %v654 = vunpack.c.h.b16 %v519
      %v655 = vunpack.c.l.b16 %v520
      %v656 = vunpack.c.h.b16 %v520
      %v657 = vunpack.c.l.b16 %v521
      %v658 = vunpack.c.h.b16 %v521
      %v659 = vunpack.c.l.b16 %v522
      %v660 = vunpack.c.h.b16 %v522
      %v661 = vunpack.c.l.b16 %v523
      %v662 = vunpack.c.h.b16 %v523
      %v663 = vunpack.c.l.b16 %v524
      %v664 = vunpack.c.h.b16 %v524
      %v665 = vunpack.c.l.b16 %v525
      %v666 = vunpack.c.h.b16 %v525
      %v667 = vunpack.c.l.b16 %v526
      %v668 = vunpack.c.h.b16 %v526
      %v669 = vunpack.c.l.b16 %v527
      %v670 = vunpack.c.h.b16 %v527
      %v671 = vunpack.c.l.b16 %v528
      %v672 = vunpack.c.h.b16 %v528
      %v673 = vunpack.c.l.b16 %v529
      %v674 = vunpack.c.h.b16 %v529
      %v675 = vunpack.c.l.b16 %v530
      %v676 = vunpack.c.h.b16 %v530
      %v677 = vunpack.c.l.b16 %v531
      %v678 = vunpack.c.h.b16 %v531
      %v679 = vunpack.c.l.b16 %v532
      %v680 = vunpack.c.h.b16 %v532
      %v681 = vunpack.c.l.b16 %v533
      %v682 = vunpack.c.h.b16 %v533
      %v683 = vunpack.c.l.b16 %v534
      %v684 = vunpack.c.h.b16 %v534
      %v685 = vunpack.c.l.b16 %v535
      %v686 = vunpack.c.h.b16 %v535
      %v687 = vunpack.c.l.b16 %v536
      %v688 = vunpack.c.h.b16 %v536
      %v689 = vunpack.c.l.b16 %v537
      %v690 = vunpack.c.h.b16 %v537
      %v691 = vunpack.c.l.b16 %v538
      %v692 = vunpack.c.h.b16 %v538
      %v693 = vunpack.c.l.b16 %v539
      %v694 = vunpack.c.h.b16 %v539
      %v695 = vunpack.c.l.b16 %v540
      %v696 = vunpack.c.h.b16 %v540
      %v697 = vunpack.c.l.b16 %v541
      %v698 = vunpack.c.h.b16 %v541
      %v699 = vunpack.c.l.b16 %v542
      %v700 = vunpack.c.h.b16 %v542
      %v701 = vunpack.c.l.b16 %v543
      %v702 = vunpack.c.h.b16 %v543
      %v703 = vunpack.c.l.b16 %v544
      %v704 = vunpack.c.h.b16 %v544
      %v705 = vpack.c.b16 %v645, %v641
      %v706 = vpack.c.b16 %v646, %v642
      %v707 = vpack.c.b16 %v647, %v643
      %v708 = vpack.c.b16 %v648, %v644
      %v709 = vpack.c.b16 %v653, %v649
      %v710 = vpack.c.b16 %v654, %v650
      %v711 = vpack.c.b16 %v655, %v651
      %v712 = vpack.c.b16 %v656, %v652
      %v713 = vpack.c.b16 %v661, %v657
      %v714 = vpack.c.b16 %v662, %v658
      %v715 = vpack.c.b16 %v663, %v659
      %v716 = vpack.c.b16 %v664, %v660
      %v717 = vpack.c.b16 %v669, %v665
      %v718 = vpack.c.b16 %v670, %v666
      %v719 = vpack.c.b16 %v671, %v667
      %v720 = vpack.c.b16 %v672, %v668
      %v721 = vpack.c.b16 %v677, %v673
      %v722 = vpack.c.b16 %v678, %v674
      %v723 = vpack.c.b16 %v679, %v675
      %v724 = vpack.c.b16 %v680, %v676
      %v725 = vpack.c.b16 %v685, %v681
      %v726 = vpack.c.b16 %v686, %v682
      %v727 = vpack.c.b16 %v687, %v683
      %v728 = vpack.c.b16 %v688, %v684
      %v729 = vpack.c.b16 %v693, %v689
      %v730 = vpack.c.b16 %v694, %v690
      %v731 = vpack.c.b16 %v695, %v691
      %v732 = vpack.c.b16 %v696, %v692
      %v733 = vpack.c.b16 %v701, %v697
      %v734 = vpack.c.b16 %v702, %v698
      %v735 = vpack.c.b16 %v703, %v699
      %v736 = vpack.c.b16 %v704, %v700
      %v833 = vunpack.c.l.b16 %v545
      %v834 = vunpack.c.h.b16 %v545
      %v835 = vunpack.c.l.b16 %v546
      %v836 = vunpack.c.h.b16 %v546
      %v837 = vunpack.c.l.b16 %v547
      %v838 = vunpack.c.h.b16 %v547
      %v839 = vunpack.c.l.b16 %v548
      %v840 = vunpack.c.h.b16 %v548
      %v841 = vunpack.c.l.b16 %v549
      %v842 = vunpack.c.h.b16 %v549
      %v843 = vunpack.c.l.b16 %v550
      %v844 = vunpack.c.h.b16 %v550
      %v845 = vunpack.c.l.b16 %v551
      %v846 = vunpack.c.h.b16 %v551
      %v847 = vunpack.c.l.b16 %v552
      %v848 = vunpack.c.h.b16 %v552
      %v849 = vunpack.c.l.b16 %v553
      %v850 = vunpack.c.h.b16 %v553
      %v851 = vunpack.c.l.b16 %v554
      %v852 = vunpack.c.h.b16 %v554
      %v853 = vunpack.c.l.b16 %v555
      %v854 = vunpack.c.h.b16 %v555
      %v855 = vunpack.c.l.b16 %v556
      %v856 = vunpack.c.h.b16 %v556
      %v857 = vunpack.c.l.b16 %v557
      %v858 = vunpack.c.h.b16 %v557
      %v859 = vunpack.c.l.b16 %v558
      %v860 = vunpack.c.h.b16 %v558
      %v861 = vunpack.c.l.b16 %v559
      %v862 = vunpack.c.h.b16 %v559
      %v863 = vunpack.c.l.b16 %v560
      %v864 = vunpack.c.h.b16 %v560
      %v865 = vunpack.c.l.b16 %v561
      %v866 = vunpack.c.h.b16 %v561
      %v867 = vunpack.c.l.b16 %v562
      %v868 = vunpack.c.h.b16 %v562
      %v869 = vunpack.c.l.b16 %v563
      %v870 = vunpack.c.h.b16 %v563
      %v871 = vunpack.c.l.b16 %v564
      %v872 = vunpack.c.h.b16 %v564
      %v873 = vunpack.c.l.b16 %v565
      %v874 = vunpack.c.h.b16 %v565
      %v875 = vunpack.c.l.b16 %v566
      %v876 = vunpack.c.h.b16 %v566
      %v877 = vunpack.c.l.b16 %v567
      %v878 = vunpack.c.h.b16 %v567
      %v879 = vunpack.c.l.b16 %v568
      %v880 = vunpack.c.h.b16 %v568
      %v881 = vunpack.c.l.b16 %v569
      %v882 = vunpack.c.h.b16 %v569
      %v883 = vunpack.c.l.b16 %v570
      %v884 = vunpack.c.h.b16 %v570
      %v885 = vunpack.c.l.b16 %v571
      %v886 = vunpack.c.h.b16 %v571
      %v887 = vunpack.c.l.b16 %v572
      %v888 = vunpack.c.h.b16 %v572
      %v889 = vunpack.c.l.b16 %v573
      %v890 = vunpack.c.h.b16 %v573
      %v891 = vunpack.c.l.b16 %v574
      %v892 = vunpack.c.h.b16 %v574
      %v893 = vunpack.c.l.b16 %v575
      %v894 = vunpack.c.h.b16 %v575
      %v895 = vunpack.c.l.b16 %v576
      %v896 = vunpack.c.h.b16 %v576
      %v897 = vunpack.c.l.b16 %v577
      %v898 = vunpack.c.h.b16 %v577
      %v899 = vunpack.c.l.b16 %v578
      %v900 = vunpack.c.h.b16 %v578
      %v901 = vunpack.c.l.b16 %v579
      %v902 = vunpack.c.h.b16 %v579
      %v903 = vunpack.c.l.b16 %v580
      %v904 = vunpack.c.h.b16 %v580
      %v905 = vunpack.c.l.b16 %v581
      %v906 = vunpack.c.h.b16 %v581
      %v907 = vunpack.c.l.b16 %v582
      %v908 = vunpack.c.h.b16 %v582
      %v909 = vunpack.c.l.b16 %v583
      %v910 = vunpack.c.h.b16 %v583
      %v911 = vunpack.c.l.b16 %v584
      %v912 = vunpack.c.h.b16 %v584
      %v913 = vunpack.c.l.b16 %v585
      %v914 = vunpack.c.h.b16 %v585
      %v915 = vunpack.c.l.b16 %v586
      %v916 = vunpack.c.h.b16 %v586
      %v917 = vunpack.c.l.b16 %v587
      %v918 = vunpack.c.h.b16 %v587
      %v919 = vunpack.c.l.b16 %v588
      %v920 = vunpack.c.h.b16 %v588
      %v921 = vunpack.c.l.b16 %v589
      %v922 = vunpack.c.h.b16 %v589
      %v923 = vunpack.c.l.b16 %v590
      %v924 = vunpack.c.h.b16 %v590
      %v925 = vunpack.c.l.b16 %v591
      %v926 = vunpack.c.h.b16 %v591
      %v927 = vunpack.c.l.b16 %v592
      %v928 = vunpack.c.h.b16 %v592
      %v929 = vunpack.c.l.b16 %v593
      %v930 = vunpack.c.h.b16 %v593
      %v931 = vunpack.c.l.b16 %v594
      %v932 = vunpack.c.h.b16 %v594
      %v933 = vunpack.c.l.b16 %v595
      %v934 = vunpack.c.h.b16 %v595
      %v935 = vunpack.c.l.b16 %v596
      %v936 = vunpack.c.h.b16 %v596
      %v937 = vunpack.c.l.b16 %v597
      %v938 = vunpack.c.h.b16 %v597
      %v939 = vunpack.c.l.b16 %v598
      %v940 = vunpack.c.h.b16 %v598
      %v941 = vunpack.c.l.b16 %v599
      %v942 = vunpack.c.h.b16 %v599
      %v943 = vunpack.c.l.b16 %v600
      %v944 = vunpack.c.h.b16 %v600
      %v945 = vunpack.c.l.b16 %v601
      %v946 = vunpack.c.h.b16 %v601
      %v947 = vunpack.c.l.b16 %v602
      %v948 = vunpack.c.h.b16 %v602
      %v949 = vunpack.c.l.b16 %v603
      %v950 = vunpack.c.h.b16 %v603
      %v951 = vunpack.c.l.b16 %v604
      %v952 = vunpack.c.h.b16 %v604
      %v953 = vunpack.c.l.b16 %v605
      %v954 = vunpack.c.h.b16 %v605
      %v955 = vunpack.c.l.b16 %v606
      %v956 = vunpack.c.h.b16 %v606
      %v957 = vunpack.c.l.b16 %v607
      %v958 = vunpack.c.h.b16 %v607
      %v959 = vunpack.c.l.b16 %v608
      %v960 = vunpack.c.h.b16 %v608
      %v961 = vpack.c.b16 %v835, %v833
      %v962 = vpack.c.b16 %v836, %v834
      %v963 = vpack.c.b16 %v839, %v837
      %v964 = vpack.c.b16 %v840, %v838
      %v965 = vpack.c.b16 %v843, %v841
      %v966 = vpack.c.b16 %v844, %v842
      %v967 = vpack.c.b16 %v847, %v845
      %v968 = vpack.c.b16 %v848, %v846
      %v969 = vpack.c.b16 %v851, %v849
      %v970 = vpack.c.b16 %v852, %v850
      %v971 = vpack.c.b16 %v855, %v853
      %v972 = vpack.c.b16 %v856, %v854
      %v973 = vpack.c.b16 %v859, %v857
      %v974 = vpack.c.b16 %v860, %v858
      %v975 = vpack.c.b16 %v863, %v861
      %v976 = vpack.c.b16 %v864, %v862
      %v977 = vpack.c.b16 %v867, %v865
      %v978 = vpack.c.b16 %v868, %v866
      %v979 = vpack.c.b16 %v871, %v869
      %v980 = vpack.c.b16 %v872, %v870
      %v981 = vpack.c.b16 %v875, %v873
      %v982 = vpack.c.b16 %v876, %v874
      %v983 = vpack.c.b16 %v879, %v877
      %v984 = vpack.c.b16 %v880, %v878
      %v985 = vpack.c.b16 %v883, %v881
      %v986 = vpack.c.b16 %v884, %v882
      %v987 = vpack.c.b16 %v887, %v885
      %v988 = vpack.c.b16 %v888, %v886
      %v989 = vpack.c.b16 %v891, %v889
      %v990 = vpack.c.b16 %v892, %v890
      %v991 = vpack.c.b16 %v895, %v893
      %v992 = vpack.c.b16 %v896, %v894
      %v993 = vpack.c.b16 %v899, %v897
      %v994 = vpack.c.b16 %v900, %v898
      %v995 = vpack.c.b16 %v903, %v901
      %v996 = vpack.c.b16 %v904, %v902
      %v997 = vpack.c.b16 %v907, %v905
      %v998 = vpack.c.b16 %v908, %v906
      %v999 = vpack.c.b16 %v911, %v909
      %v1000 = vpack.c.b16 %v912, %v910
      %v1001 = vpack.c.b16 %v915, %v913
      %v1002 = vpack.c.b16 %v916, %v914
      %v1003 = vpack.c.b16 %v919, %v917
      %v1004 = vpack.c.b16 %v920, %v918
      %v1005 = vpack.c.b16 %v923, %v921
      %v1006 = vpack.c.b16 %v924, %v922
      %v1007 = vpack.c.b16 %v927, %v925
      %v1008 = vpack.c.b16 %v928, %v926
      %v1009 = vpack.c.b16 %v931, %v929
      %v1010 = vpack.c.b16 %v932, %v930
      %v1011 = vpack.c.b16 %v935, %v933
      %v1012 = vpack.c.b16 %v936, %v934
      %v1013 = vpack.c.b16 %v939, %v937
      %v1014 = vpack.c.b16 %v940, %v938
      %v1015 = vpack.c.b16 %v943, %v941
      %v1016 = vpack.c.b16 %v944, %v942
      %v1017 = vpack.c.b16 %v947, %v945
      %v1018 = vpack.c.b16 %v948, %v946
      %v1019 = vpack.c.b16 %v951, %v949
      %v1020 = vpack.c.b16 %v952, %v950
      %v1021 = vpack.c.b16 %v955, %v953
      %v1022 = vpack.c.b16 %v956, %v954
      %v1023 = vpack.c.b16 %v959, %v957
      %v1024 = vpack.c.b16 %v960, %v958
      %1089 = vmatprep.subr.bf16.mxu0 %v976
      %1090 = vmatpush1.bf16.msra.mxu0 %v975
      %1091 = vmatprep.subr.bf16.mxu0 %v974
      %1092 = vmatpush1.bf16.msra.mxu0 %v973
      %1093 = vmatprep.subr.bf16.mxu0 %v972
      %1094 = vmatpush1.bf16.msra.mxu0 %v971
      %1095 = vmatprep.subr.bf16.mxu0 %v970
      %1096 = vmatpush1.bf16.msra.mxu0 %v969
      %1097 = vmatprep.subr.bf16.mxu0 %v968
      %1098 = vmatpush1.bf16.msra.mxu0 %v967
      %1099 = vmatprep.subr.bf16.mxu0 %v966
      %1100 = vmatpush1.bf16.msra.mxu0 %v965
      %1101 = vmatprep.subr.bf16.mxu0 %v964
      %1102 = vmatpush1.bf16.msra.mxu0 %v963
      %1103 = vmatprep.subr.bf16.mxu0 %v962
      %1104 = vmatpush1.bf16.msra.mxu0 %v961
      %1105 = vmatprep.subr.bf16.mxu0 %v992
      %1106 = vmatpush2.bf16.msra.mxu0 %v991
      %1107 = vmatprep.subr.bf16.mxu0 %v990
      %1108 = vmatpush2.bf16.msra.mxu0 %v989
      %1109 = vmatprep.subr.bf16.mxu0 %v988
      %1110 = vmatpush2.bf16.msra.mxu0 %v987
      %1111 = vmatprep.subr.bf16.mxu0 %v986
      %1112 = vmatpush2.bf16.msra.mxu0 %v985
      %1113 = vmatprep.subr.bf16.mxu0 %v984
      %1114 = vmatpush2.bf16.msra.mxu0 %v983
      %1115 = vmatprep.subr.bf16.mxu0 %v982
      %1116 = vmatpush2.bf16.msra.mxu0 %v981
      %1117 = vmatprep.subr.bf16.mxu0 %v980
      %1118 = vmatpush2.bf16.msra.mxu0 %v979
      %1119 = vmatprep.subr.bf16.mxu0 %v978
      %1120 = vmatpush2.bf16.msra.mxu0 %v977
      %1121 = vmatprep.mubr.bf16.mxu0 %v706
      %1122 = vmatmul.mubr.bf16.gmra.mxu0 %v705
      %v1123 = vpop.f32.mrf.mxu0
      %v1124 = vadd.f32 0.0, %v1123
      %v1125 = vpop.f32.mrf.mxu0
      %v1126 = vadd.f32 0.0, %v1125
      %v1127 = vpop.f32.mrf.mxu0
      %v1128 = vadd.f32 0.0, %v1127
      %v1129 = vpop.f32.mrf.mxu0
      %v1130 = vadd.f32 0.0, %v1129
      %1131 = vmatprep.mubr.bf16.mxu0 %v710
      %1132 = vmatmul.mubr.bf16.gmra.mxu0 %v709
      %v1133 = vpop.f32.mrf.mxu0
      %v1134 = vadd.f32 0.0, %v1133
      %v1135 = vpop.f32.mrf.mxu0
      %v1136 = vadd.f32 0.0, %v1135
      %v1137 = vpop.f32.mrf.mxu0
      %v1138 = vadd.f32 0.0, %v1137
      %v1139 = vpop.f32.mrf.mxu0
      %v1140 = vadd.f32 0.0, %v1139
      %1141 = vmatprep.mubr.bf16.mxu0 %v714
      %1142 = vmatmul.mubr.bf16.gmra.mxu0 %v713
      %v1143 = vpop.f32.mrf.mxu0
      %v1144 = vadd.f32 0.0, %v1143
      %v1145 = vpop.f32.mrf.mxu0
      %v1146 = vadd.f32 0.0, %v1145
      %v1147 = vpop.f32.mrf.mxu0
      %v1148 = vadd.f32 0.0, %v1147
      %v1149 = vpop.f32.mrf.mxu0
      %v1150 = vadd.f32 0.0, %v1149
      %1151 = vmatprep.mubr.bf16.mxu0 %v718
      %1152 = vmatmul.mubr.bf16.gmra.mxu0 %v717
      %v1153 = vpop.f32.mrf.mxu0
      %v1154 = vadd.f32 0.0, %v1153
      %v1155 = vpop.f32.mrf.mxu0
      %v1156 = vadd.f32 0.0, %v1155
      %v1157 = vpop.f32.mrf.mxu0
      %v1158 = vadd.f32 0.0, %v1157
      %v1159 = vpop.f32.mrf.mxu0
      %v1160 = vadd.f32 0.0, %v1159
      %1161 = vmatprep.mubr.bf16.mxu0 %v722
      %1162 = vmatmul.mubr.bf16.gmra.mxu0 %v721
      %v1163 = vpop.f32.mrf.mxu0
      %v1164 = vadd.f32 0.0, %v1163
      %v1165 = vpop.f32.mrf.mxu0
      %v1166 = vadd.f32 0.0, %v1165
      %v1167 = vpop.f32.mrf.mxu0
      %v1168 = vadd.f32 0.0, %v1167
      %v1169 = vpop.f32.mrf.mxu0
      %v1170 = vadd.f32 0.0, %v1169
      %1171 = vmatprep.mubr.bf16.mxu0 %v726
      %1172 = vmatmul.mubr.bf16.gmra.mxu0 %v725
      %v1173 = vpop.f32.mrf.mxu0
      %v1174 = vadd.f32 0.0, %v1173
      %v1175 = vpop.f32.mrf.mxu0
      %v1176 = vadd.f32 0.0, %v1175
      %v1177 = vpop.f32.mrf.mxu0
      %v1178 = vadd.f32 0.0, %v1177
      %v1179 = vpop.f32.mrf.mxu0
      %v1180 = vadd.f32 0.0, %v1179
      %1181 = vmatprep.mubr.bf16.mxu0 %v730
      %1182 = vmatmul.mubr.bf16.gmra.mxu0 %v729
      %v1183 = vpop.f32.mrf.mxu0
      %v1184 = vadd.f32 0.0, %v1183
      %v1185 = vpop.f32.mrf.mxu0
      %v1186 = vadd.f32 0.0, %v1185
      %v1187 = vpop.f32.mrf.mxu0
      %v1188 = vadd.f32 0.0, %v1187
      %v1189 = vpop.f32.mrf.mxu0
      %v1190 = vadd.f32 0.0, %v1189
      %1191 = vmatprep.mubr.bf16.mxu0 %v734
      %1192 = vmatmul.mubr.bf16.gmra.mxu0 %v733
      %v1193 = vpop.f32.mrf.mxu0
      %v1194 = vadd.f32 0.0, %v1193
      %v1195 = vpop.f32.mrf.mxu0
      %v1196 = vadd.f32 0.0, %v1195
      %v1197 = vpop.f32.mrf.mxu0
      %v1198 = vadd.f32 0.0, %v1197
      %v1199 = vpop.f32.mrf.mxu0
      %v1200 = vadd.f32 0.0, %v1199
      %1201 = vdwg.mxu0
      %1202 = vmatprep.subr.bf16.mxu0 %v1008
      %1203 = vmatpush1.bf16.msra.mxu0 %v1007
      %1204 = vmatprep.subr.bf16.mxu0 %v1006
      %1205 = vmatpush1.bf16.msra.mxu0 %v1005
      %1206 = vmatprep.subr.bf16.mxu0 %v1004
      %1207 = vmatpush1.bf16.msra.mxu0 %v1003
      %1208 = vmatprep.subr.bf16.mxu0 %v1002
      %1209 = vmatpush1.bf16.msra.mxu0 %v1001
      %1210 = vmatprep.subr.bf16.mxu0 %v1000
      %1211 = vmatpush1.bf16.msra.mxu0 %v999
      %1212 = vmatprep.subr.bf16.mxu0 %v998
      %1213 = vmatpush1.bf16.msra.mxu0 %v997
      %1214 = vmatprep.subr.bf16.mxu0 %v996
      %1215 = vmatpush1.bf16.msra.mxu0 %v995
      %1216 = vmatprep.subr.bf16.mxu0 %v994
      %1217 = vmatpush1.bf16.msra.mxu0 %v993
      %1218 = vmatprep.subr.bf16.mxu0 %v1024
      %1219 = vmatpush2.bf16.msra.mxu0 %v1023
      %1220 = vmatprep.subr.bf16.mxu0 %v1022
      %1221 = vmatpush2.bf16.msra.mxu0 %v1021
      %1222 = vmatprep.subr.bf16.mxu0 %v1020
      %1223 = vmatpush2.bf16.msra.mxu0 %v1019
      %1224 = vmatprep.subr.bf16.mxu0 %v1018
      %1225 = vmatpush2.bf16.msra.mxu0 %v1017
      %1226 = vmatprep.subr.bf16.mxu0 %v1016
      %1227 = vmatpush2.bf16.msra.mxu0 %v1015
      %1228 = vmatprep.subr.bf16.mxu0 %v1014
      %1229 = vmatpush2.bf16.msra.mxu0 %v1013
      %1230 = vmatprep.subr.bf16.mxu0 %v1012
      %1231 = vmatpush2.bf16.msra.mxu0 %v1011
      %1232 = vmatprep.subr.bf16.mxu0 %v1010
      %1233 = vmatpush2.bf16.msra.mxu0 %v1009
      %1234 = vmatprep.mubr.bf16.mxu0 %v708
      %1235 = vmatmul.mubr.bf16.gmra.mxu0 %v707
      %v1236 = vpop.f32.mrf.mxu0
      %v1237 = vadd.f32 %v1124, %v1236
      %v1238 = vpop.f32.mrf.mxu0
      %v1239 = vadd.f32 %v1126, %v1238
      %v1240 = vpop.f32.mrf.mxu0
      %v1241 = vadd.f32 %v1128, %v1240
      %v1242 = vpop.f32.mrf.mxu0
      %v1243 = vadd.f32 %v1130, %v1242
      %1244 = vmatprep.mubr.bf16.mxu0 %v712
      %1245 = vmatmul.mubr.bf16.gmra.mxu0 %v711
      %v1246 = vpop.f32.mrf.mxu0
      %v1247 = vadd.f32 %v1134, %v1246
      %v1248 = vpop.f32.mrf.mxu0
      %v1249 = vadd.f32 %v1136, %v1248
      %v1250 = vpop.f32.mrf.mxu0
      %v1251 = vadd.f32 %v1138, %v1250
      %v1252 = vpop.f32.mrf.mxu0
      %v1253 = vadd.f32 %v1140, %v1252
      %1254 = vmatprep.mubr.bf16.mxu0 %v716
      %1255 = vmatmul.mubr.bf16.gmra.mxu0 %v715
      %v1256 = vpop.f32.mrf.mxu0
      %v1257 = vadd.f32 %v1144, %v1256
      %v1258 = vpop.f32.mrf.mxu0
      %v1259 = vadd.f32 %v1146, %v1258
      %v1260 = vpop.f32.mrf.mxu0
      %v1261 = vadd.f32 %v1148, %v1260
      %v1262 = vpop.f32.mrf.mxu0
      %v1263 = vadd.f32 %v1150, %v1262
      %1264 = vmatprep.mubr.bf16.mxu0 %v720
      %1265 = vmatmul.mubr.bf16.gmra.mxu0 %v719
      %v1266 = vpop.f32.mrf.mxu0
      %v1267 = vadd.f32 %v1154, %v1266
      %v1268 = vpop.f32.mrf.mxu0
      %v1269 = vadd.f32 %v1156, %v1268
      %v1270 = vpop.f32.mrf.mxu0
      %v1271 = vadd.f32 %v1158, %v1270
      %v1272 = vpop.f32.mrf.mxu0
      %v1273 = vadd.f32 %v1160, %v1272
      %1274 = vmatprep.mubr.bf16.mxu0 %v724
      %1275 = vmatmul.mubr.bf16.gmra.mxu0 %v723
      %v1276 = vpop.f32.mrf.mxu0
      %v1277 = vadd.f32 %v1164, %v1276
      %v1278 = vpop.f32.mrf.mxu0
      %v1279 = vadd.f32 %v1166, %v1278
      %v1280 = vpop.f32.mrf.mxu0
      %v1281 = vadd.f32 %v1168, %v1280
      %v1282 = vpop.f32.mrf.mxu0
      %v1283 = vadd.f32 %v1170, %v1282
      %1284 = vmatprep.mubr.bf16.mxu0 %v728
      %1285 = vmatmul.mubr.bf16.gmra.mxu0 %v727
      %v1286 = vpop.f32.mrf.mxu0
      %v1287 = vadd.f32 %v1174, %v1286
      %v1288 = vpop.f32.mrf.mxu0
      %v1289 = vadd.f32 %v1176, %v1288
      %v1290 = vpop.f32.mrf.mxu0
      %v1291 = vadd.f32 %v1178, %v1290
      %v1292 = vpop.f32.mrf.mxu0
      %v1293 = vadd.f32 %v1180, %v1292
      %1294 = vmatprep.mubr.bf16.mxu0 %v732
      %1295 = vmatmul.mubr.bf16.gmra.mxu0 %v731
      %v1296 = vpop.f32.mrf.mxu0
      %v1297 = vadd.f32 %v1184, %v1296
      %v1298 = vpop.f32.mrf.mxu0
      %v1299 = vadd.f32 %v1186, %v1298
      %v1300 = vpop.f32.mrf.mxu0
      %v1301 = vadd.f32 %v1188, %v1300
      %v1302 = vpop.f32.mrf.mxu0
      %v1303 = vadd.f32 %v1190, %v1302
      %1304 = vmatprep.mubr.bf16.mxu0 %v736
      %1305 = vmatmul.mubr.bf16.gmra.mxu0 %v735
      %v1306 = vpop.f32.mrf.mxu0
      %v1307 = vadd.f32 %v1194, %v1306
      %v1308 = vpop.f32.mrf.mxu0
      %v1309 = vadd.f32 %v1196, %v1308
      %v1310 = vpop.f32.mrf.mxu0
      %v1311 = vadd.f32 %v1198, %v1310
      %v1312 = vpop.f32.mrf.mxu0
      %v1313 = vadd.f32 %v1200, %v1312
      %1314 = vdwg.mxu0
      %v1315 = vadd.f32 %v481, %v1237
      %v1316 = vadd.f32 %v482, %v1239
      %v1317 = vadd.f32 %v483, %v1241
      %v1318 = vadd.f32 %v484, %v1243
      %v1319 = vadd.f32 %v485, %v1247
      %v1320 = vadd.f32 %v486, %v1249
      %v1321 = vadd.f32 %v487, %v1251
      %v1322 = vadd.f32 %v488, %v1253
      %v1323 = vadd.f32 %v489, %v1257
      %v1324 = vadd.f32 %v490, %v1259
      %v1325 = vadd.f32 %v491, %v1261
      %v1326 = vadd.f32 %v492, %v1263
      %v1327 = vadd.f32 %v493, %v1267
      %v1328 = vadd.f32 %v494, %v1269
      %v1329 = vadd.f32 %v495, %v1271
      %v1330 = vadd.f32 %v496, %v1273
      %v1331 = vadd.f32 %v497, %v1277
      %v1332 = vadd.f32 %v498, %v1279
      %v1333 = vadd.f32 %v499, %v1281
      %v1334 = vadd.f32 %v500, %v1283
      %v1335 = vadd.f32 %v501, %v1287
      %v1336 = vadd.f32 %v502, %v1289
      %v1337 = vadd.f32 %v503, %v1291
      %v1338 = vadd.f32 %v504, %v1293
      %v1339 = vadd.f32 %v505, %v1297
      %v1340 = vadd.f32 %v506, %v1299
      %v1341 = vadd.f32 %v507, %v1301
      %v1342 = vadd.f32 %v508, %v1303
      %v1343 = vadd.f32 %v509, %v1307
      %v1344 = vadd.f32 %v510, %v1309
      %v1345 = vadd.f32 %v511, %v1311
      %v1346 = vadd.f32 %v512, %v1313
      %1347 = vst [vmem:[#allocation2] sm:$0xff] %v1315
      %1348 = vst [vmem:[#allocation2 + $0x8] sm:$0xff] %v1316
      %1349 = vst [vmem:[#allocation2 + $0x10] sm:$0xff] %v1317
      %1350 = vst [vmem:[#allocation2 + $0x18] sm:$0xff] %v1318
      %1351 = vst [vmem:[#allocation2 + $0x20] sm:$0xff] %v1319
      %1352 = vst [vmem:[#allocation2 + $0x28] sm:$0xff] %v1320
      %1353 = vst [vmem:[#allocation2 + $0x30] sm:$0xff] %v1321
      %1354 = vst [vmem:[#allocation2 + $0x38] sm:$0xff] %v1322
      %1355 = vst [vmem:[#allocation2 + $0x40] sm:$0xff] %v1323
      %1356 = vst [vmem:[#allocation2 + $0x48] sm:$0xff] %v1324
      %1357 = vst [vmem:[#allocation2 + $0x50] sm:$0xff] %v1325
      %1358 = vst [vmem:[#allocation2 + $0x58] sm:$0xff] %v1326
      %1359 = vst [vmem:[#allocation2 + $0x60] sm:$0xff] %v1327
      %1360 = vst [vmem:[#allocation2 + $0x68] sm:$0xff] %v1328
      %1361 = vst [vmem:[#allocation2 + $0x70] sm:$0xff] %v1329
      %1362 = vst [vmem:[#allocation2 + $0x78] sm:$0xff] %v1330
      %1363 = vst [vmem:[#allocation2 + $0x80] sm:$0xff] %v1331
      %1364 = vst [vmem:[#allocation2 + $0x88] sm:$0xff] %v1332
      %1365 = vst [vmem:[#allocation2 + $0x90] sm:$0xff] %v1333
      %1366 = vst [vmem:[#allocation2 + $0x98] sm:$0xff] %v1334
      %1367 = vst [vmem:[#allocation2 + $0xa0] sm:$0xff] %v1335
      %1368 = vst [vmem:[#allocation2 + $0xa8] sm:$0xff] %v1336
      %1369 = vst [vmem:[#allocation2 + $0xb0] sm:$0xff] %v1337
      %1370 = vst [vmem:[#allocation2 + $0xb8] sm:$0xff] %v1338
      %1371 = vst [vmem:[#allocation2 + $0xc0] sm:$0xff] %v1339
      %1372 = vst [vmem:[#allocation2 + $0xc8] sm:$0xff] %v1340
      %1373 = vst [vmem:[#allocation2 + $0xd0] sm:$0xff] %v1341
      %1374 = vst [vmem:[#allocation2 + $0xd8] sm:$0xff] %v1342
      %1375 = vst [vmem:[#allocation2 + $0xe0] sm:$0xff] %v1343
      %1376 = vst [vmem:[#allocation2 + $0xe8] sm:$0xff] %v1344
      %1377 = vst [vmem:[#allocation2 + $0xf0] sm:$0xff] %v1345
      %1378 = vst [vmem:[#allocation2 + $0xf8] sm:$0xff] %v1346
      // Predicated region
      $region49: #{bert_encoder_forward.17} parent=43 // pred_check
        %p1379 = pneg %p445
      $region50: #{bert_encoder_forward.17} parent=43 // pred_check_branch
        %1381 = sbr.rel (%p1379) target = $region52
      $region51: #{bert_encoder_forward.17} parent=43 // pred_region
        %v1382 = vld [vmem:[#allocation2] sm:$0xff]
        %v1383 = vld [vmem:[#allocation2 + $0x8] sm:$0xff]
        %v1384 = vld [vmem:[#allocation2 + $0x10] sm:$0xff]
        %v1385 = vld [vmem:[#allocation2 + $0x18] sm:$0xff]
        %v1386 = vld [vmem:[#allocation2 + $0x20] sm:$0xff]
        %v1387 = vld [vmem:[#allocation2 + $0x28] sm:$0xff]
        %v1388 = vld [vmem:[#allocation2 + $0x30] sm:$0xff]
        %v1389 = vld [vmem:[#allocation2 + $0x38] sm:$0xff]
        %v1390 = vld [vmem:[#allocation2 + $0x40] sm:$0xff]
        %v1391 = vld [vmem:[#allocation2 + $0x48] sm:$0xff]
        %v1392 = vld [vmem:[#allocation2 + $0x50] sm:$0xff]
        %v1393 = vld [vmem:[#allocation2 + $0x58] sm:$0xff]
        %v1394 = vld [vmem:[#allocation2 + $0x60] sm:$0xff]
        %v1395 = vld [vmem:[#allocation2 + $0x68] sm:$0xff]
        %v1396 = vld [vmem:[#allocation2 + $0x70] sm:$0xff]
        %v1397 = vld [vmem:[#allocation2 + $0x78] sm:$0xff]
        %v1398 = vld [vmem:[#allocation2 + $0x80] sm:$0xff]
        %v1399 = vld [vmem:[#allocation2 + $0x88] sm:$0xff]
        %v1400 = vld [vmem:[#allocation2 + $0x90] sm:$0xff]
        %v1401 = vld [vmem:[#allocation2 + $0x98] sm:$0xff]
        %v1402 = vld [vmem:[#allocation2 + $0xa0] sm:$0xff]
        %v1403 = vld [vmem:[#allocation2 + $0xa8] sm:$0xff]
        %v1404 = vld [vmem:[#allocation2 + $0xb0] sm:$0xff]
        %v1405 = vld [vmem:[#allocation2 + $0xb8] sm:$0xff]
        %v1406 = vld [vmem:[#allocation2 + $0xc0] sm:$0xff]
        %v1407 = vld [vmem:[#allocation2 + $0xc8] sm:$0xff]
        %v1408 = vld [vmem:[#allocation2 + $0xd0] sm:$0xff]
        %v1409 = vld [vmem:[#allocation2 + $0xd8] sm:$0xff]
        %v1410 = vld [vmem:[#allocation2 + $0xe0] sm:$0xff]
        %v1411 = vld [vmem:[#allocation2 + $0xe8] sm:$0xff]
        %v1412 = vld [vmem:[#allocation2 + $0xf0] sm:$0xff]
        %v1413 = vld [vmem:[#allocation2 + $0xf8] sm:$0xff]
        %v1414 = vld [vmem:[%s409] sm:$0x3]
        %v1416 = vlaneseq
        %v1417 = vshrl.u32 %v1416, 7
        %v1418 = vsub.s32 0, %v1417
        %v1419 = vrot.slane %v1414, %v1418
        %v1420 = vlaneseq
        %v1421 = vshrl.u32 %v1420, 7
        %v1422 = vsub.s32 1, %v1421
        %v1423 = vrot.slane %v1414, %v1422
        %v1426 = vadd.f32 %v1382, %v1419
        %v1427 = vadd.f32 %v1383, %v1423
        %v1428 = vadd.f32 %v1384, %v1419
        %v1429 = vadd.f32 %v1385, %v1423
        %v1430 = vadd.f32 %v1386, %v1419
        %v1431 = vadd.f32 %v1387, %v1423
        %v1432 = vadd.f32 %v1388, %v1419
        %v1433 = vadd.f32 %v1389, %v1423
        %v1434 = vadd.f32 %v1390, %v1419
        %v1435 = vadd.f32 %v1391, %v1423
        %v1436 = vadd.f32 %v1392, %v1419
        %v1437 = vadd.f32 %v1393, %v1423
        %v1438 = vadd.f32 %v1394, %v1419
        %v1439 = vadd.f32 %v1395, %v1423
        %v1440 = vadd.f32 %v1396, %v1419
        %v1441 = vadd.f32 %v1397, %v1423
        %v1442 = vadd.f32 %v1398, %v1419
        %v1443 = vadd.f32 %v1399, %v1423
        %v1444 = vadd.f32 %v1400, %v1419
        %v1445 = vadd.f32 %v1401, %v1423
        %v1446 = vadd.f32 %v1402, %v1419
        %v1447 = vadd.f32 %v1403, %v1423
        %v1448 = vadd.f32 %v1404, %v1419
        %v1449 = vadd.f32 %v1405, %v1423
        %v1450 = vadd.f32 %v1406, %v1419
        %v1451 = vadd.f32 %v1407, %v1423
        %v1452 = vadd.f32 %v1408, %v1419
        %v1453 = vadd.f32 %v1409, %v1423
        %v1454 = vadd.f32 %v1410, %v1419
        %v1455 = vadd.f32 %v1411, %v1423
        %v1456 = vadd.f32 %v1412, %v1419
        %v1457 = vadd.f32 %v1413, %v1423
        %v1458 = vld [vmem:[%s420] sm:$0xff]
        %v1459 = vld [vmem:[%s420 + $0x8] sm:$0xff]
        %v1460 = vld [vmem:[%s420 + $0x10] sm:$0xff]
        %v1461 = vld [vmem:[%s420 + $0x18] sm:$0xff]
        %v1462 = vld [vmem:[%s420 + $0x20] sm:$0xff]
        %v1463 = vld [vmem:[%s420 + $0x28] sm:$0xff]
        %v1464 = vld [vmem:[%s420 + $0x30] sm:$0xff]
        %v1465 = vld [vmem:[%s420 + $0x38] sm:$0xff]
        %v1466 = vld [vmem:[%s420 + $0x40] sm:$0xff]
        %v1467 = vld [vmem:[%s420 + $0x48] sm:$0xff]
        %v1468 = vld [vmem:[%s420 + $0x50] sm:$0xff]
        %v1469 = vld [vmem:[%s420 + $0x58] sm:$0xff]
        %v1470 = vld [vmem:[%s420 + $0x60] sm:$0xff]
        %v1471 = vld [vmem:[%s420 + $0x68] sm:$0xff]
        %v1472 = vld [vmem:[%s420 + $0x70] sm:$0xff]
        %v1473 = vld [vmem:[%s420 + $0x78] sm:$0xff]
        %v1474 = vunpack.c.l.bf16 %v1458
        %v1475 = vunpack.c.h.bf16 %v1458
        %v1476 = vunpack.c.l.bf16 %v1459
        %v1477 = vunpack.c.h.bf16 %v1459
        %v1478 = vunpack.c.l.bf16 %v1460
        %v1479 = vunpack.c.h.bf16 %v1460
        %v1480 = vunpack.c.l.bf16 %v1461
        %v1481 = vunpack.c.h.bf16 %v1461
        %v1482 = vunpack.c.l.bf16 %v1462
        %v1483 = vunpack.c.h.bf16 %v1462
        %v1484 = vunpack.c.l.bf16 %v1463
        %v1485 = vunpack.c.h.bf16 %v1463
        %v1486 = vunpack.c.l.bf16 %v1464
        %v1487 = vunpack.c.h.bf16 %v1464
        %v1488 = vunpack.c.l.bf16 %v1465
        %v1489 = vunpack.c.h.bf16 %v1465
        %v1490 = vunpack.c.l.bf16 %v1466
        %v1491 = vunpack.c.h.bf16 %v1466
        %v1492 = vunpack.c.l.bf16 %v1467
        %v1493 = vunpack.c.h.bf16 %v1467
        %v1494 = vunpack.c.l.bf16 %v1468
        %v1495 = vunpack.c.h.bf16 %v1468
        %v1496 = vunpack.c.l.bf16 %v1469
        %v1497 = vunpack.c.h.bf16 %v1469
        %v1498 = vunpack.c.l.bf16 %v1470
        %v1499 = vunpack.c.h.bf16 %v1470
        %v1500 = vunpack.c.l.bf16 %v1471
        %v1501 = vunpack.c.h.bf16 %v1471
        %v1502 = vunpack.c.l.bf16 %v1472
        %v1503 = vunpack.c.h.bf16 %v1472
        %v1504 = vunpack.c.l.bf16 %v1473
        %v1505 = vunpack.c.h.bf16 %v1473
        %v1506 = vadd.f32 %v1426, %v1474
        %v1507 = vadd.f32 %v1427, %v1475
        %v1508 = vadd.f32 %v1428, %v1476
        %v1509 = vadd.f32 %v1429, %v1477
        %v1510 = vadd.f32 %v1430, %v1478
        %v1511 = vadd.f32 %v1431, %v1479
        %v1512 = vadd.f32 %v1432, %v1480
        %v1513 = vadd.f32 %v1433, %v1481
        %v1514 = vadd.f32 %v1434, %v1482
        %v1515 = vadd.f32 %v1435, %v1483
        %v1516 = vadd.f32 %v1436, %v1484
        %v1517 = vadd.f32 %v1437, %v1485
        %v1518 = vadd.f32 %v1438, %v1486
        %v1519 = vadd.f32 %v1439, %v1487
        %v1520 = vadd.f32 %v1440, %v1488
        %v1521 = vadd.f32 %v1441, %v1489
        %v1522 = vadd.f32 %v1442, %v1490
        %v1523 = vadd.f32 %v1443, %v1491
        %v1524 = vadd.f32 %v1444, %v1492
        %v1525 = vadd.f32 %v1445, %v1493
        %v1526 = vadd.f32 %v1446, %v1494
        %v1527 = vadd.f32 %v1447, %v1495
        %v1528 = vadd.f32 %v1448, %v1496
        %v1529 = vadd.f32 %v1449, %v1497
        %v1530 = vadd.f32 %v1450, %v1498
        %v1531 = vadd.f32 %v1451, %v1499
        %v1532 = vadd.f32 %v1452, %v1500
        %v1533 = vadd.f32 %v1453, %v1501
        %v1534 = vadd.f32 %v1454, %v1502
        %v1535 = vadd.f32 %v1455, %v1503
        %v1536 = vadd.f32 %v1456, %v1504
        %v1537 = vadd.f32 %v1457, %v1505
        %v1538 = vadd.f32 %v1506, %v1507
        %1539 = vadd.xlane.f32.xlu0 %v1538
        %v1540 = vpop.xlane.xlu0 %1539
        %v1541 = vadd.f32 %v1508, %v1509
        %1542 = vadd.xlane.f32.xlu0 %v1541
        %v1543 = vpop.xlane.xlu0 %1542
        %v1544 = vadd.f32 %v1510, %v1511
        %1545 = vadd.xlane.f32.xlu0 %v1544
        %v1546 = vpop.xlane.xlu0 %1545
        %v1547 = vadd.f32 %v1512, %v1513
        %1548 = vadd.xlane.f32.xlu0 %v1547
        %v1549 = vpop.xlane.xlu0 %1548
        %v1550 = vadd.f32 %v1514, %v1515
        %1551 = vadd.xlane.f32.xlu0 %v1550
        %v1552 = vpop.xlane.xlu0 %1551
        %v1553 = vadd.f32 %v1516, %v1517
        %1554 = vadd.xlane.f32.xlu0 %v1553
        %v1555 = vpop.xlane.xlu0 %1554
        %v1556 = vadd.f32 %v1518, %v1519
        %1557 = vadd.xlane.f32.xlu0 %v1556
        %v1558 = vpop.xlane.xlu0 %1557
        %v1559 = vadd.f32 %v1520, %v1521
        %1560 = vadd.xlane.f32.xlu0 %v1559
        %v1561 = vpop.xlane.xlu0 %1560
        %v1562 = vadd.f32 %v1522, %v1523
        %1563 = vadd.xlane.f32.xlu0 %v1562
        %v1564 = vpop.xlane.xlu0 %1563
        %v1565 = vadd.f32 %v1524, %v1525
        %1566 = vadd.xlane.f32.xlu0 %v1565
        %v1567 = vpop.xlane.xlu0 %1566
        %v1568 = vadd.f32 %v1526, %v1527
        %1569 = vadd.xlane.f32.xlu0 %v1568
        %v1570 = vpop.xlane.xlu0 %1569
        %v1571 = vadd.f32 %v1528, %v1529
        %1572 = vadd.xlane.f32.xlu0 %v1571
        %v1573 = vpop.xlane.xlu0 %1572
        %v1574 = vadd.f32 %v1530, %v1531
        %1575 = vadd.xlane.f32.xlu0 %v1574
        %v1576 = vpop.xlane.xlu0 %1575
        %v1577 = vadd.f32 %v1532, %v1533
        %1578 = vadd.xlane.f32.xlu0 %v1577
        %v1579 = vpop.xlane.xlu0 %1578
        %v1580 = vadd.f32 %v1534, %v1535
        %1581 = vadd.xlane.f32.xlu0 %v1580
        %v1582 = vpop.xlane.xlu0 %1581
        %v1583 = vadd.f32 %v1536, %v1537
        %1584 = vadd.xlane.f32.xlu0 %v1583
        %v1585 = vpop.xlane.xlu0 %1584
        %v1586 = vrcp.pop 256.0
        %v1587 = vmul.f32 %v1540, %v1586
        %v1588 = vmul.f32 %v1543, %v1586
        %v1589 = vmul.f32 %v1546, %v1586
        %v1590 = vmul.f32 %v1549, %v1586
        %v1591 = vmul.f32 %v1552, %v1586
        %v1592 = vmul.f32 %v1555, %v1586
        %v1593 = vmul.f32 %v1558, %v1586
        %v1594 = vmul.f32 %v1561, %v1586
        %v1595 = vmul.f32 %v1564, %v1586
        %v1596 = vmul.f32 %v1567, %v1586
        %v1597 = vmul.f32 %v1570, %v1586
        %v1598 = vmul.f32 %v1573, %v1586
        %v1599 = vmul.f32 %v1576, %v1586
        %v1600 = vmul.f32 %v1579, %v1586
        %v1601 = vmul.f32 %v1582, %v1586
        %v1602 = vmul.f32 %v1585, %v1586
        %v1603 = vsub.f32 %v1506, %v1587
        %v1604 = vsub.f32 %v1507, %v1587
        %v1605 = vsub.f32 %v1508, %v1588
        %v1606 = vsub.f32 %v1509, %v1588
        %v1607 = vsub.f32 %v1510, %v1589
        %v1608 = vsub.f32 %v1511, %v1589
        %v1609 = vsub.f32 %v1512, %v1590
        %v1610 = vsub.f32 %v1513, %v1590
        %v1611 = vsub.f32 %v1514, %v1591
        %v1612 = vsub.f32 %v1515, %v1591
        %v1613 = vsub.f32 %v1516, %v1592
        %v1614 = vsub.f32 %v1517, %v1592
        %v1615 = vsub.f32 %v1518, %v1593
        %v1616 = vsub.f32 %v1519, %v1593
        %v1617 = vsub.f32 %v1520, %v1594
        %v1618 = vsub.f32 %v1521, %v1594
        %v1619 = vsub.f32 %v1522, %v1595
        %v1620 = vsub.f32 %v1523, %v1595
        %v1621 = vsub.f32 %v1524, %v1596
        %v1622 = vsub.f32 %v1525, %v1596
        %v1623 = vsub.f32 %v1526, %v1597
        %v1624 = vsub.f32 %v1527, %v1597
        %v1625 = vsub.f32 %v1528, %v1598
        %v1626 = vsub.f32 %v1529, %v1598
        %v1627 = vsub.f32 %v1530, %v1599
        %v1628 = vsub.f32 %v1531, %v1599
        %v1629 = vsub.f32 %v1532, %v1600
        %v1630 = vsub.f32 %v1533, %v1600
        %v1631 = vsub.f32 %v1534, %v1601
        %v1632 = vsub.f32 %v1535, %v1601
        %v1633 = vsub.f32 %v1536, %v1602
        %v1634 = vsub.f32 %v1537, %v1602
        %v1635 = vmul.f32 %v1603, %v1603
        %v1636 = vmul.f32 %v1604, %v1604
        %v1637 = vmul.f32 %v1605, %v1605
        %v1638 = vmul.f32 %v1606, %v1606
        %v1639 = vmul.f32 %v1607, %v1607
        %v1640 = vmul.f32 %v1608, %v1608
        %v1641 = vmul.f32 %v1609, %v1609
        %v1642 = vmul.f32 %v1610, %v1610
        %v1643 = vmul.f32 %v1611, %v1611
        %v1644 = vmul.f32 %v1612, %v1612
        %v1645 = vmul.f32 %v1613, %v1613
        %v1646 = vmul.f32 %v1614, %v1614
        %v1647 = vmul.f32 %v1615, %v1615
        %v1648 = vmul.f32 %v1616, %v1616
        %v1649 = vmul.f32 %v1617, %v1617
        %v1650 = vmul.f32 %v1618, %v1618
        %v1651 = vmul.f32 %v1619, %v1619
        %v1652 = vmul.f32 %v1620, %v1620
        %v1653 = vmul.f32 %v1621, %v1621
        %v1654 = vmul.f32 %v1622, %v1622
        %v1655 = vmul.f32 %v1623, %v1623
        %v1656 = vmul.f32 %v1624, %v1624
        %v1657 = vmul.f32 %v1625, %v1625
        %v1658 = vmul.f32 %v1626, %v1626
        %v1659 = vmul.f32 %v1627, %v1627
        %v1660 = vmul.f32 %v1628, %v1628
        %v1661 = vmul.f32 %v1629, %v1629
        %v1662 = vmul.f32 %v1630, %v1630
        %v1663 = vmul.f32 %v1631, %v1631
        %v1664 = vmul.f32 %v1632, %v1632
        %v1665 = vmul.f32 %v1633, %v1633
        %v1666 = vmul.f32 %v1634, %v1634
        %v1667 = vadd.f32 %v1635, %v1636
        %1668 = vadd.xlane.f32.xlu0 %v1667
        %v1669 = vpop.xlane.xlu0 %1668
        %v1670 = vadd.f32 %v1637, %v1638
        %1671 = vadd.xlane.f32.xlu0 %v1670
        %v1672 = vpop.xlane.xlu0 %1671
        %v1673 = vadd.f32 %v1639, %v1640
        %1674 = vadd.xlane.f32.xlu0 %v1673
        %v1675 = vpop.xlane.xlu0 %1674
        %v1676 = vadd.f32 %v1641, %v1642
        %1677 = vadd.xlane.f32.xlu0 %v1676
        %v1678 = vpop.xlane.xlu0 %1677
        %v1679 = vadd.f32 %v1643, %v1644
        %1680 = vadd.xlane.f32.xlu0 %v1679
        %v1681 = vpop.xlane.xlu0 %1680
        %v1682 = vadd.f32 %v1645, %v1646
        %1683 = vadd.xlane.f32.xlu0 %v1682
        %v1684 = vpop.xlane.xlu0 %1683
        %v1685 = vadd.f32 %v1647, %v1648
        %1686 = vadd.xlane.f32.xlu0 %v1685
        %v1687 = vpop.xlane.xlu0 %1686
        %v1688 = vadd.f32 %v1649, %v1650
        %1689 = vadd.xlane.f32.xlu0 %v1688
        %v1690 = vpop.xlane.xlu0 %1689
        %v1691 = vadd.f32 %v1651, %v1652
        %1692 = vadd.xlane.f32.xlu0 %v1691
        %v1693 = vpop.xlane.xlu0 %1692
        %v1694 = vadd.f32 %v1653, %v1654
        %1695 = vadd.xlane.f32.xlu0 %v1694
        %v1696 = vpop.xlane.xlu0 %1695
        %v1697 = vadd.f32 %v1655, %v1656
        %1698 = vadd.xlane.f32.xlu0 %v1697
        %v1699 = vpop.xlane.xlu0 %1698
        %v1700 = vadd.f32 %v1657, %v1658
        %1701 = vadd.xlane.f32.xlu0 %v1700
        %v1702 = vpop.xlane.xlu0 %1701
        %v1703 = vadd.f32 %v1659, %v1660
        %1704 = vadd.xlane.f32.xlu0 %v1703
        %v1705 = vpop.xlane.xlu0 %1704
        %v1706 = vadd.f32 %v1661, %v1662
        %1707 = vadd.xlane.f32.xlu0 %v1706
        %v1708 = vpop.xlane.xlu0 %1707
        %v1709 = vadd.f32 %v1663, %v1664
        %1710 = vadd.xlane.f32.xlu0 %v1709
        %v1711 = vpop.xlane.xlu0 %1710
        %v1712 = vadd.f32 %v1665, %v1666
        %1713 = vadd.xlane.f32.xlu0 %v1712
        %v1714 = vpop.xlane.xlu0 %1713
        %v1715 = vmul.f32 %v1669, %v1586
        %v1716 = vmul.f32 %v1672, %v1586
        %v1717 = vmul.f32 %v1675, %v1586
        %v1718 = vmul.f32 %v1678, %v1586
        %v1719 = vmul.f32 %v1681, %v1586
        %v1720 = vmul.f32 %v1684, %v1586
        %v1721 = vmul.f32 %v1687, %v1586
        %v1722 = vmul.f32 %v1690, %v1586
        %v1723 = vmul.f32 %v1693, %v1586
        %v1724 = vmul.f32 %v1696, %v1586
        %v1725 = vmul.f32 %v1699, %v1586
        %v1726 = vmul.f32 %v1702, %v1586
        %v1727 = vmul.f32 %v1705, %v1586
        %v1728 = vmul.f32 %v1708, %v1586
        %v1729 = vmul.f32 %v1711, %v1586
        %v1730 = vmul.f32 %v1714, %v1586
        %v1731 = vadd.f32 %v1715, 1e-12
        %v1732 = vadd.f32 %v1716, 1e-12
        %v1733 = vadd.f32 %v1717, 1e-12
        %v1734 = vadd.f32 %v1718, 1e-12
        %v1735 = vadd.f32 %v1719, 1e-12
        %v1736 = vadd.f32 %v1720, 1e-12
        %v1737 = vadd.f32 %v1721, 1e-12
        %v1738 = vadd.f32 %v1722, 1e-12
        %v1739 = vadd.f32 %v1723, 1e-12
        %v1740 = vadd.f32 %v1724, 1e-12
        %v1741 = vadd.f32 %v1725, 1e-12
        %v1742 = vadd.f32 %v1726, 1e-12
        %v1743 = vadd.f32 %v1727, 1e-12
        %v1744 = vadd.f32 %v1728, 1e-12
        %v1745 = vadd.f32 %v1729, 1e-12
        %v1746 = vadd.f32 %v1730, 1e-12
        %v1747 = vrsqrt.pop %v1731
        %v1748 = vrsqrt.pop %v1732
        %v1749 = vrsqrt.pop %v1733
        %v1750 = vrsqrt.pop %v1734
        %v1751 = vrsqrt.pop %v1735
        %v1752 = vrsqrt.pop %v1736
        %v1753 = vrsqrt.pop %v1737
        %v1754 = vrsqrt.pop %v1738
        %v1755 = vrsqrt.pop %v1739
        %v1756 = vrsqrt.pop %v1740
        %v1757 = vrsqrt.pop %v1741
        %v1758 = vrsqrt.pop %v1742
        %v1759 = vrsqrt.pop %v1743
        %v1760 = vrsqrt.pop %v1744
        %v1761 = vrsqrt.pop %v1745
        %v1762 = vrsqrt.pop %v1746
        %v1763 = vmul.f32 %v1603, %v1747
        %v1764 = vmul.f32 %v1604, %v1747
        %v1765 = vmul.f32 %v1605, %v1748
        %v1766 = vmul.f32 %v1606, %v1748
        %v1767 = vmul.f32 %v1607, %v1749
        %v1768 = vmul.f32 %v1608, %v1749
        %v1769 = vmul.f32 %v1609, %v1750
        %v1770 = vmul.f32 %v1610, %v1750
        %v1771 = vmul.f32 %v1611, %v1751
        %v1772 = vmul.f32 %v1612, %v1751
        %v1773 = vmul.f32 %v1613, %v1752
        %v1774 = vmul.f32 %v1614, %v1752
        %v1775 = vmul.f32 %v1615, %v1753
        %v1776 = vmul.f32 %v1616, %v1753
        %v1777 = vmul.f32 %v1617, %v1754
        %v1778 = vmul.f32 %v1618, %v1754
        %v1779 = vmul.f32 %v1619, %v1755
        %v1780 = vmul.f32 %v1620, %v1755
        %v1781 = vmul.f32 %v1621, %v1756
        %v1782 = vmul.f32 %v1622, %v1756
        %v1783 = vmul.f32 %v1623, %v1757
        %v1784 = vmul.f32 %v1624, %v1757
        %v1785 = vmul.f32 %v1625, %v1758
        %v1786 = vmul.f32 %v1626, %v1758
        %v1787 = vmul.f32 %v1627, %v1759
        %v1788 = vmul.f32 %v1628, %v1759
        %v1789 = vmul.f32 %v1629, %v1760
        %v1790 = vmul.f32 %v1630, %v1760
        %v1791 = vmul.f32 %v1631, %v1761
        %v1792 = vmul.f32 %v1632, %v1761
        %v1793 = vmul.f32 %v1633, %v1762
        %v1794 = vmul.f32 %v1634, %v1762
        %v1795 = vld [vmem:[%s426] sm:$0x3]
        %v1797 = vlaneseq
        %v1798 = vshrl.u32 %v1797, 7
        %v1799 = vsub.s32 0, %v1798
        %v1800 = vrot.slane %v1795, %v1799
        %v1801 = vlaneseq
        %v1802 = vshrl.u32 %v1801, 7
        %v1803 = vsub.s32 1, %v1802
        %v1804 = vrot.slane %v1795, %v1803
        %v1807 = vmul.f32 %v1763, %v1800
        %v1808 = vmul.f32 %v1764, %v1804
        %v1809 = vmul.f32 %v1765, %v1800
        %v1810 = vmul.f32 %v1766, %v1804
        %v1811 = vmul.f32 %v1767, %v1800
        %v1812 = vmul.f32 %v1768, %v1804
        %v1813 = vmul.f32 %v1769, %v1800
        %v1814 = vmul.f32 %v1770, %v1804
        %v1815 = vmul.f32 %v1771, %v1800
        %v1816 = vmul.f32 %v1772, %v1804
        %v1817 = vmul.f32 %v1773, %v1800
        %v1818 = vmul.f32 %v1774, %v1804
        %v1819 = vmul.f32 %v1775, %v1800
        %v1820 = vmul.f32 %v1776, %v1804
        %v1821 = vmul.f32 %v1777, %v1800
        %v1822 = vmul.f32 %v1778, %v1804
        %v1823 = vmul.f32 %v1779, %v1800
        %v1824 = vmul.f32 %v1780, %v1804
        %v1825 = vmul.f32 %v1781, %v1800
        %v1826 = vmul.f32 %v1782, %v1804
        %v1827 = vmul.f32 %v1783, %v1800
        %v1828 = vmul.f32 %v1784, %v1804
        %v1829 = vmul.f32 %v1785, %v1800
        %v1830 = vmul.f32 %v1786, %v1804
        %v1831 = vmul.f32 %v1787, %v1800
        %v1832 = vmul.f32 %v1788, %v1804
        %v1833 = vmul.f32 %v1789, %v1800
        %v1834 = vmul.f32 %v1790, %v1804
        %v1835 = vmul.f32 %v1791, %v1800
        %v1836 = vmul.f32 %v1792, %v1804
        %v1837 = vmul.f32 %v1793, %v1800
        %v1838 = vmul.f32 %v1794, %v1804
        %v1839 = vld [vmem:[%s431] sm:$0x3]
        %v1841 = vlaneseq
        %v1842 = vshrl.u32 %v1841, 7
        %v1843 = vsub.s32 0, %v1842
        %v1844 = vrot.slane %v1839, %v1843
        %v1845 = vlaneseq
        %v1846 = vshrl.u32 %v1845, 7
        %v1847 = vsub.s32 1, %v1846
        %v1848 = vrot.slane %v1839, %v1847
        %v1851 = vadd.f32 %v1807, %v1844
        %v1852 = vadd.f32 %v1808, %v1848
        %v1853 = vadd.f32 %v1809, %v1844
        %v1854 = vadd.f32 %v1810, %v1848
        %v1855 = vadd.f32 %v1811, %v1844
        %v1856 = vadd.f32 %v1812, %v1848
        %v1857 = vadd.f32 %v1813, %v1844
        %v1858 = vadd.f32 %v1814, %v1848
        %v1859 = vadd.f32 %v1815, %v1844
        %v1860 = vadd.f32 %v1816, %v1848
        %v1861 = vadd.f32 %v1817, %v1844
        %v1862 = vadd.f32 %v1818, %v1848
        %v1863 = vadd.f32 %v1819, %v1844
        %v1864 = vadd.f32 %v1820, %v1848
        %v1865 = vadd.f32 %v1821, %v1844
        %v1866 = vadd.f32 %v1822, %v1848
        %v1867 = vadd.f32 %v1823, %v1844
        %v1868 = vadd.f32 %v1824, %v1848
        %v1869 = vadd.f32 %v1825, %v1844
        %v1870 = vadd.f32 %v1826, %v1848
        %v1871 = vadd.f32 %v1827, %v1844
        %v1872 = vadd.f32 %v1828, %v1848
        %v1873 = vadd.f32 %v1829, %v1844
        %v1874 = vadd.f32 %v1830, %v1848
        %v1875 = vadd.f32 %v1831, %v1844
        %v1876 = vadd.f32 %v1832, %v1848
        %v1877 = vadd.f32 %v1833, %v1844
        %v1878 = vadd.f32 %v1834, %v1848
        %v1879 = vadd.f32 %v1835, %v1844
        %v1880 = vadd.f32 %v1836, %v1848
        %v1881 = vadd.f32 %v1837, %v1844
        %v1882 = vadd.f32 %v1838, %v1848
        %v1883 = vpack.c.bf16 %v1853, %v1851
        %v1884 = vpack.c.bf16 %v1854, %v1852
        %v1885 = vpack.c.bf16 %v1857, %v1855
        %v1886 = vpack.c.bf16 %v1858, %v1856
        %v1887 = vpack.c.bf16 %v1861, %v1859
        %v1888 = vpack.c.bf16 %v1862, %v1860
        %v1889 = vpack.c.bf16 %v1865, %v1863
        %v1890 = vpack.c.bf16 %v1866, %v1864
        %v1891 = vpack.c.bf16 %v1869, %v1867
        %v1892 = vpack.c.bf16 %v1870, %v1868
        %v1893 = vpack.c.bf16 %v1873, %v1871
        %v1894 = vpack.c.bf16 %v1874, %v1872
        %v1895 = vpack.c.bf16 %v1877, %v1875
        %v1896 = vpack.c.bf16 %v1878, %v1876
        %v1897 = vpack.c.bf16 %v1881, %v1879
        %v1898 = vpack.c.bf16 %v1882, %v1880
        %v1915 = vunpack.c.l.b16 %v1883
        %v1916 = vunpack.c.l.b16 %v1884
        %v1917 = vunpack.c.h.b16 %v1883
        %v1918 = vunpack.c.h.b16 %v1884
        %v1919 = vunpack.c.l.b16 %v1885
        %v1920 = vunpack.c.l.b16 %v1886
        %v1921 = vunpack.c.h.b16 %v1885
        %v1922 = vunpack.c.h.b16 %v1886
        %v1923 = vunpack.c.l.b16 %v1887
        %v1924 = vunpack.c.l.b16 %v1888
        %v1925 = vunpack.c.h.b16 %v1887
        %v1926 = vunpack.c.h.b16 %v1888
        %v1927 = vunpack.c.l.b16 %v1889
        %v1928 = vunpack.c.l.b16 %v1890
        %v1929 = vunpack.c.h.b16 %v1889
        %v1930 = vunpack.c.h.b16 %v1890
        %v1931 = vunpack.c.l.b16 %v1891
        %v1932 = vunpack.c.l.b16 %v1892
        %v1933 = vunpack.c.h.b16 %v1891
        %v1934 = vunpack.c.h.b16 %v1892
        %v1935 = vunpack.c.l.b16 %v1893
        %v1936 = vunpack.c.l.b16 %v1894
        %v1937 = vunpack.c.h.b16 %v1893
        %v1938 = vunpack.c.h.b16 %v1894
        %v1939 = vunpack.c.l.b16 %v1895
        %v1940 = vunpack.c.l.b16 %v1896
        %v1941 = vunpack.c.h.b16 %v1895
        %v1942 = vunpack.c.h.b16 %v1896
        %v1943 = vunpack.c.l.b16 %v1897
        %v1944 = vunpack.c.l.b16 %v1898
        %v1945 = vunpack.c.h.b16 %v1897
        %v1946 = vunpack.c.h.b16 %v1898
        %v1947 = vpack.c.b16 %v1916, %v1915
        %v1948 = vpack.c.b16 %v1918, %v1917
        %v1949 = vpack.c.b16 %v1920, %v1919
        %v1950 = vpack.c.b16 %v1922, %v1921
        %v1951 = vpack.c.b16 %v1924, %v1923
        %v1952 = vpack.c.b16 %v1926, %v1925
        %v1953 = vpack.c.b16 %v1928, %v1927
        %v1954 = vpack.c.b16 %v1930, %v1929
        %v1955 = vpack.c.b16 %v1932, %v1931
        %v1956 = vpack.c.b16 %v1934, %v1933
        %v1957 = vpack.c.b16 %v1936, %v1935
        %v1958 = vpack.c.b16 %v1938, %v1937
        %v1959 = vpack.c.b16 %v1940, %v1939
        %v1960 = vpack.c.b16 %v1942, %v1941
        %v1961 = vpack.c.b16 %v1944, %v1943
        %v1962 = vpack.c.b16 %v1946, %v1945
        %1979 = vst [vmem:[%s442] sm:$0xff] %v1947
        %1980 = vst [vmem:[%s442 + $0x8] sm:$0xff] %v1948
        %1981 = vst [vmem:[%s442 + $0x10] sm:$0xff] %v1949
        %1982 = vst [vmem:[%s442 + $0x18] sm:$0xff] %v1950
        %1983 = vst [vmem:[%s442 + $0x20] sm:$0xff] %v1951
        %1984 = vst [vmem:[%s442 + $0x28] sm:$0xff] %v1952
        %1985 = vst [vmem:[%s442 + $0x30] sm:$0xff] %v1953
        %1986 = vst [vmem:[%s442 + $0x38] sm:$0xff] %v1954
        %1987 = vst [vmem:[%s442 + $0x40] sm:$0xff] %v1955
        %1988 = vst [vmem:[%s442 + $0x48] sm:$0xff] %v1956
        %1989 = vst [vmem:[%s442 + $0x50] sm:$0xff] %v1957
        %1990 = vst [vmem:[%s442 + $0x58] sm:$0xff] %v1958
        %1991 = vst [vmem:[%s442 + $0x60] sm:$0xff] %v1959
        %1992 = vst [vmem:[%s442 + $0x68] sm:$0xff] %v1960
        %1993 = vst [vmem:[%s442 + $0x70] sm:$0xff] %v1961
        %1994 = vst [vmem:[%s442 + $0x78] sm:$0xff] %v1962
      $region52: #{bert_encoder_forward.17} parent=43 // pred_fallthru
        _
      %s1995 = smul.u32 16, %s22
      %s1996 = smul.u32 2, %s23
      %p1997 = scmp.lt.s32.totalorder %s1995, 31
      %s1998 = scalar_select %p1997, %s1995, 31
      %p1999 = scmp.lt.s32.totalorder %s1996, 1
      %s2000 = scalar_select %p1999, %s1996, 1
      %s2001 = smul.addr %s1998, 2
      %s2002 = sadd.s32 %s2000, %s2001
      %s2003 = smul.addr %s2002, 4
      %s2004 = scalar_lea.vmem %s6, %s2003
      // Predicated region
      $region53: #{bert_encoder_forward.17} parent=43 // pred_check
        %p2005 = pneg %p218
      $region54: #{bert_encoder_forward.17} parent=43 // pred_check_branch
        %2007 = sbr.rel (%p2005) target = $region56
      $region55: #{bert_encoder_forward.17} parent=43 // pred_region
        %s2008 = smul.u32 16, %s22
        %s2009 = smul.u32 2, %s23
      $region56: #{bert_encoder_forward.17} parent=43 // pred_fallthru
        _
    $region44: #{bert_encoder_forward.17} parent=5 // pred_fallthru
      _
    %p2010 = scmp.le.s32.totalorder 2, %s12
    // Predicated region
    $region57: #{bert_encoder_forward.17} parent=5 // pred_check
      %p2011 = pneg %p2010
    $region58: #{bert_encoder_forward.17} parent=5 // pred_check_branch
      %2013 = sbr.rel (%p2011) target = $region60
    $region59: #{bert_encoder_forward.17} parent=5 // pred_region
      %s2014 = ssub.s32 %s12, 2
      // Predicated region
      $region61: #{bert_encoder_forward.17} parent=59 // pred_check
        %p2015 = pneg %p224
      $region62: #{bert_encoder_forward.17} parent=59 // pred_check_branch
        %2017 = sbr.rel (%p2015) target = $region64
      $region63: #{bert_encoder_forward.17} parent=59 // pred_region
        %s2018 = smul.u32 16, %s25
        %s2019 = smul.u32 2, %s26
        %p2020 = scmp.lt.s32.totalorder %s2018, 31
        %s2021 = scalar_select %p2020, %s2018, 31
        %p2022 = scmp.lt.s32.totalorder %s2019, 1
        %s2023 = scalar_select %p2022, %s2019, 1
        %s2024 = smul.addr %s2021, 2
        %s2025 = sadd.s32 %s2023, %s2024
        %s2026 = smul.addr %s2025, 4
        %s2027 = scalar_lea.vmem %s6, %s2026
      $region64: #{bert_encoder_forward.17} parent=59 // pred_fallthru
        _
    $region60: #{bert_encoder_forward.17} parent=5 // pred_fallthru
      _
  $region6: #{bert_encoder_forward.17} parent=0 // loop_footer
    %s16 = sadd.s32 1, %s12
  $region7: #{bert_encoder_forward.17} parent=0 // loop_footer_branch
    %11 = sbr.rel target = $region3
  $region8: #{bert_encoder_forward.17} parent=0 // loop_exit
    _

// kernel: bert_encoder_forward.16
$region0: #{bert_encoder_forward.16}
  #allocation0 [shape = 'u32[]', space=smem, size = 0x4, offset = 0x4, fixed_abs, tag = 'smem constant byte address 0x4 - core index']
  #allocation1 [shape = 'u32[144,128]{1,0:T(1,128)}', space=vmem, size = 0x12000, scoped, tag = 'internal scratch']
  #allocation2 [shape = 'f32[128,512]{1,0:T(8,128)}', space=vmem, size = 0x40000, scoped, tag = 'scratch operand']
  %s0 = inlined_call_operand.vmem [shape: bf16[256,256], index: 0, kind: input, shape index: {}]
  %s1 = inlined_call_operand.vmem [shape: bf16[256,512], index: 1, kind: input, shape index: {}]
  %s2 = inlined_call_operand.vmem [shape: f32[1,512], index: 2, kind: input, shape index: {}]
  %s3 = inlined_call_operand.vmem [shape: bf16[256,512], index: 3, kind: output, shape index: {}]
  %s4 = sld [smem:[#allocation0]]
  $region53: #{bert_encoder_forward.16} parent=0
    _
  %s6 = ssub.s32 1, %s4
  %s7 = scalar_select 0, %s6, %s4
  loop: start=0, step=1, limit=4
  $region2: #{bert_encoder_forward.16} parent=0 // loop_pre_header
    _
  $region3: #{bert_encoder_forward.16} parent=0 // loop_header
    %s9 = sphi 0, %s13
    %p10 = scmp.ge.s32.totalorder %s9, 4
    %s16 = sphi 0, %s35
    %s17 = sphi 0, %s31
    %s18 = sphi 0, %s27
    %s19 = sphi 0, %s16
    %s20 = sphi 0, %s17
    %s21 = sphi 0, %s18
    %s22 = sphi 0, %s19
    %s23 = sphi 0, %s20
    %s24 = sphi 0, %s21
    %s40 = sphi 0, %s42
    %s43 = sphi 0, %s40
    %s44 = sphi 0, %s43
    %s60 = sphi 0, %s44
    %s68 = sphi 0, %s70
    %s71 = sphi 0, %s68
    %s72 = sphi 0, %s71
    %s88 = sphi 0, %s72
    %s94 = sphi 0, %s96
    %s97 = sphi 0, %s94
    %s98 = sphi 0, %s97
    %s114 = sphi 0, %s98
    %s122 = sphi 0, %s124
    %s125 = sphi 0, %s122
    %s126 = sphi 0, %s125
    %s142 = sphi 0, %s126
  $region4: #{bert_encoder_forward.16} parent=0 // loop_header_branch
    %12 = sbr.rel (%p10) target = $region8
  $region5: #{bert_encoder_forward.16} parent=0 // loop_body
    %s14 = ssub.s32 %s9, 1
    %s15 = ssub.s32 %s9, 2
    %s25 = sadd.s32 1, %s18
    %p26 = scmp.ge.s32.totalorder %s25, 1
    %s27 = scalar_select %p26, 0, %s25
    %s28 = sadd.s32 1, %s17
    %s29 = scalar_select %p26, %s28, %s17
    %p30 = scmp.ge.s32.totalorder %s29, 1
    %s31 = scalar_select %p30, 0, %s29
    %s32 = sadd.s32 1, %s16
    %s33 = scalar_select %p30, %s32, %s16
    %p34 = scmp.ge.s32.totalorder %s33, 2
    %s35 = scalar_select %p34, 0, %s33
    %s36 = ssub.s32 %s16, %s35
    %s37 = ssub.s32 %s18, %s27
    %s38 = sor.u32 %s36, %s37
    %p39 = scmp.eq.s32.totalorder %s38, 0
    %s41 = sadd.s32 %s40, 1
    %s42 = scalar_select %p39, %s40, %s41
    %p45 = pneg %p39
    %p46 = scmp.eq.s32.totalorder %s9, 1
    %p47 = por %p45, %p46
    %p48 = scmp.ne.s32.totalorder %s40, %s43
    %p49 = scmp.eq.s32.totalorder %s9, 0
    %p50 = por %p48, %p49
    %p51 = scmp.ne.s32.totalorder %s40, %s43
    %p52 = scmp.eq.s32.totalorder %s14, 1
    %p53 = por %p51, %p52
    %p54 = scmp.ne.s32.totalorder %s43, %s44
    %p55 = scmp.eq.s32.totalorder %s14, 0
    %p56 = por %p54, %p55
    %p57 = scmp.ne.s32.totalorder %s43, %s44
    %p58 = scmp.eq.s32.totalorder %s15, 1
    %p59 = por %p57, %p58
    %p61 = scmp.ne.s32.totalorder %s44, %s60
    %p62 = scmp.eq.s32.totalorder %s15, 0
    %p63 = por %p61, %p62
    %s64 = ssub.s32 %s18, %s27
    %s65 = ssub.s32 %s17, %s31
    %s66 = sor.u32 %s64, %s65
    %p67 = scmp.eq.s32.totalorder %s66, 0
    %s69 = sadd.s32 %s68, 1
    %s70 = scalar_select %p67, %s68, %s69
    %p73 = pneg %p67
    %p74 = scmp.eq.s32.totalorder %s9, 1
    %p75 = por %p73, %p74
    %p76 = scmp.ne.s32.totalorder %s68, %s71
    %p77 = scmp.eq.s32.totalorder %s9, 0
    %p78 = por %p76, %p77
    %p79 = scmp.ne.s32.totalorder %s68, %s71
    %p80 = scmp.eq.s32.totalorder %s14, 1
    %p81 = por %p79, %p80
    %p82 = scmp.ne.s32.totalorder %s71, %s72
    %p83 = scmp.eq.s32.totalorder %s14, 0
    %p84 = por %p82, %p83
    %p85 = scmp.ne.s32.totalorder %s71, %s72
    %p86 = scmp.eq.s32.totalorder %s15, 1
    %p87 = por %p85, %p86
    %p89 = scmp.ne.s32.totalorder %s72, %s88
    %p90 = scmp.eq.s32.totalorder %s15, 0
    %p91 = por %p89, %p90
    %s92 = ssub.s32 %s17, %s31
    %p93 = scmp.eq.s32.totalorder %s92, 0
    %s95 = sadd.s32 %s94, 1
    %s96 = scalar_select %p93, %s94, %s95
    %p99 = pneg %p93
    %p100 = scmp.eq.s32.totalorder %s9, 1
    %p101 = por %p99, %p100
    %p102 = scmp.ne.s32.totalorder %s94, %s97
    %p103 = scmp.eq.s32.totalorder %s9, 0
    %p104 = por %p102, %p103
    %p105 = scmp.ne.s32.totalorder %s94, %s97
    %p106 = scmp.eq.s32.totalorder %s14, 1
    %p107 = por %p105, %p106
    %p108 = scmp.ne.s32.totalorder %s97, %s98
    %p109 = scmp.eq.s32.totalorder %s14, 0
    %p110 = por %p108, %p109
    %p111 = scmp.ne.s32.totalorder %s97, %s98
    %p112 = scmp.eq.s32.totalorder %s15, 1
    %p113 = por %p111, %p112
    %p115 = scmp.ne.s32.totalorder %s98, %s114
    %p116 = scmp.eq.s32.totalorder %s15, 0
    %p117 = por %p115, %p116
    %s118 = ssub.s32 %s16, %s35
    %s119 = ssub.s32 %s17, %s31
    %s120 = sor.u32 %s118, %s119
    %p121 = scmp.eq.s32.totalorder %s120, 0
    %s123 = sadd.s32 %s122, 1
    %s124 = scalar_select %p121, %s122, %s123
    %p127 = pneg %p121
    %p128 = scmp.eq.s32.totalorder %s9, 1
    %p129 = por %p127, %p128
    %p130 = scmp.ne.s32.totalorder %s122, %s125
    %p131 = scmp.eq.s32.totalorder %s9, 0
    %p132 = por %p130, %p131
    %p133 = scmp.ne.s32.totalorder %s122, %s125
    %p134 = scmp.eq.s32.totalorder %s14, 1
    %p135 = por %p133, %p134
    %p136 = scmp.ne.s32.totalorder %s125, %s126
    %p137 = scmp.eq.s32.totalorder %s14, 0
    %p138 = por %p136, %p137
    %p139 = scmp.ne.s32.totalorder %s125, %s126
    %p140 = scmp.eq.s32.totalorder %s15, 1
    %p141 = por %p139, %p140
    %p143 = scmp.ne.s32.totalorder %s126, %s142
    %p144 = scmp.eq.s32.totalorder %s15, 0
    %p145 = por %p143, %p144
    %p146 = scmp.le.s32.totalorder 1, %s9
    %p147 = scmp.lt.s32.totalorder %s9, 3
    %p148 = pnand %p146, %p147
    %p149 = pneg %p148
    // Predicated region
    $region9: #{bert_encoder_forward.16} parent=5 // pred_check
      _
    $region10: #{bert_encoder_forward.16} parent=5 // pred_check_branch
      %151 = sbr.rel (%p148) target = $region12
    $region11: #{bert_encoder_forward.16} parent=5 // pred_region
      %s152 = ssub.s32 %s9, 1
      // Predicated region
      $region13: #{bert_encoder_forward.16} parent=11 // pred_check
        %p153 = pneg %p84
      $region14: #{bert_encoder_forward.16} parent=11 // pred_check_branch
        %155 = sbr.rel (%p153) target = $region16
      $region15: #{bert_encoder_forward.16} parent=11 // pred_region
        %s156 = smul.u32 32, %s21
        %s157 = smul.u32 4, %s20
        %p158 = scmp.lt.s32.totalorder %s156, 31
        %s159 = scalar_select %p158, %s156, 31
        %p160 = scmp.lt.s32.totalorder %s157, 3
        %s161 = scalar_select %p160, %s157, 3
        %s162 = smul.addr %s159, 4
        %s163 = sadd.s32 %s161, %s162
        %s164 = smul.addr %s163, 4
        %s165 = scalar_lea.vmem %s1, %s164
        %s166 = smul.u32 32, %s21
        %s167 = smul.u32 4, %s20
      $region16: #{bert_encoder_forward.16} parent=11 // pred_fallthru
        _
      // Predicated region
      $region17: #{bert_encoder_forward.16} parent=11 // pred_check
        %p168 = pneg %p110
      $region18: #{bert_encoder_forward.16} parent=11 // pred_check_branch
        %170 = sbr.rel (%p168) target = $region20
      $region19: #{bert_encoder_forward.16} parent=11 // pred_region
        %s171 = smul.u32 4, %s20
        %p172 = scmp.lt.s32.totalorder %s171, 3
        %s173 = scalar_select %p172, %s171, 3
        %s174 = scalar_lea.vmem %s2, %s173
        %s175 = smul.u32 4, %s20
      $region20: #{bert_encoder_forward.16} parent=11 // pred_fallthru
        _
    $region12: #{bert_encoder_forward.16} parent=5 // pred_fallthru
      _
    %p176 = scmp.lt.s32.totalorder %s9, 2
    // Predicated region
    $region21: #{bert_encoder_forward.16} parent=5 // pred_check
      %p177 = pneg %p176
    $region22: #{bert_encoder_forward.16} parent=5 // pred_check_branch
      %179 = sbr.rel (%p177) target = $region24
    $region23: #{bert_encoder_forward.16} parent=5 // pred_region
      // Predicated region
      $region25: #{bert_encoder_forward.16} parent=23 // pred_check
        %p180 = pneg %p50
      $region26: #{bert_encoder_forward.16} parent=23 // pred_check_branch
        %182 = sbr.rel (%p180) target = $region28
      $region27: #{bert_encoder_forward.16} parent=23 // pred_region
        %s183 = smul.u32 16, %s16
        %s184 = smul.u32 2, %s18
        %p185 = scmp.lt.s32.totalorder %s183, 31
        %s186 = scalar_select %p185, %s183, 31
        %p187 = scmp.lt.s32.totalorder %s184, 1
        %s188 = scalar_select %p187, %s184, 1
        %s189 = smul.addr %s186, 2
        %s190 = sadd.s32 %s188, %s189
        %s191 = smul.addr %s190, 4
        %s192 = scalar_lea.vmem %s0, %s191
        %s193 = smul.u32 16, %s16
        %s194 = smul.u32 2, %s18
      $region28: #{bert_encoder_forward.16} parent=23 // pred_fallthru
        _
    $region24: #{bert_encoder_forward.16} parent=5 // pred_fallthru
      _
    %p195 = scmp.le.s32.totalorder 1, %s9
    %p196 = scmp.lt.s32.totalorder %s9, 3
    %p197 = pnand %p195, %p196
    %p198 = pneg %p197
    // Predicated region
    $region29: #{bert_encoder_forward.16} parent=5 // pred_check
      _
    $region30: #{bert_encoder_forward.16} parent=5 // pred_check_branch
      %200 = sbr.rel (%p197) target = $region32
    $region31: #{bert_encoder_forward.16} parent=5 // pred_region
      %s201 = ssub.s32 %s9, 1
      %s202 = smul.u32 16, %s19
      %s203 = smul.u32 2, %s21
      %p204 = scmp.lt.s32.totalorder %s202, 31
      %s205 = scalar_select %p204, %s202, 31
      %p206 = scmp.lt.s32.totalorder %s203, 1
      %s207 = scalar_select %p206, %s203, 1
      %s208 = smul.addr %s205, 2
      %s209 = sadd.s32 %s207, %s208
      %s210 = smul.addr %s209, 4
      %s211 = scalar_lea.vmem %s0, %s210
      %p212 = pneg %p56
      %p213 = pneg %p53
      %s214 = smul.u32 32, %s21
      %s215 = smul.u32 4, %s20
      %p216 = scmp.lt.s32.totalorder %s214, 31
      %s217 = scalar_select %p216, %s214, 31
      %p218 = scmp.lt.s32.totalorder %s215, 3
      %s219 = scalar_select %p218, %s215, 3
      %s220 = smul.addr %s217, 4
      %s221 = sadd.s32 %s219, %s220
      %s222 = smul.addr %s221, 4
      %s223 = scalar_lea.vmem %s1, %s222
      %p224 = pneg %p84
      %p225 = pneg %p81
      %s226 = smul.u32 4, %s20
      %p227 = scmp.lt.s32.totalorder %s226, 3
      %s228 = scalar_select %p227, %s226, 3
      %s229 = scalar_lea.vmem %s2, %s228
      %p230 = pneg %p110
      %p231 = pneg %p107
      %p232 = pneg %p138
      %p233 = pneg %p135
      %s234 = smul.u32 16, %s19
      %s235 = smul.u32 4, %s20
      %p236 = scmp.lt.s32.totalorder %s234, 31
      %s237 = scalar_select %p236, %s234, 31
      %p238 = scmp.lt.s32.totalorder %s235, 3
      %s239 = scalar_select %p238, %s235, 3
      %s240 = smul.addr %s237, 4
      %s241 = sadd.s32 %s239, %s240
      %s242 = smul.addr %s241, 4
      %s243 = scalar_lea.vmem %s3, %s242
      %s244 = smul.u32 16, %s19
      %s245 = smul.u32 2, %s21
      %p246 = scmp.lt.s32.totalorder %s244, 31
      %s247 = scalar_select %p246, %s244, 31
      %p248 = scmp.lt.s32.totalorder %s245, 1
      %s249 = scalar_select %p248, %s245, 1
      %s250 = smul.addr %s247, 2
      %s251 = sadd.s32 %s249, %s250
      %s252 = smul.addr %s251, 4
      %s253 = scalar_lea.vmem %s0, %s252
      %s254 = smul.u32 16, %s19
      %s255 = smul.u32 2, %s21
      %s256 = smul.u32 32, %s21
      %s257 = smul.u32 4, %s20
      %p258 = scmp.lt.s32.totalorder %s256, 31
      %s259 = scalar_select %p258, %s256, 31
      %p260 = scmp.lt.s32.totalorder %s257, 3
      %s261 = scalar_select %p260, %s257, 3
      %s262 = smul.addr %s259, 4
      %s263 = sadd.s32 %s261, %s262
      %s264 = smul.addr %s263, 4
      %s265 = scalar_lea.vmem %s1, %s264
      %s266 = smul.u32 32, %s21
      %s267 = smul.u32 4, %s20
      %s268 = smul.u32 4, %s20
      %p269 = scmp.lt.s32.totalorder %s268, 3
      %s270 = scalar_select %p269, %s268, 3
      %s271 = scalar_lea.vmem %s2, %s270
      %s272 = smul.u32 4, %s20
      %s273 = smul.u32 16, %s19
      %s274 = smul.u32 4, %s20
      %p275 = scmp.lt.s32.totalorder %s273, 31
      %s276 = scalar_select %p275, %s273, 31
      %p277 = scmp.lt.s32.totalorder %s274, 3
      %s278 = scalar_select %p277, %s274, 3
      %s279 = smul.addr %s276, 4
      %s280 = sadd.s32 %s278, %s279
      %s281 = smul.addr %s280, 4
      %s282 = scalar_lea.vmem %s3, %s281
      %s283 = smul.u32 16, %s19
      %s284 = smul.u32 4, %s20
      %p285 = scmp.eq.s32.totalorder %s21, 0
      // Predicated region
      $region33: #{bert_encoder_forward.16} parent=31 // pred_check
        %p286 = pneg %p285
      $region34: #{bert_encoder_forward.16} parent=31 // pred_check_branch
        %288 = sbr.rel (%p286) target = $region36
      $region35: #{bert_encoder_forward.16} parent=31 // pred_region
        %289 = vst [vmem:[#allocation2] sm:$0xff] 0.0
        %290 = vst [vmem:[#allocation2 + $0x8] sm:$0xff] 0.0
        %291 = vst [vmem:[#allocation2 + $0x10] sm:$0xff] 0.0
        %292 = vst [vmem:[#allocation2 + $0x18] sm:$0xff] 0.0
        %293 = vst [vmem:[#allocation2 + $0x20] sm:$0xff] 0.0
        %294 = vst [vmem:[#allocation2 + $0x28] sm:$0xff] 0.0
        %295 = vst [vmem:[#allocation2 + $0x30] sm:$0xff] 0.0
        %296 = vst [vmem:[#allocation2 + $0x38] sm:$0xff] 0.0
        %297 = vst [vmem:[#allocation2 + $0x40] sm:$0xff] 0.0
        %298 = vst [vmem:[#allocation2 + $0x48] sm:$0xff] 0.0
        %299 = vst [vmem:[#allocation2 + $0x50] sm:$0xff] 0.0
        %300 = vst [vmem:[#allocation2 + $0x58] sm:$0xff] 0.0
        %301 = vst [vmem:[#allocation2 + $0x60] sm:$0xff] 0.0
        %302 = vst [vmem:[#allocation2 + $0x68] sm:$0xff] 0.0
        %303 = vst [vmem:[#allocation2 + $0x70] sm:$0xff] 0.0
        %304 = vst [vmem:[#allocation2 + $0x78] sm:$0xff] 0.0
        %305 = vst [vmem:[#allocation2 + $0x80] sm:$0xff] 0.0
        %306 = vst [vmem:[#allocation2 + $0x88] sm:$0xff] 0.0
        %307 = vst [vmem:[#allocation2 + $0x90] sm:$0xff] 0.0
        %308 = vst [vmem:[#allocation2 + $0x98] sm:$0xff] 0.0
        %309 = vst [vmem:[#allocation2 + $0xa0] sm:$0xff] 0.0
        %310 = vst [vmem:[#allocation2 + $0xa8] sm:$0xff] 0.0
        %311 = vst [vmem:[#allocation2 + $0xb0] sm:$0xff] 0.0
        %312 = vst [vmem:[#allocation2 + $0xb8] sm:$0xff] 0.0
        %313 = vst [vmem:[#allocation2 + $0xc0] sm:$0xff] 0.0
        %314 = vst [vmem:[#allocation2 + $0xc8] sm:$0xff] 0.0
        %315 = vst [vmem:[#allocation2 + $0xd0] sm:$0xff] 0.0
        %316 = vst [vmem:[#allocation2 + $0xd8] sm:$0xff] 0.0
        %317 = vst [vmem:[#allocation2 + $0xe0] sm:$0xff] 0.0
        %318 = vst [vmem:[#allocation2 + $0xe8] sm:$0xff] 0.0
        %319 = vst [vmem:[#allocation2 + $0xf0] sm:$0xff] 0.0
        %320 = vst [vmem:[#allocation2 + $0xf8] sm:$0xff] 0.0
        %321 = vst [vmem:[#allocation2 + $0x100] sm:$0xff] 0.0
        %322 = vst [vmem:[#allocation2 + $0x108] sm:$0xff] 0.0
        %323 = vst [vmem:[#allocation2 + $0x110] sm:$0xff] 0.0
        %324 = vst [vmem:[#allocation2 + $0x118] sm:$0xff] 0.0
        %325 = vst [vmem:[#allocation2 + $0x120] sm:$0xff] 0.0
        %326 = vst [vmem:[#allocation2 + $0x128] sm:$0xff] 0.0
        %327 = vst [vmem:[#allocation2 + $0x130] sm:$0xff] 0.0
        %328 = vst [vmem:[#allocation2 + $0x138] sm:$0xff] 0.0
        %329 = vst [vmem:[#allocation2 + $0x140] sm:$0xff] 0.0
        %330 = vst [vmem:[#allocation2 + $0x148] sm:$0xff] 0.0
        %331 = vst [vmem:[#allocation2 + $0x150] sm:$0xff] 0.0
        %332 = vst [vmem:[#allocation2 + $0x158] sm:$0xff] 0.0
        %333 = vst [vmem:[#allocation2 + $0x160] sm:$0xff] 0.0
        %334 = vst [vmem:[#allocation2 + $0x168] sm:$0xff] 0.0
        %335 = vst [vmem:[#allocation2 + $0x170] sm:$0xff] 0.0
        %336 = vst [vmem:[#allocation2 + $0x178] sm:$0xff] 0.0
        %337 = vst [vmem:[#allocation2 + $0x180] sm:$0xff] 0.0
        %338 = vst [vmem:[#allocation2 + $0x188] sm:$0xff] 0.0
        %339 = vst [vmem:[#allocation2 + $0x190] sm:$0xff] 0.0
        %340 = vst [vmem:[#allocation2 + $0x198] sm:$0xff] 0.0
        %341 = vst [vmem:[#allocation2 + $0x1a0] sm:$0xff] 0.0
        %342 = vst [vmem:[#allocation2 + $0x1a8] sm:$0xff] 0.0
        %343 = vst [vmem:[#allocation2 + $0x1b0] sm:$0xff] 0.0
        %344 = vst [vmem:[#allocation2 + $0x1b8] sm:$0xff] 0.0
        %345 = vst [vmem:[#allocation2 + $0x1c0] sm:$0xff] 0.0
        %346 = vst [vmem:[#allocation2 + $0x1c8] sm:$0xff] 0.0
        %347 = vst [vmem:[#allocation2 + $0x1d0] sm:$0xff] 0.0
        %348 = vst [vmem:[#allocation2 + $0x1d8] sm:$0xff] 0.0
        %349 = vst [vmem:[#allocation2 + $0x1e0] sm:$0xff] 0.0
        %350 = vst [vmem:[#allocation2 + $0x1e8] sm:$0xff] 0.0
        %351 = vst [vmem:[#allocation2 + $0x1f0] sm:$0xff] 0.0
        %352 = vst [vmem:[#allocation2 + $0x1f8] sm:$0xff] 0.0
      $region36: #{bert_encoder_forward.16} parent=31 // pred_fallthru
        _
      %v353 = vld [vmem:[#allocation2] sm:$0xff]
      %v354 = vld [vmem:[#allocation2 + $0x8] sm:$0xff]
      %v355 = vld [vmem:[#allocation2 + $0x10] sm:$0xff]
      %v356 = vld [vmem:[#allocation2 + $0x18] sm:$0xff]
      %v357 = vld [vmem:[#allocation2 + $0x20] sm:$0xff]
      %v358 = vld [vmem:[#allocation2 + $0x28] sm:$0xff]
      %v359 = vld [vmem:[#allocation2 + $0x30] sm:$0xff]
      %v360 = vld [vmem:[#allocation2 + $0x38] sm:$0xff]
      %v361 = vld [vmem:[#allocation2 + $0x40] sm:$0xff]
      %v362 = vld [vmem:[#allocation2 + $0x48] sm:$0xff]
      %v363 = vld [vmem:[#allocation2 + $0x50] sm:$0xff]
      %v364 = vld [vmem:[#allocation2 + $0x58] sm:$0xff]
      %v365 = vld [vmem:[#allocation2 + $0x60] sm:$0xff]
      %v366 = vld [vmem:[#allocation2 + $0x68] sm:$0xff]
      %v367 = vld [vmem:[#allocation2 + $0x70] sm:$0xff]
      %v368 = vld [vmem:[#allocation2 + $0x78] sm:$0xff]
      %v369 = vld [vmem:[#allocation2 + $0x80] sm:$0xff]
      %v370 = vld [vmem:[#allocation2 + $0x88] sm:$0xff]
      %v371 = vld [vmem:[#allocation2 + $0x90] sm:$0xff]
      %v372 = vld [vmem:[#allocation2 + $0x98] sm:$0xff]
      %v373 = vld [vmem:[#allocation2 + $0xa0] sm:$0xff]
      %v374 = vld [vmem:[#allocation2 + $0xa8] sm:$0xff]
      %v375 = vld [vmem:[#allocation2 + $0xb0] sm:$0xff]
      %v376 = vld [vmem:[#allocation2 + $0xb8] sm:$0xff]
      %v377 = vld [vmem:[#allocation2 + $0xc0] sm:$0xff]
      %v378 = vld [vmem:[#allocation2 + $0xc8] sm:$0xff]
      %v379 = vld [vmem:[#allocation2 + $0xd0] sm:$0xff]
      %v380 = vld [vmem:[#allocation2 + $0xd8] sm:$0xff]
      %v381 = vld [vmem:[#allocation2 + $0xe0] sm:$0xff]
      %v382 = vld [vmem:[#allocation2 + $0xe8] sm:$0xff]
      %v383 = vld [vmem:[#allocation2 + $0xf0] sm:$0xff]
      %v384 = vld [vmem:[#allocation2 + $0xf8] sm:$0xff]
      %v385 = vld [vmem:[#allocation2 + $0x100] sm:$0xff]
      %v386 = vld [vmem:[#allocation2 + $0x108] sm:$0xff]
      %v387 = vld [vmem:[#allocation2 + $0x110] sm:$0xff]
      %v388 = vld [vmem:[#allocation2 + $0x118] sm:$0xff]
      %v389 = vld [vmem:[#allocation2 + $0x120] sm:$0xff]
      %v390 = vld [vmem:[#allocation2 + $0x128] sm:$0xff]
      %v391 = vld [vmem:[#allocation2 + $0x130] sm:$0xff]
      %v392 = vld [vmem:[#allocation2 + $0x138] sm:$0xff]
      %v393 = vld [vmem:[#allocation2 + $0x140] sm:$0xff]
      %v394 = vld [vmem:[#allocation2 + $0x148] sm:$0xff]
      %v395 = vld [vmem:[#allocation2 + $0x150] sm:$0xff]
      %v396 = vld [vmem:[#allocation2 + $0x158] sm:$0xff]
      %v397 = vld [vmem:[#allocation2 + $0x160] sm:$0xff]
      %v398 = vld [vmem:[#allocation2 + $0x168] sm:$0xff]
      %v399 = vld [vmem:[#allocation2 + $0x170] sm:$0xff]
      %v400 = vld [vmem:[#allocation2 + $0x178] sm:$0xff]
      %v401 = vld [vmem:[#allocation2 + $0x180] sm:$0xff]
      %v402 = vld [vmem:[#allocation2 + $0x188] sm:$0xff]
      %v403 = vld [vmem:[#allocation2 + $0x190] sm:$0xff]
      %v404 = vld [vmem:[#allocation2 + $0x198] sm:$0xff]
      %v405 = vld [vmem:[#allocation2 + $0x1a0] sm:$0xff]
      %v406 = vld [vmem:[#allocation2 + $0x1a8] sm:$0xff]
      %v407 = vld [vmem:[#allocation2 + $0x1b0] sm:$0xff]
      %v408 = vld [vmem:[#allocation2 + $0x1b8] sm:$0xff]
      %v409 = vld [vmem:[#allocation2 + $0x1c0] sm:$0xff]
      %v410 = vld [vmem:[#allocation2 + $0x1c8] sm:$0xff]
      %v411 = vld [vmem:[#allocation2 + $0x1d0] sm:$0xff]
      %v412 = vld [vmem:[#allocation2 + $0x1d8] sm:$0xff]
      %v413 = vld [vmem:[#allocation2 + $0x1e0] sm:$0xff]
      %v414 = vld [vmem:[#allocation2 + $0x1e8] sm:$0xff]
      %v415 = vld [vmem:[#allocation2 + $0x1f0] sm:$0xff]
      %v416 = vld [vmem:[#allocation2 + $0x1f8] sm:$0xff]
      %v417 = vld [vmem:[%s253] sm:$0xff]
      %v418 = vld [vmem:[%s253 + $0x8] sm:$0xff]
      %v419 = vld [vmem:[%s253 + $0x10] sm:$0xff]
      %v420 = vld [vmem:[%s253 + $0x18] sm:$0xff]
      %v421 = vld [vmem:[%s253 + $0x20] sm:$0xff]
      %v422 = vld [vmem:[%s253 + $0x28] sm:$0xff]
      %v423 = vld [vmem:[%s253 + $0x30] sm:$0xff]
      %v424 = vld [vmem:[%s253 + $0x38] sm:$0xff]
      %v425 = vld [vmem:[%s253 + $0x40] sm:$0xff]
      %v426 = vld [vmem:[%s253 + $0x48] sm:$0xff]
      %v427 = vld [vmem:[%s253 + $0x50] sm:$0xff]
      %v428 = vld [vmem:[%s253 + $0x58] sm:$0xff]
      %v429 = vld [vmem:[%s253 + $0x60] sm:$0xff]
      %v430 = vld [vmem:[%s253 + $0x68] sm:$0xff]
      %v431 = vld [vmem:[%s253 + $0x70] sm:$0xff]
      %v432 = vld [vmem:[%s253 + $0x78] sm:$0xff]
      %v433 = vld [vmem:[%s265] sm:$0xff]
      %v434 = vld [vmem:[%s265 + $0x8] sm:$0xff]
      %v435 = vld [vmem:[%s265 + $0x10] sm:$0xff]
      %v436 = vld [vmem:[%s265 + $0x18] sm:$0xff]
      %v437 = vld [vmem:[%s265 + $0x20] sm:$0xff]
      %v438 = vld [vmem:[%s265 + $0x28] sm:$0xff]
      %v439 = vld [vmem:[%s265 + $0x30] sm:$0xff]
      %v440 = vld [vmem:[%s265 + $0x38] sm:$0xff]
      %v441 = vld [vmem:[%s265 + $0x40] sm:$0xff]
      %v442 = vld [vmem:[%s265 + $0x48] sm:$0xff]
      %v443 = vld [vmem:[%s265 + $0x50] sm:$0xff]
      %v444 = vld [vmem:[%s265 + $0x58] sm:$0xff]
      %v445 = vld [vmem:[%s265 + $0x60] sm:$0xff]
      %v446 = vld [vmem:[%s265 + $0x68] sm:$0xff]
      %v447 = vld [vmem:[%s265 + $0x70] sm:$0xff]
      %v448 = vld [vmem:[%s265 + $0x78] sm:$0xff]
      %v449 = vld [vmem:[%s265 + $0x80] sm:$0xff]
      %v450 = vld [vmem:[%s265 + $0x88] sm:$0xff]
      %v451 = vld [vmem:[%s265 + $0x90] sm:$0xff]
      %v452 = vld [vmem:[%s265 + $0x98] sm:$0xff]
      %v453 = vld [vmem:[%s265 + $0xa0] sm:$0xff]
      %v454 = vld [vmem:[%s265 + $0xa8] sm:$0xff]
      %v455 = vld [vmem:[%s265 + $0xb0] sm:$0xff]
      %v456 = vld [vmem:[%s265 + $0xb8] sm:$0xff]
      %v457 = vld [vmem:[%s265 + $0xc0] sm:$0xff]
      %v458 = vld [vmem:[%s265 + $0xc8] sm:$0xff]
      %v459 = vld [vmem:[%s265 + $0xd0] sm:$0xff]
      %v460 = vld [vmem:[%s265 + $0xd8] sm:$0xff]
      %v461 = vld [vmem:[%s265 + $0xe0] sm:$0xff]
      %v462 = vld [vmem:[%s265 + $0xe8] sm:$0xff]
      %v463 = vld [vmem:[%s265 + $0xf0] sm:$0xff]
      %v464 = vld [vmem:[%s265 + $0xf8] sm:$0xff]
      %v465 = vld [vmem:[%s265 + $0x100] sm:$0xff]
      %v466 = vld [vmem:[%s265 + $0x108] sm:$0xff]
      %v467 = vld [vmem:[%s265 + $0x110] sm:$0xff]
      %v468 = vld [vmem:[%s265 + $0x118] sm:$0xff]
      %v469 = vld [vmem:[%s265 + $0x120] sm:$0xff]
      %v470 = vld [vmem:[%s265 + $0x128] sm:$0xff]
      %v471 = vld [vmem:[%s265 + $0x130] sm:$0xff]
      %v472 = vld [vmem:[%s265 + $0x138] sm:$0xff]
      %v473 = vld [vmem:[%s265 + $0x140] sm:$0xff]
      %v474 = vld [vmem:[%s265 + $0x148] sm:$0xff]
      %v475 = vld [vmem:[%s265 + $0x150] sm:$0xff]
      %v476 = vld [vmem:[%s265 + $0x158] sm:$0xff]
      %v477 = vld [vmem:[%s265 + $0x160] sm:$0xff]
      %v478 = vld [vmem:[%s265 + $0x168] sm:$0xff]
      %v479 = vld [vmem:[%s265 + $0x170] sm:$0xff]
      %v480 = vld [vmem:[%s265 + $0x178] sm:$0xff]
      %v481 = vld [vmem:[%s265 + $0x180] sm:$0xff]
      %v482 = vld [vmem:[%s265 + $0x188] sm:$0xff]
      %v483 = vld [vmem:[%s265 + $0x190] sm:$0xff]
      %v484 = vld [vmem:[%s265 + $0x198] sm:$0xff]
      %v485 = vld [vmem:[%s265 + $0x1a0] sm:$0xff]
      %v486 = vld [vmem:[%s265 + $0x1a8] sm:$0xff]
      %v487 = vld [vmem:[%s265 + $0x1b0] sm:$0xff]
      %v488 = vld [vmem:[%s265 + $0x1b8] sm:$0xff]
      %v489 = vld [vmem:[%s265 + $0x1c0] sm:$0xff]
      %v490 = vld [vmem:[%s265 + $0x1c8] sm:$0xff]
      %v491 = vld [vmem:[%s265 + $0x1d0] sm:$0xff]
      %v492 = vld [vmem:[%s265 + $0x1d8] sm:$0xff]
      %v493 = vld [vmem:[%s265 + $0x1e0] sm:$0xff]
      %v494 = vld [vmem:[%s265 + $0x1e8] sm:$0xff]
      %v495 = vld [vmem:[%s265 + $0x1f0] sm:$0xff]
      %v496 = vld [vmem:[%s265 + $0x1f8] sm:$0xff]
      %v513 = vunpack.c.l.b16 %v417
      %v514 = vunpack.c.h.b16 %v417
      %v515 = vunpack.c.l.b16 %v418
      %v516 = vunpack.c.h.b16 %v418
      %v517 = vunpack.c.l.b16 %v419
      %v518 = vunpack.c.h.b16 %v419
      %v519 = vunpack.c.l.b16 %v420
      %v520 = vunpack.c.h.b16 %v420
      %v521 = vunpack.c.l.b16 %v421
      %v522 = vunpack.c.h.b16 %v421
      %v523 = vunpack.c.l.b16 %v422
      %v524 = vunpack.c.h.b16 %v422
      %v525 = vunpack.c.l.b16 %v423
      %v526 = vunpack.c.h.b16 %v423
      %v527 = vunpack.c.l.b16 %v424
      %v528 = vunpack.c.h.b16 %v424
      %v529 = vunpack.c.l.b16 %v425
      %v530 = vunpack.c.h.b16 %v425
      %v531 = vunpack.c.l.b16 %v426
      %v532 = vunpack.c.h.b16 %v426
      %v533 = vunpack.c.l.b16 %v427
      %v534 = vunpack.c.h.b16 %v427
      %v535 = vunpack.c.l.b16 %v428
      %v536 = vunpack.c.h.b16 %v428
      %v537 = vunpack.c.l.b16 %v429
      %v538 = vunpack.c.h.b16 %v429
      %v539 = vunpack.c.l.b16 %v430
      %v540 = vunpack.c.h.b16 %v430
      %v541 = vunpack.c.l.b16 %v431
      %v542 = vunpack.c.h.b16 %v431
      %v543 = vunpack.c.l.b16 %v432
      %v544 = vunpack.c.h.b16 %v432
      %v545 = vpack.c.b16 %v515, %v513
      %v546 = vpack.c.b16 %v516, %v514
      %v547 = vpack.c.b16 %v519, %v517
      %v548 = vpack.c.b16 %v520, %v518
      %v549 = vpack.c.b16 %v523, %v521
      %v550 = vpack.c.b16 %v524, %v522
      %v551 = vpack.c.b16 %v527, %v525
      %v552 = vpack.c.b16 %v528, %v526
      %v553 = vpack.c.b16 %v531, %v529
      %v554 = vpack.c.b16 %v532, %v530
      %v555 = vpack.c.b16 %v535, %v533
      %v556 = vpack.c.b16 %v536, %v534
      %v557 = vpack.c.b16 %v539, %v537
      %v558 = vpack.c.b16 %v540, %v538
      %v559 = vpack.c.b16 %v543, %v541
      %v560 = vpack.c.b16 %v544, %v542
      %v641 = vunpack.c.l.b16 %v433
      %v642 = vunpack.c.h.b16 %v433
      %v643 = vunpack.c.l.b16 %v434
      %v644 = vunpack.c.h.b16 %v434
      %v645 = vunpack.c.l.b16 %v435
      %v646 = vunpack.c.h.b16 %v435
      %v647 = vunpack.c.l.b16 %v436
      %v648 = vunpack.c.h.b16 %v436
      %v649 = vunpack.c.l.b16 %v437
      %v650 = vunpack.c.h.b16 %v437
      %v651 = vunpack.c.l.b16 %v438
      %v652 = vunpack.c.h.b16 %v438
      %v653 = vunpack.c.l.b16 %v439
      %v654 = vunpack.c.h.b16 %v439
      %v655 = vunpack.c.l.b16 %v440
      %v656 = vunpack.c.h.b16 %v440
      %v657 = vunpack.c.l.b16 %v441
      %v658 = vunpack.c.h.b16 %v441
      %v659 = vunpack.c.l.b16 %v442
      %v660 = vunpack.c.h.b16 %v442
      %v661 = vunpack.c.l.b16 %v443
      %v662 = vunpack.c.h.b16 %v443
      %v663 = vunpack.c.l.b16 %v444
      %v664 = vunpack.c.h.b16 %v444
      %v665 = vunpack.c.l.b16 %v445
      %v666 = vunpack.c.h.b16 %v445
      %v667 = vunpack.c.l.b16 %v446
      %v668 = vunpack.c.h.b16 %v446
      %v669 = vunpack.c.l.b16 %v447
      %v670 = vunpack.c.h.b16 %v447
      %v671 = vunpack.c.l.b16 %v448
      %v672 = vunpack.c.h.b16 %v448
      %v673 = vunpack.c.l.b16 %v449
      %v674 = vunpack.c.h.b16 %v449
      %v675 = vunpack.c.l.b16 %v450
      %v676 = vunpack.c.h.b16 %v450
      %v677 = vunpack.c.l.b16 %v451
      %v678 = vunpack.c.h.b16 %v451
      %v679 = vunpack.c.l.b16 %v452
      %v680 = vunpack.c.h.b16 %v452
      %v681 = vunpack.c.l.b16 %v453
      %v682 = vunpack.c.h.b16 %v453
      %v683 = vunpack.c.l.b16 %v454
      %v684 = vunpack.c.h.b16 %v454
      %v685 = vunpack.c.l.b16 %v455
      %v686 = vunpack.c.h.b16 %v455
      %v687 = vunpack.c.l.b16 %v456
      %v688 = vunpack.c.h.b16 %v456
      %v689 = vunpack.c.l.b16 %v457
      %v690 = vunpack.c.h.b16 %v457
      %v691 = vunpack.c.l.b16 %v458
      %v692 = vunpack.c.h.b16 %v458
      %v693 = vunpack.c.l.b16 %v459
      %v694 = vunpack.c.h.b16 %v459
      %v695 = vunpack.c.l.b16 %v460
      %v696 = vunpack.c.h.b16 %v460
      %v697 = vunpack.c.l.b16 %v461
      %v698 = vunpack.c.h.b16 %v461
      %v699 = vunpack.c.l.b16 %v462
      %v700 = vunpack.c.h.b16 %v462
      %v701 = vunpack.c.l.b16 %v463
      %v702 = vunpack.c.h.b16 %v463
      %v703 = vunpack.c.l.b16 %v464
      %v704 = vunpack.c.h.b16 %v464
      %v705 = vunpack.c.l.b16 %v465
      %v706 = vunpack.c.h.b16 %v465
      %v707 = vunpack.c.l.b16 %v466
      %v708 = vunpack.c.h.b16 %v466
      %v709 = vunpack.c.l.b16 %v467
      %v710 = vunpack.c.h.b16 %v467
      %v711 = vunpack.c.l.b16 %v468
      %v712 = vunpack.c.h.b16 %v468
      %v713 = vunpack.c.l.b16 %v469
      %v714 = vunpack.c.h.b16 %v469
      %v715 = vunpack.c.l.b16 %v470
      %v716 = vunpack.c.h.b16 %v470
      %v717 = vunpack.c.l.b16 %v471
      %v718 = vunpack.c.h.b16 %v471
      %v719 = vunpack.c.l.b16 %v472
      %v720 = vunpack.c.h.b16 %v472
      %v721 = vunpack.c.l.b16 %v473
      %v722 = vunpack.c.h.b16 %v473
      %v723 = vunpack.c.l.b16 %v474
      %v724 = vunpack.c.h.b16 %v474
      %v725 = vunpack.c.l.b16 %v475
      %v726 = vunpack.c.h.b16 %v475
      %v727 = vunpack.c.l.b16 %v476
      %v728 = vunpack.c.h.b16 %v476
      %v729 = vunpack.c.l.b16 %v477
      %v730 = vunpack.c.h.b16 %v477
      %v731 = vunpack.c.l.b16 %v478
      %v732 = vunpack.c.h.b16 %v478
      %v733 = vunpack.c.l.b16 %v479
      %v734 = vunpack.c.h.b16 %v479
      %v735 = vunpack.c.l.b16 %v480
      %v736 = vunpack.c.h.b16 %v480
      %v737 = vunpack.c.l.b16 %v481
      %v738 = vunpack.c.h.b16 %v481
      %v739 = vunpack.c.l.b16 %v482
      %v740 = vunpack.c.h.b16 %v482
      %v741 = vunpack.c.l.b16 %v483
      %v742 = vunpack.c.h.b16 %v483
      %v743 = vunpack.c.l.b16 %v484
      %v744 = vunpack.c.h.b16 %v484
      %v745 = vunpack.c.l.b16 %v485
      %v746 = vunpack.c.h.b16 %v485
      %v747 = vunpack.c.l.b16 %v486
      %v748 = vunpack.c.h.b16 %v486
      %v749 = vunpack.c.l.b16 %v487
      %v750 = vunpack.c.h.b16 %v487
      %v751 = vunpack.c.l.b16 %v488
      %v752 = vunpack.c.h.b16 %v488
      %v753 = vunpack.c.l.b16 %v489
      %v754 = vunpack.c.h.b16 %v489
      %v755 = vunpack.c.l.b16 %v490
      %v756 = vunpack.c.h.b16 %v490
      %v757 = vunpack.c.l.b16 %v491
      %v758 = vunpack.c.h.b16 %v491
      %v759 = vunpack.c.l.b16 %v492
      %v760 = vunpack.c.h.b16 %v492
      %v761 = vunpack.c.l.b16 %v493
      %v762 = vunpack.c.h.b16 %v493
      %v763 = vunpack.c.l.b16 %v494
      %v764 = vunpack.c.h.b16 %v494
      %v765 = vunpack.c.l.b16 %v495
      %v766 = vunpack.c.h.b16 %v495
      %v767 = vunpack.c.l.b16 %v496
      %v768 = vunpack.c.h.b16 %v496
      %v769 = vpack.c.b16 %v645, %v641
      %v770 = vpack.c.b16 %v646, %v642
      %v771 = vpack.c.b16 %v647, %v643
      %v772 = vpack.c.b16 %v648, %v644
      %v773 = vpack.c.b16 %v653, %v649
      %v774 = vpack.c.b16 %v654, %v650
      %v775 = vpack.c.b16 %v655, %v651
      %v776 = vpack.c.b16 %v656, %v652
      %v777 = vpack.c.b16 %v661, %v657
      %v778 = vpack.c.b16 %v662, %v658
      %v779 = vpack.c.b16 %v663, %v659
      %v780 = vpack.c.b16 %v664, %v660
      %v781 = vpack.c.b16 %v669, %v665
      %v782 = vpack.c.b16 %v670, %v666
      %v783 = vpack.c.b16 %v671, %v667
      %v784 = vpack.c.b16 %v672, %v668
      %v785 = vpack.c.b16 %v677, %v673
      %v786 = vpack.c.b16 %v678, %v674
      %v787 = vpack.c.b16 %v679, %v675
      %v788 = vpack.c.b16 %v680, %v676
      %v789 = vpack.c.b16 %v685, %v681
      %v790 = vpack.c.b16 %v686, %v682
      %v791 = vpack.c.b16 %v687, %v683
      %v792 = vpack.c.b16 %v688, %v684
      %v793 = vpack.c.b16 %v693, %v689
      %v794 = vpack.c.b16 %v694, %v690
      %v795 = vpack.c.b16 %v695, %v691
      %v796 = vpack.c.b16 %v696, %v692
      %v797 = vpack.c.b16 %v701, %v697
      %v798 = vpack.c.b16 %v702, %v698
      %v799 = vpack.c.b16 %v703, %v699
      %v800 = vpack.c.b16 %v704, %v700
      %v801 = vpack.c.b16 %v709, %v705
      %v802 = vpack.c.b16 %v710, %v706
      %v803 = vpack.c.b16 %v711, %v707
      %v804 = vpack.c.b16 %v712, %v708
      %v805 = vpack.c.b16 %v717, %v713
      %v806 = vpack.c.b16 %v718, %v714
      %v807 = vpack.c.b16 %v719, %v715
      %v808 = vpack.c.b16 %v720, %v716
      %v809 = vpack.c.b16 %v725, %v721
      %v810 = vpack.c.b16 %v726, %v722
      %v811 = vpack.c.b16 %v727, %v723
      %v812 = vpack.c.b16 %v728, %v724
      %v813 = vpack.c.b16 %v733, %v729
      %v814 = vpack.c.b16 %v734, %v730
      %v815 = vpack.c.b16 %v735, %v731
      %v816 = vpack.c.b16 %v736, %v732
      %v817 = vpack.c.b16 %v741, %v737
      %v818 = vpack.c.b16 %v742, %v738
      %v819 = vpack.c.b16 %v743, %v739
      %v820 = vpack.c.b16 %v744, %v740
      %v821 = vpack.c.b16 %v749, %v745
      %v822 = vpack.c.b16 %v750, %v746
      %v823 = vpack.c.b16 %v751, %v747
      %v824 = vpack.c.b16 %v752, %v748
      %v825 = vpack.c.b16 %v757, %v753
      %v826 = vpack.c.b16 %v758, %v754
      %v827 = vpack.c.b16 %v759, %v755
      %v828 = vpack.c.b16 %v760, %v756
      %v829 = vpack.c.b16 %v765, %v761
      %v830 = vpack.c.b16 %v766, %v762
      %v831 = vpack.c.b16 %v767, %v763
      %v832 = vpack.c.b16 %v768, %v764
      %897 = vmatprep.subr.bf16.mxu0 %v798
      %898 = vmatpush1.bf16.msra.mxu0 %v797
      %899 = vmatprep.subr.bf16.mxu0 %v794
      %900 = vmatpush1.bf16.msra.mxu0 %v793
      %901 = vmatprep.subr.bf16.mxu0 %v790
      %902 = vmatpush1.bf16.msra.mxu0 %v789
      %903 = vmatprep.subr.bf16.mxu0 %v786
      %904 = vmatpush1.bf16.msra.mxu0 %v785
      %905 = vmatprep.subr.bf16.mxu0 %v782
      %906 = vmatpush1.bf16.msra.mxu0 %v781
      %907 = vmatprep.subr.bf16.mxu0 %v778
      %908 = vmatpush1.bf16.msra.mxu0 %v777
      %909 = vmatprep.subr.bf16.mxu0 %v774
      %910 = vmatpush1.bf16.msra.mxu0 %v773
      %911 = vmatprep.subr.bf16.mxu0 %v770
      %912 = vmatpush1.bf16.msra.mxu0 %v769
      %913 = vmatprep.subr.bf16.mxu0 %v830
      %914 = vmatpush2.bf16.msra.mxu0 %v829
      %915 = vmatprep.subr.bf16.mxu0 %v826
      %916 = vmatpush2.bf16.msra.mxu0 %v825
      %917 = vmatprep.subr.bf16.mxu0 %v822
      %918 = vmatpush2.bf16.msra.mxu0 %v821
      %919 = vmatprep.subr.bf16.mxu0 %v818
      %920 = vmatpush2.bf16.msra.mxu0 %v817
      %921 = vmatprep.subr.bf16.mxu0 %v814
      %922 = vmatpush2.bf16.msra.mxu0 %v813
      %923 = vmatprep.subr.bf16.mxu0 %v810
      %924 = vmatpush2.bf16.msra.mxu0 %v809
      %925 = vmatprep.subr.bf16.mxu0 %v806
      %926 = vmatpush2.bf16.msra.mxu0 %v805
      %927 = vmatprep.subr.bf16.mxu0 %v802
      %928 = vmatpush2.bf16.msra.mxu0 %v801
      %929 = vmatprep.mubr.bf16.mxu0 %v546
      %930 = vmatmul.mubr.bf16.gmra.mxu0 %v545
      %v931 = vpop.f32.mrf.mxu0
      %v932 = vadd.f32 0.0, %v931
      %v933 = vpop.f32.mrf.mxu0
      %v934 = vadd.f32 0.0, %v933
      %v935 = vpop.f32.mrf.mxu0
      %v936 = vadd.f32 0.0, %v935
      %v937 = vpop.f32.mrf.mxu0
      %v938 = vadd.f32 0.0, %v937
      %939 = vmatprep.mubr.bf16.mxu0 %v548
      %940 = vmatmul.mubr.bf16.gmra.mxu0 %v547
      %v941 = vpop.f32.mrf.mxu0
      %v942 = vadd.f32 0.0, %v941
      %v943 = vpop.f32.mrf.mxu0
      %v944 = vadd.f32 0.0, %v943
      %v945 = vpop.f32.mrf.mxu0
      %v946 = vadd.f32 0.0, %v945
      %v947 = vpop.f32.mrf.mxu0
      %v948 = vadd.f32 0.0, %v947
      %949 = vmatprep.mubr.bf16.mxu0 %v550
      %950 = vmatmul.mubr.bf16.gmra.mxu0 %v549
      %v951 = vpop.f32.mrf.mxu0
      %v952 = vadd.f32 0.0, %v951
      %v953 = vpop.f32.mrf.mxu0
      %v954 = vadd.f32 0.0, %v953
      %v955 = vpop.f32.mrf.mxu0
      %v956 = vadd.f32 0.0, %v955
      %v957 = vpop.f32.mrf.mxu0
      %v958 = vadd.f32 0.0, %v957
      %959 = vmatprep.mubr.bf16.mxu0 %v552
      %960 = vmatmul.mubr.bf16.gmra.mxu0 %v551
      %v961 = vpop.f32.mrf.mxu0
      %v962 = vadd.f32 0.0, %v961
      %v963 = vpop.f32.mrf.mxu0
      %v964 = vadd.f32 0.0, %v963
      %v965 = vpop.f32.mrf.mxu0
      %v966 = vadd.f32 0.0, %v965
      %v967 = vpop.f32.mrf.mxu0
      %v968 = vadd.f32 0.0, %v967
      %969 = vmatprep.mubr.bf16.mxu0 %v554
      %970 = vmatmul.mubr.bf16.gmra.mxu0 %v553
      %v971 = vpop.f32.mrf.mxu0
      %v972 = vadd.f32 0.0, %v971
      %v973 = vpop.f32.mrf.mxu0
      %v974 = vadd.f32 0.0, %v973
      %v975 = vpop.f32.mrf.mxu0
      %v976 = vadd.f32 0.0, %v975
      %v977 = vpop.f32.mrf.mxu0
      %v978 = vadd.f32 0.0, %v977
      %979 = vmatprep.mubr.bf16.mxu0 %v556
      %980 = vmatmul.mubr.bf16.gmra.mxu0 %v555
      %v981 = vpop.f32.mrf.mxu0
      %v982 = vadd.f32 0.0, %v981
      %v983 = vpop.f32.mrf.mxu0
      %v984 = vadd.f32 0.0, %v983
      %v985 = vpop.f32.mrf.mxu0
      %v986 = vadd.f32 0.0, %v985
      %v987 = vpop.f32.mrf.mxu0
      %v988 = vadd.f32 0.0, %v987
      %989 = vmatprep.mubr.bf16.mxu0 %v558
      %990 = vmatmul.mubr.bf16.gmra.mxu0 %v557
      %v991 = vpop.f32.mrf.mxu0
      %v992 = vadd.f32 0.0, %v991
      %v993 = vpop.f32.mrf.mxu0
      %v994 = vadd.f32 0.0, %v993
      %v995 = vpop.f32.mrf.mxu0
      %v996 = vadd.f32 0.0, %v995
      %v997 = vpop.f32.mrf.mxu0
      %v998 = vadd.f32 0.0, %v997
      %999 = vmatprep.mubr.bf16.mxu0 %v560
      %1000 = vmatmul.mubr.bf16.gmra.mxu0 %v559
      %v1001 = vpop.f32.mrf.mxu0
      %v1002 = vadd.f32 0.0, %v1001
      %v1003 = vpop.f32.mrf.mxu0
      %v1004 = vadd.f32 0.0, %v1003
      %v1005 = vpop.f32.mrf.mxu0
      %v1006 = vadd.f32 0.0, %v1005
      %v1007 = vpop.f32.mrf.mxu0
      %v1008 = vadd.f32 0.0, %v1007
      %1009 = vdwg.mxu0
      %1010 = vmatprep.subr.bf16.mxu0 %v800
      %1011 = vmatpush1.bf16.msra.mxu0 %v799
      %1012 = vmatprep.subr.bf16.mxu0 %v796
      %1013 = vmatpush1.bf16.msra.mxu0 %v795
      %1014 = vmatprep.subr.bf16.mxu0 %v792
      %1015 = vmatpush1.bf16.msra.mxu0 %v791
      %1016 = vmatprep.subr.bf16.mxu0 %v788
      %1017 = vmatpush1.bf16.msra.mxu0 %v787
      %1018 = vmatprep.subr.bf16.mxu0 %v784
      %1019 = vmatpush1.bf16.msra.mxu0 %v783
      %1020 = vmatprep.subr.bf16.mxu0 %v780
      %1021 = vmatpush1.bf16.msra.mxu0 %v779
      %1022 = vmatprep.subr.bf16.mxu0 %v776
      %1023 = vmatpush1.bf16.msra.mxu0 %v775
      %1024 = vmatprep.subr.bf16.mxu0 %v772
      %1025 = vmatpush1.bf16.msra.mxu0 %v771
      %1026 = vmatprep.subr.bf16.mxu0 %v832
      %1027 = vmatpush2.bf16.msra.mxu0 %v831
      %1028 = vmatprep.subr.bf16.mxu0 %v828
      %1029 = vmatpush2.bf16.msra.mxu0 %v827
      %1030 = vmatprep.subr.bf16.mxu0 %v824
      %1031 = vmatpush2.bf16.msra.mxu0 %v823
      %1032 = vmatprep.subr.bf16.mxu0 %v820
      %1033 = vmatpush2.bf16.msra.mxu0 %v819
      %1034 = vmatprep.subr.bf16.mxu0 %v816
      %1035 = vmatpush2.bf16.msra.mxu0 %v815
      %1036 = vmatprep.subr.bf16.mxu0 %v812
      %1037 = vmatpush2.bf16.msra.mxu0 %v811
      %1038 = vmatprep.subr.bf16.mxu0 %v808
      %1039 = vmatpush2.bf16.msra.mxu0 %v807
      %1040 = vmatprep.subr.bf16.mxu0 %v804
      %1041 = vmatpush2.bf16.msra.mxu0 %v803
      %1042 = vmatprep.mubr.bf16.mxu0 %v546
      %1043 = vmatmul.mubr.bf16.gmra.mxu0 %v545
      %v1044 = vpop.f32.mrf.mxu0
      %v1045 = vadd.f32 0.0, %v1044
      %v1046 = vpop.f32.mrf.mxu0
      %v1047 = vadd.f32 0.0, %v1046
      %v1048 = vpop.f32.mrf.mxu0
      %v1049 = vadd.f32 0.0, %v1048
      %v1050 = vpop.f32.mrf.mxu0
      %v1051 = vadd.f32 0.0, %v1050
      %1052 = vmatprep.mubr.bf16.mxu0 %v548
      %1053 = vmatmul.mubr.bf16.gmra.mxu0 %v547
      %v1054 = vpop.f32.mrf.mxu0
      %v1055 = vadd.f32 0.0, %v1054
      %v1056 = vpop.f32.mrf.mxu0
      %v1057 = vadd.f32 0.0, %v1056
      %v1058 = vpop.f32.mrf.mxu0
      %v1059 = vadd.f32 0.0, %v1058
      %v1060 = vpop.f32.mrf.mxu0
      %v1061 = vadd.f32 0.0, %v1060
      %1062 = vmatprep.mubr.bf16.mxu0 %v550
      %1063 = vmatmul.mubr.bf16.gmra.mxu0 %v549
      %v1064 = vpop.f32.mrf.mxu0
      %v1065 = vadd.f32 0.0, %v1064
      %v1066 = vpop.f32.mrf.mxu0
      %v1067 = vadd.f32 0.0, %v1066
      %v1068 = vpop.f32.mrf.mxu0
      %v1069 = vadd.f32 0.0, %v1068
      %v1070 = vpop.f32.mrf.mxu0
      %v1071 = vadd.f32 0.0, %v1070
      %1072 = vmatprep.mubr.bf16.mxu0 %v552
      %1073 = vmatmul.mubr.bf16.gmra.mxu0 %v551
      %v1074 = vpop.f32.mrf.mxu0
      %v1075 = vadd.f32 0.0, %v1074
      %v1076 = vpop.f32.mrf.mxu0
      %v1077 = vadd.f32 0.0, %v1076
      %v1078 = vpop.f32.mrf.mxu0
      %v1079 = vadd.f32 0.0, %v1078
      %v1080 = vpop.f32.mrf.mxu0
      %v1081 = vadd.f32 0.0, %v1080
      %1082 = vmatprep.mubr.bf16.mxu0 %v554
      %1083 = vmatmul.mubr.bf16.gmra.mxu0 %v553
      %v1084 = vpop.f32.mrf.mxu0
      %v1085 = vadd.f32 0.0, %v1084
      %v1086 = vpop.f32.mrf.mxu0
      %v1087 = vadd.f32 0.0, %v1086
      %v1088 = vpop.f32.mrf.mxu0
      %v1089 = vadd.f32 0.0, %v1088
      %v1090 = vpop.f32.mrf.mxu0
      %v1091 = vadd.f32 0.0, %v1090
      %1092 = vmatprep.mubr.bf16.mxu0 %v556
      %1093 = vmatmul.mubr.bf16.gmra.mxu0 %v555
      %v1094 = vpop.f32.mrf.mxu0
      %v1095 = vadd.f32 0.0, %v1094
      %v1096 = vpop.f32.mrf.mxu0
      %v1097 = vadd.f32 0.0, %v1096
      %v1098 = vpop.f32.mrf.mxu0
      %v1099 = vadd.f32 0.0, %v1098
      %v1100 = vpop.f32.mrf.mxu0
      %v1101 = vadd.f32 0.0, %v1100
      %1102 = vmatprep.mubr.bf16.mxu0 %v558
      %1103 = vmatmul.mubr.bf16.gmra.mxu0 %v557
      %v1104 = vpop.f32.mrf.mxu0
      %v1105 = vadd.f32 0.0, %v1104
      %v1106 = vpop.f32.mrf.mxu0
      %v1107 = vadd.f32 0.0, %v1106
      %v1108 = vpop.f32.mrf.mxu0
      %v1109 = vadd.f32 0.0, %v1108
      %v1110 = vpop.f32.mrf.mxu0
      %v1111 = vadd.f32 0.0, %v1110
      %1112 = vmatprep.mubr.bf16.mxu0 %v560
      %1113 = vmatmul.mubr.bf16.gmra.mxu0 %v559
      %v1114 = vpop.f32.mrf.mxu0
      %v1115 = vadd.f32 0.0, %v1114
      %v1116 = vpop.f32.mrf.mxu0
      %v1117 = vadd.f32 0.0, %v1116
      %v1118 = vpop.f32.mrf.mxu0
      %v1119 = vadd.f32 0.0, %v1118
      %v1120 = vpop.f32.mrf.mxu0
      %v1121 = vadd.f32 0.0, %v1120
      %1122 = vdwg.mxu0
      %v1123 = vadd.f32 %v353, %v932
      %v1124 = vadd.f32 %v354, %v934
      %v1125 = vadd.f32 %v355, %v1045
      %v1126 = vadd.f32 %v356, %v1047
      %v1127 = vadd.f32 %v357, %v936
      %v1128 = vadd.f32 %v358, %v938
      %v1129 = vadd.f32 %v359, %v1049
      %v1130 = vadd.f32 %v360, %v1051
      %v1131 = vadd.f32 %v361, %v942
      %v1132 = vadd.f32 %v362, %v944
      %v1133 = vadd.f32 %v363, %v1055
      %v1134 = vadd.f32 %v364, %v1057
      %v1135 = vadd.f32 %v365, %v946
      %v1136 = vadd.f32 %v366, %v948
      %v1137 = vadd.f32 %v367, %v1059
      %v1138 = vadd.f32 %v368, %v1061
      %v1139 = vadd.f32 %v369, %v952
      %v1140 = vadd.f32 %v370, %v954
      %v1141 = vadd.f32 %v371, %v1065
      %v1142 = vadd.f32 %v372, %v1067
      %v1143 = vadd.f32 %v373, %v956
      %v1144 = vadd.f32 %v374, %v958
      %v1145 = vadd.f32 %v375, %v1069
      %v1146 = vadd.f32 %v376, %v1071
      %v1147 = vadd.f32 %v377, %v962
      %v1148 = vadd.f32 %v378, %v964
      %v1149 = vadd.f32 %v379, %v1075
      %v1150 = vadd.f32 %v380, %v1077
      %v1151 = vadd.f32 %v381, %v966
      %v1152 = vadd.f32 %v382, %v968
      %v1153 = vadd.f32 %v383, %v1079
      %v1154 = vadd.f32 %v384, %v1081
      %v1155 = vadd.f32 %v385, %v972
      %v1156 = vadd.f32 %v386, %v974
      %v1157 = vadd.f32 %v387, %v1085
      %v1158 = vadd.f32 %v388, %v1087
      %v1159 = vadd.f32 %v389, %v976
      %v1160 = vadd.f32 %v390, %v978
      %v1161 = vadd.f32 %v391, %v1089
      %v1162 = vadd.f32 %v392, %v1091
      %v1163 = vadd.f32 %v393, %v982
      %v1164 = vadd.f32 %v394, %v984
      %v1165 = vadd.f32 %v395, %v1095
      %v1166 = vadd.f32 %v396, %v1097
      %v1167 = vadd.f32 %v397, %v986
      %v1168 = vadd.f32 %v398, %v988
      %v1169 = vadd.f32 %v399, %v1099
      %v1170 = vadd.f32 %v400, %v1101
      %v1171 = vadd.f32 %v401, %v992
      %v1172 = vadd.f32 %v402, %v994
      %v1173 = vadd.f32 %v403, %v1105
      %v1174 = vadd.f32 %v404, %v1107
      %v1175 = vadd.f32 %v405, %v996
      %v1176 = vadd.f32 %v406, %v998
      %v1177 = vadd.f32 %v407, %v1109
      %v1178 = vadd.f32 %v408, %v1111
      %v1179 = vadd.f32 %v409, %v1002
      %v1180 = vadd.f32 %v410, %v1004
      %v1181 = vadd.f32 %v411, %v1115
      %v1182 = vadd.f32 %v412, %v1117
      %v1183 = vadd.f32 %v413, %v1006
      %v1184 = vadd.f32 %v414, %v1008
      %v1185 = vadd.f32 %v415, %v1119
      %v1186 = vadd.f32 %v416, %v1121
      %1187 = vst [vmem:[#allocation2] sm:$0xff] %v1123
      %1188 = vst [vmem:[#allocation2 + $0x8] sm:$0xff] %v1124
      %1189 = vst [vmem:[#allocation2 + $0x10] sm:$0xff] %v1125
      %1190 = vst [vmem:[#allocation2 + $0x18] sm:$0xff] %v1126
      %1191 = vst [vmem:[#allocation2 + $0x20] sm:$0xff] %v1127
      %1192 = vst [vmem:[#allocation2 + $0x28] sm:$0xff] %v1128
      %1193 = vst [vmem:[#allocation2 + $0x30] sm:$0xff] %v1129
      %1194 = vst [vmem:[#allocation2 + $0x38] sm:$0xff] %v1130
      %1195 = vst [vmem:[#allocation2 + $0x40] sm:$0xff] %v1131
      %1196 = vst [vmem:[#allocation2 + $0x48] sm:$0xff] %v1132
      %1197 = vst [vmem:[#allocation2 + $0x50] sm:$0xff] %v1133
      %1198 = vst [vmem:[#allocation2 + $0x58] sm:$0xff] %v1134
      %1199 = vst [vmem:[#allocation2 + $0x60] sm:$0xff] %v1135
      %1200 = vst [vmem:[#allocation2 + $0x68] sm:$0xff] %v1136
      %1201 = vst [vmem:[#allocation2 + $0x70] sm:$0xff] %v1137
      %1202 = vst [vmem:[#allocation2 + $0x78] sm:$0xff] %v1138
      %1203 = vst [vmem:[#allocation2 + $0x80] sm:$0xff] %v1139
      %1204 = vst [vmem:[#allocation2 + $0x88] sm:$0xff] %v1140
      %1205 = vst [vmem:[#allocation2 + $0x90] sm:$0xff] %v1141
      %1206 = vst [vmem:[#allocation2 + $0x98] sm:$0xff] %v1142
      %1207 = vst [vmem:[#allocation2 + $0xa0] sm:$0xff] %v1143
      %1208 = vst [vmem:[#allocation2 + $0xa8] sm:$0xff] %v1144
      %1209 = vst [vmem:[#allocation2 + $0xb0] sm:$0xff] %v1145
      %1210 = vst [vmem:[#allocation2 + $0xb8] sm:$0xff] %v1146
      %1211 = vst [vmem:[#allocation2 + $0xc0] sm:$0xff] %v1147
      %1212 = vst [vmem:[#allocation2 + $0xc8] sm:$0xff] %v1148
      %1213 = vst [vmem:[#allocation2 + $0xd0] sm:$0xff] %v1149
      %1214 = vst [vmem:[#allocation2 + $0xd8] sm:$0xff] %v1150
      %1215 = vst [vmem:[#allocation2 + $0xe0] sm:$0xff] %v1151
      %1216 = vst [vmem:[#allocation2 + $0xe8] sm:$0xff] %v1152
      %1217 = vst [vmem:[#allocation2 + $0xf0] sm:$0xff] %v1153
      %1218 = vst [vmem:[#allocation2 + $0xf8] sm:$0xff] %v1154
      %1219 = vst [vmem:[#allocation2 + $0x100] sm:$0xff] %v1155
      %1220 = vst [vmem:[#allocation2 + $0x108] sm:$0xff] %v1156
      %1221 = vst [vmem:[#allocation2 + $0x110] sm:$0xff] %v1157
      %1222 = vst [vmem:[#allocation2 + $0x118] sm:$0xff] %v1158
      %1223 = vst [vmem:[#allocation2 + $0x120] sm:$0xff] %v1159
      %1224 = vst [vmem:[#allocation2 + $0x128] sm:$0xff] %v1160
      %1225 = vst [vmem:[#allocation2 + $0x130] sm:$0xff] %v1161
      %1226 = vst [vmem:[#allocation2 + $0x138] sm:$0xff] %v1162
      %1227 = vst [vmem:[#allocation2 + $0x140] sm:$0xff] %v1163
      %1228 = vst [vmem:[#allocation2 + $0x148] sm:$0xff] %v1164
      %1229 = vst [vmem:[#allocation2 + $0x150] sm:$0xff] %v1165
      %1230 = vst [vmem:[#allocation2 + $0x158] sm:$0xff] %v1166
      %1231 = vst [vmem:[#allocation2 + $0x160] sm:$0xff] %v1167
      %1232 = vst [vmem:[#allocation2 + $0x168] sm:$0xff] %v1168
      %1233 = vst [vmem:[#allocation2 + $0x170] sm:$0xff] %v1169
      %1234 = vst [vmem:[#allocation2 + $0x178] sm:$0xff] %v1170
      %1235 = vst [vmem:[#allocation2 + $0x180] sm:$0xff] %v1171
      %1236 = vst [vmem:[#allocation2 + $0x188] sm:$0xff] %v1172
      %1237 = vst [vmem:[#allocation2 + $0x190] sm:$0xff] %v1173
      %1238 = vst [vmem:[#allocation2 + $0x198] sm:$0xff] %v1174
      %1239 = vst [vmem:[#allocation2 + $0x1a0] sm:$0xff] %v1175
      %1240 = vst [vmem:[#allocation2 + $0x1a8] sm:$0xff] %v1176
      %1241 = vst [vmem:[#allocation2 + $0x1b0] sm:$0xff] %v1177
      %1242 = vst [vmem:[#allocation2 + $0x1b8] sm:$0xff] %v1178
      %1243 = vst [vmem:[#allocation2 + $0x1c0] sm:$0xff] %v1179
      %1244 = vst [vmem:[#allocation2 + $0x1c8] sm:$0xff] %v1180
      %1245 = vst [vmem:[#allocation2 + $0x1d0] sm:$0xff] %v1181
      %1246 = vst [vmem:[#allocation2 + $0x1d8] sm:$0xff] %v1182
      %1247 = vst [vmem:[#allocation2 + $0x1e0] sm:$0xff] %v1183
      %1248 = vst [vmem:[#allocation2 + $0x1e8] sm:$0xff] %v1184
      %1249 = vst [vmem:[#allocation2 + $0x1f0] sm:$0xff] %v1185
      %1250 = vst [vmem:[#allocation2 + $0x1f8] sm:$0xff] %v1186
      // Predicated region
      $region37: #{bert_encoder_forward.16} parent=31 // pred_check
        %p1251 = pneg %p285
      $region38: #{bert_encoder_forward.16} parent=31 // pred_check_branch
        %1253 = sbr.rel (%p1251) target = $region40
      $region39: #{bert_encoder_forward.16} parent=31 // pred_region
        %v1254 = vld [vmem:[#allocation2] sm:$0xff]
        %v1255 = vld [vmem:[#allocation2 + $0x8] sm:$0xff]
        %v1256 = vld [vmem:[#allocation2 + $0x10] sm:$0xff]
        %v1257 = vld [vmem:[#allocation2 + $0x18] sm:$0xff]
        %v1258 = vld [vmem:[#allocation2 + $0x20] sm:$0xff]
        %v1259 = vld [vmem:[#allocation2 + $0x28] sm:$0xff]
        %v1260 = vld [vmem:[#allocation2 + $0x30] sm:$0xff]
        %v1261 = vld [vmem:[#allocation2 + $0x38] sm:$0xff]
        %v1262 = vld [vmem:[#allocation2 + $0x40] sm:$0xff]
        %v1263 = vld [vmem:[#allocation2 + $0x48] sm:$0xff]
        %v1264 = vld [vmem:[#allocation2 + $0x50] sm:$0xff]
        %v1265 = vld [vmem:[#allocation2 + $0x58] sm:$0xff]
        %v1266 = vld [vmem:[#allocation2 + $0x60] sm:$0xff]
        %v1267 = vld [vmem:[#allocation2 + $0x68] sm:$0xff]
        %v1268 = vld [vmem:[#allocation2 + $0x70] sm:$0xff]
        %v1269 = vld [vmem:[#allocation2 + $0x78] sm:$0xff]
        %v1270 = vld [vmem:[#allocation2 + $0x80] sm:$0xff]
        %v1271 = vld [vmem:[#allocation2 + $0x88] sm:$0xff]
        %v1272 = vld [vmem:[#allocation2 + $0x90] sm:$0xff]
        %v1273 = vld [vmem:[#allocation2 + $0x98] sm:$0xff]
        %v1274 = vld [vmem:[#allocation2 + $0xa0] sm:$0xff]
        %v1275 = vld [vmem:[#allocation2 + $0xa8] sm:$0xff]
        %v1276 = vld [vmem:[#allocation2 + $0xb0] sm:$0xff]
        %v1277 = vld [vmem:[#allocation2 + $0xb8] sm:$0xff]
        %v1278 = vld [vmem:[#allocation2 + $0xc0] sm:$0xff]
        %v1279 = vld [vmem:[#allocation2 + $0xc8] sm:$0xff]
        %v1280 = vld [vmem:[#allocation2 + $0xd0] sm:$0xff]
        %v1281 = vld [vmem:[#allocation2 + $0xd8] sm:$0xff]
        %v1282 = vld [vmem:[#allocation2 + $0xe0] sm:$0xff]
        %v1283 = vld [vmem:[#allocation2 + $0xe8] sm:$0xff]
        %v1284 = vld [vmem:[#allocation2 + $0xf0] sm:$0xff]
        %v1285 = vld [vmem:[#allocation2 + $0xf8] sm:$0xff]
        %v1286 = vld [vmem:[#allocation2 + $0x100] sm:$0xff]
        %v1287 = vld [vmem:[#allocation2 + $0x108] sm:$0xff]
        %v1288 = vld [vmem:[#allocation2 + $0x110] sm:$0xff]
        %v1289 = vld [vmem:[#allocation2 + $0x118] sm:$0xff]
        %v1290 = vld [vmem:[#allocation2 + $0x120] sm:$0xff]
        %v1291 = vld [vmem:[#allocation2 + $0x128] sm:$0xff]
        %v1292 = vld [vmem:[#allocation2 + $0x130] sm:$0xff]
        %v1293 = vld [vmem:[#allocation2 + $0x138] sm:$0xff]
        %v1294 = vld [vmem:[#allocation2 + $0x140] sm:$0xff]
        %v1295 = vld [vmem:[#allocation2 + $0x148] sm:$0xff]
        %v1296 = vld [vmem:[#allocation2 + $0x150] sm:$0xff]
        %v1297 = vld [vmem:[#allocation2 + $0x158] sm:$0xff]
        %v1298 = vld [vmem:[#allocation2 + $0x160] sm:$0xff]
        %v1299 = vld [vmem:[#allocation2 + $0x168] sm:$0xff]
        %v1300 = vld [vmem:[#allocation2 + $0x170] sm:$0xff]
        %v1301 = vld [vmem:[#allocation2 + $0x178] sm:$0xff]
        %v1302 = vld [vmem:[#allocation2 + $0x180] sm:$0xff]
        %v1303 = vld [vmem:[#allocation2 + $0x188] sm:$0xff]
        %v1304 = vld [vmem:[#allocation2 + $0x190] sm:$0xff]
        %v1305 = vld [vmem:[#allocation2 + $0x198] sm:$0xff]
        %v1306 = vld [vmem:[#allocation2 + $0x1a0] sm:$0xff]
        %v1307 = vld [vmem:[#allocation2 + $0x1a8] sm:$0xff]
        %v1308 = vld [vmem:[#allocation2 + $0x1b0] sm:$0xff]
        %v1309 = vld [vmem:[#allocation2 + $0x1b8] sm:$0xff]
        %v1310 = vld [vmem:[#allocation2 + $0x1c0] sm:$0xff]
        %v1311 = vld [vmem:[#allocation2 + $0x1c8] sm:$0xff]
        %v1312 = vld [vmem:[#allocation2 + $0x1d0] sm:$0xff]
        %v1313 = vld [vmem:[#allocation2 + $0x1d8] sm:$0xff]
        %v1314 = vld [vmem:[#allocation2 + $0x1e0] sm:$0xff]
        %v1315 = vld [vmem:[#allocation2 + $0x1e8] sm:$0xff]
        %v1316 = vld [vmem:[#allocation2 + $0x1f0] sm:$0xff]
        %v1317 = vld [vmem:[#allocation2 + $0x1f8] sm:$0xff]
        %v1318 = vld [vmem:[%s271] sm:$0xf]
        %v1320 = vlaneseq
        %v1321 = vshrl.u32 %v1320, 7
        %v1322 = vsub.s32 0, %v1321
        %v1323 = vrot.slane %v1318, %v1322
        %v1324 = vlaneseq
        %v1325 = vshrl.u32 %v1324, 7
        %v1326 = vsub.s32 1, %v1325
        %v1327 = vrot.slane %v1318, %v1326
        %v1328 = vlaneseq
        %v1329 = vshrl.u32 %v1328, 7
        %v1330 = vsub.s32 2, %v1329
        %v1331 = vrot.slane %v1318, %v1330
        %v1332 = vlaneseq
        %v1333 = vshrl.u32 %v1332, 7
        %v1334 = vsub.s32 3, %v1333
        %v1335 = vrot.slane %v1318, %v1334
        %v1340 = vadd.f32 %v1254, %v1323
        %v1341 = vadd.f32 %v1255, %v1327
        %v1342 = vadd.f32 %v1256, %v1331
        %v1343 = vadd.f32 %v1257, %v1335
        %v1344 = vadd.f32 %v1258, %v1323
        %v1345 = vadd.f32 %v1259, %v1327
        %v1346 = vadd.f32 %v1260, %v1331
        %v1347 = vadd.f32 %v1261, %v1335
        %v1348 = vadd.f32 %v1262, %v1323
        %v1349 = vadd.f32 %v1263, %v1327
        %v1350 = vadd.f32 %v1264, %v1331
        %v1351 = vadd.f32 %v1265, %v1335
        %v1352 = vadd.f32 %v1266, %v1323
        %v1353 = vadd.f32 %v1267, %v1327
        %v1354 = vadd.f32 %v1268, %v1331
        %v1355 = vadd.f32 %v1269, %v1335
        %v1356 = vadd.f32 %v1270, %v1323
        %v1357 = vadd.f32 %v1271, %v1327
        %v1358 = vadd.f32 %v1272, %v1331
        %v1359 = vadd.f32 %v1273, %v1335
        %v1360 = vadd.f32 %v1274, %v1323
        %v1361 = vadd.f32 %v1275, %v1327
        %v1362 = vadd.f32 %v1276, %v1331
        %v1363 = vadd.f32 %v1277, %v1335
        %v1364 = vadd.f32 %v1278, %v1323
        %v1365 = vadd.f32 %v1279, %v1327
        %v1366 = vadd.f32 %v1280, %v1331
        %v1367 = vadd.f32 %v1281, %v1335
        %v1368 = vadd.f32 %v1282, %v1323
        %v1369 = vadd.f32 %v1283, %v1327
        %v1370 = vadd.f32 %v1284, %v1331
        %v1371 = vadd.f32 %v1285, %v1335
        %v1372 = vadd.f32 %v1286, %v1323
        %v1373 = vadd.f32 %v1287, %v1327
        %v1374 = vadd.f32 %v1288, %v1331
        %v1375 = vadd.f32 %v1289, %v1335
        %v1376 = vadd.f32 %v1290, %v1323
        %v1377 = vadd.f32 %v1291, %v1327
        %v1378 = vadd.f32 %v1292, %v1331
        %v1379 = vadd.f32 %v1293, %v1335
        %v1380 = vadd.f32 %v1294, %v1323
        %v1381 = vadd.f32 %v1295, %v1327
        %v1382 = vadd.f32 %v1296, %v1331
        %v1383 = vadd.f32 %v1297, %v1335
        %v1384 = vadd.f32 %v1298, %v1323
        %v1385 = vadd.f32 %v1299, %v1327
        %v1386 = vadd.f32 %v1300, %v1331
        %v1387 = vadd.f32 %v1301, %v1335
        %v1388 = vadd.f32 %v1302, %v1323
        %v1389 = vadd.f32 %v1303, %v1327
        %v1390 = vadd.f32 %v1304, %v1331
        %v1391 = vadd.f32 %v1305, %v1335
        %v1392 = vadd.f32 %v1306, %v1323
        %v1393 = vadd.f32 %v1307, %v1327
        %v1394 = vadd.f32 %v1308, %v1331
        %v1395 = vadd.f32 %v1309, %v1335
        %v1396 = vadd.f32 %v1310, %v1323
        %v1397 = vadd.f32 %v1311, %v1327
        %v1398 = vadd.f32 %v1312, %v1331
        %v1399 = vadd.f32 %v1313, %v1335
        %v1400 = vadd.f32 %v1314, %v1323
        %v1401 = vadd.f32 %v1315, %v1327
        %v1402 = vadd.f32 %v1316, %v1331
        %v1403 = vadd.f32 %v1317, %v1335
        %v1404 = vmul.f32 %v1340, 0.5
        %v1405 = vmul.f32 %v1341, 0.5
        %v1406 = vmul.f32 %v1342, 0.5
        %v1407 = vmul.f32 %v1343, 0.5
        %v1408 = vmul.f32 %v1344, 0.5
        %v1409 = vmul.f32 %v1345, 0.5
        %v1410 = vmul.f32 %v1346, 0.5
        %v1411 = vmul.f32 %v1347, 0.5
        %v1412 = vmul.f32 %v1348, 0.5
        %v1413 = vmul.f32 %v1349, 0.5
        %v1414 = vmul.f32 %v1350, 0.5
        %v1415 = vmul.f32 %v1351, 0.5
        %v1416 = vmul.f32 %v1352, 0.5
        %v1417 = vmul.f32 %v1353, 0.5
        %v1418 = vmul.f32 %v1354, 0.5
        %v1419 = vmul.f32 %v1355, 0.5
        %v1420 = vmul.f32 %v1356, 0.5
        %v1421 = vmul.f32 %v1357, 0.5
        %v1422 = vmul.f32 %v1358, 0.5
        %v1423 = vmul.f32 %v1359, 0.5
        %v1424 = vmul.f32 %v1360, 0.5
        %v1425 = vmul.f32 %v1361, 0.5
        %v1426 = vmul.f32 %v1362, 0.5
        %v1427 = vmul.f32 %v1363, 0.5
        %v1428 = vmul.f32 %v1364, 0.5
        %v1429 = vmul.f32 %v1365, 0.5
        %v1430 = vmul.f32 %v1366, 0.5
        %v1431 = vmul.f32 %v1367, 0.5
        %v1432 = vmul.f32 %v1368, 0.5
        %v1433 = vmul.f32 %v1369, 0.5
        %v1434 = vmul.f32 %v1370, 0.5
        %v1435 = vmul.f32 %v1371, 0.5
        %v1436 = vmul.f32 %v1372, 0.5
        %v1437 = vmul.f32 %v1373, 0.5
        %v1438 = vmul.f32 %v1374, 0.5
        %v1439 = vmul.f32 %v1375, 0.5
        %v1440 = vmul.f32 %v1376, 0.5
        %v1441 = vmul.f32 %v1377, 0.5
        %v1442 = vmul.f32 %v1378, 0.5
        %v1443 = vmul.f32 %v1379, 0.5
        %v1444 = vmul.f32 %v1380, 0.5
        %v1445 = vmul.f32 %v1381, 0.5
        %v1446 = vmul.f32 %v1382, 0.5
        %v1447 = vmul.f32 %v1383, 0.5
        %v1448 = vmul.f32 %v1384, 0.5
        %v1449 = vmul.f32 %v1385, 0.5
        %v1450 = vmul.f32 %v1386, 0.5
        %v1451 = vmul.f32 %v1387, 0.5
        %v1452 = vmul.f32 %v1388, 0.5
        %v1453 = vmul.f32 %v1389, 0.5
        %v1454 = vmul.f32 %v1390, 0.5
        %v1455 = vmul.f32 %v1391, 0.5
        %v1456 = vmul.f32 %v1392, 0.5
        %v1457 = vmul.f32 %v1393, 0.5
        %v1458 = vmul.f32 %v1394, 0.5
        %v1459 = vmul.f32 %v1395, 0.5
        %v1460 = vmul.f32 %v1396, 0.5
        %v1461 = vmul.f32 %v1397, 0.5
        %v1462 = vmul.f32 %v1398, 0.5
        %v1463 = vmul.f32 %v1399, 0.5
        %v1464 = vmul.f32 %v1400, 0.5
        %v1465 = vmul.f32 %v1401, 0.5
        %v1466 = vmul.f32 %v1402, 0.5
        %v1467 = vmul.f32 %v1403, 0.5
        %v1468 = vmul.f32 %v1340, 0.044715
        %v1469 = vmul.f32 %v1341, 0.044715
        %v1470 = vmul.f32 %v1342, 0.044715
        %v1471 = vmul.f32 %v1343, 0.044715
        %v1472 = vmul.f32 %v1344, 0.044715
        %v1473 = vmul.f32 %v1345, 0.044715
        %v1474 = vmul.f32 %v1346, 0.044715
        %v1475 = vmul.f32 %v1347, 0.044715
        %v1476 = vmul.f32 %v1348, 0.044715
        %v1477 = vmul.f32 %v1349, 0.044715
        %v1478 = vmul.f32 %v1350, 0.044715
        %v1479 = vmul.f32 %v1351, 0.044715
        %v1480 = vmul.f32 %v1352, 0.044715
        %v1481 = vmul.f32 %v1353, 0.044715
        %v1482 = vmul.f32 %v1354, 0.044715
        %v1483 = vmul.f32 %v1355, 0.044715
        %v1484 = vmul.f32 %v1356, 0.044715
        %v1485 = vmul.f32 %v1357, 0.044715
        %v1486 = vmul.f32 %v1358, 0.044715
        %v1487 = vmul.f32 %v1359, 0.044715
        %v1488 = vmul.f32 %v1360, 0.044715
        %v1489 = vmul.f32 %v1361, 0.044715
        %v1490 = vmul.f32 %v1362, 0.044715
        %v1491 = vmul.f32 %v1363, 0.044715
        %v1492 = vmul.f32 %v1364, 0.044715
        %v1493 = vmul.f32 %v1365, 0.044715
        %v1494 = vmul.f32 %v1366, 0.044715
        %v1495 = vmul.f32 %v1367, 0.044715
        %v1496 = vmul.f32 %v1368, 0.044715
        %v1497 = vmul.f32 %v1369, 0.044715
        %v1498 = vmul.f32 %v1370, 0.044715
        %v1499 = vmul.f32 %v1371, 0.044715
        %v1500 = vmul.f32 %v1372, 0.044715
        %v1501 = vmul.f32 %v1373, 0.044715
        %v1502 = vmul.f32 %v1374, 0.044715
        %v1503 = vmul.f32 %v1375, 0.044715
        %v1504 = vmul.f32 %v1376, 0.044715
        %v1505 = vmul.f32 %v1377, 0.044715
        %v1506 = vmul.f32 %v1378, 0.044715
        %v1507 = vmul.f32 %v1379, 0.044715
        %v1508 = vmul.f32 %v1380, 0.044715
        %v1509 = vmul.f32 %v1381, 0.044715
        %v1510 = vmul.f32 %v1382, 0.044715
        %v1511 = vmul.f32 %v1383, 0.044715
        %v1512 = vmul.f32 %v1384, 0.044715
        %v1513 = vmul.f32 %v1385, 0.044715
        %v1514 = vmul.f32 %v1386, 0.044715
        %v1515 = vmul.f32 %v1387, 0.044715
        %v1516 = vmul.f32 %v1388, 0.044715
        %v1517 = vmul.f32 %v1389, 0.044715
        %v1518 = vmul.f32 %v1390, 0.044715
        %v1519 = vmul.f32 %v1391, 0.044715
        %v1520 = vmul.f32 %v1392, 0.044715
        %v1521 = vmul.f32 %v1393, 0.044715
        %v1522 = vmul.f32 %v1394, 0.044715
        %v1523 = vmul.f32 %v1395, 0.044715
        %v1524 = vmul.f32 %v1396, 0.044715
        %v1525 = vmul.f32 %v1397, 0.044715
        %v1526 = vmul.f32 %v1398, 0.044715
        %v1527 = vmul.f32 %v1399, 0.044715
        %v1528 = vmul.f32 %v1400, 0.044715
        %v1529 = vmul.f32 %v1401, 0.044715
        %v1530 = vmul.f32 %v1402, 0.044715
        %v1531 = vmul.f32 %v1403, 0.044715
        %v1532 = vmul.f32 %v1468, %v1340
        %v1533 = vmul.f32 %v1469, %v1341
        %v1534 = vmul.f32 %v1470, %v1342
        %v1535 = vmul.f32 %v1471, %v1343
        %v1536 = vmul.f32 %v1472, %v1344
        %v1537 = vmul.f32 %v1473, %v1345
        %v1538 = vmul.f32 %v1474, %v1346
        %v1539 = vmul.f32 %v1475, %v1347
        %v1540 = vmul.f32 %v1476, %v1348
        %v1541 = vmul.f32 %v1477, %v1349
        %v1542 = vmul.f32 %v1478, %v1350
        %v1543 = vmul.f32 %v1479, %v1351
        %v1544 = vmul.f32 %v1480, %v1352
        %v1545 = vmul.f32 %v1481, %v1353
        %v1546 = vmul.f32 %v1482, %v1354
        %v1547 = vmul.f32 %v1483, %v1355
        %v1548 = vmul.f32 %v1484, %v1356
        %v1549 = vmul.f32 %v1485, %v1357
        %v1550 = vmul.f32 %v1486, %v1358
        %v1551 = vmul.f32 %v1487, %v1359
        %v1552 = vmul.f32 %v1488, %v1360
        %v1553 = vmul.f32 %v1489, %v1361
        %v1554 = vmul.f32 %v1490, %v1362
        %v1555 = vmul.f32 %v1491, %v1363
        %v1556 = vmul.f32 %v1492, %v1364
        %v1557 = vmul.f32 %v1493, %v1365
        %v1558 = vmul.f32 %v1494, %v1366
        %v1559 = vmul.f32 %v1495, %v1367
        %v1560 = vmul.f32 %v1496, %v1368
        %v1561 = vmul.f32 %v1497, %v1369
        %v1562 = vmul.f32 %v1498, %v1370
        %v1563 = vmul.f32 %v1499, %v1371
        %v1564 = vmul.f32 %v1500, %v1372
        %v1565 = vmul.f32 %v1501, %v1373
        %v1566 = vmul.f32 %v1502, %v1374
        %v1567 = vmul.f32 %v1503, %v1375
        %v1568 = vmul.f32 %v1504, %v1376
        %v1569 = vmul.f32 %v1505, %v1377
        %v1570 = vmul.f32 %v1506, %v1378
        %v1571 = vmul.f32 %v1507, %v1379
        %v1572 = vmul.f32 %v1508, %v1380
        %v1573 = vmul.f32 %v1509, %v1381
        %v1574 = vmul.f32 %v1510, %v1382
        %v1575 = vmul.f32 %v1511, %v1383
        %v1576 = vmul.f32 %v1512, %v1384
        %v1577 = vmul.f32 %v1513, %v1385
        %v1578 = vmul.f32 %v1514, %v1386
        %v1579 = vmul.f32 %v1515, %v1387
        %v1580 = vmul.f32 %v1516, %v1388
        %v1581 = vmul.f32 %v1517, %v1389
        %v1582 = vmul.f32 %v1518, %v1390
        %v1583 = vmul.f32 %v1519, %v1391
        %v1584 = vmul.f32 %v1520, %v1392
        %v1585 = vmul.f32 %v1521, %v1393
        %v1586 = vmul.f32 %v1522, %v1394
        %v1587 = vmul.f32 %v1523, %v1395
        %v1588 = vmul.f32 %v1524, %v1396
        %v1589 = vmul.f32 %v1525, %v1397
        %v1590 = vmul.f32 %v1526, %v1398
        %v1591 = vmul.f32 %v1527, %v1399
        %v1592 = vmul.f32 %v1528, %v1400
        %v1593 = vmul.f32 %v1529, %v1401
        %v1594 = vmul.f32 %v1530, %v1402
        %v1595 = vmul.f32 %v1531, %v1403
        %v1596 = vmul.f32 %v1532, %v1340
        %v1597 = vmul.f32 %v1533, %v1341
        %v1598 = vmul.f32 %v1534, %v1342
        %v1599 = vmul.f32 %v1535, %v1343
        %v1600 = vmul.f32 %v1536, %v1344
        %v1601 = vmul.f32 %v1537, %v1345
        %v1602 = vmul.f32 %v1538, %v1346
        %v1603 = vmul.f32 %v1539, %v1347
        %v1604 = vmul.f32 %v1540, %v1348
        %v1605 = vmul.f32 %v1541, %v1349
        %v1606 = vmul.f32 %v1542, %v1350
        %v1607 = vmul.f32 %v1543, %v1351
        %v1608 = vmul.f32 %v1544, %v1352
        %v1609 = vmul.f32 %v1545, %v1353
        %v1610 = vmul.f32 %v1546, %v1354
        %v1611 = vmul.f32 %v1547, %v1355
        %v1612 = vmul.f32 %v1548, %v1356
        %v1613 = vmul.f32 %v1549, %v1357
        %v1614 = vmul.f32 %v1550, %v1358
        %v1615 = vmul.f32 %v1551, %v1359
        %v1616 = vmul.f32 %v1552, %v1360
        %v1617 = vmul.f32 %v1553, %v1361
        %v1618 = vmul.f32 %v1554, %v1362
        %v1619 = vmul.f32 %v1555, %v1363
        %v1620 = vmul.f32 %v1556, %v1364
        %v1621 = vmul.f32 %v1557, %v1365
        %v1622 = vmul.f32 %v1558, %v1366
        %v1623 = vmul.f32 %v1559, %v1367
        %v1624 = vmul.f32 %v1560, %v1368
        %v1625 = vmul.f32 %v1561, %v1369
        %v1626 = vmul.f32 %v1562, %v1370
        %v1627 = vmul.f32 %v1563, %v1371
        %v1628 = vmul.f32 %v1564, %v1372
        %v1629 = vmul.f32 %v1565, %v1373
        %v1630 = vmul.f32 %v1566, %v1374
        %v1631 = vmul.f32 %v1567, %v1375
        %v1632 = vmul.f32 %v1568, %v1376
        %v1633 = vmul.f32 %v1569, %v1377
        %v1634 = vmul.f32 %v1570, %v1378
        %v1635 = vmul.f32 %v1571, %v1379
        %v1636 = vmul.f32 %v1572, %v1380
        %v1637 = vmul.f32 %v1573, %v1381
        %v1638 = vmul.f32 %v1574, %v1382
        %v1639 = vmul.f32 %v1575, %v1383
        %v1640 = vmul.f32 %v1576, %v1384
        %v1641 = vmul.f32 %v1577, %v1385
        %v1642 = vmul.f32 %v1578, %v1386
        %v1643 = vmul.f32 %v1579, %v1387
        %v1644 = vmul.f32 %v1580, %v1388
        %v1645 = vmul.f32 %v1581, %v1389
        %v1646 = vmul.f32 %v1582, %v1390
        %v1647 = vmul.f32 %v1583, %v1391
        %v1648 = vmul.f32 %v1584, %v1392
        %v1649 = vmul.f32 %v1585, %v1393
        %v1650 = vmul.f32 %v1586, %v1394
        %v1651 = vmul.f32 %v1587, %v1395
        %v1652 = vmul.f32 %v1588, %v1396
        %v1653 = vmul.f32 %v1589, %v1397
        %v1654 = vmul.f32 %v1590, %v1398
        %v1655 = vmul.f32 %v1591, %v1399
        %v1656 = vmul.f32 %v1592, %v1400
        %v1657 = vmul.f32 %v1593, %v1401
        %v1658 = vmul.f32 %v1594, %v1402
        %v1659 = vmul.f32 %v1595, %v1403
        %v1660 = vadd.f32 %v1340, %v1596
        %v1661 = vadd.f32 %v1341, %v1597
        %v1662 = vadd.f32 %v1342, %v1598
        %v1663 = vadd.f32 %v1343, %v1599
        %v1664 = vadd.f32 %v1344, %v1600
        %v1665 = vadd.f32 %v1345, %v1601
        %v1666 = vadd.f32 %v1346, %v1602
        %v1667 = vadd.f32 %v1347, %v1603
        %v1668 = vadd.f32 %v1348, %v1604
        %v1669 = vadd.f32 %v1349, %v1605
        %v1670 = vadd.f32 %v1350, %v1606
        %v1671 = vadd.f32 %v1351, %v1607
        %v1672 = vadd.f32 %v1352, %v1608
        %v1673 = vadd.f32 %v1353, %v1609
        %v1674 = vadd.f32 %v1354, %v1610
        %v1675 = vadd.f32 %v1355, %v1611
        %v1676 = vadd.f32 %v1356, %v1612
        %v1677 = vadd.f32 %v1357, %v1613
        %v1678 = vadd.f32 %v1358, %v1614
        %v1679 = vadd.f32 %v1359, %v1615
        %v1680 = vadd.f32 %v1360, %v1616
        %v1681 = vadd.f32 %v1361, %v1617
        %v1682 = vadd.f32 %v1362, %v1618
        %v1683 = vadd.f32 %v1363, %v1619
        %v1684 = vadd.f32 %v1364, %v1620
        %v1685 = vadd.f32 %v1365, %v1621
        %v1686 = vadd.f32 %v1366, %v1622
        %v1687 = vadd.f32 %v1367, %v1623
        %v1688 = vadd.f32 %v1368, %v1624
        %v1689 = vadd.f32 %v1369, %v1625
        %v1690 = vadd.f32 %v1370, %v1626
        %v1691 = vadd.f32 %v1371, %v1627
        %v1692 = vadd.f32 %v1372, %v1628
        %v1693 = vadd.f32 %v1373, %v1629
        %v1694 = vadd.f32 %v1374, %v1630
        %v1695 = vadd.f32 %v1375, %v1631
        %v1696 = vadd.f32 %v1376, %v1632
        %v1697 = vadd.f32 %v1377, %v1633
        %v1698 = vadd.f32 %v1378, %v1634
        %v1699 = vadd.f32 %v1379, %v1635
        %v1700 = vadd.f32 %v1380, %v1636
        %v1701 = vadd.f32 %v1381, %v1637
        %v1702 = vadd.f32 %v1382, %v1638
        %v1703 = vadd.f32 %v1383, %v1639
        %v1704 = vadd.f32 %v1384, %v1640
        %v1705 = vadd.f32 %v1385, %v1641
        %v1706 = vadd.f32 %v1386, %v1642
        %v1707 = vadd.f32 %v1387, %v1643
        %v1708 = vadd.f32 %v1388, %v1644
        %v1709 = vadd.f32 %v1389, %v1645
        %v1710 = vadd.f32 %v1390, %v1646
        %v1711 = vadd.f32 %v1391, %v1647
        %v1712 = vadd.f32 %v1392, %v1648
        %v1713 = vadd.f32 %v1393, %v1649
        %v1714 = vadd.f32 %v1394, %v1650
        %v1715 = vadd.f32 %v1395, %v1651
        %v1716 = vadd.f32 %v1396, %v1652
        %v1717 = vadd.f32 %v1397, %v1653
        %v1718 = vadd.f32 %v1398, %v1654
        %v1719 = vadd.f32 %v1399, %v1655
        %v1720 = vadd.f32 %v1400, %v1656
        %v1721 = vadd.f32 %v1401, %v1657
        %v1722 = vadd.f32 %v1402, %v1658
        %v1723 = vadd.f32 %v1403, %v1659
        %v1724 = vmul.f32 %v1660, 0.7978846
        %v1725 = vmul.f32 %v1661, 0.7978846
        %v1726 = vmul.f32 %v1662, 0.7978846
        %v1727 = vmul.f32 %v1663, 0.7978846
        %v1728 = vmul.f32 %v1664, 0.7978846
        %v1729 = vmul.f32 %v1665, 0.7978846
        %v1730 = vmul.f32 %v1666, 0.7978846
        %v1731 = vmul.f32 %v1667, 0.7978846
        %v1732 = vmul.f32 %v1668, 0.7978846
        %v1733 = vmul.f32 %v1669, 0.7978846
        %v1734 = vmul.f32 %v1670, 0.7978846
        %v1735 = vmul.f32 %v1671, 0.7978846
        %v1736 = vmul.f32 %v1672, 0.7978846
        %v1737 = vmul.f32 %v1673, 0.7978846
        %v1738 = vmul.f32 %v1674, 0.7978846
        %v1739 = vmul.f32 %v1675, 0.7978846
        %v1740 = vmul.f32 %v1676, 0.7978846
        %v1741 = vmul.f32 %v1677, 0.7978846
        %v1742 = vmul.f32 %v1678, 0.7978846
        %v1743 = vmul.f32 %v1679, 0.7978846
        %v1744 = vmul.f32 %v1680, 0.7978846
        %v1745 = vmul.f32 %v1681, 0.7978846
        %v1746 = vmul.f32 %v1682, 0.7978846
        %v1747 = vmul.f32 %v1683, 0.7978846
        %v1748 = vmul.f32 %v1684, 0.7978846
        %v1749 = vmul.f32 %v1685, 0.7978846
        %v1750 = vmul.f32 %v1686, 0.7978846
        %v1751 = vmul.f32 %v1687, 0.7978846
        %v1752 = vmul.f32 %v1688, 0.7978846
        %v1753 = vmul.f32 %v1689, 0.7978846
        %v1754 = vmul.f32 %v1690, 0.7978846
        %v1755 = vmul.f32 %v1691, 0.7978846
        %v1756 = vmul.f32 %v1692, 0.7978846
        %v1757 = vmul.f32 %v1693, 0.7978846
        %v1758 = vmul.f32 %v1694, 0.7978846
        %v1759 = vmul.f32 %v1695, 0.7978846
        %v1760 = vmul.f32 %v1696, 0.7978846
        %v1761 = vmul.f32 %v1697, 0.7978846
        %v1762 = vmul.f32 %v1698, 0.7978846
        %v1763 = vmul.f32 %v1699, 0.7978846
        %v1764 = vmul.f32 %v1700, 0.7978846
        %v1765 = vmul.f32 %v1701, 0.7978846
        %v1766 = vmul.f32 %v1702, 0.7978846
        %v1767 = vmul.f32 %v1703, 0.7978846
        %v1768 = vmul.f32 %v1704, 0.7978846
        %v1769 = vmul.f32 %v1705, 0.7978846
        %v1770 = vmul.f32 %v1706, 0.7978846
        %v1771 = vmul.f32 %v1707, 0.7978846
        %v1772 = vmul.f32 %v1708, 0.7978846
        %v1773 = vmul.f32 %v1709, 0.7978846
        %v1774 = vmul.f32 %v1710, 0.7978846
        %v1775 = vmul.f32 %v1711, 0.7978846
        %v1776 = vmul.f32 %v1712, 0.7978846
        %v1777 = vmul.f32 %v1713, 0.7978846
        %v1778 = vmul.f32 %v1714, 0.7978846
        %v1779 = vmul.f32 %v1715, 0.7978846
        %v1780 = vmul.f32 %v1716, 0.7978846
        %v1781 = vmul.f32 %v1717, 0.7978846
        %v1782 = vmul.f32 %v1718, 0.7978846
        %v1783 = vmul.f32 %v1719, 0.7978846
        %v1784 = vmul.f32 %v1720, 0.7978846
        %v1785 = vmul.f32 %v1721, 0.7978846
        %v1786 = vmul.f32 %v1722, 0.7978846
        %v1787 = vmul.f32 %v1723, 0.7978846
        %v1788 = vtanh.pop %v1724
        %v1789 = vtanh.pop %v1725
        %v1790 = vtanh.pop %v1726
        %v1791 = vtanh.pop %v1727
        %v1792 = vtanh.pop %v1728
        %v1793 = vtanh.pop %v1729
        %v1794 = vtanh.pop %v1730
        %v1795 = vtanh.pop %v1731
        %v1796 = vtanh.pop %v1732
        %v1797 = vtanh.pop %v1733
        %v1798 = vtanh.pop %v1734
        %v1799 = vtanh.pop %v1735
        %v1800 = vtanh.pop %v1736
        %v1801 = vtanh.pop %v1737
        %v1802 = vtanh.pop %v1738
        %v1803 = vtanh.pop %v1739
        %v1804 = vtanh.pop %v1740
        %v1805 = vtanh.pop %v1741
        %v1806 = vtanh.pop %v1742
        %v1807 = vtanh.pop %v1743
        %v1808 = vtanh.pop %v1744
        %v1809 = vtanh.pop %v1745
        %v1810 = vtanh.pop %v1746
        %v1811 = vtanh.pop %v1747
        %v1812 = vtanh.pop %v1748
        %v1813 = vtanh.pop %v1749
        %v1814 = vtanh.pop %v1750
        %v1815 = vtanh.pop %v1751
        %v1816 = vtanh.pop %v1752
        %v1817 = vtanh.pop %v1753
        %v1818 = vtanh.pop %v1754
        %v1819 = vtanh.pop %v1755
        %v1820 = vtanh.pop %v1756
        %v1821 = vtanh.pop %v1757
        %v1822 = vtanh.pop %v1758
        %v1823 = vtanh.pop %v1759
        %v1824 = vtanh.pop %v1760
        %v1825 = vtanh.pop %v1761
        %v1826 = vtanh.pop %v1762
        %v1827 = vtanh.pop %v1763
        %v1828 = vtanh.pop %v1764
        %v1829 = vtanh.pop %v1765
        %v1830 = vtanh.pop %v1766
        %v1831 = vtanh.pop %v1767
        %v1832 = vtanh.pop %v1768
        %v1833 = vtanh.pop %v1769
        %v1834 = vtanh.pop %v1770
        %v1835 = vtanh.pop %v1771
        %v1836 = vtanh.pop %v1772
        %v1837 = vtanh.pop %v1773
        %v1838 = vtanh.pop %v1774
        %v1839 = vtanh.pop %v1775
        %v1840 = vtanh.pop %v1776
        %v1841 = vtanh.pop %v1777
        %v1842 = vtanh.pop %v1778
        %v1843 = vtanh.pop %v1779
        %v1844 = vtanh.pop %v1780
        %v1845 = vtanh.pop %v1781
        %v1846 = vtanh.pop %v1782
        %v1847 = vtanh.pop %v1783
        %v1848 = vtanh.pop %v1784
        %v1849 = vtanh.pop %v1785
        %v1850 = vtanh.pop %v1786
        %v1851 = vtanh.pop %v1787
        %v1852 = vadd.f32 %v1788, 1.0
        %v1853 = vadd.f32 %v1789, 1.0
        %v1854 = vadd.f32 %v1790, 1.0
        %v1855 = vadd.f32 %v1791, 1.0
        %v1856 = vadd.f32 %v1792, 1.0
        %v1857 = vadd.f32 %v1793, 1.0
        %v1858 = vadd.f32 %v1794, 1.0
        %v1859 = vadd.f32 %v1795, 1.0
        %v1860 = vadd.f32 %v1796, 1.0
        %v1861 = vadd.f32 %v1797, 1.0
        %v1862 = vadd.f32 %v1798, 1.0
        %v1863 = vadd.f32 %v1799, 1.0
        %v1864 = vadd.f32 %v1800, 1.0
        %v1865 = vadd.f32 %v1801, 1.0
        %v1866 = vadd.f32 %v1802, 1.0
        %v1867 = vadd.f32 %v1803, 1.0
        %v1868 = vadd.f32 %v1804, 1.0
        %v1869 = vadd.f32 %v1805, 1.0
        %v1870 = vadd.f32 %v1806, 1.0
        %v1871 = vadd.f32 %v1807, 1.0
        %v1872 = vadd.f32 %v1808, 1.0
        %v1873 = vadd.f32 %v1809, 1.0
        %v1874 = vadd.f32 %v1810, 1.0
        %v1875 = vadd.f32 %v1811, 1.0
        %v1876 = vadd.f32 %v1812, 1.0
        %v1877 = vadd.f32 %v1813, 1.0
        %v1878 = vadd.f32 %v1814, 1.0
        %v1879 = vadd.f32 %v1815, 1.0
        %v1880 = vadd.f32 %v1816, 1.0
        %v1881 = vadd.f32 %v1817, 1.0
        %v1882 = vadd.f32 %v1818, 1.0
        %v1883 = vadd.f32 %v1819, 1.0
        %v1884 = vadd.f32 %v1820, 1.0
        %v1885 = vadd.f32 %v1821, 1.0
        %v1886 = vadd.f32 %v1822, 1.0
        %v1887 = vadd.f32 %v1823, 1.0
        %v1888 = vadd.f32 %v1824, 1.0
        %v1889 = vadd.f32 %v1825, 1.0
        %v1890 = vadd.f32 %v1826, 1.0
        %v1891 = vadd.f32 %v1827, 1.0
        %v1892 = vadd.f32 %v1828, 1.0
        %v1893 = vadd.f32 %v1829, 1.0
        %v1894 = vadd.f32 %v1830, 1.0
        %v1895 = vadd.f32 %v1831, 1.0
        %v1896 = vadd.f32 %v1832, 1.0
        %v1897 = vadd.f32 %v1833, 1.0
        %v1898 = vadd.f32 %v1834, 1.0
        %v1899 = vadd.f32 %v1835, 1.0
        %v1900 = vadd.f32 %v1836, 1.0
        %v1901 = vadd.f32 %v1837, 1.0
        %v1902 = vadd.f32 %v1838, 1.0
        %v1903 = vadd.f32 %v1839, 1.0
        %v1904 = vadd.f32 %v1840, 1.0
        %v1905 = vadd.f32 %v1841, 1.0
        %v1906 = vadd.f32 %v1842, 1.0
        %v1907 = vadd.f32 %v1843, 1.0
        %v1908 = vadd.f32 %v1844, 1.0
        %v1909 = vadd.f32 %v1845, 1.0
        %v1910 = vadd.f32 %v1846, 1.0
        %v1911 = vadd.f32 %v1847, 1.0
        %v1912 = vadd.f32 %v1848, 1.0
        %v1913 = vadd.f32 %v1849, 1.0
        %v1914 = vadd.f32 %v1850, 1.0
        %v1915 = vadd.f32 %v1851, 1.0
        %v1916 = vmul.f32 %v1404, %v1852
        %v1917 = vmul.f32 %v1405, %v1853
        %v1918 = vmul.f32 %v1406, %v1854
        %v1919 = vmul.f32 %v1407, %v1855
        %v1920 = vmul.f32 %v1408, %v1856
        %v1921 = vmul.f32 %v1409, %v1857
        %v1922 = vmul.f32 %v1410, %v1858
        %v1923 = vmul.f32 %v1411, %v1859
        %v1924 = vmul.f32 %v1412, %v1860
        %v1925 = vmul.f32 %v1413, %v1861
        %v1926 = vmul.f32 %v1414, %v1862
        %v1927 = vmul.f32 %v1415, %v1863
        %v1928 = vmul.f32 %v1416, %v1864
        %v1929 = vmul.f32 %v1417, %v1865
        %v1930 = vmul.f32 %v1418, %v1866
        %v1931 = vmul.f32 %v1419, %v1867
        %v1932 = vmul.f32 %v1420, %v1868
        %v1933 = vmul.f32 %v1421, %v1869
        %v1934 = vmul.f32 %v1422, %v1870
        %v1935 = vmul.f32 %v1423, %v1871
        %v1936 = vmul.f32 %v1424, %v1872
        %v1937 = vmul.f32 %v1425, %v1873
        %v1938 = vmul.f32 %v1426, %v1874
        %v1939 = vmul.f32 %v1427, %v1875
        %v1940 = vmul.f32 %v1428, %v1876
        %v1941 = vmul.f32 %v1429, %v1877
        %v1942 = vmul.f32 %v1430, %v1878
        %v1943 = vmul.f32 %v1431, %v1879
        %v1944 = vmul.f32 %v1432, %v1880
        %v1945 = vmul.f32 %v1433, %v1881
        %v1946 = vmul.f32 %v1434, %v1882
        %v1947 = vmul.f32 %v1435, %v1883
        %v1948 = vmul.f32 %v1436, %v1884
        %v1949 = vmul.f32 %v1437, %v1885
        %v1950 = vmul.f32 %v1438, %v1886
        %v1951 = vmul.f32 %v1439, %v1887
        %v1952 = vmul.f32 %v1440, %v1888
        %v1953 = vmul.f32 %v1441, %v1889
        %v1954 = vmul.f32 %v1442, %v1890
        %v1955 = vmul.f32 %v1443, %v1891
        %v1956 = vmul.f32 %v1444, %v1892
        %v1957 = vmul.f32 %v1445, %v1893
        %v1958 = vmul.f32 %v1446, %v1894
        %v1959 = vmul.f32 %v1447, %v1895
        %v1960 = vmul.f32 %v1448, %v1896
        %v1961 = vmul.f32 %v1449, %v1897
        %v1962 = vmul.f32 %v1450, %v1898
        %v1963 = vmul.f32 %v1451, %v1899
        %v1964 = vmul.f32 %v1452, %v1900
        %v1965 = vmul.f32 %v1453, %v1901
        %v1966 = vmul.f32 %v1454, %v1902
        %v1967 = vmul.f32 %v1455, %v1903
        %v1968 = vmul.f32 %v1456, %v1904
        %v1969 = vmul.f32 %v1457, %v1905
        %v1970 = vmul.f32 %v1458, %v1906
        %v1971 = vmul.f32 %v1459, %v1907
        %v1972 = vmul.f32 %v1460, %v1908
        %v1973 = vmul.f32 %v1461, %v1909
        %v1974 = vmul.f32 %v1462, %v1910
        %v1975 = vmul.f32 %v1463, %v1911
        %v1976 = vmul.f32 %v1464, %v1912
        %v1977 = vmul.f32 %v1465, %v1913
        %v1978 = vmul.f32 %v1466, %v1914
        %v1979 = vmul.f32 %v1467, %v1915
        %v1980 = vpack.c.bf16 %v1920, %v1916
        %v1981 = vpack.c.bf16 %v1921, %v1917
        %v1982 = vpack.c.bf16 %v1922, %v1918
        %v1983 = vpack.c.bf16 %v1923, %v1919
        %v1984 = vpack.c.bf16 %v1928, %v1924
        %v1985 = vpack.c.bf16 %v1929, %v1925
        %v1986 = vpack.c.bf16 %v1930, %v1926
        %v1987 = vpack.c.bf16 %v1931, %v1927
        %v1988 = vpack.c.bf16 %v1936, %v1932
        %v1989 = vpack.c.bf16 %v1937, %v1933
        %v1990 = vpack.c.bf16 %v1938, %v1934
        %v1991 = vpack.c.bf16 %v1939, %v1935
        %v1992 = vpack.c.bf16 %v1944, %v1940
        %v1993 = vpack.c.bf16 %v1945, %v1941
        %v1994 = vpack.c.bf16 %v1946, %v1942
        %v1995 = vpack.c.bf16 %v1947, %v1943
        %v1996 = vpack.c.bf16 %v1952, %v1948
        %v1997 = vpack.c.bf16 %v1953, %v1949
        %v1998 = vpack.c.bf16 %v1954, %v1950
        %v1999 = vpack.c.bf16 %v1955, %v1951
        %v2000 = vpack.c.bf16 %v1960, %v1956
        %v2001 = vpack.c.bf16 %v1961, %v1957
        %v2002 = vpack.c.bf16 %v1962, %v1958
        %v2003 = vpack.c.bf16 %v1963, %v1959
        %v2004 = vpack.c.bf16 %v1968, %v1964
        %v2005 = vpack.c.bf16 %v1969, %v1965
        %v2006 = vpack.c.bf16 %v1970, %v1966
        %v2007 = vpack.c.bf16 %v1971, %v1967
        %v2008 = vpack.c.bf16 %v1976, %v1972
        %v2009 = vpack.c.bf16 %v1977, %v1973
        %v2010 = vpack.c.bf16 %v1978, %v1974
        %v2011 = vpack.c.bf16 %v1979, %v1975
        %v2044 = vunpack.c.l.b16 %v1980
        %v2045 = vunpack.c.l.b16 %v1981
        %v2046 = vunpack.c.l.b16 %v1982
        %v2047 = vunpack.c.l.b16 %v1983
        %v2048 = vunpack.c.h.b16 %v1980
        %v2049 = vunpack.c.h.b16 %v1981
        %v2050 = vunpack.c.h.b16 %v1982
        %v2051 = vunpack.c.h.b16 %v1983
        %v2052 = vunpack.c.l.b16 %v1984
        %v2053 = vunpack.c.l.b16 %v1985
        %v2054 = vunpack.c.l.b16 %v1986
        %v2055 = vunpack.c.l.b16 %v1987
        %v2056 = vunpack.c.h.b16 %v1984
        %v2057 = vunpack.c.h.b16 %v1985
        %v2058 = vunpack.c.h.b16 %v1986
        %v2059 = vunpack.c.h.b16 %v1987
        %v2060 = vunpack.c.l.b16 %v1988
        %v2061 = vunpack.c.l.b16 %v1989
        %v2062 = vunpack.c.l.b16 %v1990
        %v2063 = vunpack.c.l.b16 %v1991
        %v2064 = vunpack.c.h.b16 %v1988
        %v2065 = vunpack.c.h.b16 %v1989
        %v2066 = vunpack.c.h.b16 %v1990
        %v2067 = vunpack.c.h.b16 %v1991
        %v2068 = vunpack.c.l.b16 %v1992
        %v2069 = vunpack.c.l.b16 %v1993
        %v2070 = vunpack.c.l.b16 %v1994
        %v2071 = vunpack.c.l.b16 %v1995
        %v2072 = vunpack.c.h.b16 %v1992
        %v2073 = vunpack.c.h.b16 %v1993
        %v2074 = vunpack.c.h.b16 %v1994
        %v2075 = vunpack.c.h.b16 %v1995
        %v2076 = vunpack.c.l.b16 %v1996
        %v2077 = vunpack.c.l.b16 %v1997
        %v2078 = vunpack.c.l.b16 %v1998
        %v2079 = vunpack.c.l.b16 %v1999
        %v2080 = vunpack.c.h.b16 %v1996
        %v2081 = vunpack.c.h.b16 %v1997
        %v2082 = vunpack.c.h.b16 %v1998
        %v2083 = vunpack.c.h.b16 %v1999
        %v2084 = vunpack.c.l.b16 %v2000
        %v2085 = vunpack.c.l.b16 %v2001
        %v2086 = vunpack.c.l.b16 %v2002
        %v2087 = vunpack.c.l.b16 %v2003
        %v2088 = vunpack.c.h.b16 %v2000
        %v2089 = vunpack.c.h.b16 %v2001
        %v2090 = vunpack.c.h.b16 %v2002
        %v2091 = vunpack.c.h.b16 %v2003
        %v2092 = vunpack.c.l.b16 %v2004
        %v2093 = vunpack.c.l.b16 %v2005
        %v2094 = vunpack.c.l.b16 %v2006
        %v2095 = vunpack.c.l.b16 %v2007
        %v2096 = vunpack.c.h.b16 %v2004
        %v2097 = vunpack.c.h.b16 %v2005
        %v2098 = vunpack.c.h.b16 %v2006
        %v2099 = vunpack.c.h.b16 %v2007
        %v2100 = vunpack.c.l.b16 %v2008
        %v2101 = vunpack.c.l.b16 %v2009
        %v2102 = vunpack.c.l.b16 %v2010
        %v2103 = vunpack.c.l.b16 %v2011
        %v2104 = vunpack.c.h.b16 %v2008
        %v2105 = vunpack.c.h.b16 %v2009
        %v2106 = vunpack.c.h.b16 %v2010
        %v2107 = vunpack.c.h.b16 %v2011
        %v2108 = vpack.c.b16 %v2045, %v2044
        %v2109 = vpack.c.b16 %v2047, %v2046
        %v2110 = vpack.c.b16 %v2049, %v2048
        %v2111 = vpack.c.b16 %v2051, %v2050
        %v2112 = vpack.c.b16 %v2053, %v2052
        %v2113 = vpack.c.b16 %v2055, %v2054
        %v2114 = vpack.c.b16 %v2057, %v2056
        %v2115 = vpack.c.b16 %v2059, %v2058
        %v2116 = vpack.c.b16 %v2061, %v2060
        %v2117 = vpack.c.b16 %v2063, %v2062
        %v2118 = vpack.c.b16 %v2065, %v2064
        %v2119 = vpack.c.b16 %v2067, %v2066
        %v2120 = vpack.c.b16 %v2069, %v2068
        %v2121 = vpack.c.b16 %v2071, %v2070
        %v2122 = vpack.c.b16 %v2073, %v2072
        %v2123 = vpack.c.b16 %v2075, %v2074
        %v2124 = vpack.c.b16 %v2077, %v2076
        %v2125 = vpack.c.b16 %v2079, %v2078
        %v2126 = vpack.c.b16 %v2081, %v2080
        %v2127 = vpack.c.b16 %v2083, %v2082
        %v2128 = vpack.c.b16 %v2085, %v2084
        %v2129 = vpack.c.b16 %v2087, %v2086
        %v2130 = vpack.c.b16 %v2089, %v2088
        %v2131 = vpack.c.b16 %v2091, %v2090
        %v2132 = vpack.c.b16 %v2093, %v2092
        %v2133 = vpack.c.b16 %v2095, %v2094
        %v2134 = vpack.c.b16 %v2097, %v2096
        %v2135 = vpack.c.b16 %v2099, %v2098
        %v2136 = vpack.c.b16 %v2101, %v2100
        %v2137 = vpack.c.b16 %v2103, %v2102
        %v2138 = vpack.c.b16 %v2105, %v2104
        %v2139 = vpack.c.b16 %v2107, %v2106
        %2172 = vst [vmem:[%s282] sm:$0xff] %v2108
        %2173 = vst [vmem:[%s282 + $0x8] sm:$0xff] %v2109
        %2174 = vst [vmem:[%s282 + $0x10] sm:$0xff] %v2110
        %2175 = vst [vmem:[%s282 + $0x18] sm:$0xff] %v2111
        %2176 = vst [vmem:[%s282 + $0x20] sm:$0xff] %v2112
        %2177 = vst [vmem:[%s282 + $0x28] sm:$0xff] %v2113
        %2178 = vst [vmem:[%s282 + $0x30] sm:$0xff] %v2114
        %2179 = vst [vmem:[%s282 + $0x38] sm:$0xff] %v2115
        %2180 = vst [vmem:[%s282 + $0x40] sm:$0xff] %v2116
        %2181 = vst [vmem:[%s282 + $0x48] sm:$0xff] %v2117
        %2182 = vst [vmem:[%s282 + $0x50] sm:$0xff] %v2118
        %2183 = vst [vmem:[%s282 + $0x58] sm:$0xff] %v2119
        %2184 = vst [vmem:[%s282 + $0x60] sm:$0xff] %v2120
        %2185 = vst [vmem:[%s282 + $0x68] sm:$0xff] %v2121
        %2186 = vst [vmem:[%s282 + $0x70] sm:$0xff] %v2122
        %2187 = vst [vmem:[%s282 + $0x78] sm:$0xff] %v2123
        %2188 = vst [vmem:[%s282 + $0x80] sm:$0xff] %v2124
        %2189 = vst [vmem:[%s282 + $0x88] sm:$0xff] %v2125
        %2190 = vst [vmem:[%s282 + $0x90] sm:$0xff] %v2126
        %2191 = vst [vmem:[%s282 + $0x98] sm:$0xff] %v2127
        %2192 = vst [vmem:[%s282 + $0xa0] sm:$0xff] %v2128
        %2193 = vst [vmem:[%s282 + $0xa8] sm:$0xff] %v2129
        %2194 = vst [vmem:[%s282 + $0xb0] sm:$0xff] %v2130
        %2195 = vst [vmem:[%s282 + $0xb8] sm:$0xff] %v2131
        %2196 = vst [vmem:[%s282 + $0xc0] sm:$0xff] %v2132
        %2197 = vst [vmem:[%s282 + $0xc8] sm:$0xff] %v2133
        %2198 = vst [vmem:[%s282 + $0xd0] sm:$0xff] %v2134
        %2199 = vst [vmem:[%s282 + $0xd8] sm:$0xff] %v2135
        %2200 = vst [vmem:[%s282 + $0xe0] sm:$0xff] %v2136
        %2201 = vst [vmem:[%s282 + $0xe8] sm:$0xff] %v2137
        %2202 = vst [vmem:[%s282 + $0xf0] sm:$0xff] %v2138
        %2203 = vst [vmem:[%s282 + $0xf8] sm:$0xff] %v2139
      $region40: #{bert_encoder_forward.16} parent=31 // pred_fallthru
        _
      %s2204 = smul.u32 16, %s19
      %s2205 = smul.u32 4, %s20
      %p2206 = scmp.lt.s32.totalorder %s2204, 31
      %s2207 = scalar_select %p2206, %s2204, 31
      %p2208 = scmp.lt.s32.totalorder %s2205, 3
      %s2209 = scalar_select %p2208, %s2205, 3
      %s2210 = smul.addr %s2207, 4
      %s2211 = sadd.s32 %s2209, %s2210
      %s2212 = smul.addr %s2211, 4
      %s2213 = scalar_lea.vmem %s3, %s2212
      // Predicated region
      $region41: #{bert_encoder_forward.16} parent=31 // pred_check
        %p2214 = pneg %p135
      $region42: #{bert_encoder_forward.16} parent=31 // pred_check_branch
        %2216 = sbr.rel (%p2214) target = $region44
      $region43: #{bert_encoder_forward.16} parent=31 // pred_region
        %s2217 = smul.u32 16, %s19
        %s2218 = smul.u32 4, %s20
      $region44: #{bert_encoder_forward.16} parent=31 // pred_fallthru
        _
    $region32: #{bert_encoder_forward.16} parent=5 // pred_fallthru
      _
    %p2219 = scmp.le.s32.totalorder 2, %s9
    // Predicated region
    $region45: #{bert_encoder_forward.16} parent=5 // pred_check
      %p2220 = pneg %p2219
    $region46: #{bert_encoder_forward.16} parent=5 // pred_check_branch
      %2222 = sbr.rel (%p2220) target = $region48
    $region47: #{bert_encoder_forward.16} parent=5 // pred_region
      %s2223 = ssub.s32 %s9, 2
      // Predicated region
      $region49: #{bert_encoder_forward.16} parent=47 // pred_check
        %p2224 = pneg %p141
      $region50: #{bert_encoder_forward.16} parent=47 // pred_check_branch
        %2226 = sbr.rel (%p2224) target = $region52
      $region51: #{bert_encoder_forward.16} parent=47 // pred_region
        %s2227 = smul.u32 16, %s22
        %s2228 = smul.u32 4, %s23
        %p2229 = scmp.lt.s32.totalorder %s2227, 31
        %s2230 = scalar_select %p2229, %s2227, 31
        %p2231 = scmp.lt.s32.totalorder %s2228, 3
        %s2232 = scalar_select %p2231, %s2228, 3
        %s2233 = smul.addr %s2230, 4
        %s2234 = sadd.s32 %s2232, %s2233
        %s2235 = smul.addr %s2234, 4
        %s2236 = scalar_lea.vmem %s3, %s2235
      $region52: #{bert_encoder_forward.16} parent=47 // pred_fallthru
        _
    $region48: #{bert_encoder_forward.16} parent=5 // pred_fallthru
      _
  $region6: #{bert_encoder_forward.16} parent=0 // loop_footer
    %s13 = sadd.s32 1, %s9
  $region7: #{bert_encoder_forward.16} parent=0 // loop_footer_branch
    %8 = sbr.rel target = $region3
  $region8: #{bert_encoder_forward.16} parent=0 // loop_exit
    _

</llo_original>
